<compile_context>
chip_gen: v5e
topology: v5e:2x2
jax: 0.10.0
libtpu: 0.0.40
codegen_flags: <defaults>
</compile_context>

<pallas_src>
import functools

import jax
import jax.numpy as jnp
import numpy as np
from jax.experimental import pallas as pl
from jax.experimental.pallas import tpu as pltpu


# ----------------------------------------------------------------------------
# Fused LSTM-layer + ELMo-mix kernel.
#
# Grid iterates over time chunks; h/c carries persist in VMEM scratch.
# Per chunk:
#   gates_in = x_chunk @ W_ih + b        (one big MXU GEMM, M = T*B)
#   for tau in chunk (unrolled):
#       gates = gates_in[tau] + h @ W_hh
#       i, f, g, o = sigmoid/tanh(gates)     (PyTorch gate order i, f, g, o)
#       c = f*c + i*g ; h = o*tanh(c)
#       h_out[tau]   = h
#       acc_out[tau] = acc_in[tau] + nw_l * h      (fused ELMo layer mix)
# ----------------------------------------------------------------------------
def _lstm_mix_kernel(nw_ref, x_ref, wih_ref, whh_ref, b_ref, acc_in_ref,
                     h_out_ref, acc_out_ref, h_scr, c_scr, *,
                     seq_chunk, batch):
    @pl.when(pl.program_id(0) == 0)
    def _():
        h_scr[...] = jnp.zeros_like(h_scr)
        c_scr[...] = jnp.zeros_like(c_scr)

    H = h_scr.shape[-1]
    T, Bp = seq_chunk, batch
    nw = nw_ref[0]

    # Hoisted input projection: one (T*B, D_in) @ (D_in, 4H) GEMM per chunk.
    gates_in = (
        jnp.dot(x_ref[...], wih_ref[...], preferred_element_type=jnp.float32)
        + b_ref[...]
    )                                                       # (T*B, 4H)
    w_hh = whh_ref[...]                                     # (H, 4H)

    h = h_scr[...]
    c = c_scr[...]
    # Fully unrolled serial recurrence; only the small recurrent matmul and
    # the gate math are inside the per-timestep loop.
    for tau in range(T):
        r0 = tau * Bp                                       # Bp % 8 == 0 -> aligned
        gates = gates_in[r0:r0 + Bp, :] + jnp.dot(
            h, w_hh, preferred_element_type=jnp.float32)    # (Bp, 4H)
        i_g = jax.nn.sigmoid(gates[:, 0 * H:1 * H])
        f_g = jax.nn.sigmoid(gates[:, 1 * H:2 * H])
        g_g = jnp.tanh(gates[:, 2 * H:3 * H])
        o_g = jax.nn.sigmoid(gates[:, 3 * H:4 * H])
        c = f_g * c + i_g * g_g
        h = o_g * jnp.tanh(c)
        h_out_ref[r0:r0 + Bp, :] = h.astype(h_out_ref.dtype)
        acc_out_ref[r0:r0 + Bp, :] = (
            acc_in_ref[r0:r0 + Bp, :] + nw * h
        ).astype(acc_out_ref.dtype)

    h_scr[...] = h
    c_scr[...] = c


def lstm_mix_layer(x2d, w_ih, w_hh, b, nw_l, acc2d, *, seq_chunk, batch):
    """One ELMo LSTM layer with fused layer mixing.

    x2d:   (S*B, D_in) f32, time-major rows (row = t*B + b)
    w_ih:  (D_in, 4H);  w_hh: (H, 4H);  b: (1, 4H)  (b_ih + b_hh folded)
    nw_l:  (1,) f32  — this layer's gamma*softmax(weight_list) coefficient
    acc2d: (S*B, H) f32 running ELMo accumulator
    Returns (h2d, new_acc2d), each (S*B, H) f32.
    """
    M, D_in = x2d.shape
    H = w_hh.shape[0]
    rows = seq_chunk * batch
    assert M % rows == 0
    n_chunks = M // rows

    kernel = functools.partial(_lstm_mix_kernel,
                               seq_chunk=seq_chunk, batch=batch)
    return pl.pallas_call(
        kernel,
        out_shape=(
            jax.ShapeDtypeStruct((M, H), jnp.float32),   # layer output h
            jax.ShapeDtypeStruct((M, H), jnp.float32),   # updated accumulator
        ),
        grid_spec=pltpu.PrefetchScalarGridSpec(
            num_scalar_prefetch=0,
            grid=(n_chunks,),
            in_specs=[
                pl.BlockSpec(memory_space=pltpu.MemorySpace.SMEM),  # nw (1,)
                pl.BlockSpec((rows, D_in), lambda t: (t, 0)),       # x chunk
                pl.BlockSpec((D_in, 4 * H), lambda t: (0, 0)),      # w_ih (const)
                pl.BlockSpec((H, 4 * H), lambda t: (0, 0)),         # w_hh (const)
                pl.BlockSpec((1, 4 * H), lambda t: (0, 0)),         # bias
                pl.BlockSpec((rows, H), lambda t: (t, 0)),          # acc in
            ],
            out_specs=(
                pl.BlockSpec((rows, H), lambda t: (t, 0)),
                pl.BlockSpec((rows, H), lambda t: (t, 0)),
            ),
            scratch_shapes=[
                pltpu.VMEM((batch, H), jnp.float32),   # h carry
                pltpu.VMEM((batch, H), jnp.float32),   # c carry
            ],
        ),
        compiler_params=pltpu.CompilerParams(
            dimension_semantics=("arbitrary",),        # sequential recurrence
        ),
    )(nw_l, x2d, w_ih, w_hh, b, acc2d)


# ----------------------------------------------------------------------------
# ElmoLM forward (glue around the fused layer kernels)
# ----------------------------------------------------------------------------
@functools.partial(jax.jit, static_argnames=("backward",))
def elmo_lm_forward(params, w_in, ind=None, backward=False):
    S, B = w_in.shape
    H = params["lstm"][0][1].shape[0]

    # word_embed(w_in): embedding gather (glue).
    w_emb = jnp.take(params["embed"], w_in, axis=0)          # (S, B, w_dim)

    # Pad batch to a sublane multiple (>= 8) and seq to a multiple of the
    # time-chunk; padded rows compute throwaway values (LSTM is causal in
    # time, independent across batch) and are sliced off at the end.
    T = max(1, min(16, S))
    Sp = -(-S // T) * T
    Bp = max(8, -(-B // 8) * 8)
    w_emb = jnp.pad(w_emb, ((0, Sp - S), (0, Bp - B), (0, 0)))
    x2d = w_emb.reshape(Sp * Bp, -1)                         # (Sp*Bp, w_dim)

    # ERNN: gamma * softmax(weight_list), layer mix fused into the kernels.
    nw = params["gamma"] * jax.nn.softmax(params["weight_list"])   # (L,)
    acc = jnp.zeros((Sp * Bp, H), jnp.float32)
    for l, (w_ih, w_hh, b) in enumerate(params["lstm"]):
        x2d, acc = lstm_mix_layer(x2d, w_ih, w_hh, b, nw[l:l + 1], acc,
                                  seq_chunk=T, batch=Bp)

    out = acc.reshape(Sp, Bp, H)[:S, :B, :]                  # (S, B, H)

    if backward:
        # out.view(S*B, H).index_select(0, ind).view(S, B, H)   (glue)
        out = jnp.take(out.reshape(S * B, H), ind.reshape(-1), axis=0)
        out = out.reshape(S, B, H)
    return out


# ----------------------------------------------------------------------------
# Pure-JAX reference (matches the PyTorch semantics) for validation.
# ----------------------------------------------------------------------------
def elmo_lm_reference(params, w_in, ind=None, backward=False):
    w_emb = jnp.take(params["embed"], w_in, axis=0)
    nw = params["gamma"] * jax.nn.softmax(params["weight_list"])
    x = w_emb
    H = params["lstm"][0][1].shape[0]
    out = jnp.zeros(w_emb.shape[:2] + (H,), jnp.float32)
    for l, (w_ih, w_hh, b) in enumerate(params["lstm"]):
        B = x.shape[1]

        def step(carry, x_t, w_ih=w_ih, w_hh=w_hh, b=b):
            h, c = carry
            gates = x_t @ w_ih + h @ w_hh + b
            i_g = jax.nn.sigmoid(gates[:, 0 * H:1 * H])
            f_g = jax.nn.sigmoid(gates[:, 1 * H:2 * H])
            g_g = jnp.tanh(gates[:, 2 * H:3 * H])
            o_g = jax.nn.sigmoid(gates[:, 3 * H:4 * H])
            c = f_g * c + i_g * g_g
            h = o_g * jnp.tanh(c)
            return (h, c), h

        h0 = jnp.zeros((B, H), jnp.float32)
        (_, _), hs = jax.lax.scan(step, (h0, h0), x)
        x = hs
        out = out + nw[l] * x
    if backward:
        S, B, _ = out.shape
        out = jnp.take(out.reshape(S * B, H), ind.reshape(-1), axis=0)
        out = out.reshape(S, B, H)
    return out


def make_params(key, w_num, w_dim, hidden, num_layers):
    keys = jax.random.split(key, 1 + 3 * num_layers)
    embed = 0.1 * jax.random.normal(keys[0], (w_num, w_dim), jnp.float32)
    lstm = []
    d_in = w_dim
    for l in range(num_layers):
        k_ih, k_hh, k_b = keys[1 + 3 * l:4 + 3 * l]
        w_ih = 0.1 * jax.random.normal(k_ih, (d_in, 4 * hidden), jnp.float32)
        w_hh = 0.1 * jax.random.normal(k_hh, (hidden, 4 * hidden), jnp.float32)
        # PyTorch LSTM has b_ih + b_hh; fold into one (1, 4H) bias.
        b = 0.1 * jax.random.normal(k_b, (1, 4 * hidden), jnp.float32)
        lstm.append((w_ih, w_hh, b))
        d_in = hidden
    return {
        "embed": embed,
        "lstm": lstm,
        # ERNN.__init__: gamma = 1.0, weight_list = zeros(num_layers)
        "gamma": jnp.float32(1.0),
        "weight_list": jnp.zeros((num_layers,), jnp.float32),
    }


if __name__ == "__main__":
    # small shapes: seq=16, batch=8, vocab=50, w_dim=64, hidden=128, 2 layers
    # (H = 128 keeps gate slices lane-aligned; B = 8 fills sublanes).
    S, B = 16, 8
    W_NUM, W_DIM, HIDDEN, L = 50, 64, 128, 2

    key = jax.random.PRNGKey(0)
    k_params, k_w = jax.random.split(key)
    params = make_params(k_params, W_NUM, W_DIM, HIDDEN, L)

    w_in = jax.random.randint(k_w, (S, B), 0, W_NUM, dtype=jnp.int32)
    # backward LM index: reverse the sequence per batch element on the
    # flattened (S*B) axis, as in the original index_select usage.
    s_idx = jnp.arange(S)[:, None]
    b_idx = jnp.arange(B)[None, :]
    ind = ((S - 1 - s_idx) * B + b_idx).astype(jnp.int32)      # (S, B)

    out_fwd = elmo_lm_forward(params, w_in, backward=False)
    out_bwd = elmo_lm_forward(params, w_in, ind=ind, backward=True)
    jax.block_until_ready(out_fwd)
    jax.block_until_ready(out_bwd)

    assert out_fwd.shape == (S, B, HIDDEN)
    assert out_bwd.shape == (S, B, HIDDEN)

    ref_fwd = elmo_lm_reference(params, w_in, backward=False)
    ref_bwd = elmo_lm_reference(params, w_in, ind=ind, backward=True)
    np.testing.assert_allclose(np.asarray(out_fwd), np.asarray(ref_fwd),
                               rtol=1e-2, atol=1e-2)
    np.testing.assert_allclose(np.asarray(out_bwd), np.asarray(ref_bwd),
                               rtol=1e-2, atol=1e-2)

    print("KERNEL_OK")
</pallas_src>

<mosaic_0001>
module attributes {stable_mosaic.version = 11 : i64} {
  func.func @_lstm_mix_kernel(%arg0: i32, %arg1: memref<1xf32, #tpu.memory_space<smem>>, %arg2: memref<128x64xf32, #tpu.memory_space<vmem>>, %arg3: memref<64x512xf32, #tpu.memory_space<vmem>>, %arg4: memref<128x512xf32, #tpu.memory_space<vmem>>, %arg5: memref<1x512xf32, #tpu.memory_space<vmem>>, %arg6: memref<128x128xf32, #tpu.memory_space<vmem>>, %arg7: memref<128x128xf32, #tpu.memory_space<vmem>>, %arg8: memref<128x128xf32, #tpu.memory_space<vmem>>, %arg9: memref<8x128xf32, #tpu.memory_space<vmem>>, %arg10: memref<8x128xf32, #tpu.memory_space<vmem>>) attributes {dimension_semantics = [#tpu.dimension_semantics<arbitrary>], iteration_bounds = array<i64: 1>, scalar_prefetch = 0 : i64, scratch_operands = 2 : i64, tpu.core_type = #tpu.core_type<tc>, window_params = [{transform_indices = @transform_0, window_bounds = array<i64: 1>}, {transform_indices = @transform_1, window_bounds = array<i64: 128, 64>}, {pipeline_mode = #tpu.pipeline_mode<synchronous>, transform_indices = @transform_2, window_bounds = array<i64: 64, 512>}, {pipeline_mode = #tpu.pipeline_mode<synchronous>, transform_indices = @transform_3, window_bounds = array<i64: 128, 512>}, {pipeline_mode = #tpu.pipeline_mode<synchronous>, transform_indices = @transform_4, window_bounds = array<i64: 1, 512>}, {transform_indices = @transform_5, window_bounds = array<i64: 128, 128>}, {transform_indices = @transform_6, window_bounds = array<i64: 128, 128>}, {transform_indices = @transform_7, window_bounds = array<i64: 128, 128>}]} {
    %c0_i32 = arith.constant 0 : i32
    %0 = arith.cmpi eq, %arg0, %c0_i32 : i32
    %1 = arith.extui %0 : i1 to i32
    %c0_i32_0 = arith.constant 0 : i32
    %2 = arith.cmpi ne, %1, %c0_i32_0 : i32
    scf.if %2 {
      %cst_162 = arith.constant 0.000000e+00 : f32
      %559 = vector.broadcast %cst_162 : f32 to vector<8x128xf32>
      %c0_163 = arith.constant 0 : index
      %c0_164 = arith.constant 0 : index
      %560 = vector.load %arg9[%c0_163, %c0_164] : memref<8x128xf32, #tpu.memory_space<vmem>>, vector<8x128xf32>
      tpu.vector_store %arg9[%c0_163, %c0_164], %559 {strides = array<i32>} : memref<8x128xf32, #tpu.memory_space<vmem>>, vector<8x128xf32>,
      %cst_165 = arith.constant 0.000000e+00 : f32
      %561 = vector.broadcast %cst_165 : f32 to vector<8x128xf32>
      %c0_166 = arith.constant 0 : index
      %c0_167 = arith.constant 0 : index
      %562 = vector.load %arg10[%c0_166, %c0_167] : memref<8x128xf32, #tpu.memory_space<vmem>>, vector<8x128xf32>
      tpu.vector_store %arg10[%c0_166, %c0_167], %561 {strides = array<i32>} : memref<8x128xf32, #tpu.memory_space<vmem>>, vector<8x128xf32>,
    } else {
    }
    %c0 = arith.constant 0 : index
    %3 = memref.load %arg1[%c0] : memref<1xf32, #tpu.memory_space<smem>>
    %c0_1 = arith.constant 0 : index
    %c0_2 = arith.constant 0 : index
    %4 = vector.load %arg2[%c0_1, %c0_2] : memref<128x64xf32, #tpu.memory_space<vmem>>, vector<128x64xf32>
    %c0_3 = arith.constant 0 : index
    %c0_4 = arith.constant 0 : index
    %5 = vector.load %arg3[%c0_3, %c0_4] : memref<64x512xf32, #tpu.memory_space<vmem>>, vector<64x512xf32>
    %cst = arith.constant dense<0.000000e+00> : vector<128x512xf32>
    %6 = tpu.matmul %4, %5, %cst {dimension_numbers = #tpu.dot_dimension_numbers<[1], [0], [0], [1], [0, 0, 1, 1], [], []>} : vector<128x64xf32>, vector<64x512xf32>, vector<128x512xf32> -> vector<128x512xf32>
    %c0_5 = arith.constant 0 : index
    %c0_6 = arith.constant 0 : index
    %7 = vector.load %arg5[%c0_5, %c0_6] : memref<1x512xf32, #tpu.memory_space<vmem>>, vector<1x512xf32>
    %8 = vector.broadcast %7 : vector<1x512xf32> to vector<128x512xf32>
    %9 = arith.addf %6, %8 : vector<128x512xf32>
    %c0_7 = arith.constant 0 : index
    %c0_8 = arith.constant 0 : index
    %10 = vector.load %arg4[%c0_7, %c0_8] : memref<128x512xf32, #tpu.memory_space<vmem>>, vector<128x512xf32>
    %c0_9 = arith.constant 0 : index
    %c0_10 = arith.constant 0 : index
    %11 = vector.load %arg9[%c0_9, %c0_10] : memref<8x128xf32, #tpu.memory_space<vmem>>, vector<8x128xf32>
    %c0_11 = arith.constant 0 : index
    %c0_12 = arith.constant 0 : index
    %12 = vector.load %arg10[%c0_11, %c0_12] : memref<8x128xf32, #tpu.memory_space<vmem>>, vector<8x128xf32>
    %13 = vector.extract_strided_slice %9 {offsets = [0, 0], sizes = [8, 512], strides = [1, 1]} : vector<128x512xf32> to vector<8x512xf32>
    %cst_13 = arith.constant dense<0.000000e+00> : vector<8x512xf32>
    %14 = tpu.matmul %11, %10, %cst_13 {dimension_numbers = #tpu.dot_dimension_numbers<[1], [0], [0], [1], [0, 0, 1, 1], [], []>} : vector<8x128xf32>, vector<128x512xf32>, vector<8x512xf32> -> vector<8x512xf32>
    %15 = arith.addf %13, %14 : vector<8x512xf32>
    %16 = vector.extract_strided_slice %15 {offsets = [0, 0], sizes = [8, 128], strides = [1, 1]} : vector<8x512xf32> to vector<8x128xf32>
    %17 = arith.negf %16 : vector<8x128xf32>
    %18 = math.exp %17 : vector<8x128xf32>
    %cst_14 = arith.constant 1.000000e+00 : f32
    %19 = vector.broadcast %cst_14 : f32 to vector<8x128xf32>
    %20 = arith.addf %19, %18 : vector<8x128xf32>
    %21 = arith.divf %19, %20 : vector<8x128xf32>
    %22 = vector.extract_strided_slice %15 {offsets = [0, 128], sizes = [8, 128], strides = [1, 1]} : vector<8x512xf32> to vector<8x128xf32>
    %23 = arith.negf %22 : vector<8x128xf32>
    %24 = math.exp %23 : vector<8x128xf32>
    %cst_15 = arith.constant 1.000000e+00 : f32
    %25 = vector.broadcast %cst_15 : f32 to vector<8x128xf32>
    %26 = arith.addf %25, %24 : vector<8x128xf32>
    %27 = arith.divf %25, %26 : vector<8x128xf32>
    %28 = vector.extract_strided_slice %15 {offsets = [0, 256], sizes = [8, 128], strides = [1, 1]} : vector<8x512xf32> to vector<8x128xf32>
    %29 = math.tanh %28 : vector<8x128xf32>
    %30 = vector.extract_strided_slice %15 {offsets = [0, 384], sizes = [8, 128], strides = [1, 1]} : vector<8x512xf32> to vector<8x128xf32>
    %31 = arith.negf %30 : vector<8x128xf32>
    %32 = math.exp %31 : vector<8x128xf32>
    %cst_16 = arith.constant 1.000000e+00 : f32
    %33 = vector.broadcast %cst_16 : f32 to vector<8x128xf32>
    %34 = arith.addf %33, %32 : vector<8x128xf32>
    %35 = arith.divf %33, %34 : vector<8x128xf32>
    %36 = arith.mulf %27, %12 : vector<8x128xf32>
    %37 = arith.mulf %21, %29 : vector<8x128xf32>
    %38 = arith.addf %36, %37 : vector<8x128xf32>
    %39 = math.tanh %38 : vector<8x128xf32>
    %40 = arith.mulf %35, %39 : vector<8x128xf32>
    %c0_17 = arith.constant 0 : index
    %c0_18 = arith.constant 0 : index
    %41 = vector.load %arg7[%c0_17, %c0_18] : memref<128x128xf32, #tpu.memory_space<vmem>>, vector<8x128xf32>
    tpu.vector_store %arg7[%c0_17, %c0_18], %40 {strides = array<i32>} : memref<128x128xf32, #tpu.memory_space<vmem>>, vector<8x128xf32>,
    %c0_19 = arith.constant 0 : index
    %c0_20 = arith.constant 0 : index
    %42 = vector.load %arg6[%c0_19, %c0_20] : memref<128x128xf32, #tpu.memory_space<vmem>>, vector<8x128xf32>
    %43 = vector.broadcast %3 : f32 to vector<8x128xf32>
    %44 = arith.mulf %43, %40 : vector<8x128xf32>
    %45 = arith.addf %42, %44 : vector<8x128xf32>
    %c0_21 = arith.constant 0 : index
    %c0_22 = arith.constant 0 : index
    %46 = vector.load %arg8[%c0_21, %c0_22] : memref<128x128xf32, #tpu.memory_space<vmem>>, vector<8x128xf32>
    tpu.vector_store %arg8[%c0_21, %c0_22], %45 {strides = array<i32>} : memref<128x128xf32, #tpu.memory_space<vmem>>, vector<8x128xf32>,
    %47 = vector.extract_strided_slice %9 {offsets = [8, 0], sizes = [8, 512], strides = [1, 1]} : vector<128x512xf32> to vector<8x512xf32>
    %cst_23 = arith.constant dense<0.000000e+00> : vector<8x512xf32>
    %48 = tpu.matmul %40, %10, %cst_23 {dimension_numbers = #tpu.dot_dimension_numbers<[1], [0], [0], [1], [0, 0, 1, 1], [], []>} : vector<8x128xf32>, vector<128x512xf32>, vector<8x512xf32> -> vector<8x512xf32>
    %49 = arith.addf %47, %48 : vector<8x512xf32>
    %50 = vector.extract_strided_slice %49 {offsets = [0, 0], sizes = [8, 128], strides = [1, 1]} : vector<8x512xf32> to vector<8x128xf32>
    %51 = arith.negf %50 : vector<8x128xf32>
    %52 = math.exp %51 : vector<8x128xf32>
    %cst_24 = arith.constant 1.000000e+00 : f32
    %53 = vector.broadcast %cst_24 : f32 to vector<8x128xf32>
    %54 = arith.addf %53, %52 : vector<8x128xf32>
    %55 = arith.divf %53, %54 : vector<8x128xf32>
    %56 = vector.extract_strided_slice %49 {offsets = [0, 128], sizes = [8, 128], strides = [1, 1]} : vector<8x512xf32> to vector<8x128xf32>
    %57 = arith.negf %56 : vector<8x128xf32>
    %58 = math.exp %57 : vector<8x128xf32>
    %cst_25 = arith.constant 1.000000e+00 : f32
    %59 = vector.broadcast %cst_25 : f32 to vector<8x128xf32>
    %60 = arith.addf %59, %58 : vector<8x128xf32>
    %61 = arith.divf %59, %60 : vector<8x128xf32>
    %62 = vector.extract_strided_slice %49 {offsets = [0, 256], sizes = [8, 128], strides = [1, 1]} : vector<8x512xf32> to vector<8x128xf32>
    %63 = math.tanh %62 : vector<8x128xf32>
    %64 = vector.extract_strided_slice %49 {offsets = [0, 384], sizes = [8, 128], strides = [1, 1]} : vector<8x512xf32> to vector<8x128xf32>
    %65 = arith.negf %64 : vector<8x128xf32>
    %66 = math.exp %65 : vector<8x128xf32>
    %cst_26 = arith.constant 1.000000e+00 : f32
    %67 = vector.broadcast %cst_26 : f32 to vector<8x128xf32>
    %68 = arith.addf %67, %66 : vector<8x128xf32>
    %69 = arith.divf %67, %68 : vector<8x128xf32>
    %70 = arith.mulf %61, %38 : vector<8x128xf32>
    %71 = arith.mulf %55, %63 : vector<8x128xf32>
    %72 = arith.addf %70, %71 : vector<8x128xf32>
    %73 = math.tanh %72 : vector<8x128xf32>
    %74 = arith.mulf %69, %73 : vector<8x128xf32>
    %c8 = arith.constant 8 : index
    %c0_27 = arith.constant 0 : index
    %75 = vector.load %arg7[%c8, %c0_27] : memref<128x128xf32, #tpu.memory_space<vmem>>, vector<8x128xf32>
    tpu.vector_store %arg7[%c8, %c0_27], %74 {strides = array<i32>} : memref<128x128xf32, #tpu.memory_space<vmem>>, vector<8x128xf32>,
    %c8_28 = arith.constant 8 : index
    %c0_29 = arith.constant 0 : index
    %76 = vector.load %arg6[%c8_28, %c0_29] : memref<128x128xf32, #tpu.memory_space<vmem>>, vector<8x128xf32>
    %77 = vector.broadcast %3 : f32 to vector<8x128xf32>
    %78 = arith.mulf %77, %74 : vector<8x128xf32>
    %79 = arith.addf %76, %78 : vector<8x128xf32>
    %c8_30 = arith.constant 8 : index
    %c0_31 = arith.constant 0 : index
    %80 = vector.load %arg8[%c8_30, %c0_31] : memref<128x128xf32, #tpu.memory_space<vmem>>, vector<8x128xf32>
    tpu.vector_store %arg8[%c8_30, %c0_31], %79 {strides = array<i32>} : memref<128x128xf32, #tpu.memory_space<vmem>>, vector<8x128xf32>,
    %81 = vector.extract_strided_slice %9 {offsets = [16, 0], sizes = [8, 512], strides = [1, 1]} : vector<128x512xf32> to vector<8x512xf32>
    %cst_32 = arith.constant dense<0.000000e+00> : vector<8x512xf32>
    %82 = tpu.matmul %74, %10, %cst_32 {dimension_numbers = #tpu.dot_dimension_numbers<[1], [0], [0], [1], [0, 0, 1, 1], [], []>} : vector<8x128xf32>, vector<128x512xf32>, vector<8x512xf32> -> vector<8x512xf32>
    %83 = arith.addf %81, %82 : vector<8x512xf32>
    %84 = vector.extract_strided_slice %83 {offsets = [0, 0], sizes = [8, 128], strides = [1, 1]} : vector<8x512xf32> to vector<8x128xf32>
    %85 = arith.negf %84 : vector<8x128xf32>
    %86 = math.exp %85 : vector<8x128xf32>
    %cst_33 = arith.constant 1.000000e+00 : f32
    %87 = vector.broadcast %cst_33 : f32 to vector<8x128xf32>
    %88 = arith.addf %87, %86 : vector<8x128xf32>
    %89 = arith.divf %87, %88 : vector<8x128xf32>
    %90 = vector.extract_strided_slice %83 {offsets = [0, 128], sizes = [8, 128], strides = [1, 1]} : vector<8x512xf32> to vector<8x128xf32>
    %91 = arith.negf %90 : vector<8x128xf32>
    %92 = math.exp %91 : vector<8x128xf32>
    %cst_34 = arith.constant 1.000000e+00 : f32
    %93 = vector.broadcast %cst_34 : f32 to vector<8x128xf32>
    %94 = arith.addf %93, %92 : vector<8x128xf32>
    %95 = arith.divf %93, %94 : vector<8x128xf32>
    %96 = vector.extract_strided_slice %83 {offsets = [0, 256], sizes = [8, 128], strides = [1, 1]} : vector<8x512xf32> to vector<8x128xf32>
    %97 = math.tanh %96 : vector<8x128xf32>
    %98 = vector.extract_strided_slice %83 {offsets = [0, 384], sizes = [8, 128], strides = [1, 1]} : vector<8x512xf32> to vector<8x128xf32>
    %99 = arith.negf %98 : vector<8x128xf32>
    %100 = math.exp %99 : vector<8x128xf32>
    %cst_35 = arith.constant 1.000000e+00 : f32
    %101 = vector.broadcast %cst_35 : f32 to vector<8x128xf32>
    %102 = arith.addf %101, %100 : vector<8x128xf32>
    %103 = arith.divf %101, %102 : vector<8x128xf32>
    %104 = arith.mulf %95, %72 : vector<8x128xf32>
    %105 = arith.mulf %89, %97 : vector<8x128xf32>
    %106 = arith.addf %104, %105 : vector<8x128xf32>
    %107 = math.tanh %106 : vector<8x128xf32>
    %108 = arith.mulf %103, %107 : vector<8x128xf32>
    %c16 = arith.constant 16 : index
    %c0_36 = arith.constant 0 : index
    %109 = vector.load %arg7[%c16, %c0_36] : memref<128x128xf32, #tpu.memory_space<vmem>>, vector<8x128xf32>
    tpu.vector_store %arg7[%c16, %c0_36], %108 {strides = array<i32>} : memref<128x128xf32, #tpu.memory_space<vmem>>, vector<8x128xf32>,
    %c16_37 = arith.constant 16 : index
    %c0_38 = arith.constant 0 : index
    %110 = vector.load %arg6[%c16_37, %c0_38] : memref<128x128xf32, #tpu.memory_space<vmem>>, vector<8x128xf32>
    %111 = vector.broadcast %3 : f32 to vector<8x128xf32>
    %112 = arith.mulf %111, %108 : vector<8x128xf32>
    %113 = arith.addf %110, %112 : vector<8x128xf32>
    %c16_39 = arith.constant 16 : index
    %c0_40 = arith.constant 0 : index
    %114 = vector.load %arg8[%c16_39, %c0_40] : memref<128x128xf32, #tpu.memory_space<vmem>>, vector<8x128xf32>
    tpu.vector_store %arg8[%c16_39, %c0_40], %113 {strides = array<i32>} : memref<128x128xf32, #tpu.memory_space<vmem>>, vector<8x128xf32>,
    %115 = vector.extract_strided_slice %9 {offsets = [24, 0], sizes = [8, 512], strides = [1, 1]} : vector<128x512xf32> to vector<8x512xf32>
    %cst_41 = arith.constant dense<0.000000e+00> : vector<8x512xf32>
    %116 = tpu.matmul %108, %10, %cst_41 {dimension_numbers = #tpu.dot_dimension_numbers<[1], [0], [0], [1], [0, 0, 1, 1], [], []>} : vector<8x128xf32>, vector<128x512xf32>, vector<8x512xf32> -> vector<8x512xf32>
    %117 = arith.addf %115, %116 : vector<8x512xf32>
    %118 = vector.extract_strided_slice %117 {offsets = [0, 0], sizes = [8, 128], strides = [1, 1]} : vector<8x512xf32> to vector<8x128xf32>
    %119 = arith.negf %118 : vector<8x128xf32>
    %120 = math.exp %119 : vector<8x128xf32>
    %cst_42 = arith.constant 1.000000e+00 : f32
    %121 = vector.broadcast %cst_42 : f32 to vector<8x128xf32>
    %122 = arith.addf %121, %120 : vector<8x128xf32>
    %123 = arith.divf %121, %122 : vector<8x128xf32>
    %124 = vector.extract_strided_slice %117 {offsets = [0, 128], sizes = [8, 128], strides = [1, 1]} : vector<8x512xf32> to vector<8x128xf32>
    %125 = arith.negf %124 : vector<8x128xf32>
    %126 = math.exp %125 : vector<8x128xf32>
    %cst_43 = arith.constant 1.000000e+00 : f32
    %127 = vector.broadcast %cst_43 : f32 to vector<8x128xf32>
    %128 = arith.addf %127, %126 : vector<8x128xf32>
    %129 = arith.divf %127, %128 : vector<8x128xf32>
    %130 = vector.extract_strided_slice %117 {offsets = [0, 256], sizes = [8, 128], strides = [1, 1]} : vector<8x512xf32> to vector<8x128xf32>
    %131 = math.tanh %130 : vector<8x128xf32>
    %132 = vector.extract_strided_slice %117 {offsets = [0, 384], sizes = [8, 128], strides = [1, 1]} : vector<8x512xf32> to vector<8x128xf32>
    %133 = arith.negf %132 : vector<8x128xf32>
    %134 = math.exp %133 : vector<8x128xf32>
    %cst_44 = arith.constant 1.000000e+00 : f32
    %135 = vector.broadcast %cst_44 : f32 to vector<8x128xf32>
    %136 = arith.addf %135, %134 : vector<8x128xf32>
    %137 = arith.divf %135, %136 : vector<8x128xf32>
    %138 = arith.mulf %129, %106 : vector<8x128xf32>
    %139 = arith.mulf %123, %131 : vector<8x128xf32>
    %140 = arith.addf %138, %139 : vector<8x128xf32>
    %141 = math.tanh %140 : vector<8x128xf32>
    %142 = arith.mulf %137, %141 : vector<8x128xf32>
    %c24 = arith.constant 24 : index
    %c0_45 = arith.constant 0 : index
    %143 = vector.load %arg7[%c24, %c0_45] : memref<128x128xf32, #tpu.memory_space<vmem>>, vector<8x128xf32>
    tpu.vector_store %arg7[%c24, %c0_45], %142 {strides = array<i32>} : memref<128x128xf32, #tpu.memory_space<vmem>>, vector<8x128xf32>,
    %c24_46 = arith.constant 24 : index
    %c0_47 = arith.constant 0 : index
    %144 = vector.load %arg6[%c24_46, %c0_47] : memref<128x128xf32, #tpu.memory_space<vmem>>, vector<8x128xf32>
    %145 = vector.broadcast %3 : f32 to vector<8x128xf32>
    %146 = arith.mulf %145, %142 : vector<8x128xf32>
    %147 = arith.addf %144, %146 : vector<8x128xf32>
    %c24_48 = arith.constant 24 : index
    %c0_49 = arith.constant 0 : index
    %148 = vector.load %arg8[%c24_48, %c0_49] : memref<128x128xf32, #tpu.memory_space<vmem>>, vector<8x128xf32>
    tpu.vector_store %arg8[%c24_48, %c0_49], %147 {strides = array<i32>} : memref<128x128xf32, #tpu.memory_space<vmem>>, vector<8x128xf32>,
    %149 = vector.extract_strided_slice %9 {offsets = [32, 0], sizes = [8, 512], strides = [1, 1]} : vector<128x512xf32> to vector<8x512xf32>
    %cst_50 = arith.constant dense<0.000000e+00> : vector<8x512xf32>
    %150 = tpu.matmul %142, %10, %cst_50 {dimension_numbers = #tpu.dot_dimension_numbers<[1], [0], [0], [1], [0, 0, 1, 1], [], []>} : vector<8x128xf32>, vector<128x512xf32>, vector<8x512xf32> -> vector<8x512xf32>
    %151 = arith.addf %149, %150 : vector<8x512xf32>
    %152 = vector.extract_strided_slice %151 {offsets = [0, 0], sizes = [8, 128], strides = [1, 1]} : vector<8x512xf32> to vector<8x128xf32>
    %153 = arith.negf %152 : vector<8x128xf32>
    %154 = math.exp %153 : vector<8x128xf32>
    %cst_51 = arith.constant 1.000000e+00 : f32
    %155 = vector.broadcast %cst_51 : f32 to vector<8x128xf32>
    %156 = arith.addf %155, %154 : vector<8x128xf32>
    %157 = arith.divf %155, %156 : vector<8x128xf32>
    %158 = vector.extract_strided_slice %151 {offsets = [0, 128], sizes = [8, 128], strides = [1, 1]} : vector<8x512xf32> to vector<8x128xf32>
    %159 = arith.negf %158 : vector<8x128xf32>
    %160 = math.exp %159 : vector<8x128xf32>
    %cst_52 = arith.constant 1.000000e+00 : f32
    %161 = vector.broadcast %cst_52 : f32 to vector<8x128xf32>
    %162 = arith.addf %161, %160 : vector<8x128xf32>
    %163 = arith.divf %161, %162 : vector<8x128xf32>
    %164 = vector.extract_strided_slice %151 {offsets = [0, 256], sizes = [8, 128], strides = [1, 1]} : vector<8x512xf32> to vector<8x128xf32>
    %165 = math.tanh %164 : vector<8x128xf32>
    %166 = vector.extract_strided_slice %151 {offsets = [0, 384], sizes = [8, 128], strides = [1, 1]} : vector<8x512xf32> to vector<8x128xf32>
    %167 = arith.negf %166 : vector<8x128xf32>
    %168 = math.exp %167 : vector<8x128xf32>
    %cst_53 = arith.constant 1.000000e+00 : f32
    %169 = vector.broadcast %cst_53 : f32 to vector<8x128xf32>
    %170 = arith.addf %169, %168 : vector<8x128xf32>
    %171 = arith.divf %169, %170 : vector<8x128xf32>
    %172 = arith.mulf %163, %140 : vector<8x128xf32>
    %173 = arith.mulf %157, %165 : vector<8x128xf32>
    %174 = arith.addf %172, %173 : vector<8x128xf32>
    %175 = math.tanh %174 : vector<8x128xf32>
    %176 = arith.mulf %171, %175 : vector<8x128xf32>
    %c32 = arith.constant 32 : index
    %c0_54 = arith.constant 0 : index
    %177 = vector.load %arg7[%c32, %c0_54] : memref<128x128xf32, #tpu.memory_space<vmem>>, vector<8x128xf32>
    tpu.vector_store %arg7[%c32, %c0_54], %176 {strides = array<i32>} : memref<128x128xf32, #tpu.memory_space<vmem>>, vector<8x128xf32>,
    %c32_55 = arith.constant 32 : index
    %c0_56 = arith.constant 0 : index
    %178 = vector.load %arg6[%c32_55, %c0_56] : memref<128x128xf32, #tpu.memory_space<vmem>>, vector<8x128xf32>
    %179 = vector.broadcast %3 : f32 to vector<8x128xf32>
    %180 = arith.mulf %179, %176 : vector<8x128xf32>
    %181 = arith.addf %178, %180 : vector<8x128xf32>
    %c32_57 = arith.constant 32 : index
    %c0_58 = arith.constant 0 : index
    %182 = vector.load %arg8[%c32_57, %c0_58] : memref<128x128xf32, #tpu.memory_space<vmem>>, vector<8x128xf32>
    tpu.vector_store %arg8[%c32_57, %c0_58], %181 {strides = array<i32>} : memref<128x128xf32, #tpu.memory_space<vmem>>, vector<8x128xf32>,
    %183 = vector.extract_strided_slice %9 {offsets = [40, 0], sizes = [8, 512], strides = [1, 1]} : vector<128x512xf32> to vector<8x512xf32>
    %cst_59 = arith.constant dense<0.000000e+00> : vector<8x512xf32>
    %184 = tpu.matmul %176, %10, %cst_59 {dimension_numbers = #tpu.dot_dimension_numbers<[1], [0], [0], [1], [0, 0, 1, 1], [], []>} : vector<8x128xf32>, vector<128x512xf32>, vector<8x512xf32> -> vector<8x512xf32>
    %185 = arith.addf %183, %184 : vector<8x512xf32>
    %186 = vector.extract_strided_slice %185 {offsets = [0, 0], sizes = [8, 128], strides = [1, 1]} : vector<8x512xf32> to vector<8x128xf32>
    %187 = arith.negf %186 : vector<8x128xf32>
    %188 = math.exp %187 : vector<8x128xf32>
    %cst_60 = arith.constant 1.000000e+00 : f32
    %189 = vector.broadcast %cst_60 : f32 to vector<8x128xf32>
    %190 = arith.addf %189, %188 : vector<8x128xf32>
    %191 = arith.divf %189, %190 : vector<8x128xf32>
    %192 = vector.extract_strided_slice %185 {offsets = [0, 128], sizes = [8, 128], strides = [1, 1]} : vector<8x512xf32> to vector<8x128xf32>
    %193 = arith.negf %192 : vector<8x128xf32>
    %194 = math.exp %193 : vector<8x128xf32>
    %cst_61 = arith.constant 1.000000e+00 : f32
    %195 = vector.broadcast %cst_61 : f32 to vector<8x128xf32>
    %196 = arith.addf %195, %194 : vector<8x128xf32>
    %197 = arith.divf %195, %196 : vector<8x128xf32>
    %198 = vector.extract_strided_slice %185 {offsets = [0, 256], sizes = [8, 128], strides = [1, 1]} : vector<8x512xf32> to vector<8x128xf32>
    %199 = math.tanh %198 : vector<8x128xf32>
    %200 = vector.extract_strided_slice %185 {offsets = [0, 384], sizes = [8, 128], strides = [1, 1]} : vector<8x512xf32> to vector<8x128xf32>
    %201 = arith.negf %200 : vector<8x128xf32>
    %202 = math.exp %201 : vector<8x128xf32>
    %cst_62 = arith.constant 1.000000e+00 : f32
    %203 = vector.broadcast %cst_62 : f32 to vector<8x128xf32>
    %204 = arith.addf %203, %202 : vector<8x128xf32>
    %205 = arith.divf %203, %204 : vector<8x128xf32>
    %206 = arith.mulf %197, %174 : vector<8x128xf32>
    %207 = arith.mulf %191, %199 : vector<8x128xf32>
    %208 = arith.addf %206, %207 : vector<8x128xf32>
    %209 = math.tanh %208 : vector<8x128xf32>
    %210 = arith.mulf %205, %209 : vector<8x128xf32>
    %c40 = arith.constant 40 : index
    %c0_63 = arith.constant 0 : index
    %211 = vector.load %arg7[%c40, %c0_63] : memref<128x128xf32, #tpu.memory_space<vmem>>, vector<8x128xf32>
    tpu.vector_store %arg7[%c40, %c0_63], %210 {strides = array<i32>} : memref<128x128xf32, #tpu.memory_space<vmem>>, vector<8x128xf32>,
    %c40_64 = arith.constant 40 : index
    %c0_65 = arith.constant 0 : index
    %212 = vector.load %arg6[%c40_64, %c0_65] : memref<128x128xf32, #tpu.memory_space<vmem>>, vector<8x128xf32>
    %213 = vector.broadcast %3 : f32 to vector<8x128xf32>
    %214 = arith.mulf %213, %210 : vector<8x128xf32>
    %215 = arith.addf %212, %214 : vector<8x128xf32>
    %c40_66 = arith.constant 40 : index
    %c0_67 = arith.constant 0 : index
    %216 = vector.load %arg8[%c40_66, %c0_67] : memref<128x128xf32, #tpu.memory_space<vmem>>, vector<8x128xf32>
    tpu.vector_store %arg8[%c40_66, %c0_67], %215 {strides = array<i32>} : memref<128x128xf32, #tpu.memory_space<vmem>>, vector<8x128xf32>,
    %217 = vector.extract_strided_slice %9 {offsets = [48, 0], sizes = [8, 512], strides = [1, 1]} : vector<128x512xf32> to vector<8x512xf32>
    %cst_68 = arith.constant dense<0.000000e+00> : vector<8x512xf32>
    %218 = tpu.matmul %210, %10, %cst_68 {dimension_numbers = #tpu.dot_dimension_numbers<[1], [0], [0], [1], [0, 0, 1, 1], [], []>} : vector<8x128xf32>, vector<128x512xf32>, vector<8x512xf32> -> vector<8x512xf32>
    %219 = arith.addf %217, %218 : vector<8x512xf32>
    %220 = vector.extract_strided_slice %219 {offsets = [0, 0], sizes = [8, 128], strides = [1, 1]} : vector<8x512xf32> to vector<8x128xf32>
    %221 = arith.negf %220 : vector<8x128xf32>
    %222 = math.exp %221 : vector<8x128xf32>
    %cst_69 = arith.constant 1.000000e+00 : f32
    %223 = vector.broadcast %cst_69 : f32 to vector<8x128xf32>
    %224 = arith.addf %223, %222 : vector<8x128xf32>
    %225 = arith.divf %223, %224 : vector<8x128xf32>
    %226 = vector.extract_strided_slice %219 {offsets = [0, 128], sizes = [8, 128], strides = [1, 1]} : vector<8x512xf32> to vector<8x128xf32>
    %227 = arith.negf %226 : vector<8x128xf32>
    %228 = math.exp %227 : vector<8x128xf32>
    %cst_70 = arith.constant 1.000000e+00 : f32
    %229 = vector.broadcast %cst_70 : f32 to vector<8x128xf32>
    %230 = arith.addf %229, %228 : vector<8x128xf32>
    %231 = arith.divf %229, %230 : vector<8x128xf32>
    %232 = vector.extract_strided_slice %219 {offsets = [0, 256], sizes = [8, 128], strides = [1, 1]} : vector<8x512xf32> to vector<8x128xf32>
    %233 = math.tanh %232 : vector<8x128xf32>
    %234 = vector.extract_strided_slice %219 {offsets = [0, 384], sizes = [8, 128], strides = [1, 1]} : vector<8x512xf32> to vector<8x128xf32>
    %235 = arith.negf %234 : vector<8x128xf32>
    %236 = math.exp %235 : vector<8x128xf32>
    %cst_71 = arith.constant 1.000000e+00 : f32
    %237 = vector.broadcast %cst_71 : f32 to vector<8x128xf32>
    %238 = arith.addf %237, %236 : vector<8x128xf32>
    %239 = arith.divf %237, %238 : vector<8x128xf32>
    %240 = arith.mulf %231, %208 : vector<8x128xf32>
    %241 = arith.mulf %225, %233 : vector<8x128xf32>
    %242 = arith.addf %240, %241 : vector<8x128xf32>
    %243 = math.tanh %242 : vector<8x128xf32>
    %244 = arith.mulf %239, %243 : vector<8x128xf32>
    %c48 = arith.constant 48 : index
    %c0_72 = arith.constant 0 : index
    %245 = vector.load %arg7[%c48, %c0_72] : memref<128x128xf32, #tpu.memory_space<vmem>>, vector<8x128xf32>
    tpu.vector_store %arg7[%c48, %c0_72], %244 {strides = array<i32>} : memref<128x128xf32, #tpu.memory_space<vmem>>, vector<8x128xf32>,
    %c48_73 = arith.constant 48 : index
    %c0_74 = arith.constant 0 : index
    %246 = vector.load %arg6[%c48_73, %c0_74] : memref<128x128xf32, #tpu.memory_space<vmem>>, vector<8x128xf32>
    %247 = vector.broadcast %3 : f32 to vector<8x128xf32>
    %248 = arith.mulf %247, %244 : vector<8x128xf32>
    %249 = arith.addf %246, %248 : vector<8x128xf32>
    %c48_75 = arith.constant 48 : index
    %c0_76 = arith.constant 0 : index
    %250 = vector.load %arg8[%c48_75, %c0_76] : memref<128x128xf32, #tpu.memory_space<vmem>>, vector<8x128xf32>
    tpu.vector_store %arg8[%c48_75, %c0_76], %249 {strides = array<i32>} : memref<128x128xf32, #tpu.memory_space<vmem>>, vector<8x128xf32>,
    %251 = vector.extract_strided_slice %9 {offsets = [56, 0], sizes = [8, 512], strides = [1, 1]} : vector<128x512xf32> to vector<8x512xf32>
    %cst_77 = arith.constant dense<0.000000e+00> : vector<8x512xf32>
    %252 = tpu.matmul %244, %10, %cst_77 {dimension_numbers = #tpu.dot_dimension_numbers<[1], [0], [0], [1], [0, 0, 1, 1], [], []>} : vector<8x128xf32>, vector<128x512xf32>, vector<8x512xf32> -> vector<8x512xf32>
    %253 = arith.addf %251, %252 : vector<8x512xf32>
    %254 = vector.extract_strided_slice %253 {offsets = [0, 0], sizes = [8, 128], strides = [1, 1]} : vector<8x512xf32> to vector<8x128xf32>
    %255 = arith.negf %254 : vector<8x128xf32>
    %256 = math.exp %255 : vector<8x128xf32>
    %cst_78 = arith.constant 1.000000e+00 : f32
    %257 = vector.broadcast %cst_78 : f32 to vector<8x128xf32>
    %258 = arith.addf %257, %256 : vector<8x128xf32>
    %259 = arith.divf %257, %258 : vector<8x128xf32>
    %260 = vector.extract_strided_slice %253 {offsets = [0, 128], sizes = [8, 128], strides = [1, 1]} : vector<8x512xf32> to vector<8x128xf32>
    %261 = arith.negf %260 : vector<8x128xf32>
    %262 = math.exp %261 : vector<8x128xf32>
    %cst_79 = arith.constant 1.000000e+00 : f32
    %263 = vector.broadcast %cst_79 : f32 to vector<8x128xf32>
    %264 = arith.addf %263, %262 : vector<8x128xf32>
    %265 = arith.divf %263, %264 : vector<8x128xf32>
    %266 = vector.extract_strided_slice %253 {offsets = [0, 256], sizes = [8, 128], strides = [1, 1]} : vector<8x512xf32> to vector<8x128xf32>
    %267 = math.tanh %266 : vector<8x128xf32>
    %268 = vector.extract_strided_slice %253 {offsets = [0, 384], sizes = [8, 128], strides = [1, 1]} : vector<8x512xf32> to vector<8x128xf32>
    %269 = arith.negf %268 : vector<8x128xf32>
    %270 = math.exp %269 : vector<8x128xf32>
    %cst_80 = arith.constant 1.000000e+00 : f32
    %271 = vector.broadcast %cst_80 : f32 to vector<8x128xf32>
    %272 = arith.addf %271, %270 : vector<8x128xf32>
    %273 = arith.divf %271, %272 : vector<8x128xf32>
    %274 = arith.mulf %265, %242 : vector<8x128xf32>
    %275 = arith.mulf %259, %267 : vector<8x128xf32>
    %276 = arith.addf %274, %275 : vector<8x128xf32>
    %277 = math.tanh %276 : vector<8x128xf32>
    %278 = arith.mulf %273, %277 : vector<8x128xf32>
    %c56 = arith.constant 56 : index
    %c0_81 = arith.constant 0 : index
    %279 = vector.load %arg7[%c56, %c0_81] : memref<128x128xf32, #tpu.memory_space<vmem>>, vector<8x128xf32>
    tpu.vector_store %arg7[%c56, %c0_81], %278 {strides = array<i32>} : memref<128x128xf32, #tpu.memory_space<vmem>>, vector<8x128xf32>,
    %c56_82 = arith.constant 56 : index
    %c0_83 = arith.constant 0 : index
    %280 = vector.load %arg6[%c56_82, %c0_83] : memref<128x128xf32, #tpu.memory_space<vmem>>, vector<8x128xf32>
    %281 = vector.broadcast %3 : f32 to vector<8x128xf32>
    %282 = arith.mulf %281, %278 : vector<8x128xf32>
    %283 = arith.addf %280, %282 : vector<8x128xf32>
    %c56_84 = arith.constant 56 : index
    %c0_85 = arith.constant 0 : index
    %284 = vector.load %arg8[%c56_84, %c0_85] : memref<128x128xf32, #tpu.memory_space<vmem>>, vector<8x128xf32>
    tpu.vector_store %arg8[%c56_84, %c0_85], %283 {strides = array<i32>} : memref<128x128xf32, #tpu.memory_space<vmem>>, vector<8x128xf32>,
    %285 = vector.extract_strided_slice %9 {offsets = [64, 0], sizes = [8, 512], strides = [1, 1]} : vector<128x512xf32> to vector<8x512xf32>
    %cst_86 = arith.constant dense<0.000000e+00> : vector<8x512xf32>
    %286 = tpu.matmul %278, %10, %cst_86 {dimension_numbers = #tpu.dot_dimension_numbers<[1], [0], [0], [1], [0, 0, 1, 1], [], []>} : vector<8x128xf32>, vector<128x512xf32>, vector<8x512xf32> -> vector<8x512xf32>
    %287 = arith.addf %285, %286 : vector<8x512xf32>
    %288 = vector.extract_strided_slice %287 {offsets = [0, 0], sizes = [8, 128], strides = [1, 1]} : vector<8x512xf32> to vector<8x128xf32>
    %289 = arith.negf %288 : vector<8x128xf32>
    %290 = math.exp %289 : vector<8x128xf32>
    %cst_87 = arith.constant 1.000000e+00 : f32
    %291 = vector.broadcast %cst_87 : f32 to vector<8x128xf32>
    %292 = arith.addf %291, %290 : vector<8x128xf32>
    %293 = arith.divf %291, %292 : vector<8x128xf32>
    %294 = vector.extract_strided_slice %287 {offsets = [0, 128], sizes = [8, 128], strides = [1, 1]} : vector<8x512xf32> to vector<8x128xf32>
    %295 = arith.negf %294 : vector<8x128xf32>
    %296 = math.exp %295 : vector<8x128xf32>
    %cst_88 = arith.constant 1.000000e+00 : f32
    %297 = vector.broadcast %cst_88 : f32 to vector<8x128xf32>
    %298 = arith.addf %297, %296 : vector<8x128xf32>
    %299 = arith.divf %297, %298 : vector<8x128xf32>
    %300 = vector.extract_strided_slice %287 {offsets = [0, 256], sizes = [8, 128], strides = [1, 1]} : vector<8x512xf32> to vector<8x128xf32>
    %301 = math.tanh %300 : vector<8x128xf32>
    %302 = vector.extract_strided_slice %287 {offsets = [0, 384], sizes = [8, 128], strides = [1, 1]} : vector<8x512xf32> to vector<8x128xf32>
    %303 = arith.negf %302 : vector<8x128xf32>
    %304 = math.exp %303 : vector<8x128xf32>
    %cst_89 = arith.constant 1.000000e+00 : f32
    %305 = vector.broadcast %cst_89 : f32 to vector<8x128xf32>
    %306 = arith.addf %305, %304 : vector<8x128xf32>
    %307 = arith.divf %305, %306 : vector<8x128xf32>
    %308 = arith.mulf %299, %276 : vector<8x128xf32>
    %309 = arith.mulf %293, %301 : vector<8x128xf32>
    %310 = arith.addf %308, %309 : vector<8x128xf32>
    %311 = math.tanh %310 : vector<8x128xf32>
    %312 = arith.mulf %307, %311 : vector<8x128xf32>
    %c64 = arith.constant 64 : index
    %c0_90 = arith.constant 0 : index
    %313 = vector.load %arg7[%c64, %c0_90] : memref<128x128xf32, #tpu.memory_space<vmem>>, vector<8x128xf32>
    tpu.vector_store %arg7[%c64, %c0_90], %312 {strides = array<i32>} : memref<128x128xf32, #tpu.memory_space<vmem>>, vector<8x128xf32>,
    %c64_91 = arith.constant 64 : index
    %c0_92 = arith.constant 0 : index
    %314 = vector.load %arg6[%c64_91, %c0_92] : memref<128x128xf32, #tpu.memory_space<vmem>>, vector<8x128xf32>
    %315 = vector.broadcast %3 : f32 to vector<8x128xf32>
    %316 = arith.mulf %315, %312 : vector<8x128xf32>
    %317 = arith.addf %314, %316 : vector<8x128xf32>
    %c64_93 = arith.constant 64 : index
    %c0_94 = arith.constant 0 : index
    %318 = vector.load %arg8[%c64_93, %c0_94] : memref<128x128xf32, #tpu.memory_space<vmem>>, vector<8x128xf32>
    tpu.vector_store %arg8[%c64_93, %c0_94], %317 {strides = array<i32>} : memref<128x128xf32, #tpu.memory_space<vmem>>, vector<8x128xf32>,
    %319 = vector.extract_strided_slice %9 {offsets = [72, 0], sizes = [8, 512], strides = [1, 1]} : vector<128x512xf32> to vector<8x512xf32>
    %cst_95 = arith.constant dense<0.000000e+00> : vector<8x512xf32>
    %320 = tpu.matmul %312, %10, %cst_95 {dimension_numbers = #tpu.dot_dimension_numbers<[1], [0], [0], [1], [0, 0, 1, 1], [], []>} : vector<8x128xf32>, vector<128x512xf32>, vector<8x512xf32> -> vector<8x512xf32>
    %321 = arith.addf %319, %320 : vector<8x512xf32>
    %322 = vector.extract_strided_slice %321 {offsets = [0, 0], sizes = [8, 128], strides = [1, 1]} : vector<8x512xf32> to vector<8x128xf32>
    %323 = arith.negf %322 : vector<8x128xf32>
    %324 = math.exp %323 : vector<8x128xf32>
    %cst_96 = arith.constant 1.000000e+00 : f32
    %325 = vector.broadcast %cst_96 : f32 to vector<8x128xf32>
    %326 = arith.addf %325, %324 : vector<8x128xf32>
    %327 = arith.divf %325, %326 : vector<8x128xf32>
    %328 = vector.extract_strided_slice %321 {offsets = [0, 128], sizes = [8, 128], strides = [1, 1]} : vector<8x512xf32> to vector<8x128xf32>
    %329 = arith.negf %328 : vector<8x128xf32>
    %330 = math.exp %329 : vector<8x128xf32>
    %cst_97 = arith.constant 1.000000e+00 : f32
    %331 = vector.broadcast %cst_97 : f32 to vector<8x128xf32>
    %332 = arith.addf %331, %330 : vector<8x128xf32>
    %333 = arith.divf %331, %332 : vector<8x128xf32>
    %334 = vector.extract_strided_slice %321 {offsets = [0, 256], sizes = [8, 128], strides = [1, 1]} : vector<8x512xf32> to vector<8x128xf32>
    %335 = math.tanh %334 : vector<8x128xf32>
    %336 = vector.extract_strided_slice %321 {offsets = [0, 384], sizes = [8, 128], strides = [1, 1]} : vector<8x512xf32> to vector<8x128xf32>
    %337 = arith.negf %336 : vector<8x128xf32>
    %338 = math.exp %337 : vector<8x128xf32>
    %cst_98 = arith.constant 1.000000e+00 : f32
    %339 = vector.broadcast %cst_98 : f32 to vector<8x128xf32>
    %340 = arith.addf %339, %338 : vector<8x128xf32>
    %341 = arith.divf %339, %340 : vector<8x128xf32>
    %342 = arith.mulf %333, %310 : vector<8x128xf32>
    %343 = arith.mulf %327, %335 : vector<8x128xf32>
    %344 = arith.addf %342, %343 : vector<8x128xf32>
    %345 = math.tanh %344 : vector<8x128xf32>
    %346 = arith.mulf %341, %345 : vector<8x128xf32>
    %c72 = arith.constant 72 : index
    %c0_99 = arith.constant 0 : index
    %347 = vector.load %arg7[%c72, %c0_99] : memref<128x128xf32, #tpu.memory_space<vmem>>, vector<8x128xf32>
    tpu.vector_store %arg7[%c72, %c0_99], %346 {strides = array<i32>} : memref<128x128xf32, #tpu.memory_space<vmem>>, vector<8x128xf32>,
    %c72_100 = arith.constant 72 : index
    %c0_101 = arith.constant 0 : index
    %348 = vector.load %arg6[%c72_100, %c0_101] : memref<128x128xf32, #tpu.memory_space<vmem>>, vector<8x128xf32>
    %349 = vector.broadcast %3 : f32 to vector<8x128xf32>
    %350 = arith.mulf %349, %346 : vector<8x128xf32>
    %351 = arith.addf %348, %350 : vector<8x128xf32>
    %c72_102 = arith.constant 72 : index
    %c0_103 = arith.constant 0 : index
    %352 = vector.load %arg8[%c72_102, %c0_103] : memref<128x128xf32, #tpu.memory_space<vmem>>, vector<8x128xf32>
    tpu.vector_store %arg8[%c72_102, %c0_103], %351 {strides = array<i32>} : memref<128x128xf32, #tpu.memory_space<vmem>>, vector<8x128xf32>,
    %353 = vector.extract_strided_slice %9 {offsets = [80, 0], sizes = [8, 512], strides = [1, 1]} : vector<128x512xf32> to vector<8x512xf32>
    %cst_104 = arith.constant dense<0.000000e+00> : vector<8x512xf32>
    %354 = tpu.matmul %346, %10, %cst_104 {dimension_numbers = #tpu.dot_dimension_numbers<[1], [0], [0], [1], [0, 0, 1, 1], [], []>} : vector<8x128xf32>, vector<128x512xf32>, vector<8x512xf32> -> vector<8x512xf32>
    %355 = arith.addf %353, %354 : vector<8x512xf32>
    %356 = vector.extract_strided_slice %355 {offsets = [0, 0], sizes = [8, 128], strides = [1, 1]} : vector<8x512xf32> to vector<8x128xf32>
    %357 = arith.negf %356 : vector<8x128xf32>
    %358 = math.exp %357 : vector<8x128xf32>
    %cst_105 = arith.constant 1.000000e+00 : f32
    %359 = vector.broadcast %cst_105 : f32 to vector<8x128xf32>
    %360 = arith.addf %359, %358 : vector<8x128xf32>
    %361 = arith.divf %359, %360 : vector<8x128xf32>
    %362 = vector.extract_strided_slice %355 {offsets = [0, 128], sizes = [8, 128], strides = [1, 1]} : vector<8x512xf32> to vector<8x128xf32>
    %363 = arith.negf %362 : vector<8x128xf32>
    %364 = math.exp %363 : vector<8x128xf32>
    %cst_106 = arith.constant 1.000000e+00 : f32
    %365 = vector.broadcast %cst_106 : f32 to vector<8x128xf32>
    %366 = arith.addf %365, %364 : vector<8x128xf32>
    %367 = arith.divf %365, %366 : vector<8x128xf32>
    %368 = vector.extract_strided_slice %355 {offsets = [0, 256], sizes = [8, 128], strides = [1, 1]} : vector<8x512xf32> to vector<8x128xf32>
    %369 = math.tanh %368 : vector<8x128xf32>
    %370 = vector.extract_strided_slice %355 {offsets = [0, 384], sizes = [8, 128], strides = [1, 1]} : vector<8x512xf32> to vector<8x128xf32>
    %371 = arith.negf %370 : vector<8x128xf32>
    %372 = math.exp %371 : vector<8x128xf32>
    %cst_107 = arith.constant 1.000000e+00 : f32
    %373 = vector.broadcast %cst_107 : f32 to vector<8x128xf32>
    %374 = arith.addf %373, %372 : vector<8x128xf32>
    %375 = arith.divf %373, %374 : vector<8x128xf32>
    %376 = arith.mulf %367, %344 : vector<8x128xf32>
    %377 = arith.mulf %361, %369 : vector<8x128xf32>
    %378 = arith.addf %376, %377 : vector<8x128xf32>
    %379 = math.tanh %378 : vector<8x128xf32>
    %380 = arith.mulf %375, %379 : vector<8x128xf32>
    %c80 = arith.constant 80 : index
    %c0_108 = arith.constant 0 : index
    %381 = vector.load %arg7[%c80, %c0_108] : memref<128x128xf32, #tpu.memory_space<vmem>>, vector<8x128xf32>
    tpu.vector_store %arg7[%c80, %c0_108], %380 {strides = array<i32>} : memref<128x128xf32, #tpu.memory_space<vmem>>, vector<8x128xf32>,
    %c80_109 = arith.constant 80 : index
    %c0_110 = arith.constant 0 : index
    %382 = vector.load %arg6[%c80_109, %c0_110] : memref<128x128xf32, #tpu.memory_space<vmem>>, vector<8x128xf32>
    %383 = vector.broadcast %3 : f32 to vector<8x128xf32>
    %384 = arith.mulf %383, %380 : vector<8x128xf32>
    %385 = arith.addf %382, %384 : vector<8x128xf32>
    %c80_111 = arith.constant 80 : index
    %c0_112 = arith.constant 0 : index
    %386 = vector.load %arg8[%c80_111, %c0_112] : memref<128x128xf32, #tpu.memory_space<vmem>>, vector<8x128xf32>
    tpu.vector_store %arg8[%c80_111, %c0_112], %385 {strides = array<i32>} : memref<128x128xf32, #tpu.memory_space<vmem>>, vector<8x128xf32>,
    %387 = vector.extract_strided_slice %9 {offsets = [88, 0], sizes = [8, 512], strides = [1, 1]} : vector<128x512xf32> to vector<8x512xf32>
    %cst_113 = arith.constant dense<0.000000e+00> : vector<8x512xf32>
    %388 = tpu.matmul %380, %10, %cst_113 {dimension_numbers = #tpu.dot_dimension_numbers<[1], [0], [0], [1], [0, 0, 1, 1], [], []>} : vector<8x128xf32>, vector<128x512xf32>, vector<8x512xf32> -> vector<8x512xf32>
    %389 = arith.addf %387, %388 : vector<8x512xf32>
    %390 = vector.extract_strided_slice %389 {offsets = [0, 0], sizes = [8, 128], strides = [1, 1]} : vector<8x512xf32> to vector<8x128xf32>
    %391 = arith.negf %390 : vector<8x128xf32>
    %392 = math.exp %391 : vector<8x128xf32>
    %cst_114 = arith.constant 1.000000e+00 : f32
    %393 = vector.broadcast %cst_114 : f32 to vector<8x128xf32>
    %394 = arith.addf %393, %392 : vector<8x128xf32>
    %395 = arith.divf %393, %394 : vector<8x128xf32>
    %396 = vector.extract_strided_slice %389 {offsets = [0, 128], sizes = [8, 128], strides = [1, 1]} : vector<8x512xf32> to vector<8x128xf32>
    %397 = arith.negf %396 : vector<8x128xf32>
    %398 = math.exp %397 : vector<8x128xf32>
    %cst_115 = arith.constant 1.000000e+00 : f32
    %399 = vector.broadcast %cst_115 : f32 to vector<8x128xf32>
    %400 = arith.addf %399, %398 : vector<8x128xf32>
    %401 = arith.divf %399, %400 : vector<8x128xf32>
    %402 = vector.extract_strided_slice %389 {offsets = [0, 256], sizes = [8, 128], strides = [1, 1]} : vector<8x512xf32> to vector<8x128xf32>
    %403 = math.tanh %402 : vector<8x128xf32>
    %404 = vector.extract_strided_slice %389 {offsets = [0, 384], sizes = [8, 128], strides = [1, 1]} : vector<8x512xf32> to vector<8x128xf32>
    %405 = arith.negf %404 : vector<8x128xf32>
    %406 = math.exp %405 : vector<8x128xf32>
    %cst_116 = arith.constant 1.000000e+00 : f32
    %407 = vector.broadcast %cst_116 : f32 to vector<8x128xf32>
    %408 = arith.addf %407, %406 : vector<8x128xf32>
    %409 = arith.divf %407, %408 : vector<8x128xf32>
    %410 = arith.mulf %401, %378 : vector<8x128xf32>
    %411 = arith.mulf %395, %403 : vector<8x128xf32>
    %412 = arith.addf %410, %411 : vector<8x128xf32>
    %413 = math.tanh %412 : vector<8x128xf32>
    %414 = arith.mulf %409, %413 : vector<8x128xf32>
    %c88 = arith.constant 88 : index
    %c0_117 = arith.constant 0 : index
    %415 = vector.load %arg7[%c88, %c0_117] : memref<128x128xf32, #tpu.memory_space<vmem>>, vector<8x128xf32>
    tpu.vector_store %arg7[%c88, %c0_117], %414 {strides = array<i32>} : memref<128x128xf32, #tpu.memory_space<vmem>>, vector<8x128xf32>,
    %c88_118 = arith.constant 88 : index
    %c0_119 = arith.constant 0 : index
    %416 = vector.load %arg6[%c88_118, %c0_119] : memref<128x128xf32, #tpu.memory_space<vmem>>, vector<8x128xf32>
    %417 = vector.broadcast %3 : f32 to vector<8x128xf32>
    %418 = arith.mulf %417, %414 : vector<8x128xf32>
    %419 = arith.addf %416, %418 : vector<8x128xf32>
    %c88_120 = arith.constant 88 : index
    %c0_121 = arith.constant 0 : index
    %420 = vector.load %arg8[%c88_120, %c0_121] : memref<128x128xf32, #tpu.memory_space<vmem>>, vector<8x128xf32>
    tpu.vector_store %arg8[%c88_120, %c0_121], %419 {strides = array<i32>} : memref<128x128xf32, #tpu.memory_space<vmem>>, vector<8x128xf32>,
    %421 = vector.extract_strided_slice %9 {offsets = [96, 0], sizes = [8, 512], strides = [1, 1]} : vector<128x512xf32> to vector<8x512xf32>
    %cst_122 = arith.constant dense<0.000000e+00> : vector<8x512xf32>
    %422 = tpu.matmul %414, %10, %cst_122 {dimension_numbers = #tpu.dot_dimension_numbers<[1], [0], [0], [1], [0, 0, 1, 1], [], []>} : vector<8x128xf32>, vector<128x512xf32>, vector<8x512xf32> -> vector<8x512xf32>
    %423 = arith.addf %421, %422 : vector<8x512xf32>
    %424 = vector.extract_strided_slice %423 {offsets = [0, 0], sizes = [8, 128], strides = [1, 1]} : vector<8x512xf32> to vector<8x128xf32>
    %425 = arith.negf %424 : vector<8x128xf32>
    %426 = math.exp %425 : vector<8x128xf32>
    %cst_123 = arith.constant 1.000000e+00 : f32
    %427 = vector.broadcast %cst_123 : f32 to vector<8x128xf32>
    %428 = arith.addf %427, %426 : vector<8x128xf32>
    %429 = arith.divf %427, %428 : vector<8x128xf32>
    %430 = vector.extract_strided_slice %423 {offsets = [0, 128], sizes = [8, 128], strides = [1, 1]} : vector<8x512xf32> to vector<8x128xf32>
    %431 = arith.negf %430 : vector<8x128xf32>
    %432 = math.exp %431 : vector<8x128xf32>
    %cst_124 = arith.constant 1.000000e+00 : f32
    %433 = vector.broadcast %cst_124 : f32 to vector<8x128xf32>
    %434 = arith.addf %433, %432 : vector<8x128xf32>
    %435 = arith.divf %433, %434 : vector<8x128xf32>
    %436 = vector.extract_strided_slice %423 {offsets = [0, 256], sizes = [8, 128], strides = [1, 1]} : vector<8x512xf32> to vector<8x128xf32>
    %437 = math.tanh %436 : vector<8x128xf32>
    %438 = vector.extract_strided_slice %423 {offsets = [0, 384], sizes = [8, 128], strides = [1, 1]} : vector<8x512xf32> to vector<8x128xf32>
    %439 = arith.negf %438 : vector<8x128xf32>
    %440 = math.exp %439 : vector<8x128xf32>
    %cst_125 = arith.constant 1.000000e+00 : f32
    %441 = vector.broadcast %cst_125 : f32 to vector<8x128xf32>
    %442 = arith.addf %441, %440 : vector<8x128xf32>
    %443 = arith.divf %441, %442 : vector<8x128xf32>
    %444 = arith.mulf %435, %412 : vector<8x128xf32>
    %445 = arith.mulf %429, %437 : vector<8x128xf32>
    %446 = arith.addf %444, %445 : vector<8x128xf32>
    %447 = math.tanh %446 : vector<8x128xf32>
    %448 = arith.mulf %443, %447 : vector<8x128xf32>
    %c96 = arith.constant 96 : index
    %c0_126 = arith.constant 0 : index
    %449 = vector.load %arg7[%c96, %c0_126] : memref<128x128xf32, #tpu.memory_space<vmem>>, vector<8x128xf32>
    tpu.vector_store %arg7[%c96, %c0_126], %448 {strides = array<i32>} : memref<128x128xf32, #tpu.memory_space<vmem>>, vector<8x128xf32>,
    %c96_127 = arith.constant 96 : index
    %c0_128 = arith.constant 0 : index
    %450 = vector.load %arg6[%c96_127, %c0_128] : memref<128x128xf32, #tpu.memory_space<vmem>>, vector<8x128xf32>
    %451 = vector.broadcast %3 : f32 to vector<8x128xf32>
    %452 = arith.mulf %451, %448 : vector<8x128xf32>
    %453 = arith.addf %450, %452 : vector<8x128xf32>
    %c96_129 = arith.constant 96 : index
    %c0_130 = arith.constant 0 : index
    %454 = vector.load %arg8[%c96_129, %c0_130] : memref<128x128xf32, #tpu.memory_space<vmem>>, vector<8x128xf32>
    tpu.vector_store %arg8[%c96_129, %c0_130], %453 {strides = array<i32>} : memref<128x128xf32, #tpu.memory_space<vmem>>, vector<8x128xf32>,
    %455 = vector.extract_strided_slice %9 {offsets = [104, 0], sizes = [8, 512], strides = [1, 1]} : vector<128x512xf32> to vector<8x512xf32>
    %cst_131 = arith.constant dense<0.000000e+00> : vector<8x512xf32>
    %456 = tpu.matmul %448, %10, %cst_131 {dimension_numbers = #tpu.dot_dimension_numbers<[1], [0], [0], [1], [0, 0, 1, 1], [], []>} : vector<8x128xf32>, vector<128x512xf32>, vector<8x512xf32> -> vector<8x512xf32>
    %457 = arith.addf %455, %456 : vector<8x512xf32>
    %458 = vector.extract_strided_slice %457 {offsets = [0, 0], sizes = [8, 128], strides = [1, 1]} : vector<8x512xf32> to vector<8x128xf32>
    %459 = arith.negf %458 : vector<8x128xf32>
    %460 = math.exp %459 : vector<8x128xf32>
    %cst_132 = arith.constant 1.000000e+00 : f32
    %461 = vector.broadcast %cst_132 : f32 to vector<8x128xf32>
    %462 = arith.addf %461, %460 : vector<8x128xf32>
    %463 = arith.divf %461, %462 : vector<8x128xf32>
    %464 = vector.extract_strided_slice %457 {offsets = [0, 128], sizes = [8, 128], strides = [1, 1]} : vector<8x512xf32> to vector<8x128xf32>
    %465 = arith.negf %464 : vector<8x128xf32>
    %466 = math.exp %465 : vector<8x128xf32>
    %cst_133 = arith.constant 1.000000e+00 : f32
    %467 = vector.broadcast %cst_133 : f32 to vector<8x128xf32>
    %468 = arith.addf %467, %466 : vector<8x128xf32>
    %469 = arith.divf %467, %468 : vector<8x128xf32>
    %470 = vector.extract_strided_slice %457 {offsets = [0, 256], sizes = [8, 128], strides = [1, 1]} : vector<8x512xf32> to vector<8x128xf32>
    %471 = math.tanh %470 : vector<8x128xf32>
    %472 = vector.extract_strided_slice %457 {offsets = [0, 384], sizes = [8, 128], strides = [1, 1]} : vector<8x512xf32> to vector<8x128xf32>
    %473 = arith.negf %472 : vector<8x128xf32>
    %474 = math.exp %473 : vector<8x128xf32>
    %cst_134 = arith.constant 1.000000e+00 : f32
    %475 = vector.broadcast %cst_134 : f32 to vector<8x128xf32>
    %476 = arith.addf %475, %474 : vector<8x128xf32>
    %477 = arith.divf %475, %476 : vector<8x128xf32>
    %478 = arith.mulf %469, %446 : vector<8x128xf32>
    %479 = arith.mulf %463, %471 : vector<8x128xf32>
    %480 = arith.addf %478, %479 : vector<8x128xf32>
    %481 = math.tanh %480 : vector<8x128xf32>
    %482 = arith.mulf %477, %481 : vector<8x128xf32>
    %c104 = arith.constant 104 : index
    %c0_135 = arith.constant 0 : index
    %483 = vector.load %arg7[%c104, %c0_135] : memref<128x128xf32, #tpu.memory_space<vmem>>, vector<8x128xf32>
    tpu.vector_store %arg7[%c104, %c0_135], %482 {strides = array<i32>} : memref<128x128xf32, #tpu.memory_space<vmem>>, vector<8x128xf32>,
    %c104_136 = arith.constant 104 : index
    %c0_137 = arith.constant 0 : index
    %484 = vector.load %arg6[%c104_136, %c0_137] : memref<128x128xf32, #tpu.memory_space<vmem>>, vector<8x128xf32>
    %485 = vector.broadcast %3 : f32 to vector<8x128xf32>
    %486 = arith.mulf %485, %482 : vector<8x128xf32>
    %487 = arith.addf %484, %486 : vector<8x128xf32>
    %c104_138 = arith.constant 104 : index
    %c0_139 = arith.constant 0 : index
    %488 = vector.load %arg8[%c104_138, %c0_139] : memref<128x128xf32, #tpu.memory_space<vmem>>, vector<8x128xf32>
    tpu.vector_store %arg8[%c104_138, %c0_139], %487 {strides = array<i32>} : memref<128x128xf32, #tpu.memory_space<vmem>>, vector<8x128xf32>,
    %489 = vector.extract_strided_slice %9 {offsets = [112, 0], sizes = [8, 512], strides = [1, 1]} : vector<128x512xf32> to vector<8x512xf32>
    %cst_140 = arith.constant dense<0.000000e+00> : vector<8x512xf32>
    %490 = tpu.matmul %482, %10, %cst_140 {dimension_numbers = #tpu.dot_dimension_numbers<[1], [0], [0], [1], [0, 0, 1, 1], [], []>} : vector<8x128xf32>, vector<128x512xf32>, vector<8x512xf32> -> vector<8x512xf32>
    %491 = arith.addf %489, %490 : vector<8x512xf32>
    %492 = vector.extract_strided_slice %491 {offsets = [0, 0], sizes = [8, 128], strides = [1, 1]} : vector<8x512xf32> to vector<8x128xf32>
    %493 = arith.negf %492 : vector<8x128xf32>
    %494 = math.exp %493 : vector<8x128xf32>
    %cst_141 = arith.constant 1.000000e+00 : f32
    %495 = vector.broadcast %cst_141 : f32 to vector<8x128xf32>
    %496 = arith.addf %495, %494 : vector<8x128xf32>
    %497 = arith.divf %495, %496 : vector<8x128xf32>
    %498 = vector.extract_strided_slice %491 {offsets = [0, 128], sizes = [8, 128], strides = [1, 1]} : vector<8x512xf32> to vector<8x128xf32>
    %499 = arith.negf %498 : vector<8x128xf32>
    %500 = math.exp %499 : vector<8x128xf32>
    %cst_142 = arith.constant 1.000000e+00 : f32
    %501 = vector.broadcast %cst_142 : f32 to vector<8x128xf32>
    %502 = arith.addf %501, %500 : vector<8x128xf32>
    %503 = arith.divf %501, %502 : vector<8x128xf32>
    %504 = vector.extract_strided_slice %491 {offsets = [0, 256], sizes = [8, 128], strides = [1, 1]} : vector<8x512xf32> to vector<8x128xf32>
    %505 = math.tanh %504 : vector<8x128xf32>
    %506 = vector.extract_strided_slice %491 {offsets = [0, 384], sizes = [8, 128], strides = [1, 1]} : vector<8x512xf32> to vector<8x128xf32>
    %507 = arith.negf %506 : vector<8x128xf32>
    %508 = math.exp %507 : vector<8x128xf32>
    %cst_143 = arith.constant 1.000000e+00 : f32
    %509 = vector.broadcast %cst_143 : f32 to vector<8x128xf32>
    %510 = arith.addf %509, %508 : vector<8x128xf32>
    %511 = arith.divf %509, %510 : vector<8x128xf32>
    %512 = arith.mulf %503, %480 : vector<8x128xf32>
    %513 = arith.mulf %497, %505 : vector<8x128xf32>
    %514 = arith.addf %512, %513 : vector<8x128xf32>
    %515 = math.tanh %514 : vector<8x128xf32>
    %516 = arith.mulf %511, %515 : vector<8x128xf32>
    %c112 = arith.constant 112 : index
    %c0_144 = arith.constant 0 : index
    %517 = vector.load %arg7[%c112, %c0_144] : memref<128x128xf32, #tpu.memory_space<vmem>>, vector<8x128xf32>
    tpu.vector_store %arg7[%c112, %c0_144], %516 {strides = array<i32>} : memref<128x128xf32, #tpu.memory_space<vmem>>, vector<8x128xf32>,
    %c112_145 = arith.constant 112 : index
    %c0_146 = arith.constant 0 : index
    %518 = vector.load %arg6[%c112_145, %c0_146] : memref<128x128xf32, #tpu.memory_space<vmem>>, vector<8x128xf32>
    %519 = vector.broadcast %3 : f32 to vector<8x128xf32>
    %520 = arith.mulf %519, %516 : vector<8x128xf32>
    %521 = arith.addf %518, %520 : vector<8x128xf32>
    %c112_147 = arith.constant 112 : index
    %c0_148 = arith.constant 0 : index
    %522 = vector.load %arg8[%c112_147, %c0_148] : memref<128x128xf32, #tpu.memory_space<vmem>>, vector<8x128xf32>
    tpu.vector_store %arg8[%c112_147, %c0_148], %521 {strides = array<i32>} : memref<128x128xf32, #tpu.memory_space<vmem>>, vector<8x128xf32>,
    %523 = vector.extract_strided_slice %9 {offsets = [120, 0], sizes = [8, 512], strides = [1, 1]} : vector<128x512xf32> to vector<8x512xf32>
    %cst_149 = arith.constant dense<0.000000e+00> : vector<8x512xf32>
    %524 = tpu.matmul %516, %10, %cst_149 {dimension_numbers = #tpu.dot_dimension_numbers<[1], [0], [0], [1], [0, 0, 1, 1], [], []>} : vector<8x128xf32>, vector<128x512xf32>, vector<8x512xf32> -> vector<8x512xf32>
    %525 = arith.addf %523, %524 : vector<8x512xf32>
    %526 = vector.extract_strided_slice %525 {offsets = [0, 0], sizes = [8, 128], strides = [1, 1]} : vector<8x512xf32> to vector<8x128xf32>
    %527 = arith.negf %526 : vector<8x128xf32>
    %528 = math.exp %527 : vector<8x128xf32>
    %cst_150 = arith.constant 1.000000e+00 : f32
    %529 = vector.broadcast %cst_150 : f32 to vector<8x128xf32>
    %530 = arith.addf %529, %528 : vector<8x128xf32>
    %531 = arith.divf %529, %530 : vector<8x128xf32>
    %532 = vector.extract_strided_slice %525 {offsets = [0, 128], sizes = [8, 128], strides = [1, 1]} : vector<8x512xf32> to vector<8x128xf32>
    %533 = arith.negf %532 : vector<8x128xf32>
    %534 = math.exp %533 : vector<8x128xf32>
    %cst_151 = arith.constant 1.000000e+00 : f32
    %535 = vector.broadcast %cst_151 : f32 to vector<8x128xf32>
    %536 = arith.addf %535, %534 : vector<8x128xf32>
    %537 = arith.divf %535, %536 : vector<8x128xf32>
    %538 = vector.extract_strided_slice %525 {offsets = [0, 256], sizes = [8, 128], strides = [1, 1]} : vector<8x512xf32> to vector<8x128xf32>
    %539 = math.tanh %538 : vector<8x128xf32>
    %540 = vector.extract_strided_slice %525 {offsets = [0, 384], sizes = [8, 128], strides = [1, 1]} : vector<8x512xf32> to vector<8x128xf32>
    %541 = arith.negf %540 : vector<8x128xf32>
    %542 = math.exp %541 : vector<8x128xf32>
    %cst_152 = arith.constant 1.000000e+00 : f32
    %543 = vector.broadcast %cst_152 : f32 to vector<8x128xf32>
    %544 = arith.addf %543, %542 : vector<8x128xf32>
    %545 = arith.divf %543, %544 : vector<8x128xf32>
    %546 = arith.mulf %537, %514 : vector<8x128xf32>
    %547 = arith.mulf %531, %539 : vector<8x128xf32>
    %548 = arith.addf %546, %547 : vector<8x128xf32>
    %549 = math.tanh %548 : vector<8x128xf32>
    %550 = arith.mulf %545, %549 : vector<8x128xf32>
    %c120 = arith.constant 120 : index
    %c0_153 = arith.constant 0 : index
    %551 = vector.load %arg7[%c120, %c0_153] : memref<128x128xf32, #tpu.memory_space<vmem>>, vector<8x128xf32>
    tpu.vector_store %arg7[%c120, %c0_153], %550 {strides = array<i32>} : memref<128x128xf32, #tpu.memory_space<vmem>>, vector<8x128xf32>,
    %c120_154 = arith.constant 120 : index
    %c0_155 = arith.constant 0 : index
    %552 = vector.load %arg6[%c120_154, %c0_155] : memref<128x128xf32, #tpu.memory_space<vmem>>, vector<8x128xf32>
    %553 = vector.broadcast %3 : f32 to vector<8x128xf32>
    %554 = arith.mulf %553, %550 : vector<8x128xf32>
    %555 = arith.addf %552, %554 : vector<8x128xf32>
    %c120_156 = arith.constant 120 : index
    %c0_157 = arith.constant 0 : index
    %556 = vector.load %arg8[%c120_156, %c0_157] : memref<128x128xf32, #tpu.memory_space<vmem>>, vector<8x128xf32>
    tpu.vector_store %arg8[%c120_156, %c0_157], %555 {strides = array<i32>} : memref<128x128xf32, #tpu.memory_space<vmem>>, vector<8x128xf32>,
    %c0_158 = arith.constant 0 : index
    %c0_159 = arith.constant 0 : index
    %557 = vector.load %arg9[%c0_158, %c0_159] : memref<8x128xf32, #tpu.memory_space<vmem>>, vector<8x128xf32>
    tpu.vector_store %arg9[%c0_158, %c0_159], %550 {strides = array<i32>} : memref<8x128xf32, #tpu.memory_space<vmem>>, vector<8x128xf32>,
    %c0_160 = arith.constant 0 : index
    %c0_161 = arith.constant 0 : index
    %558 = vector.load %arg10[%c0_160, %c0_161] : memref<8x128xf32, #tpu.memory_space<vmem>>, vector<8x128xf32>
    tpu.vector_store %arg10[%c0_160, %c0_161], %548 {strides = array<i32>} : memref<8x128xf32, #tpu.memory_space<vmem>>, vector<8x128xf32>,
    return
  }
  func.func @transform_0(%arg0: i32) -> i32 {
    %c0_i32 = arith.constant 0 : i32
    %c0_i32_0 = arith.constant 0 : i32
    return %c0_i32 : i32
  }
  func.func @transform_1(%arg0: i32) -> (i32, i32) {
    %c0_i32 = arith.constant 0 : i32
    %c0_i32_0 = arith.constant 0 : i32
    return %arg0, %c0_i32 : i32, i32
  }
  func.func @transform_2(%arg0: i32) -> (i32, i32) {
    %c0_i32 = arith.constant 0 : i32
    %c0_i32_0 = arith.constant 0 : i32
    %c0_i32_1 = arith.constant 0 : i32
    return %c0_i32, %c0_i32_0 : i32, i32
  }
  func.func @transform_3(%arg0: i32) -> (i32, i32) {
    %c0_i32 = arith.constant 0 : i32
    %c0_i32_0 = arith.constant 0 : i32
    %c0_i32_1 = arith.constant 0 : i32
    return %c0_i32, %c0_i32_0 : i32, i32
  }
  func.func @transform_4(%arg0: i32) -> (i32, i32) {
    %c0_i32 = arith.constant 0 : i32
    %c0_i32_0 = arith.constant 0 : i32
    %c0_i32_1 = arith.constant 0 : i32
    return %c0_i32, %c0_i32_0 : i32, i32
  }
  func.func @transform_5(%arg0: i32) -> (i32, i32) {
    %c0_i32 = arith.constant 0 : i32
    %c0_i32_0 = arith.constant 0 : i32
    return %arg0, %c0_i32 : i32, i32
  }
  func.func @transform_6(%arg0: i32) -> (i32, i32) {
    %c0_i32 = arith.constant 0 : i32
    %c0_i32_0 = arith.constant 0 : i32
    return %arg0, %c0_i32 : i32, i32
  }
  func.func @transform_7(%arg0: i32) -> (i32, i32) {
    %c0_i32 = arith.constant 0 : i32
    %c0_i32_0 = arith.constant 0 : i32
    return %arg0, %c0_i32 : i32, i32
  }
}

module attributes {stable_mosaic.version = 11 : i64} {
  func.func @_lstm_mix_kernel(%arg0: i32, %arg1: memref<1xf32, #tpu.memory_space<smem>>, %arg2: memref<128x128xf32, #tpu.memory_space<vmem>>, %arg3: memref<128x512xf32, #tpu.memory_space<vmem>>, %arg4: memref<128x512xf32, #tpu.memory_space<vmem>>, %arg5: memref<1x512xf32, #tpu.memory_space<vmem>>, %arg6: memref<128x128xf32, #tpu.memory_space<vmem>>, %arg7: memref<128x128xf32, #tpu.memory_space<vmem>>, %arg8: memref<128x128xf32, #tpu.memory_space<vmem>>, %arg9: memref<8x128xf32, #tpu.memory_space<vmem>>, %arg10: memref<8x128xf32, #tpu.memory_space<vmem>>) attributes {dimension_semantics = [#tpu.dimension_semantics<arbitrary>], iteration_bounds = array<i64: 1>, scalar_prefetch = 0 : i64, scratch_operands = 2 : i64, tpu.core_type = #tpu.core_type<tc>, window_params = [{transform_indices = @transform_0, window_bounds = array<i64: 1>}, {transform_indices = @transform_1, window_bounds = array<i64: 128, 128>}, {pipeline_mode = #tpu.pipeline_mode<synchronous>, transform_indices = @transform_2, window_bounds = array<i64: 128, 512>}, {pipeline_mode = #tpu.pipeline_mode<synchronous>, transform_indices = @transform_3, window_bounds = array<i64: 128, 512>}, {pipeline_mode = #tpu.pipeline_mode<synchronous>, transform_indices = @transform_4, window_bounds = array<i64: 1, 512>}, {transform_indices = @transform_5, window_bounds = array<i64: 128, 128>}, {transform_indices = @transform_6, window_bounds = array<i64: 128, 128>}, {transform_indices = @transform_7, window_bounds = array<i64: 128, 128>}]} {
    %c0_i32 = arith.constant 0 : i32
    %0 = arith.cmpi eq, %arg0, %c0_i32 : i32
    %1 = arith.extui %0 : i1 to i32
    %c0_i32_0 = arith.constant 0 : i32
    %2 = arith.cmpi ne, %1, %c0_i32_0 : i32
    scf.if %2 {
      %cst_162 = arith.constant 0.000000e+00 : f32
      %559 = vector.broadcast %cst_162 : f32 to vector<8x128xf32>
      %c0_163 = arith.constant 0 : index
      %c0_164 = arith.constant 0 : index
      %560 = vector.load %arg9[%c0_163, %c0_164] : memref<8x128xf32, #tpu.memory_space<vmem>>, vector<8x128xf32>
      tpu.vector_store %arg9[%c0_163, %c0_164], %559 {strides = array<i32>} : memref<8x128xf32, #tpu.memory_space<vmem>>, vector<8x128xf32>,
      %cst_165 = arith.constant 0.000000e+00 : f32
      %561 = vector.broadcast %cst_165 : f32 to vector<8x128xf32>
      %c0_166 = arith.constant 0 : index
      %c0_167 = arith.constant 0 : index
      %562 = vector.load %arg10[%c0_166, %c0_167] : memref<8x128xf32, #tpu.memory_space<vmem>>, vector<8x128xf32>
      tpu.vector_store %arg10[%c0_166, %c0_167], %561 {strides = array<i32>} : memref<8x128xf32, #tpu.memory_space<vmem>>, vector<8x128xf32>,
    } else {
    }
    %c0 = arith.constant 0 : index
    %3 = memref.load %arg1[%c0] : memref<1xf32, #tpu.memory_space<smem>>
    %c0_1 = arith.constant 0 : index
    %c0_2 = arith.constant 0 : index
    %4 = vector.load %arg2[%c0_1, %c0_2] : memref<128x128xf32, #tpu.memory_space<vmem>>, vector<128x128xf32>
    %c0_3 = arith.constant 0 : index
    %c0_4 = arith.constant 0 : index
    %5 = vector.load %arg3[%c0_3, %c0_4] : memref<128x512xf32, #tpu.memory_space<vmem>>, vector<128x512xf32>
    %cst = arith.constant dense<0.000000e+00> : vector<128x512xf32>
    %6 = tpu.matmul %4, %5, %cst {dimension_numbers = #tpu.dot_dimension_numbers<[1], [0], [0], [1], [0, 0, 1, 1], [], []>} : vector<128x128xf32>, vector<128x512xf32>, vector<128x512xf32> -> vector<128x512xf32>
    %c0_5 = arith.constant 0 : index
    %c0_6 = arith.constant 0 : index
    %7 = vector.load %arg5[%c0_5, %c0_6] : memref<1x512xf32, #tpu.memory_space<vmem>>, vector<1x512xf32>
    %8 = vector.broadcast %7 : vector<1x512xf32> to vector<128x512xf32>
    %9 = arith.addf %6, %8 : vector<128x512xf32>
    %c0_7 = arith.constant 0 : index
    %c0_8 = arith.constant 0 : index
    %10 = vector.load %arg4[%c0_7, %c0_8] : memref<128x512xf32, #tpu.memory_space<vmem>>, vector<128x512xf32>
    %c0_9 = arith.constant 0 : index
    %c0_10 = arith.constant 0 : index
    %11 = vector.load %arg9[%c0_9, %c0_10] : memref<8x128xf32, #tpu.memory_space<vmem>>, vector<8x128xf32>
    %c0_11 = arith.constant 0 : index
    %c0_12 = arith.constant 0 : index
    %12 = vector.load %arg10[%c0_11, %c0_12] : memref<8x128xf32, #tpu.memory_space<vmem>>, vector<8x128xf32>
    %13 = vector.extract_strided_slice %9 {offsets = [0, 0], sizes = [8, 512], strides = [1, 1]} : vector<128x512xf32> to vector<8x512xf32>
    %cst_13 = arith.constant dense<0.000000e+00> : vector<8x512xf32>
    %14 = tpu.matmul %11, %10, %cst_13 {dimension_numbers = #tpu.dot_dimension_numbers<[1], [0], [0], [1], [0, 0, 1, 1], [], []>} : vector<8x128xf32>, vector<128x512xf32>, vector<8x512xf32> -> vector<8x512xf32>
    %15 = arith.addf %13, %14 : vector<8x512xf32>
    %16 = vector.extract_strided_slice %15 {offsets = [0, 0], sizes = [8, 128], strides = [1, 1]} : vector<8x512xf32> to vector<8x128xf32>
    %17 = arith.negf %16 : vector<8x128xf32>
    %18 = math.exp %17 : vector<8x128xf32>
    %cst_14 = arith.constant 1.000000e+00 : f32
    %19 = vector.broadcast %cst_14 : f32 to vector<8x128xf32>
    %20 = arith.addf %19, %18 : vector<8x128xf32>
    %21 = arith.divf %19, %20 : vector<8x128xf32>
    %22 = vector.extract_strided_slice %15 {offsets = [0, 128], sizes = [8, 128], strides = [1, 1]} : vector<8x512xf32> to vector<8x128xf32>
    %23 = arith.negf %22 : vector<8x128xf32>
    %24 = math.exp %23 : vector<8x128xf32>
    %cst_15 = arith.constant 1.000000e+00 : f32
    %25 = vector.broadcast %cst_15 : f32 to vector<8x128xf32>
    %26 = arith.addf %25, %24 : vector<8x128xf32>
    %27 = arith.divf %25, %26 : vector<8x128xf32>
    %28 = vector.extract_strided_slice %15 {offsets = [0, 256], sizes = [8, 128], strides = [1, 1]} : vector<8x512xf32> to vector<8x128xf32>
    %29 = math.tanh %28 : vector<8x128xf32>
    %30 = vector.extract_strided_slice %15 {offsets = [0, 384], sizes = [8, 128], strides = [1, 1]} : vector<8x512xf32> to vector<8x128xf32>
    %31 = arith.negf %30 : vector<8x128xf32>
    %32 = math.exp %31 : vector<8x128xf32>
    %cst_16 = arith.constant 1.000000e+00 : f32
    %33 = vector.broadcast %cst_16 : f32 to vector<8x128xf32>
    %34 = arith.addf %33, %32 : vector<8x128xf32>
    %35 = arith.divf %33, %34 : vector<8x128xf32>
    %36 = arith.mulf %27, %12 : vector<8x128xf32>
    %37 = arith.mulf %21, %29 : vector<8x128xf32>
    %38 = arith.addf %36, %37 : vector<8x128xf32>
    %39 = math.tanh %38 : vector<8x128xf32>
    %40 = arith.mulf %35, %39 : vector<8x128xf32>
    %c0_17 = arith.constant 0 : index
    %c0_18 = arith.constant 0 : index
    %41 = vector.load %arg7[%c0_17, %c0_18] : memref<128x128xf32, #tpu.memory_space<vmem>>, vector<8x128xf32>
    tpu.vector_store %arg7[%c0_17, %c0_18], %40 {strides = array<i32>} : memref<128x128xf32, #tpu.memory_space<vmem>>, vector<8x128xf32>,
    %c0_19 = arith.constant 0 : index
    %c0_20 = arith.constant 0 : index
    %42 = vector.load %arg6[%c0_19, %c0_20] : memref<128x128xf32, #tpu.memory_space<vmem>>, vector<8x128xf32>
    %43 = vector.broadcast %3 : f32 to vector<8x128xf32>
    %44 = arith.mulf %43, %40 : vector<8x128xf32>
    %45 = arith.addf %42, %44 : vector<8x128xf32>
    %c0_21 = arith.constant 0 : index
    %c0_22 = arith.constant 0 : index
    %46 = vector.load %arg8[%c0_21, %c0_22] : memref<128x128xf32, #tpu.memory_space<vmem>>, vector<8x128xf32>
    tpu.vector_store %arg8[%c0_21, %c0_22], %45 {strides = array<i32>} : memref<128x128xf32, #tpu.memory_space<vmem>>, vector<8x128xf32>,
    %47 = vector.extract_strided_slice %9 {offsets = [8, 0], sizes = [8, 512], strides = [1, 1]} : vector<128x512xf32> to vector<8x512xf32>
    %cst_23 = arith.constant dense<0.000000e+00> : vector<8x512xf32>
    %48 = tpu.matmul %40, %10, %cst_23 {dimension_numbers = #tpu.dot_dimension_numbers<[1], [0], [0], [1], [0, 0, 1, 1], [], []>} : vector<8x128xf32>, vector<128x512xf32>, vector<8x512xf32> -> vector<8x512xf32>
    %49 = arith.addf %47, %48 : vector<8x512xf32>
    %50 = vector.extract_strided_slice %49 {offsets = [0, 0], sizes = [8, 128], strides = [1, 1]} : vector<8x512xf32> to vector<8x128xf32>
    %51 = arith.negf %50 : vector<8x128xf32>
    %52 = math.exp %51 : vector<8x128xf32>
    %cst_24 = arith.constant 1.000000e+00 : f32
    %53 = vector.broadcast %cst_24 : f32 to vector<8x128xf32>
    %54 = arith.addf %53, %52 : vector<8x128xf32>
    %55 = arith.divf %53, %54 : vector<8x128xf32>
    %56 = vector.extract_strided_slice %49 {offsets = [0, 128], sizes = [8, 128], strides = [1, 1]} : vector<8x512xf32> to vector<8x128xf32>
    %57 = arith.negf %56 : vector<8x128xf32>
    %58 = math.exp %57 : vector<8x128xf32>
    %cst_25 = arith.constant 1.000000e+00 : f32
    %59 = vector.broadcast %cst_25 : f32 to vector<8x128xf32>
    %60 = arith.addf %59, %58 : vector<8x128xf32>
    %61 = arith.divf %59, %60 : vector<8x128xf32>
    %62 = vector.extract_strided_slice %49 {offsets = [0, 256], sizes = [8, 128], strides = [1, 1]} : vector<8x512xf32> to vector<8x128xf32>
    %63 = math.tanh %62 : vector<8x128xf32>
    %64 = vector.extract_strided_slice %49 {offsets = [0, 384], sizes = [8, 128], strides = [1, 1]} : vector<8x512xf32> to vector<8x128xf32>
    %65 = arith.negf %64 : vector<8x128xf32>
    %66 = math.exp %65 : vector<8x128xf32>
    %cst_26 = arith.constant 1.000000e+00 : f32
    %67 = vector.broadcast %cst_26 : f32 to vector<8x128xf32>
    %68 = arith.addf %67, %66 : vector<8x128xf32>
    %69 = arith.divf %67, %68 : vector<8x128xf32>
    %70 = arith.mulf %61, %38 : vector<8x128xf32>
    %71 = arith.mulf %55, %63 : vector<8x128xf32>
    %72 = arith.addf %70, %71 : vector<8x128xf32>
    %73 = math.tanh %72 : vector<8x128xf32>
    %74 = arith.mulf %69, %73 : vector<8x128xf32>
    %c8 = arith.constant 8 : index
    %c0_27 = arith.constant 0 : index
    %75 = vector.load %arg7[%c8, %c0_27] : memref<128x128xf32, #tpu.memory_space<vmem>>, vector<8x128xf32>
    tpu.vector_store %arg7[%c8, %c0_27], %74 {strides = array<i32>} : memref<128x128xf32, #tpu.memory_space<vmem>>, vector<8x128xf32>,
    %c8_28 = arith.constant 8 : index
    %c0_29 = arith.constant 0 : index
    %76 = vector.load %arg6[%c8_28, %c0_29] : memref<128x128xf32, #tpu.memory_space<vmem>>, vector<8x128xf32>
    %77 = vector.broadcast %3 : f32 to vector<8x128xf32>
    %78 = arith.mulf %77, %74 : vector<8x128xf32>
    %79 = arith.addf %76, %78 : vector<8x128xf32>
    %c8_30 = arith.constant 8 : index
    %c0_31 = arith.constant 0 : index
    %80 = vector.load %arg8[%c8_30, %c0_31] : memref<128x128xf32, #tpu.memory_space<vmem>>, vector<8x128xf32>
    tpu.vector_store %arg8[%c8_30, %c0_31], %79 {strides = array<i32>} : memref<128x128xf32, #tpu.memory_space<vmem>>, vector<8x128xf32>,
    %81 = vector.extract_strided_slice %9 {offsets = [16, 0], sizes = [8, 512], strides = [1, 1]} : vector<128x512xf32> to vector<8x512xf32>
    %cst_32 = arith.constant dense<0.000000e+00> : vector<8x512xf32>
    %82 = tpu.matmul %74, %10, %cst_32 {dimension_numbers = #tpu.dot_dimension_numbers<[1], [0], [0], [1], [0, 0, 1, 1], [], []>} : vector<8x128xf32>, vector<128x512xf32>, vector<8x512xf32> -> vector<8x512xf32>
    %83 = arith.addf %81, %82 : vector<8x512xf32>
    %84 = vector.extract_strided_slice %83 {offsets = [0, 0], sizes = [8, 128], strides = [1, 1]} : vector<8x512xf32> to vector<8x128xf32>
    %85 = arith.negf %84 : vector<8x128xf32>
    %86 = math.exp %85 : vector<8x128xf32>
    %cst_33 = arith.constant 1.000000e+00 : f32
    %87 = vector.broadcast %cst_33 : f32 to vector<8x128xf32>
    %88 = arith.addf %87, %86 : vector<8x128xf32>
    %89 = arith.divf %87, %88 : vector<8x128xf32>
    %90 = vector.extract_strided_slice %83 {offsets = [0, 128], sizes = [8, 128], strides = [1, 1]} : vector<8x512xf32> to vector<8x128xf32>
    %91 = arith.negf %90 : vector<8x128xf32>
    %92 = math.exp %91 : vector<8x128xf32>
    %cst_34 = arith.constant 1.000000e+00 : f32
    %93 = vector.broadcast %cst_34 : f32 to vector<8x128xf32>
    %94 = arith.addf %93, %92 : vector<8x128xf32>
    %95 = arith.divf %93, %94 : vector<8x128xf32>
    %96 = vector.extract_strided_slice %83 {offsets = [0, 256], sizes = [8, 128], strides = [1, 1]} : vector<8x512xf32> to vector<8x128xf32>
    %97 = math.tanh %96 : vector<8x128xf32>
    %98 = vector.extract_strided_slice %83 {offsets = [0, 384], sizes = [8, 128], strides = [1, 1]} : vector<8x512xf32> to vector<8x128xf32>
    %99 = arith.negf %98 : vector<8x128xf32>
    %100 = math.exp %99 : vector<8x128xf32>
    %cst_35 = arith.constant 1.000000e+00 : f32
    %101 = vector.broadcast %cst_35 : f32 to vector<8x128xf32>
    %102 = arith.addf %101, %100 : vector<8x128xf32>
    %103 = arith.divf %101, %102 : vector<8x128xf32>
    %104 = arith.mulf %95, %72 : vector<8x128xf32>
    %105 = arith.mulf %89, %97 : vector<8x128xf32>
    %106 = arith.addf %104, %105 : vector<8x128xf32>
    %107 = math.tanh %106 : vector<8x128xf32>
    %108 = arith.mulf %103, %107 : vector<8x128xf32>
    %c16 = arith.constant 16 : index
    %c0_36 = arith.constant 0 : index
    %109 = vector.load %arg7[%c16, %c0_36] : memref<128x128xf32, #tpu.memory_space<vmem>>, vector<8x128xf32>
    tpu.vector_store %arg7[%c16, %c0_36], %108 {strides = array<i32>} : memref<128x128xf32, #tpu.memory_space<vmem>>, vector<8x128xf32>,
    %c16_37 = arith.constant 16 : index
    %c0_38 = arith.constant 0 : index
    %110 = vector.load %arg6[%c16_37, %c0_38] : memref<128x128xf32, #tpu.memory_space<vmem>>, vector<8x128xf32>
    %111 = vector.broadcast %3 : f32 to vector<8x128xf32>
    %112 = arith.mulf %111, %108 : vector<8x128xf32>
    %113 = arith.addf %110, %112 : vector<8x128xf32>
    %c16_39 = arith.constant 16 : index
    %c0_40 = arith.constant 0 : index
    %114 = vector.load %arg8[%c16_39, %c0_40] : memref<128x128xf32, #tpu.memory_space<vmem>>, vector<8x128xf32>
    tpu.vector_store %arg8[%c16_39, %c0_40], %113 {strides = array<i32>} : memref<128x128xf32, #tpu.memory_space<vmem>>, vector<8x128xf32>,
    %115 = vector.extract_strided_slice %9 {offsets = [24, 0], sizes = [8, 512], strides = [1, 1]} : vector<128x512xf32> to vector<8x512xf32>
    %cst_41 = arith.constant dense<0.000000e+00> : vector<8x512xf32>
    %116 = tpu.matmul %108, %10, %cst_41 {dimension_numbers = #tpu.dot_dimension_numbers<[1], [0], [0], [1], [0, 0, 1, 1], [], []>} : vector<8x128xf32>, vector<128x512xf32>, vector<8x512xf32> -> vector<8x512xf32>
    %117 = arith.addf %115, %116 : vector<8x512xf32>
    %118 = vector.extract_strided_slice %117 {offsets = [0, 0], sizes = [8, 128], strides = [1, 1]} : vector<8x512xf32> to vector<8x128xf32>
    %119 = arith.negf %118 : vector<8x128xf32>
    %120 = math.exp %119 : vector<8x128xf32>
    %cst_42 = arith.constant 1.000000e+00 : f32
    %121 = vector.broadcast %cst_42 : f32 to vector<8x128xf32>
    %122 = arith.addf %121, %120 : vector<8x128xf32>
    %123 = arith.divf %121, %122 : vector<8x128xf32>
    %124 = vector.extract_strided_slice %117 {offsets = [0, 128], sizes = [8, 128], strides = [1, 1]} : vector<8x512xf32> to vector<8x128xf32>
    %125 = arith.negf %124 : vector<8x128xf32>
    %126 = math.exp %125 : vector<8x128xf32>
    %cst_43 = arith.constant 1.000000e+00 : f32
    %127 = vector.broadcast %cst_43 : f32 to vector<8x128xf32>
    %128 = arith.addf %127, %126 : vector<8x128xf32>
    %129 = arith.divf %127, %128 : vector<8x128xf32>
    %130 = vector.extract_strided_slice %117 {offsets = [0, 256], sizes = [8, 128], strides = [1, 1]} : vector<8x512xf32> to vector<8x128xf32>
    %131 = math.tanh %130 : vector<8x128xf32>
    %132 = vector.extract_strided_slice %117 {offsets = [0, 384], sizes = [8, 128], strides = [1, 1]} : vector<8x512xf32> to vector<8x128xf32>
    %133 = arith.negf %132 : vector<8x128xf32>
    %134 = math.exp %133 : vector<8x128xf32>
    %cst_44 = arith.constant 1.000000e+00 : f32
    %135 = vector.broadcast %cst_44 : f32 to vector<8x128xf32>
    %136 = arith.addf %135, %134 : vector<8x128xf32>
    %137 = arith.divf %135, %136 : vector<8x128xf32>
    %138 = arith.mulf %129, %106 : vector<8x128xf32>
    %139 = arith.mulf %123, %131 : vector<8x128xf32>
    %140 = arith.addf %138, %139 : vector<8x128xf32>
    %141 = math.tanh %140 : vector<8x128xf32>
    %142 = arith.mulf %137, %141 : vector<8x128xf32>
    %c24 = arith.constant 24 : index
    %c0_45 = arith.constant 0 : index
    %143 = vector.load %arg7[%c24, %c0_45] : memref<128x128xf32, #tpu.memory_space<vmem>>, vector<8x128xf32>
    tpu.vector_store %arg7[%c24, %c0_45], %142 {strides = array<i32>} : memref<128x128xf32, #tpu.memory_space<vmem>>, vector<8x128xf32>,
    %c24_46 = arith.constant 24 : index
    %c0_47 = arith.constant 0 : index
    %144 = vector.load %arg6[%c24_46, %c0_47] : memref<128x128xf32, #tpu.memory_space<vmem>>, vector<8x128xf32>
    %145 = vector.broadcast %3 : f32 to vector<8x128xf32>
    %146 = arith.mulf %145, %142 : vector<8x128xf32>
    %147 = arith.addf %144, %146 : vector<8x128xf32>
    %c24_48 = arith.constant 24 : index
    %c0_49 = arith.constant 0 : index
    %148 = vector.load %arg8[%c24_48, %c0_49] : memref<128x128xf32, #tpu.memory_space<vmem>>, vector<8x128xf32>
    tpu.vector_store %arg8[%c24_48, %c0_49], %147 {strides = array<i32>} : memref<128x128xf32, #tpu.memory_space<vmem>>, vector<8x128xf32>,
    %149 = vector.extract_strided_slice %9 {offsets = [32, 0], sizes = [8, 512], strides = [1, 1]} : vector<128x512xf32> to vector<8x512xf32>
    %cst_50 = arith.constant dense<0.000000e+00> : vector<8x512xf32>
    %150 = tpu.matmul %142, %10, %cst_50 {dimension_numbers = #tpu.dot_dimension_numbers<[1], [0], [0], [1], [0, 0, 1, 1], [], []>} : vector<8x128xf32>, vector<128x512xf32>, vector<8x512xf32> -> vector<8x512xf32>
    %151 = arith.addf %149, %150 : vector<8x512xf32>
    %152 = vector.extract_strided_slice %151 {offsets = [0, 0], sizes = [8, 128], strides = [1, 1]} : vector<8x512xf32> to vector<8x128xf32>
    %153 = arith.negf %152 : vector<8x128xf32>
    %154 = math.exp %153 : vector<8x128xf32>
    %cst_51 = arith.constant 1.000000e+00 : f32
    %155 = vector.broadcast %cst_51 : f32 to vector<8x128xf32>
    %156 = arith.addf %155, %154 : vector<8x128xf32>
    %157 = arith.divf %155, %156 : vector<8x128xf32>
    %158 = vector.extract_strided_slice %151 {offsets = [0, 128], sizes = [8, 128], strides = [1, 1]} : vector<8x512xf32> to vector<8x128xf32>
    %159 = arith.negf %158 : vector<8x128xf32>
    %160 = math.exp %159 : vector<8x128xf32>
    %cst_52 = arith.constant 1.000000e+00 : f32
    %161 = vector.broadcast %cst_52 : f32 to vector<8x128xf32>
    %162 = arith.addf %161, %160 : vector<8x128xf32>
    %163 = arith.divf %161, %162 : vector<8x128xf32>
    %164 = vector.extract_strided_slice %151 {offsets = [0, 256], sizes = [8, 128], strides = [1, 1]} : vector<8x512xf32> to vector<8x128xf32>
    %165 = math.tanh %164 : vector<8x128xf32>
    %166 = vector.extract_strided_slice %151 {offsets = [0, 384], sizes = [8, 128], strides = [1, 1]} : vector<8x512xf32> to vector<8x128xf32>
    %167 = arith.negf %166 : vector<8x128xf32>
    %168 = math.exp %167 : vector<8x128xf32>
    %cst_53 = arith.constant 1.000000e+00 : f32
    %169 = vector.broadcast %cst_53 : f32 to vector<8x128xf32>
    %170 = arith.addf %169, %168 : vector<8x128xf32>
    %171 = arith.divf %169, %170 : vector<8x128xf32>
    %172 = arith.mulf %163, %140 : vector<8x128xf32>
    %173 = arith.mulf %157, %165 : vector<8x128xf32>
    %174 = arith.addf %172, %173 : vector<8x128xf32>
    %175 = math.tanh %174 : vector<8x128xf32>
    %176 = arith.mulf %171, %175 : vector<8x128xf32>
    %c32 = arith.constant 32 : index
    %c0_54 = arith.constant 0 : index
    %177 = vector.load %arg7[%c32, %c0_54] : memref<128x128xf32, #tpu.memory_space<vmem>>, vector<8x128xf32>
    tpu.vector_store %arg7[%c32, %c0_54], %176 {strides = array<i32>} : memref<128x128xf32, #tpu.memory_space<vmem>>, vector<8x128xf32>,
    %c32_55 = arith.constant 32 : index
    %c0_56 = arith.constant 0 : index
    %178 = vector.load %arg6[%c32_55, %c0_56] : memref<128x128xf32, #tpu.memory_space<vmem>>, vector<8x128xf32>
    %179 = vector.broadcast %3 : f32 to vector<8x128xf32>
    %180 = arith.mulf %179, %176 : vector<8x128xf32>
    %181 = arith.addf %178, %180 : vector<8x128xf32>
    %c32_57 = arith.constant 32 : index
    %c0_58 = arith.constant 0 : index
    %182 = vector.load %arg8[%c32_57, %c0_58] : memref<128x128xf32, #tpu.memory_space<vmem>>, vector<8x128xf32>
    tpu.vector_store %arg8[%c32_57, %c0_58], %181 {strides = array<i32>} : memref<128x128xf32, #tpu.memory_space<vmem>>, vector<8x128xf32>,
    %183 = vector.extract_strided_slice %9 {offsets = [40, 0], sizes = [8, 512], strides = [1, 1]} : vector<128x512xf32> to vector<8x512xf32>
    %cst_59 = arith.constant dense<0.000000e+00> : vector<8x512xf32>
    %184 = tpu.matmul %176, %10, %cst_59 {dimension_numbers = #tpu.dot_dimension_numbers<[1], [0], [0], [1], [0, 0, 1, 1], [], []>} : vector<8x128xf32>, vector<128x512xf32>, vector<8x512xf32> -> vector<8x512xf32>
    %185 = arith.addf %183, %184 : vector<8x512xf32>
    %186 = vector.extract_strided_slice %185 {offsets = [0, 0], sizes = [8, 128], strides = [1, 1]} : vector<8x512xf32> to vector<8x128xf32>
    %187 = arith.negf %186 : vector<8x128xf32>
    %188 = math.exp %187 : vector<8x128xf32>
    %cst_60 = arith.constant 1.000000e+00 : f32
    %189 = vector.broadcast %cst_60 : f32 to vector<8x128xf32>
    %190 = arith.addf %189, %188 : vector<8x128xf32>
    %191 = arith.divf %189, %190 : vector<8x128xf32>
    %192 = vector.extract_strided_slice %185 {offsets = [0, 128], sizes = [8, 128], strides = [1, 1]} : vector<8x512xf32> to vector<8x128xf32>
    %193 = arith.negf %192 : vector<8x128xf32>
    %194 = math.exp %193 : vector<8x128xf32>
    %cst_61 = arith.constant 1.000000e+00 : f32
    %195 = vector.broadcast %cst_61 : f32 to vector<8x128xf32>
    %196 = arith.addf %195, %194 : vector<8x128xf32>
    %197 = arith.divf %195, %196 : vector<8x128xf32>
    %198 = vector.extract_strided_slice %185 {offsets = [0, 256], sizes = [8, 128], strides = [1, 1]} : vector<8x512xf32> to vector<8x128xf32>
    %199 = math.tanh %198 : vector<8x128xf32>
    %200 = vector.extract_strided_slice %185 {offsets = [0, 384], sizes = [8, 128], strides = [1, 1]} : vector<8x512xf32> to vector<8x128xf32>
    %201 = arith.negf %200 : vector<8x128xf32>
    %202 = math.exp %201 : vector<8x128xf32>
    %cst_62 = arith.constant 1.000000e+00 : f32
    %203 = vector.broadcast %cst_62 : f32 to vector<8x128xf32>
    %204 = arith.addf %203, %202 : vector<8x128xf32>
    %205 = arith.divf %203, %204 : vector<8x128xf32>
    %206 = arith.mulf %197, %174 : vector<8x128xf32>
    %207 = arith.mulf %191, %199 : vector<8x128xf32>
    %208 = arith.addf %206, %207 : vector<8x128xf32>
    %209 = math.tanh %208 : vector<8x128xf32>
    %210 = arith.mulf %205, %209 : vector<8x128xf32>
    %c40 = arith.constant 40 : index
    %c0_63 = arith.constant 0 : index
    %211 = vector.load %arg7[%c40, %c0_63] : memref<128x128xf32, #tpu.memory_space<vmem>>, vector<8x128xf32>
    tpu.vector_store %arg7[%c40, %c0_63], %210 {strides = array<i32>} : memref<128x128xf32, #tpu.memory_space<vmem>>, vector<8x128xf32>,
    %c40_64 = arith.constant 40 : index
    %c0_65 = arith.constant 0 : index
    %212 = vector.load %arg6[%c40_64, %c0_65] : memref<128x128xf32, #tpu.memory_space<vmem>>, vector<8x128xf32>
    %213 = vector.broadcast %3 : f32 to vector<8x128xf32>
    %214 = arith.mulf %213, %210 : vector<8x128xf32>
    %215 = arith.addf %212, %214 : vector<8x128xf32>
    %c40_66 = arith.constant 40 : index
    %c0_67 = arith.constant 0 : index
    %216 = vector.load %arg8[%c40_66, %c0_67] : memref<128x128xf32, #tpu.memory_space<vmem>>, vector<8x128xf32>
    tpu.vector_store %arg8[%c40_66, %c0_67], %215 {strides = array<i32>} : memref<128x128xf32, #tpu.memory_space<vmem>>, vector<8x128xf32>,
    %217 = vector.extract_strided_slice %9 {offsets = [48, 0], sizes = [8, 512], strides = [1, 1]} : vector<128x512xf32> to vector<8x512xf32>
    %cst_68 = arith.constant dense<0.000000e+00> : vector<8x512xf32>
    %218 = tpu.matmul %210, %10, %cst_68 {dimension_numbers = #tpu.dot_dimension_numbers<[1], [0], [0], [1], [0, 0, 1, 1], [], []>} : vector<8x128xf32>, vector<128x512xf32>, vector<8x512xf32> -> vector<8x512xf32>
    %219 = arith.addf %217, %218 : vector<8x512xf32>
    %220 = vector.extract_strided_slice %219 {offsets = [0, 0], sizes = [8, 128], strides = [1, 1]} : vector<8x512xf32> to vector<8x128xf32>
    %221 = arith.negf %220 : vector<8x128xf32>
    %222 = math.exp %221 : vector<8x128xf32>
    %cst_69 = arith.constant 1.000000e+00 : f32
    %223 = vector.broadcast %cst_69 : f32 to vector<8x128xf32>
    %224 = arith.addf %223, %222 : vector<8x128xf32>
    %225 = arith.divf %223, %224 : vector<8x128xf32>
    %226 = vector.extract_strided_slice %219 {offsets = [0, 128], sizes = [8, 128], strides = [1, 1]} : vector<8x512xf32> to vector<8x128xf32>
    %227 = arith.negf %226 : vector<8x128xf32>
    %228 = math.exp %227 : vector<8x128xf32>
    %cst_70 = arith.constant 1.000000e+00 : f32
    %229 = vector.broadcast %cst_70 : f32 to vector<8x128xf32>
    %230 = arith.addf %229, %228 : vector<8x128xf32>
    %231 = arith.divf %229, %230 : vector<8x128xf32>
    %232 = vector.extract_strided_slice %219 {offsets = [0, 256], sizes = [8, 128], strides = [1, 1]} : vector<8x512xf32> to vector<8x128xf32>
    %233 = math.tanh %232 : vector<8x128xf32>
    %234 = vector.extract_strided_slice %219 {offsets = [0, 384], sizes = [8, 128], strides = [1, 1]} : vector<8x512xf32> to vector<8x128xf32>
    %235 = arith.negf %234 : vector<8x128xf32>
    %236 = math.exp %235 : vector<8x128xf32>
    %cst_71 = arith.constant 1.000000e+00 : f32
    %237 = vector.broadcast %cst_71 : f32 to vector<8x128xf32>
    %238 = arith.addf %237, %236 : vector<8x128xf32>
    %239 = arith.divf %237, %238 : vector<8x128xf32>
    %240 = arith.mulf %231, %208 : vector<8x128xf32>
    %241 = arith.mulf %225, %233 : vector<8x128xf32>
    %242 = arith.addf %240, %241 : vector<8x128xf32>
    %243 = math.tanh %242 : vector<8x128xf32>
    %244 = arith.mulf %239, %243 : vector<8x128xf32>
    %c48 = arith.constant 48 : index
    %c0_72 = arith.constant 0 : index
    %245 = vector.load %arg7[%c48, %c0_72] : memref<128x128xf32, #tpu.memory_space<vmem>>, vector<8x128xf32>
    tpu.vector_store %arg7[%c48, %c0_72], %244 {strides = array<i32>} : memref<128x128xf32, #tpu.memory_space<vmem>>, vector<8x128xf32>,
    %c48_73 = arith.constant 48 : index
    %c0_74 = arith.constant 0 : index
    %246 = vector.load %arg6[%c48_73, %c0_74] : memref<128x128xf32, #tpu.memory_space<vmem>>, vector<8x128xf32>
    %247 = vector.broadcast %3 : f32 to vector<8x128xf32>
    %248 = arith.mulf %247, %244 : vector<8x128xf32>
    %249 = arith.addf %246, %248 : vector<8x128xf32>
    %c48_75 = arith.constant 48 : index
    %c0_76 = arith.constant 0 : index
    %250 = vector.load %arg8[%c48_75, %c0_76] : memref<128x128xf32, #tpu.memory_space<vmem>>, vector<8x128xf32>
    tpu.vector_store %arg8[%c48_75, %c0_76], %249 {strides = array<i32>} : memref<128x128xf32, #tpu.memory_space<vmem>>, vector<8x128xf32>,
    %251 = vector.extract_strided_slice %9 {offsets = [56, 0], sizes = [8, 512], strides = [1, 1]} : vector<128x512xf32> to vector<8x512xf32>
    %cst_77 = arith.constant dense<0.000000e+00> : vector<8x512xf32>
    %252 = tpu.matmul %244, %10, %cst_77 {dimension_numbers = #tpu.dot_dimension_numbers<[1], [0], [0], [1], [0, 0, 1, 1], [], []>} : vector<8x128xf32>, vector<128x512xf32>, vector<8x512xf32> -> vector<8x512xf32>
    %253 = arith.addf %251, %252 : vector<8x512xf32>
    %254 = vector.extract_strided_slice %253 {offsets = [0, 0], sizes = [8, 128], strides = [1, 1]} : vector<8x512xf32> to vector<8x128xf32>
    %255 = arith.negf %254 : vector<8x128xf32>
    %256 = math.exp %255 : vector<8x128xf32>
    %cst_78 = arith.constant 1.000000e+00 : f32
    %257 = vector.broadcast %cst_78 : f32 to vector<8x128xf32>
    %258 = arith.addf %257, %256 : vector<8x128xf32>
    %259 = arith.divf %257, %258 : vector<8x128xf32>
    %260 = vector.extract_strided_slice %253 {offsets = [0, 128], sizes = [8, 128], strides = [1, 1]} : vector<8x512xf32> to vector<8x128xf32>
    %261 = arith.negf %260 : vector<8x128xf32>
    %262 = math.exp %261 : vector<8x128xf32>
    %cst_79 = arith.constant 1.000000e+00 : f32
    %263 = vector.broadcast %cst_79 : f32 to vector<8x128xf32>
    %264 = arith.addf %263, %262 : vector<8x128xf32>
    %265 = arith.divf %263, %264 : vector<8x128xf32>
    %266 = vector.extract_strided_slice %253 {offsets = [0, 256], sizes = [8, 128], strides = [1, 1]} : vector<8x512xf32> to vector<8x128xf32>
    %267 = math.tanh %266 : vector<8x128xf32>
    %268 = vector.extract_strided_slice %253 {offsets = [0, 384], sizes = [8, 128], strides = [1, 1]} : vector<8x512xf32> to vector<8x128xf32>
    %269 = arith.negf %268 : vector<8x128xf32>
    %270 = math.exp %269 : vector<8x128xf32>
    %cst_80 = arith.constant 1.000000e+00 : f32
    %271 = vector.broadcast %cst_80 : f32 to vector<8x128xf32>
    %272 = arith.addf %271, %270 : vector<8x128xf32>
    %273 = arith.divf %271, %272 : vector<8x128xf32>
    %274 = arith.mulf %265, %242 : vector<8x128xf32>
    %275 = arith.mulf %259, %267 : vector<8x128xf32>
    %276 = arith.addf %274, %275 : vector<8x128xf32>
    %277 = math.tanh %276 : vector<8x128xf32>
    %278 = arith.mulf %273, %277 : vector<8x128xf32>
    %c56 = arith.constant 56 : index
    %c0_81 = arith.constant 0 : index
    %279 = vector.load %arg7[%c56, %c0_81] : memref<128x128xf32, #tpu.memory_space<vmem>>, vector<8x128xf32>
    tpu.vector_store %arg7[%c56, %c0_81], %278 {strides = array<i32>} : memref<128x128xf32, #tpu.memory_space<vmem>>, vector<8x128xf32>,
    %c56_82 = arith.constant 56 : index
    %c0_83 = arith.constant 0 : index
    %280 = vector.load %arg6[%c56_82, %c0_83] : memref<128x128xf32, #tpu.memory_space<vmem>>, vector<8x128xf32>
    %281 = vector.broadcast %3 : f32 to vector<8x128xf32>
    %282 = arith.mulf %281, %278 : vector<8x128xf32>
    %283 = arith.addf %280, %282 : vector<8x128xf32>
    %c56_84 = arith.constant 56 : index
    %c0_85 = arith.constant 0 : index
    %284 = vector.load %arg8[%c56_84, %c0_85] : memref<128x128xf32, #tpu.memory_space<vmem>>, vector<8x128xf32>
    tpu.vector_store %arg8[%c56_84, %c0_85], %283 {strides = array<i32>} : memref<128x128xf32, #tpu.memory_space<vmem>>, vector<8x128xf32>,
    %285 = vector.extract_strided_slice %9 {offsets = [64, 0], sizes = [8, 512], strides = [1, 1]} : vector<128x512xf32> to vector<8x512xf32>
    %cst_86 = arith.constant dense<0.000000e+00> : vector<8x512xf32>
    %286 = tpu.matmul %278, %10, %cst_86 {dimension_numbers = #tpu.dot_dimension_numbers<[1], [0], [0], [1], [0, 0, 1, 1], [], []>} : vector<8x128xf32>, vector<128x512xf32>, vector<8x512xf32> -> vector<8x512xf32>
    %287 = arith.addf %285, %286 : vector<8x512xf32>
    %288 = vector.extract_strided_slice %287 {offsets = [0, 0], sizes = [8, 128], strides = [1, 1]} : vector<8x512xf32> to vector<8x128xf32>
    %289 = arith.negf %288 : vector<8x128xf32>
    %290 = math.exp %289 : vector<8x128xf32>
    %cst_87 = arith.constant 1.000000e+00 : f32
    %291 = vector.broadcast %cst_87 : f32 to vector<8x128xf32>
    %292 = arith.addf %291, %290 : vector<8x128xf32>
    %293 = arith.divf %291, %292 : vector<8x128xf32>
    %294 = vector.extract_strided_slice %287 {offsets = [0, 128], sizes = [8, 128], strides = [1, 1]} : vector<8x512xf32> to vector<8x128xf32>
    %295 = arith.negf %294 : vector<8x128xf32>
    %296 = math.exp %295 : vector<8x128xf32>
    %cst_88 = arith.constant 1.000000e+00 : f32
    %297 = vector.broadcast %cst_88 : f32 to vector<8x128xf32>
    %298 = arith.addf %297, %296 : vector<8x128xf32>
    %299 = arith.divf %297, %298 : vector<8x128xf32>
    %300 = vector.extract_strided_slice %287 {offsets = [0, 256], sizes = [8, 128], strides = [1, 1]} : vector<8x512xf32> to vector<8x128xf32>
    %301 = math.tanh %300 : vector<8x128xf32>
    %302 = vector.extract_strided_slice %287 {offsets = [0, 384], sizes = [8, 128], strides = [1, 1]} : vector<8x512xf32> to vector<8x128xf32>
    %303 = arith.negf %302 : vector<8x128xf32>
    %304 = math.exp %303 : vector<8x128xf32>
    %cst_89 = arith.constant 1.000000e+00 : f32
    %305 = vector.broadcast %cst_89 : f32 to vector<8x128xf32>
    %306 = arith.addf %305, %304 : vector<8x128xf32>
    %307 = arith.divf %305, %306 : vector<8x128xf32>
    %308 = arith.mulf %299, %276 : vector<8x128xf32>
    %309 = arith.mulf %293, %301 : vector<8x128xf32>
    %310 = arith.addf %308, %309 : vector<8x128xf32>
    %311 = math.tanh %310 : vector<8x128xf32>
    %312 = arith.mulf %307, %311 : vector<8x128xf32>
    %c64 = arith.constant 64 : index
    %c0_90 = arith.constant 0 : index
    %313 = vector.load %arg7[%c64, %c0_90] : memref<128x128xf32, #tpu.memory_space<vmem>>, vector<8x128xf32>
    tpu.vector_store %arg7[%c64, %c0_90], %312 {strides = array<i32>} : memref<128x128xf32, #tpu.memory_space<vmem>>, vector<8x128xf32>,
    %c64_91 = arith.constant 64 : index
    %c0_92 = arith.constant 0 : index
    %314 = vector.load %arg6[%c64_91, %c0_92] : memref<128x128xf32, #tpu.memory_space<vmem>>, vector<8x128xf32>
    %315 = vector.broadcast %3 : f32 to vector<8x128xf32>
    %316 = arith.mulf %315, %312 : vector<8x128xf32>
    %317 = arith.addf %314, %316 : vector<8x128xf32>
    %c64_93 = arith.constant 64 : index
    %c0_94 = arith.constant 0 : index
    %318 = vector.load %arg8[%c64_93, %c0_94] : memref<128x128xf32, #tpu.memory_space<vmem>>, vector<8x128xf32>
    tpu.vector_store %arg8[%c64_93, %c0_94], %317 {strides = array<i32>} : memref<128x128xf32, #tpu.memory_space<vmem>>, vector<8x128xf32>,
    %319 = vector.extract_strided_slice %9 {offsets = [72, 0], sizes = [8, 512], strides = [1, 1]} : vector<128x512xf32> to vector<8x512xf32>
    %cst_95 = arith.constant dense<0.000000e+00> : vector<8x512xf32>
    %320 = tpu.matmul %312, %10, %cst_95 {dimension_numbers = #tpu.dot_dimension_numbers<[1], [0], [0], [1], [0, 0, 1, 1], [], []>} : vector<8x128xf32>, vector<128x512xf32>, vector<8x512xf32> -> vector<8x512xf32>
    %321 = arith.addf %319, %320 : vector<8x512xf32>
    %322 = vector.extract_strided_slice %321 {offsets = [0, 0], sizes = [8, 128], strides = [1, 1]} : vector<8x512xf32> to vector<8x128xf32>
    %323 = arith.negf %322 : vector<8x128xf32>
    %324 = math.exp %323 : vector<8x128xf32>
    %cst_96 = arith.constant 1.000000e+00 : f32
    %325 = vector.broadcast %cst_96 : f32 to vector<8x128xf32>
    %326 = arith.addf %325, %324 : vector<8x128xf32>
    %327 = arith.divf %325, %326 : vector<8x128xf32>
    %328 = vector.extract_strided_slice %321 {offsets = [0, 128], sizes = [8, 128], strides = [1, 1]} : vector<8x512xf32> to vector<8x128xf32>
    %329 = arith.negf %328 : vector<8x128xf32>
    %330 = math.exp %329 : vector<8x128xf32>
    %cst_97 = arith.constant 1.000000e+00 : f32
    %331 = vector.broadcast %cst_97 : f32 to vector<8x128xf32>
    %332 = arith.addf %331, %330 : vector<8x128xf32>
    %333 = arith.divf %331, %332 : vector<8x128xf32>
    %334 = vector.extract_strided_slice %321 {offsets = [0, 256], sizes = [8, 128], strides = [1, 1]} : vector<8x512xf32> to vector<8x128xf32>
    %335 = math.tanh %334 : vector<8x128xf32>
    %336 = vector.extract_strided_slice %321 {offsets = [0, 384], sizes = [8, 128], strides = [1, 1]} : vector<8x512xf32> to vector<8x128xf32>
    %337 = arith.negf %336 : vector<8x128xf32>
    %338 = math.exp %337 : vector<8x128xf32>
    %cst_98 = arith.constant 1.000000e+00 : f32
    %339 = vector.broadcast %cst_98 : f32 to vector<8x128xf32>
    %340 = arith.addf %339, %338 : vector<8x128xf32>
    %341 = arith.divf %339, %340 : vector<8x128xf32>
    %342 = arith.mulf %333, %310 : vector<8x128xf32>
    %343 = arith.mulf %327, %335 : vector<8x128xf32>
    %344 = arith.addf %342, %343 : vector<8x128xf32>
    %345 = math.tanh %344 : vector<8x128xf32>
    %346 = arith.mulf %341, %345 : vector<8x128xf32>
    %c72 = arith.constant 72 : index
    %c0_99 = arith.constant 0 : index
    %347 = vector.load %arg7[%c72, %c0_99] : memref<128x128xf32, #tpu.memory_space<vmem>>, vector<8x128xf32>
    tpu.vector_store %arg7[%c72, %c0_99], %346 {strides = array<i32>} : memref<128x128xf32, #tpu.memory_space<vmem>>, vector<8x128xf32>,
    %c72_100 = arith.constant 72 : index
    %c0_101 = arith.constant 0 : index
    %348 = vector.load %arg6[%c72_100, %c0_101] : memref<128x128xf32, #tpu.memory_space<vmem>>, vector<8x128xf32>
    %349 = vector.broadcast %3 : f32 to vector<8x128xf32>
    %350 = arith.mulf %349, %346 : vector<8x128xf32>
    %351 = arith.addf %348, %350 : vector<8x128xf32>
    %c72_102 = arith.constant 72 : index
    %c0_103 = arith.constant 0 : index
    %352 = vector.load %arg8[%c72_102, %c0_103] : memref<128x128xf32, #tpu.memory_space<vmem>>, vector<8x128xf32>
    tpu.vector_store %arg8[%c72_102, %c0_103], %351 {strides = array<i32>} : memref<128x128xf32, #tpu.memory_space<vmem>>, vector<8x128xf32>,
    %353 = vector.extract_strided_slice %9 {offsets = [80, 0], sizes = [8, 512], strides = [1, 1]} : vector<128x512xf32> to vector<8x512xf32>
    %cst_104 = arith.constant dense<0.000000e+00> : vector<8x512xf32>
    %354 = tpu.matmul %346, %10, %cst_104 {dimension_numbers = #tpu.dot_dimension_numbers<[1], [0], [0], [1], [0, 0, 1, 1], [], []>} : vector<8x128xf32>, vector<128x512xf32>, vector<8x512xf32> -> vector<8x512xf32>
    %355 = arith.addf %353, %354 : vector<8x512xf32>
    %356 = vector.extract_strided_slice %355 {offsets = [0, 0], sizes = [8, 128], strides = [1, 1]} : vector<8x512xf32> to vector<8x128xf32>
    %357 = arith.negf %356 : vector<8x128xf32>
    %358 = math.exp %357 : vector<8x128xf32>
    %cst_105 = arith.constant 1.000000e+00 : f32
    %359 = vector.broadcast %cst_105 : f32 to vector<8x128xf32>
    %360 = arith.addf %359, %358 : vector<8x128xf32>
    %361 = arith.divf %359, %360 : vector<8x128xf32>
    %362 = vector.extract_strided_slice %355 {offsets = [0, 128], sizes = [8, 128], strides = [1, 1]} : vector<8x512xf32> to vector<8x128xf32>
    %363 = arith.negf %362 : vector<8x128xf32>
    %364 = math.exp %363 : vector<8x128xf32>
    %cst_106 = arith.constant 1.000000e+00 : f32
    %365 = vector.broadcast %cst_106 : f32 to vector<8x128xf32>
    %366 = arith.addf %365, %364 : vector<8x128xf32>
    %367 = arith.divf %365, %366 : vector<8x128xf32>
    %368 = vector.extract_strided_slice %355 {offsets = [0, 256], sizes = [8, 128], strides = [1, 1]} : vector<8x512xf32> to vector<8x128xf32>
    %369 = math.tanh %368 : vector<8x128xf32>
    %370 = vector.extract_strided_slice %355 {offsets = [0, 384], sizes = [8, 128], strides = [1, 1]} : vector<8x512xf32> to vector<8x128xf32>
    %371 = arith.negf %370 : vector<8x128xf32>
    %372 = math.exp %371 : vector<8x128xf32>
    %cst_107 = arith.constant 1.000000e+00 : f32
    %373 = vector.broadcast %cst_107 : f32 to vector<8x128xf32>
    %374 = arith.addf %373, %372 : vector<8x128xf32>
    %375 = arith.divf %373, %374 : vector<8x128xf32>
    %376 = arith.mulf %367, %344 : vector<8x128xf32>
    %377 = arith.mulf %361, %369 : vector<8x128xf32>
    %378 = arith.addf %376, %377 : vector<8x128xf32>
    %379 = math.tanh %378 : vector<8x128xf32>
    %380 = arith.mulf %375, %379 : vector<8x128xf32>
    %c80 = arith.constant 80 : index
    %c0_108 = arith.constant 0 : index
    %381 = vector.load %arg7[%c80, %c0_108] : memref<128x128xf32, #tpu.memory_space<vmem>>, vector<8x128xf32>
    tpu.vector_store %arg7[%c80, %c0_108], %380 {strides = array<i32>} : memref<128x128xf32, #tpu.memory_space<vmem>>, vector<8x128xf32>,
    %c80_109 = arith.constant 80 : index
    %c0_110 = arith.constant 0 : index
    %382 = vector.load %arg6[%c80_109, %c0_110] : memref<128x128xf32, #tpu.memory_space<vmem>>, vector<8x128xf32>
    %383 = vector.broadcast %3 : f32 to vector<8x128xf32>
    %384 = arith.mulf %383, %380 : vector<8x128xf32>
    %385 = arith.addf %382, %384 : vector<8x128xf32>
    %c80_111 = arith.constant 80 : index
    %c0_112 = arith.constant 0 : index
    %386 = vector.load %arg8[%c80_111, %c0_112] : memref<128x128xf32, #tpu.memory_space<vmem>>, vector<8x128xf32>
    tpu.vector_store %arg8[%c80_111, %c0_112], %385 {strides = array<i32>} : memref<128x128xf32, #tpu.memory_space<vmem>>, vector<8x128xf32>,
    %387 = vector.extract_strided_slice %9 {offsets = [88, 0], sizes = [8, 512], strides = [1, 1]} : vector<128x512xf32> to vector<8x512xf32>
    %cst_113 = arith.constant dense<0.000000e+00> : vector<8x512xf32>
    %388 = tpu.matmul %380, %10, %cst_113 {dimension_numbers = #tpu.dot_dimension_numbers<[1], [0], [0], [1], [0, 0, 1, 1], [], []>} : vector<8x128xf32>, vector<128x512xf32>, vector<8x512xf32> -> vector<8x512xf32>
    %389 = arith.addf %387, %388 : vector<8x512xf32>
    %390 = vector.extract_strided_slice %389 {offsets = [0, 0], sizes = [8, 128], strides = [1, 1]} : vector<8x512xf32> to vector<8x128xf32>
    %391 = arith.negf %390 : vector<8x128xf32>
    %392 = math.exp %391 : vector<8x128xf32>
    %cst_114 = arith.constant 1.000000e+00 : f32
    %393 = vector.broadcast %cst_114 : f32 to vector<8x128xf32>
    %394 = arith.addf %393, %392 : vector<8x128xf32>
    %395 = arith.divf %393, %394 : vector<8x128xf32>
    %396 = vector.extract_strided_slice %389 {offsets = [0, 128], sizes = [8, 128], strides = [1, 1]} : vector<8x512xf32> to vector<8x128xf32>
    %397 = arith.negf %396 : vector<8x128xf32>
    %398 = math.exp %397 : vector<8x128xf32>
    %cst_115 = arith.constant 1.000000e+00 : f32
    %399 = vector.broadcast %cst_115 : f32 to vector<8x128xf32>
    %400 = arith.addf %399, %398 : vector<8x128xf32>
    %401 = arith.divf %399, %400 : vector<8x128xf32>
    %402 = vector.extract_strided_slice %389 {offsets = [0, 256], sizes = [8, 128], strides = [1, 1]} : vector<8x512xf32> to vector<8x128xf32>
    %403 = math.tanh %402 : vector<8x128xf32>
    %404 = vector.extract_strided_slice %389 {offsets = [0, 384], sizes = [8, 128], strides = [1, 1]} : vector<8x512xf32> to vector<8x128xf32>
    %405 = arith.negf %404 : vector<8x128xf32>
    %406 = math.exp %405 : vector<8x128xf32>
    %cst_116 = arith.constant 1.000000e+00 : f32
    %407 = vector.broadcast %cst_116 : f32 to vector<8x128xf32>
    %408 = arith.addf %407, %406 : vector<8x128xf32>
    %409 = arith.divf %407, %408 : vector<8x128xf32>
    %410 = arith.mulf %401, %378 : vector<8x128xf32>
    %411 = arith.mulf %395, %403 : vector<8x128xf32>
    %412 = arith.addf %410, %411 : vector<8x128xf32>
    %413 = math.tanh %412 : vector<8x128xf32>
    %414 = arith.mulf %409, %413 : vector<8x128xf32>
    %c88 = arith.constant 88 : index
    %c0_117 = arith.constant 0 : index
    %415 = vector.load %arg7[%c88, %c0_117] : memref<128x128xf32, #tpu.memory_space<vmem>>, vector<8x128xf32>
    tpu.vector_store %arg7[%c88, %c0_117], %414 {strides = array<i32>} : memref<128x128xf32, #tpu.memory_space<vmem>>, vector<8x128xf32>,
    %c88_118 = arith.constant 88 : index
    %c0_119 = arith.constant 0 : index
    %416 = vector.load %arg6[%c88_118, %c0_119] : memref<128x128xf32, #tpu.memory_space<vmem>>, vector<8x128xf32>
    %417 = vector.broadcast %3 : f32 to vector<8x128xf32>
    %418 = arith.mulf %417, %414 : vector<8x128xf32>
    %419 = arith.addf %416, %418 : vector<8x128xf32>
    %c88_120 = arith.constant 88 : index
    %c0_121 = arith.constant 0 : index
    %420 = vector.load %arg8[%c88_120, %c0_121] : memref<128x128xf32, #tpu.memory_space<vmem>>, vector<8x128xf32>
    tpu.vector_store %arg8[%c88_120, %c0_121], %419 {strides = array<i32>} : memref<128x128xf32, #tpu.memory_space<vmem>>, vector<8x128xf32>,
    %421 = vector.extract_strided_slice %9 {offsets = [96, 0], sizes = [8, 512], strides = [1, 1]} : vector<128x512xf32> to vector<8x512xf32>
    %cst_122 = arith.constant dense<0.000000e+00> : vector<8x512xf32>
    %422 = tpu.matmul %414, %10, %cst_122 {dimension_numbers = #tpu.dot_dimension_numbers<[1], [0], [0], [1], [0, 0, 1, 1], [], []>} : vector<8x128xf32>, vector<128x512xf32>, vector<8x512xf32> -> vector<8x512xf32>
    %423 = arith.addf %421, %422 : vector<8x512xf32>
    %424 = vector.extract_strided_slice %423 {offsets = [0, 0], sizes = [8, 128], strides = [1, 1]} : vector<8x512xf32> to vector<8x128xf32>
    %425 = arith.negf %424 : vector<8x128xf32>
    %426 = math.exp %425 : vector<8x128xf32>
    %cst_123 = arith.constant 1.000000e+00 : f32
    %427 = vector.broadcast %cst_123 : f32 to vector<8x128xf32>
    %428 = arith.addf %427, %426 : vector<8x128xf32>
    %429 = arith.divf %427, %428 : vector<8x128xf32>
    %430 = vector.extract_strided_slice %423 {offsets = [0, 128], sizes = [8, 128], strides = [1, 1]} : vector<8x512xf32> to vector<8x128xf32>
    %431 = arith.negf %430 : vector<8x128xf32>
    %432 = math.exp %431 : vector<8x128xf32>
    %cst_124 = arith.constant 1.000000e+00 : f32
    %433 = vector.broadcast %cst_124 : f32 to vector<8x128xf32>
    %434 = arith.addf %433, %432 : vector<8x128xf32>
    %435 = arith.divf %433, %434 : vector<8x128xf32>
    %436 = vector.extract_strided_slice %423 {offsets = [0, 256], sizes = [8, 128], strides = [1, 1]} : vector<8x512xf32> to vector<8x128xf32>
    %437 = math.tanh %436 : vector<8x128xf32>
    %438 = vector.extract_strided_slice %423 {offsets = [0, 384], sizes = [8, 128], strides = [1, 1]} : vector<8x512xf32> to vector<8x128xf32>
    %439 = arith.negf %438 : vector<8x128xf32>
    %440 = math.exp %439 : vector<8x128xf32>
    %cst_125 = arith.constant 1.000000e+00 : f32
    %441 = vector.broadcast %cst_125 : f32 to vector<8x128xf32>
    %442 = arith.addf %441, %440 : vector<8x128xf32>
    %443 = arith.divf %441, %442 : vector<8x128xf32>
    %444 = arith.mulf %435, %412 : vector<8x128xf32>
    %445 = arith.mulf %429, %437 : vector<8x128xf32>
    %446 = arith.addf %444, %445 : vector<8x128xf32>
    %447 = math.tanh %446 : vector<8x128xf32>
    %448 = arith.mulf %443, %447 : vector<8x128xf32>
    %c96 = arith.constant 96 : index
    %c0_126 = arith.constant 0 : index
    %449 = vector.load %arg7[%c96, %c0_126] : memref<128x128xf32, #tpu.memory_space<vmem>>, vector<8x128xf32>
    tpu.vector_store %arg7[%c96, %c0_126], %448 {strides = array<i32>} : memref<128x128xf32, #tpu.memory_space<vmem>>, vector<8x128xf32>,
    %c96_127 = arith.constant 96 : index
    %c0_128 = arith.constant 0 : index
    %450 = vector.load %arg6[%c96_127, %c0_128] : memref<128x128xf32, #tpu.memory_space<vmem>>, vector<8x128xf32>
    %451 = vector.broadcast %3 : f32 to vector<8x128xf32>
    %452 = arith.mulf %451, %448 : vector<8x128xf32>
    %453 = arith.addf %450, %452 : vector<8x128xf32>
    %c96_129 = arith.constant 96 : index
    %c0_130 = arith.constant 0 : index
    %454 = vector.load %arg8[%c96_129, %c0_130] : memref<128x128xf32, #tpu.memory_space<vmem>>, vector<8x128xf32>
    tpu.vector_store %arg8[%c96_129, %c0_130], %453 {strides = array<i32>} : memref<128x128xf32, #tpu.memory_space<vmem>>, vector<8x128xf32>,
    %455 = vector.extract_strided_slice %9 {offsets = [104, 0], sizes = [8, 512], strides = [1, 1]} : vector<128x512xf32> to vector<8x512xf32>
    %cst_131 = arith.constant dense<0.000000e+00> : vector<8x512xf32>
    %456 = tpu.matmul %448, %10, %cst_131 {dimension_numbers = #tpu.dot_dimension_numbers<[1], [0], [0], [1], [0, 0, 1, 1], [], []>} : vector<8x128xf32>, vector<128x512xf32>, vector<8x512xf32> -> vector<8x512xf32>
    %457 = arith.addf %455, %456 : vector<8x512xf32>
    %458 = vector.extract_strided_slice %457 {offsets = [0, 0], sizes = [8, 128], strides = [1, 1]} : vector<8x512xf32> to vector<8x128xf32>
    %459 = arith.negf %458 : vector<8x128xf32>
    %460 = math.exp %459 : vector<8x128xf32>
    %cst_132 = arith.constant 1.000000e+00 : f32
    %461 = vector.broadcast %cst_132 : f32 to vector<8x128xf32>
    %462 = arith.addf %461, %460 : vector<8x128xf32>
    %463 = arith.divf %461, %462 : vector<8x128xf32>
    %464 = vector.extract_strided_slice %457 {offsets = [0, 128], sizes = [8, 128], strides = [1, 1]} : vector<8x512xf32> to vector<8x128xf32>
    %465 = arith.negf %464 : vector<8x128xf32>
    %466 = math.exp %465 : vector<8x128xf32>
    %cst_133 = arith.constant 1.000000e+00 : f32
    %467 = vector.broadcast %cst_133 : f32 to vector<8x128xf32>
    %468 = arith.addf %467, %466 : vector<8x128xf32>
    %469 = arith.divf %467, %468 : vector<8x128xf32>
    %470 = vector.extract_strided_slice %457 {offsets = [0, 256], sizes = [8, 128], strides = [1, 1]} : vector<8x512xf32> to vector<8x128xf32>
    %471 = math.tanh %470 : vector<8x128xf32>
    %472 = vector.extract_strided_slice %457 {offsets = [0, 384], sizes = [8, 128], strides = [1, 1]} : vector<8x512xf32> to vector<8x128xf32>
    %473 = arith.negf %472 : vector<8x128xf32>
    %474 = math.exp %473 : vector<8x128xf32>
    %cst_134 = arith.constant 1.000000e+00 : f32
    %475 = vector.broadcast %cst_134 : f32 to vector<8x128xf32>
    %476 = arith.addf %475, %474 : vector<8x128xf32>
    %477 = arith.divf %475, %476 : vector<8x128xf32>
    %478 = arith.mulf %469, %446 : vector<8x128xf32>
    %479 = arith.mulf %463, %471 : vector<8x128xf32>
    %480 = arith.addf %478, %479 : vector<8x128xf32>
    %481 = math.tanh %480 : vector<8x128xf32>
    %482 = arith.mulf %477, %481 : vector<8x128xf32>
    %c104 = arith.constant 104 : index
    %c0_135 = arith.constant 0 : index
    %483 = vector.load %arg7[%c104, %c0_135] : memref<128x128xf32, #tpu.memory_space<vmem>>, vector<8x128xf32>
    tpu.vector_store %arg7[%c104, %c0_135], %482 {strides = array<i32>} : memref<128x128xf32, #tpu.memory_space<vmem>>, vector<8x128xf32>,
    %c104_136 = arith.constant 104 : index
    %c0_137 = arith.constant 0 : index
    %484 = vector.load %arg6[%c104_136, %c0_137] : memref<128x128xf32, #tpu.memory_space<vmem>>, vector<8x128xf32>
    %485 = vector.broadcast %3 : f32 to vector<8x128xf32>
    %486 = arith.mulf %485, %482 : vector<8x128xf32>
    %487 = arith.addf %484, %486 : vector<8x128xf32>
    %c104_138 = arith.constant 104 : index
    %c0_139 = arith.constant 0 : index
    %488 = vector.load %arg8[%c104_138, %c0_139] : memref<128x128xf32, #tpu.memory_space<vmem>>, vector<8x128xf32>
    tpu.vector_store %arg8[%c104_138, %c0_139], %487 {strides = array<i32>} : memref<128x128xf32, #tpu.memory_space<vmem>>, vector<8x128xf32>,
    %489 = vector.extract_strided_slice %9 {offsets = [112, 0], sizes = [8, 512], strides = [1, 1]} : vector<128x512xf32> to vector<8x512xf32>
    %cst_140 = arith.constant dense<0.000000e+00> : vector<8x512xf32>
    %490 = tpu.matmul %482, %10, %cst_140 {dimension_numbers = #tpu.dot_dimension_numbers<[1], [0], [0], [1], [0, 0, 1, 1], [], []>} : vector<8x128xf32>, vector<128x512xf32>, vector<8x512xf32> -> vector<8x512xf32>
    %491 = arith.addf %489, %490 : vector<8x512xf32>
    %492 = vector.extract_strided_slice %491 {offsets = [0, 0], sizes = [8, 128], strides = [1, 1]} : vector<8x512xf32> to vector<8x128xf32>
    %493 = arith.negf %492 : vector<8x128xf32>
    %494 = math.exp %493 : vector<8x128xf32>
    %cst_141 = arith.constant 1.000000e+00 : f32
    %495 = vector.broadcast %cst_141 : f32 to vector<8x128xf32>
    %496 = arith.addf %495, %494 : vector<8x128xf32>
    %497 = arith.divf %495, %496 : vector<8x128xf32>
    %498 = vector.extract_strided_slice %491 {offsets = [0, 128], sizes = [8, 128], strides = [1, 1]} : vector<8x512xf32> to vector<8x128xf32>
    %499 = arith.negf %498 : vector<8x128xf32>
    %500 = math.exp %499 : vector<8x128xf32>
    %cst_142 = arith.constant 1.000000e+00 : f32
    %501 = vector.broadcast %cst_142 : f32 to vector<8x128xf32>
    %502 = arith.addf %501, %500 : vector<8x128xf32>
    %503 = arith.divf %501, %502 : vector<8x128xf32>
    %504 = vector.extract_strided_slice %491 {offsets = [0, 256], sizes = [8, 128], strides = [1, 1]} : vector<8x512xf32> to vector<8x128xf32>
    %505 = math.tanh %504 : vector<8x128xf32>
    %506 = vector.extract_strided_slice %491 {offsets = [0, 384], sizes = [8, 128], strides = [1, 1]} : vector<8x512xf32> to vector<8x128xf32>
    %507 = arith.negf %506 : vector<8x128xf32>
    %508 = math.exp %507 : vector<8x128xf32>
    %cst_143 = arith.constant 1.000000e+00 : f32
    %509 = vector.broadcast %cst_143 : f32 to vector<8x128xf32>
    %510 = arith.addf %509, %508 : vector<8x128xf32>
    %511 = arith.divf %509, %510 : vector<8x128xf32>
    %512 = arith.mulf %503, %480 : vector<8x128xf32>
    %513 = arith.mulf %497, %505 : vector<8x128xf32>
    %514 = arith.addf %512, %513 : vector<8x128xf32>
    %515 = math.tanh %514 : vector<8x128xf32>
    %516 = arith.mulf %511, %515 : vector<8x128xf32>
    %c112 = arith.constant 112 : index
    %c0_144 = arith.constant 0 : index
    %517 = vector.load %arg7[%c112, %c0_144] : memref<128x128xf32, #tpu.memory_space<vmem>>, vector<8x128xf32>
    tpu.vector_store %arg7[%c112, %c0_144], %516 {strides = array<i32>} : memref<128x128xf32, #tpu.memory_space<vmem>>, vector<8x128xf32>,
    %c112_145 = arith.constant 112 : index
    %c0_146 = arith.constant 0 : index
    %518 = vector.load %arg6[%c112_145, %c0_146] : memref<128x128xf32, #tpu.memory_space<vmem>>, vector<8x128xf32>
    %519 = vector.broadcast %3 : f32 to vector<8x128xf32>
    %520 = arith.mulf %519, %516 : vector<8x128xf32>
    %521 = arith.addf %518, %520 : vector<8x128xf32>
    %c112_147 = arith.constant 112 : index
    %c0_148 = arith.constant 0 : index
    %522 = vector.load %arg8[%c112_147, %c0_148] : memref<128x128xf32, #tpu.memory_space<vmem>>, vector<8x128xf32>
    tpu.vector_store %arg8[%c112_147, %c0_148], %521 {strides = array<i32>} : memref<128x128xf32, #tpu.memory_space<vmem>>, vector<8x128xf32>,
    %523 = vector.extract_strided_slice %9 {offsets = [120, 0], sizes = [8, 512], strides = [1, 1]} : vector<128x512xf32> to vector<8x512xf32>
    %cst_149 = arith.constant dense<0.000000e+00> : vector<8x512xf32>
    %524 = tpu.matmul %516, %10, %cst_149 {dimension_numbers = #tpu.dot_dimension_numbers<[1], [0], [0], [1], [0, 0, 1, 1], [], []>} : vector<8x128xf32>, vector<128x512xf32>, vector<8x512xf32> -> vector<8x512xf32>
    %525 = arith.addf %523, %524 : vector<8x512xf32>
    %526 = vector.extract_strided_slice %525 {offsets = [0, 0], sizes = [8, 128], strides = [1, 1]} : vector<8x512xf32> to vector<8x128xf32>
    %527 = arith.negf %526 : vector<8x128xf32>
    %528 = math.exp %527 : vector<8x128xf32>
    %cst_150 = arith.constant 1.000000e+00 : f32
    %529 = vector.broadcast %cst_150 : f32 to vector<8x128xf32>
    %530 = arith.addf %529, %528 : vector<8x128xf32>
    %531 = arith.divf %529, %530 : vector<8x128xf32>
    %532 = vector.extract_strided_slice %525 {offsets = [0, 128], sizes = [8, 128], strides = [1, 1]} : vector<8x512xf32> to vector<8x128xf32>
    %533 = arith.negf %532 : vector<8x128xf32>
    %534 = math.exp %533 : vector<8x128xf32>
    %cst_151 = arith.constant 1.000000e+00 : f32
    %535 = vector.broadcast %cst_151 : f32 to vector<8x128xf32>
    %536 = arith.addf %535, %534 : vector<8x128xf32>
    %537 = arith.divf %535, %536 : vector<8x128xf32>
    %538 = vector.extract_strided_slice %525 {offsets = [0, 256], sizes = [8, 128], strides = [1, 1]} : vector<8x512xf32> to vector<8x128xf32>
    %539 = math.tanh %538 : vector<8x128xf32>
    %540 = vector.extract_strided_slice %525 {offsets = [0, 384], sizes = [8, 128], strides = [1, 1]} : vector<8x512xf32> to vector<8x128xf32>
    %541 = arith.negf %540 : vector<8x128xf32>
    %542 = math.exp %541 : vector<8x128xf32>
    %cst_152 = arith.constant 1.000000e+00 : f32
    %543 = vector.broadcast %cst_152 : f32 to vector<8x128xf32>
    %544 = arith.addf %543, %542 : vector<8x128xf32>
    %545 = arith.divf %543, %544 : vector<8x128xf32>
    %546 = arith.mulf %537, %514 : vector<8x128xf32>
    %547 = arith.mulf %531, %539 : vector<8x128xf32>
    %548 = arith.addf %546, %547 : vector<8x128xf32>
    %549 = math.tanh %548 : vector<8x128xf32>
    %550 = arith.mulf %545, %549 : vector<8x128xf32>
    %c120 = arith.constant 120 : index
    %c0_153 = arith.constant 0 : index
    %551 = vector.load %arg7[%c120, %c0_153] : memref<128x128xf32, #tpu.memory_space<vmem>>, vector<8x128xf32>
    tpu.vector_store %arg7[%c120, %c0_153], %550 {strides = array<i32>} : memref<128x128xf32, #tpu.memory_space<vmem>>, vector<8x128xf32>,
    %c120_154 = arith.constant 120 : index
    %c0_155 = arith.constant 0 : index
    %552 = vector.load %arg6[%c120_154, %c0_155] : memref<128x128xf32, #tpu.memory_space<vmem>>, vector<8x128xf32>
    %553 = vector.broadcast %3 : f32 to vector<8x128xf32>
    %554 = arith.mulf %553, %550 : vector<8x128xf32>
    %555 = arith.addf %552, %554 : vector<8x128xf32>
    %c120_156 = arith.constant 120 : index
    %c0_157 = arith.constant 0 : index
    %556 = vector.load %arg8[%c120_156, %c0_157] : memref<128x128xf32, #tpu.memory_space<vmem>>, vector<8x128xf32>
    tpu.vector_store %arg8[%c120_156, %c0_157], %555 {strides = array<i32>} : memref<128x128xf32, #tpu.memory_space<vmem>>, vector<8x128xf32>,
    %c0_158 = arith.constant 0 : index
    %c0_159 = arith.constant 0 : index
    %557 = vector.load %arg9[%c0_158, %c0_159] : memref<8x128xf32, #tpu.memory_space<vmem>>, vector<8x128xf32>
    tpu.vector_store %arg9[%c0_158, %c0_159], %550 {strides = array<i32>} : memref<8x128xf32, #tpu.memory_space<vmem>>, vector<8x128xf32>,
    %c0_160 = arith.constant 0 : index
    %c0_161 = arith.constant 0 : index
    %558 = vector.load %arg10[%c0_160, %c0_161] : memref<8x128xf32, #tpu.memory_space<vmem>>, vector<8x128xf32>
    tpu.vector_store %arg10[%c0_160, %c0_161], %548 {strides = array<i32>} : memref<8x128xf32, #tpu.memory_space<vmem>>, vector<8x128xf32>,
    return
  }
  func.func @transform_0(%arg0: i32) -> i32 {
    %c0_i32 = arith.constant 0 : i32
    %c0_i32_0 = arith.constant 0 : i32
    return %c0_i32 : i32
  }
  func.func @transform_1(%arg0: i32) -> (i32, i32) {
    %c0_i32 = arith.constant 0 : i32
    %c0_i32_0 = arith.constant 0 : i32
    return %arg0, %c0_i32 : i32, i32
  }
  func.func @transform_2(%arg0: i32) -> (i32, i32) {
    %c0_i32 = arith.constant 0 : i32
    %c0_i32_0 = arith.constant 0 : i32
    %c0_i32_1 = arith.constant 0 : i32
    return %c0_i32, %c0_i32_0 : i32, i32
  }
  func.func @transform_3(%arg0: i32) -> (i32, i32) {
    %c0_i32 = arith.constant 0 : i32
    %c0_i32_0 = arith.constant 0 : i32
    %c0_i32_1 = arith.constant 0 : i32
    return %c0_i32, %c0_i32_0 : i32, i32
  }
  func.func @transform_4(%arg0: i32) -> (i32, i32) {
    %c0_i32 = arith.constant 0 : i32
    %c0_i32_0 = arith.constant 0 : i32
    %c0_i32_1 = arith.constant 0 : i32
    return %c0_i32, %c0_i32_0 : i32, i32
  }
  func.func @transform_5(%arg0: i32) -> (i32, i32) {
    %c0_i32 = arith.constant 0 : i32
    %c0_i32_0 = arith.constant 0 : i32
    return %arg0, %c0_i32 : i32, i32
  }
  func.func @transform_6(%arg0: i32) -> (i32, i32) {
    %c0_i32 = arith.constant 0 : i32
    %c0_i32_0 = arith.constant 0 : i32
    return %arg0, %c0_i32 : i32, i32
  }
  func.func @transform_7(%arg0: i32) -> (i32, i32) {
    %c0_i32 = arith.constant 0 : i32
    %c0_i32_0 = arith.constant 0 : i32
    return %arg0, %c0_i32 : i32, i32
  }
}

</mosaic_0001>

<llo_original>
// kernel: elmo_lm_forward.3
$region0: #{elmo_lm_forward.3}
  #allocation0 [shape = 'u32[]', space=smem, size = 0x4, offset = 0x4, fixed_abs, tag = 'smem constant byte address 0x4 - core index']
  #allocation1 [shape = 'u32[72,128]{1,0:T(1,128)}', space=vmem, size = 0x9000, scoped, tag = 'internal scratch']
  #allocation2 [shape = 'f32[8,128]{1,0:T(8,128)}', space=vmem, size = 0x1000, scoped, tag = 'scratch operand']
  #allocation3 [shape = 'f32[8,128]{1,0:T(8,128)}', space=vmem, size = 0x1000, scoped, tag = 'scratch operand']
  #allocation4 [shape = 'f32[1]{0:T(128)S(6)}', space=smem, size = 0x200, scoped, tag = 'scoped memory for elmo_lm_forward.3']
  %s0 = inlined_call_operand.<no memory space> [shape: f32[1], index: 0, kind: input, shape index: {}]
  %s1 = inlined_call_operand.vmem [shape: f32[128,128], index: 1, kind: input, shape index: {}]
  %s2 = inlined_call_operand.vmem [shape: f32[128,512], index: 2, kind: input, shape index: {}]
  %s3 = inlined_call_operand.vmem [shape: f32[128,512], index: 3, kind: input, shape index: {}]
  %s4 = inlined_call_operand.vmem [shape: f32[1,512], index: 4, kind: input, shape index: {}]
  %s5 = inlined_call_operand.vmem [shape: f32[128,128], index: 5, kind: input, shape index: {}]
  %s6 = inlined_call_operand.hbm [shape: f32[128,128], index: 6, kind: output, shape index: {0}]
  %s7 = inlined_call_operand.hbm [shape: f32[128,128], index: 7, kind: output, shape index: {1}]
  %8 = xla_tuple %s6, %s7
  %s9 = sld [smem:[#allocation0]]
  $region46: #{elmo_lm_forward.3} parent=0
    _
  %s11 = ssub.s32 1, %s9
  %s12 = scalar_select 0, %s11, %s9
  %13 = sst [smem:[#allocation4]] %s0
  $region1: #{elmo_lm_forward.3} parent=0
    #allocation5 [shape = 'u8[65536]{0}', space=vmem, size = 0x10000, scoped, tag = 'output window, operand 0, single buffered']
    #allocation6 [shape = 's32[1]{0}', space=sflag, size = 0x4, scoped, tag = 'scoped memory for elmo_lm_forward.3']
    #allocation7 [shape = 'u8[65536]{0}', space=vmem, size = 0x10000, scoped, tag = 'output window, operand 1, single buffered']
    #allocation8 [shape = 's32[1]{0}', space=sflag, size = 0x4, scoped, tag = 'scoped memory for elmo_lm_forward.3']
    %14 = vsyncpa [#allocation6], 0
    %15 = vsyncpa [#allocation8], 0
    // Predicated region
    $region2: #{elmo_lm_forward.3} parent=1 // pred_check
      _
    $region3: #{elmo_lm_forward.3} parent=1 // pred_check_branch
      %17 = sbr.rel (0) target = $region5
    $region4: #{elmo_lm_forward.3} parent=1 // pred_region
      _
    $region5: #{elmo_lm_forward.3} parent=1 // pred_fallthru
      _
    // Predicated region
    $region6: #{elmo_lm_forward.3} parent=1 // pred_check
      _
    $region7: #{elmo_lm_forward.3} parent=1 // pred_check_branch
      %19 = sbr.rel (0) target = $region9
    $region8: #{elmo_lm_forward.3} parent=1 // pred_region
      _
    $region9: #{elmo_lm_forward.3} parent=1 // pred_fallthru
      _
    // Predicated region
    $region10: #{elmo_lm_forward.3} parent=1 // pred_check
      _
    $region11: #{elmo_lm_forward.3} parent=1 // pred_check_branch
      %21 = sbr.rel (0) target = $region13
    $region12: #{elmo_lm_forward.3} parent=1 // pred_region
      _
    $region13: #{elmo_lm_forward.3} parent=1 // pred_fallthru
      _
    // Predicated region
    $region14: #{elmo_lm_forward.3} parent=1 // pred_check
      _
    $region15: #{elmo_lm_forward.3} parent=1 // pred_check_branch
      %23 = sbr.rel (0) target = $region17
    $region16: #{elmo_lm_forward.3} parent=1 // pred_region
      _
    $region17: #{elmo_lm_forward.3} parent=1 // pred_fallthru
      _
    // Predicated region
    $region18: #{elmo_lm_forward.3} parent=1 // pred_check
      _
    $region19: #{elmo_lm_forward.3} parent=1 // pred_check_branch
      %25 = sbr.rel (0) target = $region21
    $region20: #{elmo_lm_forward.3} parent=1 // pred_region
      _
    $region21: #{elmo_lm_forward.3} parent=1 // pred_fallthru
      _
    // Predicated region
    $region22: #{elmo_lm_forward.3} parent=1 // pred_check
      _
    $region23: #{elmo_lm_forward.3} parent=1 // pred_check_branch
      %27 = sbr.rel (0) target = $region25
    $region24: #{elmo_lm_forward.3} parent=1 // pred_region
      _
    $region25: #{elmo_lm_forward.3} parent=1 // pred_fallthru
      _
    %p28 = scmp.eq.s32.totalorder 0, 0
    // Predicated region
    $region26: #{elmo_lm_forward.3} parent=1 // pred_check
      %p29 = pneg %p28
    $region27: #{elmo_lm_forward.3} parent=1 // pred_check_branch
      %31 = sbr.rel (%p29) target = $region29
    $region28: #{elmo_lm_forward.3} parent=1 // pred_region
      %32 = vst [vmem:[#allocation2] sm:$0xff] 0.0
      %33 = vst [vmem:[#allocation3] sm:$0xff] 0.0
    $region29: #{elmo_lm_forward.3} parent=1 // pred_fallthru
      _
    %s34 = sld [smem:[#allocation4]]
    %v35 = vld [vmem:[%s1] sm:$0xff]
    %v36 = vld [vmem:[%s1 + $0x8] sm:$0xff]
    %v37 = vld [vmem:[%s1 + $0x10] sm:$0xff]
    %v38 = vld [vmem:[%s1 + $0x18] sm:$0xff]
    %v39 = vld [vmem:[%s1 + $0x20] sm:$0xff]
    %v40 = vld [vmem:[%s1 + $0x28] sm:$0xff]
    %v41 = vld [vmem:[%s1 + $0x30] sm:$0xff]
    %v42 = vld [vmem:[%s1 + $0x38] sm:$0xff]
    %v43 = vld [vmem:[%s1 + $0x40] sm:$0xff]
    %v44 = vld [vmem:[%s1 + $0x48] sm:$0xff]
    %v45 = vld [vmem:[%s1 + $0x50] sm:$0xff]
    %v46 = vld [vmem:[%s1 + $0x58] sm:$0xff]
    %v47 = vld [vmem:[%s1 + $0x60] sm:$0xff]
    %v48 = vld [vmem:[%s1 + $0x68] sm:$0xff]
    %v49 = vld [vmem:[%s1 + $0x70] sm:$0xff]
    %v50 = vld [vmem:[%s1 + $0x78] sm:$0xff]
    %v51 = vld [vmem:[%s2] sm:$0xff]
    %v52 = vld [vmem:[%s2 + $0x8] sm:$0xff]
    %v53 = vld [vmem:[%s2 + $0x10] sm:$0xff]
    %v54 = vld [vmem:[%s2 + $0x18] sm:$0xff]
    %v55 = vld [vmem:[%s2 + $0x20] sm:$0xff]
    %v56 = vld [vmem:[%s2 + $0x28] sm:$0xff]
    %v57 = vld [vmem:[%s2 + $0x30] sm:$0xff]
    %v58 = vld [vmem:[%s2 + $0x38] sm:$0xff]
    %v59 = vld [vmem:[%s2 + $0x40] sm:$0xff]
    %v60 = vld [vmem:[%s2 + $0x48] sm:$0xff]
    %v61 = vld [vmem:[%s2 + $0x50] sm:$0xff]
    %v62 = vld [vmem:[%s2 + $0x58] sm:$0xff]
    %v63 = vld [vmem:[%s2 + $0x60] sm:$0xff]
    %v64 = vld [vmem:[%s2 + $0x68] sm:$0xff]
    %v65 = vld [vmem:[%s2 + $0x70] sm:$0xff]
    %v66 = vld [vmem:[%s2 + $0x78] sm:$0xff]
    %v67 = vld [vmem:[%s2 + $0x80] sm:$0xff]
    %v68 = vld [vmem:[%s2 + $0x88] sm:$0xff]
    %v69 = vld [vmem:[%s2 + $0x90] sm:$0xff]
    %v70 = vld [vmem:[%s2 + $0x98] sm:$0xff]
    %v71 = vld [vmem:[%s2 + $0xa0] sm:$0xff]
    %v72 = vld [vmem:[%s2 + $0xa8] sm:$0xff]
    %v73 = vld [vmem:[%s2 + $0xb0] sm:$0xff]
    %v74 = vld [vmem:[%s2 + $0xb8] sm:$0xff]
    %v75 = vld [vmem:[%s2 + $0xc0] sm:$0xff]
    %v76 = vld [vmem:[%s2 + $0xc8] sm:$0xff]
    %v77 = vld [vmem:[%s2 + $0xd0] sm:$0xff]
    %v78 = vld [vmem:[%s2 + $0xd8] sm:$0xff]
    %v79 = vld [vmem:[%s2 + $0xe0] sm:$0xff]
    %v80 = vld [vmem:[%s2 + $0xe8] sm:$0xff]
    %v81 = vld [vmem:[%s2 + $0xf0] sm:$0xff]
    %v82 = vld [vmem:[%s2 + $0xf8] sm:$0xff]
    %v83 = vld [vmem:[%s2 + $0x100] sm:$0xff]
    %v84 = vld [vmem:[%s2 + $0x108] sm:$0xff]
    %v85 = vld [vmem:[%s2 + $0x110] sm:$0xff]
    %v86 = vld [vmem:[%s2 + $0x118] sm:$0xff]
    %v87 = vld [vmem:[%s2 + $0x120] sm:$0xff]
    %v88 = vld [vmem:[%s2 + $0x128] sm:$0xff]
    %v89 = vld [vmem:[%s2 + $0x130] sm:$0xff]
    %v90 = vld [vmem:[%s2 + $0x138] sm:$0xff]
    %v91 = vld [vmem:[%s2 + $0x140] sm:$0xff]
    %v92 = vld [vmem:[%s2 + $0x148] sm:$0xff]
    %v93 = vld [vmem:[%s2 + $0x150] sm:$0xff]
    %v94 = vld [vmem:[%s2 + $0x158] sm:$0xff]
    %v95 = vld [vmem:[%s2 + $0x160] sm:$0xff]
    %v96 = vld [vmem:[%s2 + $0x168] sm:$0xff]
    %v97 = vld [vmem:[%s2 + $0x170] sm:$0xff]
    %v98 = vld [vmem:[%s2 + $0x178] sm:$0xff]
    %v99 = vld [vmem:[%s2 + $0x180] sm:$0xff]
    %v100 = vld [vmem:[%s2 + $0x188] sm:$0xff]
    %v101 = vld [vmem:[%s2 + $0x190] sm:$0xff]
    %v102 = vld [vmem:[%s2 + $0x198] sm:$0xff]
    %v103 = vld [vmem:[%s2 + $0x1a0] sm:$0xff]
    %v104 = vld [vmem:[%s2 + $0x1a8] sm:$0xff]
    %v105 = vld [vmem:[%s2 + $0x1b0] sm:$0xff]
    %v106 = vld [vmem:[%s2 + $0x1b8] sm:$0xff]
    %v107 = vld [vmem:[%s2 + $0x1c0] sm:$0xff]
    %v108 = vld [vmem:[%s2 + $0x1c8] sm:$0xff]
    %v109 = vld [vmem:[%s2 + $0x1d0] sm:$0xff]
    %v110 = vld [vmem:[%s2 + $0x1d8] sm:$0xff]
    %v111 = vld [vmem:[%s2 + $0x1e0] sm:$0xff]
    %v112 = vld [vmem:[%s2 + $0x1e8] sm:$0xff]
    %v113 = vld [vmem:[%s2 + $0x1f0] sm:$0xff]
    %v114 = vld [vmem:[%s2 + $0x1f8] sm:$0xff]
    %v115 = vld [vmem:[%s4] sm:$0xf]
    %v117 = vperm.slane %v115, 0
    %v118 = vperm.slane %v115, 1
    %v119 = vperm.slane %v115, 2
    %v120 = vperm.slane %v115, 3
    %125 = vmatpush.msra.mxu0 %v111
    %126 = vmatpush.msra.mxu0 %v107
    %127 = vmatpush.msra.mxu0 %v103
    %128 = vmatpush.msra.mxu0 %v99
    %129 = vmatpush.msra.mxu0 %v95
    %130 = vmatpush.msra.mxu0 %v91
    %131 = vmatpush.msra.mxu0 %v87
    %132 = vmatpush.msra.mxu0 %v83
    %133 = vmatpush.msra.mxu0 %v79
    %134 = vmatpush.msra.mxu0 %v75
    %135 = vmatpush.msra.mxu0 %v71
    %136 = vmatpush.msra.mxu0 %v67
    %137 = vmatpush.msra.mxu0 %v63
    %138 = vmatpush.msra.mxu0 %v59
    %139 = vmatpush.msra.mxu0 %v55
    %140 = vmatpush.msra.mxu0 %v51
    %141 = vmatmul.f32.gmra.mxu0 %v35
    %v142 = vpop.f32.mrf.mxu0
    %v143 = vadd.f32 %v117, %v142
    %144 = vmatmul.f32.gmra.mxu0 %v36
    %v145 = vpop.f32.mrf.mxu0
    %v146 = vadd.f32 %v117, %v145
    %147 = vmatmul.f32.gmra.mxu0 %v37
    %v148 = vpop.f32.mrf.mxu0
    %v149 = vadd.f32 %v117, %v148
    %150 = vmatmul.f32.gmra.mxu0 %v38
    %v151 = vpop.f32.mrf.mxu0
    %v152 = vadd.f32 %v117, %v151
    %153 = vmatmul.f32.gmra.mxu0 %v39
    %v154 = vpop.f32.mrf.mxu0
    %v155 = vadd.f32 %v117, %v154
    %156 = vmatmul.f32.gmra.mxu0 %v40
    %v157 = vpop.f32.mrf.mxu0
    %v158 = vadd.f32 %v117, %v157
    %159 = vmatmul.f32.gmra.mxu0 %v41
    %v160 = vpop.f32.mrf.mxu0
    %v161 = vadd.f32 %v117, %v160
    %162 = vmatmul.f32.gmra.mxu0 %v42
    %v163 = vpop.f32.mrf.mxu0
    %v164 = vadd.f32 %v117, %v163
    %165 = vmatmul.f32.gmra.mxu0 %v43
    %v166 = vpop.f32.mrf.mxu0
    %v167 = vadd.f32 %v117, %v166
    %168 = vmatmul.f32.gmra.mxu0 %v44
    %v169 = vpop.f32.mrf.mxu0
    %v170 = vadd.f32 %v117, %v169
    %171 = vmatmul.f32.gmra.mxu0 %v45
    %v172 = vpop.f32.mrf.mxu0
    %v173 = vadd.f32 %v117, %v172
    %174 = vmatmul.f32.gmra.mxu0 %v46
    %v175 = vpop.f32.mrf.mxu0
    %v176 = vadd.f32 %v117, %v175
    %177 = vmatmul.f32.gmra.mxu0 %v47
    %v178 = vpop.f32.mrf.mxu0
    %v179 = vadd.f32 %v117, %v178
    %180 = vmatmul.f32.gmra.mxu0 %v48
    %v181 = vpop.f32.mrf.mxu0
    %v182 = vadd.f32 %v117, %v181
    %183 = vmatmul.f32.gmra.mxu0 %v49
    %v184 = vpop.f32.mrf.mxu0
    %v185 = vadd.f32 %v117, %v184
    %186 = vmatmul.f32.gmra.mxu0 %v50
    %v187 = vpop.f32.mrf.mxu0
    %v188 = vadd.f32 %v117, %v187
    %189 = vdwg.mxu0
    %190 = vmatpush.msra.mxu0 %v112
    %191 = vmatpush.msra.mxu0 %v108
    %192 = vmatpush.msra.mxu0 %v104
    %193 = vmatpush.msra.mxu0 %v100
    %194 = vmatpush.msra.mxu0 %v96
    %195 = vmatpush.msra.mxu0 %v92
    %196 = vmatpush.msra.mxu0 %v88
    %197 = vmatpush.msra.mxu0 %v84
    %198 = vmatpush.msra.mxu0 %v80
    %199 = vmatpush.msra.mxu0 %v76
    %200 = vmatpush.msra.mxu0 %v72
    %201 = vmatpush.msra.mxu0 %v68
    %202 = vmatpush.msra.mxu0 %v64
    %203 = vmatpush.msra.mxu0 %v60
    %204 = vmatpush.msra.mxu0 %v56
    %205 = vmatpush.msra.mxu0 %v52
    %206 = vmatmul.f32.gmra.mxu0 %v35
    %v207 = vpop.f32.mrf.mxu0
    %v208 = vadd.f32 %v118, %v207
    %209 = vmatmul.f32.gmra.mxu0 %v36
    %v210 = vpop.f32.mrf.mxu0
    %v211 = vadd.f32 %v118, %v210
    %212 = vmatmul.f32.gmra.mxu0 %v37
    %v213 = vpop.f32.mrf.mxu0
    %v214 = vadd.f32 %v118, %v213
    %215 = vmatmul.f32.gmra.mxu0 %v38
    %v216 = vpop.f32.mrf.mxu0
    %v217 = vadd.f32 %v118, %v216
    %218 = vmatmul.f32.gmra.mxu0 %v39
    %v219 = vpop.f32.mrf.mxu0
    %v220 = vadd.f32 %v118, %v219
    %221 = vmatmul.f32.gmra.mxu0 %v40
    %v222 = vpop.f32.mrf.mxu0
    %v223 = vadd.f32 %v118, %v222
    %224 = vmatmul.f32.gmra.mxu0 %v41
    %v225 = vpop.f32.mrf.mxu0
    %v226 = vadd.f32 %v118, %v225
    %227 = vmatmul.f32.gmra.mxu0 %v42
    %v228 = vpop.f32.mrf.mxu0
    %v229 = vadd.f32 %v118, %v228
    %230 = vmatmul.f32.gmra.mxu0 %v43
    %v231 = vpop.f32.mrf.mxu0
    %v232 = vadd.f32 %v118, %v231
    %233 = vmatmul.f32.gmra.mxu0 %v44
    %v234 = vpop.f32.mrf.mxu0
    %v235 = vadd.f32 %v118, %v234
    %236 = vmatmul.f32.gmra.mxu0 %v45
    %v237 = vpop.f32.mrf.mxu0
    %v238 = vadd.f32 %v118, %v237
    %239 = vmatmul.f32.gmra.mxu0 %v46
    %v240 = vpop.f32.mrf.mxu0
    %v241 = vadd.f32 %v118, %v240
    %242 = vmatmul.f32.gmra.mxu0 %v47
    %v243 = vpop.f32.mrf.mxu0
    %v244 = vadd.f32 %v118, %v243
    %245 = vmatmul.f32.gmra.mxu0 %v48
    %v246 = vpop.f32.mrf.mxu0
    %v247 = vadd.f32 %v118, %v246
    %248 = vmatmul.f32.gmra.mxu0 %v49
    %v249 = vpop.f32.mrf.mxu0
    %v250 = vadd.f32 %v118, %v249
    %251 = vmatmul.f32.gmra.mxu0 %v50
    %v252 = vpop.f32.mrf.mxu0
    %v253 = vadd.f32 %v118, %v252
    %254 = vdwg.mxu0
    %255 = vmatpush.msra.mxu0 %v113
    %256 = vmatpush.msra.mxu0 %v109
    %257 = vmatpush.msra.mxu0 %v105
    %258 = vmatpush.msra.mxu0 %v101
    %259 = vmatpush.msra.mxu0 %v97
    %260 = vmatpush.msra.mxu0 %v93
    %261 = vmatpush.msra.mxu0 %v89
    %262 = vmatpush.msra.mxu0 %v85
    %263 = vmatpush.msra.mxu0 %v81
    %264 = vmatpush.msra.mxu0 %v77
    %265 = vmatpush.msra.mxu0 %v73
    %266 = vmatpush.msra.mxu0 %v69
    %267 = vmatpush.msra.mxu0 %v65
    %268 = vmatpush.msra.mxu0 %v61
    %269 = vmatpush.msra.mxu0 %v57
    %270 = vmatpush.msra.mxu0 %v53
    %271 = vmatmul.f32.gmra.mxu0 %v35
    %v272 = vpop.f32.mrf.mxu0
    %v273 = vadd.f32 %v119, %v272
    %274 = vmatmul.f32.gmra.mxu0 %v36
    %v275 = vpop.f32.mrf.mxu0
    %v276 = vadd.f32 %v119, %v275
    %277 = vmatmul.f32.gmra.mxu0 %v37
    %v278 = vpop.f32.mrf.mxu0
    %v279 = vadd.f32 %v119, %v278
    %280 = vmatmul.f32.gmra.mxu0 %v38
    %v281 = vpop.f32.mrf.mxu0
    %v282 = vadd.f32 %v119, %v281
    %283 = vmatmul.f32.gmra.mxu0 %v39
    %v284 = vpop.f32.mrf.mxu0
    %v285 = vadd.f32 %v119, %v284
    %286 = vmatmul.f32.gmra.mxu0 %v40
    %v287 = vpop.f32.mrf.mxu0
    %v288 = vadd.f32 %v119, %v287
    %289 = vmatmul.f32.gmra.mxu0 %v41
    %v290 = vpop.f32.mrf.mxu0
    %v291 = vadd.f32 %v119, %v290
    %292 = vmatmul.f32.gmra.mxu0 %v42
    %v293 = vpop.f32.mrf.mxu0
    %v294 = vadd.f32 %v119, %v293
    %295 = vmatmul.f32.gmra.mxu0 %v43
    %v296 = vpop.f32.mrf.mxu0
    %v297 = vadd.f32 %v119, %v296
    %298 = vmatmul.f32.gmra.mxu0 %v44
    %v299 = vpop.f32.mrf.mxu0
    %v300 = vadd.f32 %v119, %v299
    %301 = vmatmul.f32.gmra.mxu0 %v45
    %v302 = vpop.f32.mrf.mxu0
    %v303 = vadd.f32 %v119, %v302
    %304 = vmatmul.f32.gmra.mxu0 %v46
    %v305 = vpop.f32.mrf.mxu0
    %v306 = vadd.f32 %v119, %v305
    %307 = vmatmul.f32.gmra.mxu0 %v47
    %v308 = vpop.f32.mrf.mxu0
    %v309 = vadd.f32 %v119, %v308
    %310 = vmatmul.f32.gmra.mxu0 %v48
    %v311 = vpop.f32.mrf.mxu0
    %v312 = vadd.f32 %v119, %v311
    %313 = vmatmul.f32.gmra.mxu0 %v49
    %v314 = vpop.f32.mrf.mxu0
    %v315 = vadd.f32 %v119, %v314
    %316 = vmatmul.f32.gmra.mxu0 %v50
    %v317 = vpop.f32.mrf.mxu0
    %v318 = vadd.f32 %v119, %v317
    %319 = vdwg.mxu0
    %320 = vmatpush.msra.mxu0 %v114
    %321 = vmatpush.msra.mxu0 %v110
    %322 = vmatpush.msra.mxu0 %v106
    %323 = vmatpush.msra.mxu0 %v102
    %324 = vmatpush.msra.mxu0 %v98
    %325 = vmatpush.msra.mxu0 %v94
    %326 = vmatpush.msra.mxu0 %v90
    %327 = vmatpush.msra.mxu0 %v86
    %328 = vmatpush.msra.mxu0 %v82
    %329 = vmatpush.msra.mxu0 %v78
    %330 = vmatpush.msra.mxu0 %v74
    %331 = vmatpush.msra.mxu0 %v70
    %332 = vmatpush.msra.mxu0 %v66
    %333 = vmatpush.msra.mxu0 %v62
    %334 = vmatpush.msra.mxu0 %v58
    %335 = vmatpush.msra.mxu0 %v54
    %336 = vmatmul.f32.gmra.mxu0 %v35
    %v337 = vpop.f32.mrf.mxu0
    %v338 = vadd.f32 %v120, %v337
    %339 = vmatmul.f32.gmra.mxu0 %v36
    %v340 = vpop.f32.mrf.mxu0
    %v341 = vadd.f32 %v120, %v340
    %342 = vmatmul.f32.gmra.mxu0 %v37
    %v343 = vpop.f32.mrf.mxu0
    %v344 = vadd.f32 %v120, %v343
    %345 = vmatmul.f32.gmra.mxu0 %v38
    %v346 = vpop.f32.mrf.mxu0
    %v347 = vadd.f32 %v120, %v346
    %348 = vmatmul.f32.gmra.mxu0 %v39
    %v349 = vpop.f32.mrf.mxu0
    %v350 = vadd.f32 %v120, %v349
    %351 = vmatmul.f32.gmra.mxu0 %v40
    %v352 = vpop.f32.mrf.mxu0
    %v353 = vadd.f32 %v120, %v352
    %354 = vmatmul.f32.gmra.mxu0 %v41
    %v355 = vpop.f32.mrf.mxu0
    %v356 = vadd.f32 %v120, %v355
    %357 = vmatmul.f32.gmra.mxu0 %v42
    %v358 = vpop.f32.mrf.mxu0
    %v359 = vadd.f32 %v120, %v358
    %360 = vmatmul.f32.gmra.mxu0 %v43
    %v361 = vpop.f32.mrf.mxu0
    %v362 = vadd.f32 %v120, %v361
    %363 = vmatmul.f32.gmra.mxu0 %v44
    %v364 = vpop.f32.mrf.mxu0
    %v365 = vadd.f32 %v120, %v364
    %366 = vmatmul.f32.gmra.mxu0 %v45
    %v367 = vpop.f32.mrf.mxu0
    %v368 = vadd.f32 %v120, %v367
    %369 = vmatmul.f32.gmra.mxu0 %v46
    %v370 = vpop.f32.mrf.mxu0
    %v371 = vadd.f32 %v120, %v370
    %372 = vmatmul.f32.gmra.mxu0 %v47
    %v373 = vpop.f32.mrf.mxu0
    %v374 = vadd.f32 %v120, %v373
    %375 = vmatmul.f32.gmra.mxu0 %v48
    %v376 = vpop.f32.mrf.mxu0
    %v377 = vadd.f32 %v120, %v376
    %378 = vmatmul.f32.gmra.mxu0 %v49
    %v379 = vpop.f32.mrf.mxu0
    %v380 = vadd.f32 %v120, %v379
    %381 = vmatmul.f32.gmra.mxu0 %v50
    %v382 = vpop.f32.mrf.mxu0
    %v383 = vadd.f32 %v120, %v382
    %384 = vdwg.mxu0
    %v385 = vld [vmem:[%s3] sm:$0xff]
    %v386 = vld [vmem:[%s3 + $0x8] sm:$0xff]
    %v387 = vld [vmem:[%s3 + $0x10] sm:$0xff]
    %v388 = vld [vmem:[%s3 + $0x18] sm:$0xff]
    %v389 = vld [vmem:[%s3 + $0x20] sm:$0xff]
    %v390 = vld [vmem:[%s3 + $0x28] sm:$0xff]
    %v391 = vld [vmem:[%s3 + $0x30] sm:$0xff]
    %v392 = vld [vmem:[%s3 + $0x38] sm:$0xff]
    %v393 = vld [vmem:[%s3 + $0x40] sm:$0xff]
    %v394 = vld [vmem:[%s3 + $0x48] sm:$0xff]
    %v395 = vld [vmem:[%s3 + $0x50] sm:$0xff]
    %v396 = vld [vmem:[%s3 + $0x58] sm:$0xff]
    %v397 = vld [vmem:[%s3 + $0x60] sm:$0xff]
    %v398 = vld [vmem:[%s3 + $0x68] sm:$0xff]
    %v399 = vld [vmem:[%s3 + $0x70] sm:$0xff]
    %v400 = vld [vmem:[%s3 + $0x78] sm:$0xff]
    %v401 = vld [vmem:[%s3 + $0x80] sm:$0xff]
    %v402 = vld [vmem:[%s3 + $0x88] sm:$0xff]
    %v403 = vld [vmem:[%s3 + $0x90] sm:$0xff]
    %v404 = vld [vmem:[%s3 + $0x98] sm:$0xff]
    %v405 = vld [vmem:[%s3 + $0xa0] sm:$0xff]
    %v406 = vld [vmem:[%s3 + $0xa8] sm:$0xff]
    %v407 = vld [vmem:[%s3 + $0xb0] sm:$0xff]
    %v408 = vld [vmem:[%s3 + $0xb8] sm:$0xff]
    %v409 = vld [vmem:[%s3 + $0xc0] sm:$0xff]
    %v410 = vld [vmem:[%s3 + $0xc8] sm:$0xff]
    %v411 = vld [vmem:[%s3 + $0xd0] sm:$0xff]
    %v412 = vld [vmem:[%s3 + $0xd8] sm:$0xff]
    %v413 = vld [vmem:[%s3 + $0xe0] sm:$0xff]
    %v414 = vld [vmem:[%s3 + $0xe8] sm:$0xff]
    %v415 = vld [vmem:[%s3 + $0xf0] sm:$0xff]
    %v416 = vld [vmem:[%s3 + $0xf8] sm:$0xff]
    %v417 = vld [vmem:[%s3 + $0x100] sm:$0xff]
    %v418 = vld [vmem:[%s3 + $0x108] sm:$0xff]
    %v419 = vld [vmem:[%s3 + $0x110] sm:$0xff]
    %v420 = vld [vmem:[%s3 + $0x118] sm:$0xff]
    %v421 = vld [vmem:[%s3 + $0x120] sm:$0xff]
    %v422 = vld [vmem:[%s3 + $0x128] sm:$0xff]
    %v423 = vld [vmem:[%s3 + $0x130] sm:$0xff]
    %v424 = vld [vmem:[%s3 + $0x138] sm:$0xff]
    %v425 = vld [vmem:[%s3 + $0x140] sm:$0xff]
    %v426 = vld [vmem:[%s3 + $0x148] sm:$0xff]
    %v427 = vld [vmem:[%s3 + $0x150] sm:$0xff]
    %v428 = vld [vmem:[%s3 + $0x158] sm:$0xff]
    %v429 = vld [vmem:[%s3 + $0x160] sm:$0xff]
    %v430 = vld [vmem:[%s3 + $0x168] sm:$0xff]
    %v431 = vld [vmem:[%s3 + $0x170] sm:$0xff]
    %v432 = vld [vmem:[%s3 + $0x178] sm:$0xff]
    %v433 = vld [vmem:[%s3 + $0x180] sm:$0xff]
    %v434 = vld [vmem:[%s3 + $0x188] sm:$0xff]
    %v435 = vld [vmem:[%s3 + $0x190] sm:$0xff]
    %v436 = vld [vmem:[%s3 + $0x198] sm:$0xff]
    %v437 = vld [vmem:[%s3 + $0x1a0] sm:$0xff]
    %v438 = vld [vmem:[%s3 + $0x1a8] sm:$0xff]
    %v439 = vld [vmem:[%s3 + $0x1b0] sm:$0xff]
    %v440 = vld [vmem:[%s3 + $0x1b8] sm:$0xff]
    %v441 = vld [vmem:[%s3 + $0x1c0] sm:$0xff]
    %v442 = vld [vmem:[%s3 + $0x1c8] sm:$0xff]
    %v443 = vld [vmem:[%s3 + $0x1d0] sm:$0xff]
    %v444 = vld [vmem:[%s3 + $0x1d8] sm:$0xff]
    %v445 = vld [vmem:[%s3 + $0x1e0] sm:$0xff]
    %v446 = vld [vmem:[%s3 + $0x1e8] sm:$0xff]
    %v447 = vld [vmem:[%s3 + $0x1f0] sm:$0xff]
    %v448 = vld [vmem:[%s3 + $0x1f8] sm:$0xff]
    %v449 = vld [vmem:[#allocation2] sm:$0xff]
    %v450 = vld [vmem:[#allocation3] sm:$0xff]
    %451 = vmatpush.msra.mxu0 %v445
    %452 = vmatpush.msra.mxu0 %v441
    %453 = vmatpush.msra.mxu0 %v437
    %454 = vmatpush.msra.mxu0 %v433
    %455 = vmatpush.msra.mxu0 %v429
    %456 = vmatpush.msra.mxu0 %v425
    %457 = vmatpush.msra.mxu0 %v421
    %458 = vmatpush.msra.mxu0 %v417
    %459 = vmatpush.msra.mxu0 %v413
    %460 = vmatpush.msra.mxu0 %v409
    %461 = vmatpush.msra.mxu0 %v405
    %462 = vmatpush.msra.mxu0 %v401
    %463 = vmatpush.msra.mxu0 %v397
    %464 = vmatpush.msra.mxu0 %v393
    %465 = vmatpush.msra.mxu0 %v389
    %466 = vmatpush.msra.mxu0 %v385
    %467 = vmatmul.f32.gmra.mxu0 %v449
    %v468 = vpop.f32.mrf.mxu0
    %v469 = vadd.f32 0.0, %v468
    %470 = vdwg.mxu0
    %471 = vmatpush.msra.mxu0 %v446
    %472 = vmatpush.msra.mxu0 %v442
    %473 = vmatpush.msra.mxu0 %v438
    %474 = vmatpush.msra.mxu0 %v434
    %475 = vmatpush.msra.mxu0 %v430
    %476 = vmatpush.msra.mxu0 %v426
    %477 = vmatpush.msra.mxu0 %v422
    %478 = vmatpush.msra.mxu0 %v418
    %479 = vmatpush.msra.mxu0 %v414
    %480 = vmatpush.msra.mxu0 %v410
    %481 = vmatpush.msra.mxu0 %v406
    %482 = vmatpush.msra.mxu0 %v402
    %483 = vmatpush.msra.mxu0 %v398
    %484 = vmatpush.msra.mxu0 %v394
    %485 = vmatpush.msra.mxu0 %v390
    %486 = vmatpush.msra.mxu0 %v386
    %487 = vmatmul.f32.gmra.mxu0 %v449
    %v488 = vpop.f32.mrf.mxu0
    %v489 = vadd.f32 0.0, %v488
    %490 = vdwg.mxu0
    %491 = vmatpush.msra.mxu0 %v447
    %492 = vmatpush.msra.mxu0 %v443
    %493 = vmatpush.msra.mxu0 %v439
    %494 = vmatpush.msra.mxu0 %v435
    %495 = vmatpush.msra.mxu0 %v431
    %496 = vmatpush.msra.mxu0 %v427
    %497 = vmatpush.msra.mxu0 %v423
    %498 = vmatpush.msra.mxu0 %v419
    %499 = vmatpush.msra.mxu0 %v415
    %500 = vmatpush.msra.mxu0 %v411
    %501 = vmatpush.msra.mxu0 %v407
    %502 = vmatpush.msra.mxu0 %v403
    %503 = vmatpush.msra.mxu0 %v399
    %504 = vmatpush.msra.mxu0 %v395
    %505 = vmatpush.msra.mxu0 %v391
    %506 = vmatpush.msra.mxu0 %v387
    %507 = vmatmul.f32.gmra.mxu0 %v449
    %v508 = vpop.f32.mrf.mxu0
    %v509 = vadd.f32 0.0, %v508
    %510 = vdwg.mxu0
    %511 = vmatpush.msra.mxu0 %v448
    %512 = vmatpush.msra.mxu0 %v444
    %513 = vmatpush.msra.mxu0 %v440
    %514 = vmatpush.msra.mxu0 %v436
    %515 = vmatpush.msra.mxu0 %v432
    %516 = vmatpush.msra.mxu0 %v428
    %517 = vmatpush.msra.mxu0 %v424
    %518 = vmatpush.msra.mxu0 %v420
    %519 = vmatpush.msra.mxu0 %v416
    %520 = vmatpush.msra.mxu0 %v412
    %521 = vmatpush.msra.mxu0 %v408
    %522 = vmatpush.msra.mxu0 %v404
    %523 = vmatpush.msra.mxu0 %v400
    %524 = vmatpush.msra.mxu0 %v396
    %525 = vmatpush.msra.mxu0 %v392
    %526 = vmatpush.msra.mxu0 %v388
    %527 = vmatmul.f32.gmra.mxu0 %v449
    %v528 = vpop.f32.mrf.mxu0
    %v529 = vadd.f32 0.0, %v528
    %530 = vdwg.mxu0
    %v531 = vadd.f32 %v143, %v469
    %v532 = vadd.f32 %v208, %v489
    %v533 = vadd.f32 %v273, %v509
    %v534 = vadd.f32 %v338, %v529
    %v535 = vxor.u32 %v531, 2147483648
    %v536 = vmul.f32 %v535, 1.442695
    %v537 = vpow.pop %v536
    %v538 = vadd.f32 %v537, 1.0
    %v539 = vrcp.pop %v538
    %v540 = vmul.f32 %v538, %v539
    %v541 = vsub.f32 1.0, %v540
    %v542 = vmul.f32 %v539, %v541
    %v543 = vadd.f32 %v539, %v542
    %vm544 = vweird.f32 %v538
    %vm545 = vweird.f32 %v539
    %vm546 = vmor %vm544, %vm545
    %v547 = vsel %vm546, %v539, %v543
    %v548 = vand.u32 2147483647, %v538
    %vm549 = vcmp.eq.f32.partialorder %v548, 8.507059e+37
    %v550 = vand.u32 %v538, 2147483648
    %v551 = vor.u32 1.1754944e-38, %v550
    %v552 = vsel %vm549, %v551, %v547
    %v553 = vmul.f32 1.0, %v552
    %v554 = vxor.u32 %v532, 2147483648
    %v555 = vmul.f32 %v554, 1.442695
    %v556 = vpow.pop %v555
    %v557 = vadd.f32 %v556, 1.0
    %v558 = vrcp.pop %v557
    %v559 = vmul.f32 %v557, %v558
    %v560 = vsub.f32 1.0, %v559
    %v561 = vmul.f32 %v558, %v560
    %v562 = vadd.f32 %v558, %v561
    %vm563 = vweird.f32 %v557
    %vm564 = vweird.f32 %v558
    %vm565 = vmor %vm563, %vm564
    %v566 = vsel %vm565, %v558, %v562
    %v567 = vand.u32 2147483647, %v557
    %vm568 = vcmp.eq.f32.partialorder %v567, 8.507059e+37
    %v569 = vand.u32 %v557, 2147483648
    %v570 = vor.u32 1.1754944e-38, %v569
    %v571 = vsel %vm568, %v570, %v566
    %v572 = vmul.f32 1.0, %v571
    %v573 = vtanh.pop %v533
    %v574 = vxor.u32 %v534, 2147483648
    %v575 = vmul.f32 %v574, 1.442695
    %v576 = vpow.pop %v575
    %v577 = vadd.f32 %v576, 1.0
    %v578 = vrcp.pop %v577
    %v579 = vmul.f32 %v577, %v578
    %v580 = vsub.f32 1.0, %v579
    %v581 = vmul.f32 %v578, %v580
    %v582 = vadd.f32 %v578, %v581
    %vm583 = vweird.f32 %v577
    %vm584 = vweird.f32 %v578
    %vm585 = vmor %vm583, %vm584
    %v586 = vsel %vm585, %v578, %v582
    %v587 = vand.u32 2147483647, %v577
    %vm588 = vcmp.eq.f32.partialorder %v587, 8.507059e+37
    %v589 = vand.u32 %v577, 2147483648
    %v590 = vor.u32 1.1754944e-38, %v589
    %v591 = vsel %vm588, %v590, %v586
    %v592 = vmul.f32 1.0, %v591
    %v593 = vmul.f32 %v572, %v450
    %v594 = vmul.f32 %v553, %v573
    %v595 = vadd.f32 %v593, %v594
    %v596 = vtanh.pop %v595
    %v597 = vmul.f32 %v592, %v596
    %598 = vst [vmem:[#allocation5] sm:$0xff] %v597
    %v599 = vld [vmem:[%s5] sm:$0xff]
    %v600 = vstv %s34
    %v601 = vmul.f32 %v600, %v597
    %v602 = vadd.f32 %v599, %v601
    %603 = vst [vmem:[#allocation7] sm:$0xff] %v602
    %604 = vmatpush.msra.mxu0 %v445
    %605 = vmatpush.msra.mxu0 %v441
    %606 = vmatpush.msra.mxu0 %v437
    %607 = vmatpush.msra.mxu0 %v433
    %608 = vmatpush.msra.mxu0 %v429
    %609 = vmatpush.msra.mxu0 %v425
    %610 = vmatpush.msra.mxu0 %v421
    %611 = vmatpush.msra.mxu0 %v417
    %612 = vmatpush.msra.mxu0 %v413
    %613 = vmatpush.msra.mxu0 %v409
    %614 = vmatpush.msra.mxu0 %v405
    %615 = vmatpush.msra.mxu0 %v401
    %616 = vmatpush.msra.mxu0 %v397
    %617 = vmatpush.msra.mxu0 %v393
    %618 = vmatpush.msra.mxu0 %v389
    %619 = vmatpush.msra.mxu0 %v385
    %620 = vmatmul.f32.gmra.mxu0 %v597
    %v621 = vpop.f32.mrf.mxu0
    %v622 = vadd.f32 0.0, %v621
    %623 = vdwg.mxu0
    %624 = vmatpush.msra.mxu0 %v446
    %625 = vmatpush.msra.mxu0 %v442
    %626 = vmatpush.msra.mxu0 %v438
    %627 = vmatpush.msra.mxu0 %v434
    %628 = vmatpush.msra.mxu0 %v430
    %629 = vmatpush.msra.mxu0 %v426
    %630 = vmatpush.msra.mxu0 %v422
    %631 = vmatpush.msra.mxu0 %v418
    %632 = vmatpush.msra.mxu0 %v414
    %633 = vmatpush.msra.mxu0 %v410
    %634 = vmatpush.msra.mxu0 %v406
    %635 = vmatpush.msra.mxu0 %v402
    %636 = vmatpush.msra.mxu0 %v398
    %637 = vmatpush.msra.mxu0 %v394
    %638 = vmatpush.msra.mxu0 %v390
    %639 = vmatpush.msra.mxu0 %v386
    %640 = vmatmul.f32.gmra.mxu0 %v597
    %v641 = vpop.f32.mrf.mxu0
    %v642 = vadd.f32 0.0, %v641
    %643 = vdwg.mxu0
    %644 = vmatpush.msra.mxu0 %v447
    %645 = vmatpush.msra.mxu0 %v443
    %646 = vmatpush.msra.mxu0 %v439
    %647 = vmatpush.msra.mxu0 %v435
    %648 = vmatpush.msra.mxu0 %v431
    %649 = vmatpush.msra.mxu0 %v427
    %650 = vmatpush.msra.mxu0 %v423
    %651 = vmatpush.msra.mxu0 %v419
    %652 = vmatpush.msra.mxu0 %v415
    %653 = vmatpush.msra.mxu0 %v411
    %654 = vmatpush.msra.mxu0 %v407
    %655 = vmatpush.msra.mxu0 %v403
    %656 = vmatpush.msra.mxu0 %v399
    %657 = vmatpush.msra.mxu0 %v395
    %658 = vmatpush.msra.mxu0 %v391
    %659 = vmatpush.msra.mxu0 %v387
    %660 = vmatmul.f32.gmra.mxu0 %v597
    %v661 = vpop.f32.mrf.mxu0
    %v662 = vadd.f32 0.0, %v661
    %663 = vdwg.mxu0
    %664 = vmatpush.msra.mxu0 %v448
    %665 = vmatpush.msra.mxu0 %v444
    %666 = vmatpush.msra.mxu0 %v440
    %667 = vmatpush.msra.mxu0 %v436
    %668 = vmatpush.msra.mxu0 %v432
    %669 = vmatpush.msra.mxu0 %v428
    %670 = vmatpush.msra.mxu0 %v424
    %671 = vmatpush.msra.mxu0 %v420
    %672 = vmatpush.msra.mxu0 %v416
    %673 = vmatpush.msra.mxu0 %v412
    %674 = vmatpush.msra.mxu0 %v408
    %675 = vmatpush.msra.mxu0 %v404
    %676 = vmatpush.msra.mxu0 %v400
    %677 = vmatpush.msra.mxu0 %v396
    %678 = vmatpush.msra.mxu0 %v392
    %679 = vmatpush.msra.mxu0 %v388
    %680 = vmatmul.f32.gmra.mxu0 %v597
    %v681 = vpop.f32.mrf.mxu0
    %v682 = vadd.f32 0.0, %v681
    %683 = vdwg.mxu0
    %v684 = vadd.f32 %v146, %v622
    %v685 = vadd.f32 %v211, %v642
    %v686 = vadd.f32 %v276, %v662
    %v687 = vadd.f32 %v341, %v682
    %v688 = vxor.u32 %v684, 2147483648
    %v689 = vmul.f32 %v688, 1.442695
    %v690 = vpow.pop %v689
    %v691 = vadd.f32 %v690, 1.0
    %v692 = vrcp.pop %v691
    %v693 = vmul.f32 %v691, %v692
    %v694 = vsub.f32 1.0, %v693
    %v695 = vmul.f32 %v692, %v694
    %v696 = vadd.f32 %v692, %v695
    %vm697 = vweird.f32 %v691
    %vm698 = vweird.f32 %v692
    %vm699 = vmor %vm697, %vm698
    %v700 = vsel %vm699, %v692, %v696
    %v701 = vand.u32 2147483647, %v691
    %vm702 = vcmp.eq.f32.partialorder %v701, 8.507059e+37
    %v703 = vand.u32 %v691, 2147483648
    %v704 = vor.u32 1.1754944e-38, %v703
    %v705 = vsel %vm702, %v704, %v700
    %v706 = vmul.f32 1.0, %v705
    %v707 = vxor.u32 %v685, 2147483648
    %v708 = vmul.f32 %v707, 1.442695
    %v709 = vpow.pop %v708
    %v710 = vadd.f32 %v709, 1.0
    %v711 = vrcp.pop %v710
    %v712 = vmul.f32 %v710, %v711
    %v713 = vsub.f32 1.0, %v712
    %v714 = vmul.f32 %v711, %v713
    %v715 = vadd.f32 %v711, %v714
    %vm716 = vweird.f32 %v710
    %vm717 = vweird.f32 %v711
    %vm718 = vmor %vm716, %vm717
    %v719 = vsel %vm718, %v711, %v715
    %v720 = vand.u32 2147483647, %v710
    %vm721 = vcmp.eq.f32.partialorder %v720, 8.507059e+37
    %v722 = vand.u32 %v710, 2147483648
    %v723 = vor.u32 1.1754944e-38, %v722
    %v724 = vsel %vm721, %v723, %v719
    %v725 = vmul.f32 1.0, %v724
    %v726 = vtanh.pop %v686
    %v727 = vxor.u32 %v687, 2147483648
    %v728 = vmul.f32 %v727, 1.442695
    %v729 = vpow.pop %v728
    %v730 = vadd.f32 %v729, 1.0
    %v731 = vrcp.pop %v730
    %v732 = vmul.f32 %v730, %v731
    %v733 = vsub.f32 1.0, %v732
    %v734 = vmul.f32 %v731, %v733
    %v735 = vadd.f32 %v731, %v734
    %vm736 = vweird.f32 %v730
    %vm737 = vweird.f32 %v731
    %vm738 = vmor %vm736, %vm737
    %v739 = vsel %vm738, %v731, %v735
    %v740 = vand.u32 2147483647, %v730
    %vm741 = vcmp.eq.f32.partialorder %v740, 8.507059e+37
    %v742 = vand.u32 %v730, 2147483648
    %v743 = vor.u32 1.1754944e-38, %v742
    %v744 = vsel %vm741, %v743, %v739
    %v745 = vmul.f32 1.0, %v744
    %v746 = vmul.f32 %v725, %v595
    %v747 = vmul.f32 %v706, %v726
    %v748 = vadd.f32 %v746, %v747
    %v749 = vtanh.pop %v748
    %v750 = vmul.f32 %v745, %v749
    %751 = vst [vmem:[#allocation5 + $0x8] sm:$0xff] %v750
    %v752 = vld [vmem:[%s5 + $0x8] sm:$0xff]
    %v753 = vmul.f32 %v600, %v750
    %v754 = vadd.f32 %v752, %v753
    %755 = vst [vmem:[#allocation7 + $0x8] sm:$0xff] %v754
    %756 = vmatpush.msra.mxu0 %v445
    %757 = vmatpush.msra.mxu0 %v441
    %758 = vmatpush.msra.mxu0 %v437
    %759 = vmatpush.msra.mxu0 %v433
    %760 = vmatpush.msra.mxu0 %v429
    %761 = vmatpush.msra.mxu0 %v425
    %762 = vmatpush.msra.mxu0 %v421
    %763 = vmatpush.msra.mxu0 %v417
    %764 = vmatpush.msra.mxu0 %v413
    %765 = vmatpush.msra.mxu0 %v409
    %766 = vmatpush.msra.mxu0 %v405
    %767 = vmatpush.msra.mxu0 %v401
    %768 = vmatpush.msra.mxu0 %v397
    %769 = vmatpush.msra.mxu0 %v393
    %770 = vmatpush.msra.mxu0 %v389
    %771 = vmatpush.msra.mxu0 %v385
    %772 = vmatmul.f32.gmra.mxu0 %v750
    %v773 = vpop.f32.mrf.mxu0
    %v774 = vadd.f32 0.0, %v773
    %775 = vdwg.mxu0
    %776 = vmatpush.msra.mxu0 %v446
    %777 = vmatpush.msra.mxu0 %v442
    %778 = vmatpush.msra.mxu0 %v438
    %779 = vmatpush.msra.mxu0 %v434
    %780 = vmatpush.msra.mxu0 %v430
    %781 = vmatpush.msra.mxu0 %v426
    %782 = vmatpush.msra.mxu0 %v422
    %783 = vmatpush.msra.mxu0 %v418
    %784 = vmatpush.msra.mxu0 %v414
    %785 = vmatpush.msra.mxu0 %v410
    %786 = vmatpush.msra.mxu0 %v406
    %787 = vmatpush.msra.mxu0 %v402
    %788 = vmatpush.msra.mxu0 %v398
    %789 = vmatpush.msra.mxu0 %v394
    %790 = vmatpush.msra.mxu0 %v390
    %791 = vmatpush.msra.mxu0 %v386
    %792 = vmatmul.f32.gmra.mxu0 %v750
    %v793 = vpop.f32.mrf.mxu0
    %v794 = vadd.f32 0.0, %v793
    %795 = vdwg.mxu0
    %796 = vmatpush.msra.mxu0 %v447
    %797 = vmatpush.msra.mxu0 %v443
    %798 = vmatpush.msra.mxu0 %v439
    %799 = vmatpush.msra.mxu0 %v435
    %800 = vmatpush.msra.mxu0 %v431
    %801 = vmatpush.msra.mxu0 %v427
    %802 = vmatpush.msra.mxu0 %v423
    %803 = vmatpush.msra.mxu0 %v419
    %804 = vmatpush.msra.mxu0 %v415
    %805 = vmatpush.msra.mxu0 %v411
    %806 = vmatpush.msra.mxu0 %v407
    %807 = vmatpush.msra.mxu0 %v403
    %808 = vmatpush.msra.mxu0 %v399
    %809 = vmatpush.msra.mxu0 %v395
    %810 = vmatpush.msra.mxu0 %v391
    %811 = vmatpush.msra.mxu0 %v387
    %812 = vmatmul.f32.gmra.mxu0 %v750
    %v813 = vpop.f32.mrf.mxu0
    %v814 = vadd.f32 0.0, %v813
    %815 = vdwg.mxu0
    %816 = vmatpush.msra.mxu0 %v448
    %817 = vmatpush.msra.mxu0 %v444
    %818 = vmatpush.msra.mxu0 %v440
    %819 = vmatpush.msra.mxu0 %v436
    %820 = vmatpush.msra.mxu0 %v432
    %821 = vmatpush.msra.mxu0 %v428
    %822 = vmatpush.msra.mxu0 %v424
    %823 = vmatpush.msra.mxu0 %v420
    %824 = vmatpush.msra.mxu0 %v416
    %825 = vmatpush.msra.mxu0 %v412
    %826 = vmatpush.msra.mxu0 %v408
    %827 = vmatpush.msra.mxu0 %v404
    %828 = vmatpush.msra.mxu0 %v400
    %829 = vmatpush.msra.mxu0 %v396
    %830 = vmatpush.msra.mxu0 %v392
    %831 = vmatpush.msra.mxu0 %v388
    %832 = vmatmul.f32.gmra.mxu0 %v750
    %v833 = vpop.f32.mrf.mxu0
    %v834 = vadd.f32 0.0, %v833
    %835 = vdwg.mxu0
    %v836 = vadd.f32 %v149, %v774
    %v837 = vadd.f32 %v214, %v794
    %v838 = vadd.f32 %v279, %v814
    %v839 = vadd.f32 %v344, %v834
    %v840 = vxor.u32 %v836, 2147483648
    %v841 = vmul.f32 %v840, 1.442695
    %v842 = vpow.pop %v841
    %v843 = vadd.f32 %v842, 1.0
    %v844 = vrcp.pop %v843
    %v845 = vmul.f32 %v843, %v844
    %v846 = vsub.f32 1.0, %v845
    %v847 = vmul.f32 %v844, %v846
    %v848 = vadd.f32 %v844, %v847
    %vm849 = vweird.f32 %v843
    %vm850 = vweird.f32 %v844
    %vm851 = vmor %vm849, %vm850
    %v852 = vsel %vm851, %v844, %v848
    %v853 = vand.u32 2147483647, %v843
    %vm854 = vcmp.eq.f32.partialorder %v853, 8.507059e+37
    %v855 = vand.u32 %v843, 2147483648
    %v856 = vor.u32 1.1754944e-38, %v855
    %v857 = vsel %vm854, %v856, %v852
    %v858 = vmul.f32 1.0, %v857
    %v859 = vxor.u32 %v837, 2147483648
    %v860 = vmul.f32 %v859, 1.442695
    %v861 = vpow.pop %v860
    %v862 = vadd.f32 %v861, 1.0
    %v863 = vrcp.pop %v862
    %v864 = vmul.f32 %v862, %v863
    %v865 = vsub.f32 1.0, %v864
    %v866 = vmul.f32 %v863, %v865
    %v867 = vadd.f32 %v863, %v866
    %vm868 = vweird.f32 %v862
    %vm869 = vweird.f32 %v863
    %vm870 = vmor %vm868, %vm869
    %v871 = vsel %vm870, %v863, %v867
    %v872 = vand.u32 2147483647, %v862
    %vm873 = vcmp.eq.f32.partialorder %v872, 8.507059e+37
    %v874 = vand.u32 %v862, 2147483648
    %v875 = vor.u32 1.1754944e-38, %v874
    %v876 = vsel %vm873, %v875, %v871
    %v877 = vmul.f32 1.0, %v876
    %v878 = vtanh.pop %v838
    %v879 = vxor.u32 %v839, 2147483648
    %v880 = vmul.f32 %v879, 1.442695
    %v881 = vpow.pop %v880
    %v882 = vadd.f32 %v881, 1.0
    %v883 = vrcp.pop %v882
    %v884 = vmul.f32 %v882, %v883
    %v885 = vsub.f32 1.0, %v884
    %v886 = vmul.f32 %v883, %v885
    %v887 = vadd.f32 %v883, %v886
    %vm888 = vweird.f32 %v882
    %vm889 = vweird.f32 %v883
    %vm890 = vmor %vm888, %vm889
    %v891 = vsel %vm890, %v883, %v887
    %v892 = vand.u32 2147483647, %v882
    %vm893 = vcmp.eq.f32.partialorder %v892, 8.507059e+37
    %v894 = vand.u32 %v882, 2147483648
    %v895 = vor.u32 1.1754944e-38, %v894
    %v896 = vsel %vm893, %v895, %v891
    %v897 = vmul.f32 1.0, %v896
    %v898 = vmul.f32 %v877, %v748
    %v899 = vmul.f32 %v858, %v878
    %v900 = vadd.f32 %v898, %v899
    %v901 = vtanh.pop %v900
    %v902 = vmul.f32 %v897, %v901
    %903 = vst [vmem:[#allocation5 + $0x10] sm:$0xff] %v902
    %v904 = vld [vmem:[%s5 + $0x10] sm:$0xff]
    %v905 = vmul.f32 %v600, %v902
    %v906 = vadd.f32 %v904, %v905
    %907 = vst [vmem:[#allocation7 + $0x10] sm:$0xff] %v906
    %908 = vmatpush.msra.mxu0 %v445
    %909 = vmatpush.msra.mxu0 %v441
    %910 = vmatpush.msra.mxu0 %v437
    %911 = vmatpush.msra.mxu0 %v433
    %912 = vmatpush.msra.mxu0 %v429
    %913 = vmatpush.msra.mxu0 %v425
    %914 = vmatpush.msra.mxu0 %v421
    %915 = vmatpush.msra.mxu0 %v417
    %916 = vmatpush.msra.mxu0 %v413
    %917 = vmatpush.msra.mxu0 %v409
    %918 = vmatpush.msra.mxu0 %v405
    %919 = vmatpush.msra.mxu0 %v401
    %920 = vmatpush.msra.mxu0 %v397
    %921 = vmatpush.msra.mxu0 %v393
    %922 = vmatpush.msra.mxu0 %v389
    %923 = vmatpush.msra.mxu0 %v385
    %924 = vmatmul.f32.gmra.mxu0 %v902
    %v925 = vpop.f32.mrf.mxu0
    %v926 = vadd.f32 0.0, %v925
    %927 = vdwg.mxu0
    %928 = vmatpush.msra.mxu0 %v446
    %929 = vmatpush.msra.mxu0 %v442
    %930 = vmatpush.msra.mxu0 %v438
    %931 = vmatpush.msra.mxu0 %v434
    %932 = vmatpush.msra.mxu0 %v430
    %933 = vmatpush.msra.mxu0 %v426
    %934 = vmatpush.msra.mxu0 %v422
    %935 = vmatpush.msra.mxu0 %v418
    %936 = vmatpush.msra.mxu0 %v414
    %937 = vmatpush.msra.mxu0 %v410
    %938 = vmatpush.msra.mxu0 %v406
    %939 = vmatpush.msra.mxu0 %v402
    %940 = vmatpush.msra.mxu0 %v398
    %941 = vmatpush.msra.mxu0 %v394
    %942 = vmatpush.msra.mxu0 %v390
    %943 = vmatpush.msra.mxu0 %v386
    %944 = vmatmul.f32.gmra.mxu0 %v902
    %v945 = vpop.f32.mrf.mxu0
    %v946 = vadd.f32 0.0, %v945
    %947 = vdwg.mxu0
    %948 = vmatpush.msra.mxu0 %v447
    %949 = vmatpush.msra.mxu0 %v443
    %950 = vmatpush.msra.mxu0 %v439
    %951 = vmatpush.msra.mxu0 %v435
    %952 = vmatpush.msra.mxu0 %v431
    %953 = vmatpush.msra.mxu0 %v427
    %954 = vmatpush.msra.mxu0 %v423
    %955 = vmatpush.msra.mxu0 %v419
    %956 = vmatpush.msra.mxu0 %v415
    %957 = vmatpush.msra.mxu0 %v411
    %958 = vmatpush.msra.mxu0 %v407
    %959 = vmatpush.msra.mxu0 %v403
    %960 = vmatpush.msra.mxu0 %v399
    %961 = vmatpush.msra.mxu0 %v395
    %962 = vmatpush.msra.mxu0 %v391
    %963 = vmatpush.msra.mxu0 %v387
    %964 = vmatmul.f32.gmra.mxu0 %v902
    %v965 = vpop.f32.mrf.mxu0
    %v966 = vadd.f32 0.0, %v965
    %967 = vdwg.mxu0
    %968 = vmatpush.msra.mxu0 %v448
    %969 = vmatpush.msra.mxu0 %v444
    %970 = vmatpush.msra.mxu0 %v440
    %971 = vmatpush.msra.mxu0 %v436
    %972 = vmatpush.msra.mxu0 %v432
    %973 = vmatpush.msra.mxu0 %v428
    %974 = vmatpush.msra.mxu0 %v424
    %975 = vmatpush.msra.mxu0 %v420
    %976 = vmatpush.msra.mxu0 %v416
    %977 = vmatpush.msra.mxu0 %v412
    %978 = vmatpush.msra.mxu0 %v408
    %979 = vmatpush.msra.mxu0 %v404
    %980 = vmatpush.msra.mxu0 %v400
    %981 = vmatpush.msra.mxu0 %v396
    %982 = vmatpush.msra.mxu0 %v392
    %983 = vmatpush.msra.mxu0 %v388
    %984 = vmatmul.f32.gmra.mxu0 %v902
    %v985 = vpop.f32.mrf.mxu0
    %v986 = vadd.f32 0.0, %v985
    %987 = vdwg.mxu0
    %v988 = vadd.f32 %v152, %v926
    %v989 = vadd.f32 %v217, %v946
    %v990 = vadd.f32 %v282, %v966
    %v991 = vadd.f32 %v347, %v986
    %v992 = vxor.u32 %v988, 2147483648
    %v993 = vmul.f32 %v992, 1.442695
    %v994 = vpow.pop %v993
    %v995 = vadd.f32 %v994, 1.0
    %v996 = vrcp.pop %v995
    %v997 = vmul.f32 %v995, %v996
    %v998 = vsub.f32 1.0, %v997
    %v999 = vmul.f32 %v996, %v998
    %v1000 = vadd.f32 %v996, %v999
    %vm1001 = vweird.f32 %v995
    %vm1002 = vweird.f32 %v996
    %vm1003 = vmor %vm1001, %vm1002
    %v1004 = vsel %vm1003, %v996, %v1000
    %v1005 = vand.u32 2147483647, %v995
    %vm1006 = vcmp.eq.f32.partialorder %v1005, 8.507059e+37
    %v1007 = vand.u32 %v995, 2147483648
    %v1008 = vor.u32 1.1754944e-38, %v1007
    %v1009 = vsel %vm1006, %v1008, %v1004
    %v1010 = vmul.f32 1.0, %v1009
    %v1011 = vxor.u32 %v989, 2147483648
    %v1012 = vmul.f32 %v1011, 1.442695
    %v1013 = vpow.pop %v1012
    %v1014 = vadd.f32 %v1013, 1.0
    %v1015 = vrcp.pop %v1014
    %v1016 = vmul.f32 %v1014, %v1015
    %v1017 = vsub.f32 1.0, %v1016
    %v1018 = vmul.f32 %v1015, %v1017
    %v1019 = vadd.f32 %v1015, %v1018
    %vm1020 = vweird.f32 %v1014
    %vm1021 = vweird.f32 %v1015
    %vm1022 = vmor %vm1020, %vm1021
    %v1023 = vsel %vm1022, %v1015, %v1019
    %v1024 = vand.u32 2147483647, %v1014
    %vm1025 = vcmp.eq.f32.partialorder %v1024, 8.507059e+37
    %v1026 = vand.u32 %v1014, 2147483648
    %v1027 = vor.u32 1.1754944e-38, %v1026
    %v1028 = vsel %vm1025, %v1027, %v1023
    %v1029 = vmul.f32 1.0, %v1028
    %v1030 = vtanh.pop %v990
    %v1031 = vxor.u32 %v991, 2147483648
    %v1032 = vmul.f32 %v1031, 1.442695
    %v1033 = vpow.pop %v1032
    %v1034 = vadd.f32 %v1033, 1.0
    %v1035 = vrcp.pop %v1034
    %v1036 = vmul.f32 %v1034, %v1035
    %v1037 = vsub.f32 1.0, %v1036
    %v1038 = vmul.f32 %v1035, %v1037
    %v1039 = vadd.f32 %v1035, %v1038
    %vm1040 = vweird.f32 %v1034
    %vm1041 = vweird.f32 %v1035
    %vm1042 = vmor %vm1040, %vm1041
    %v1043 = vsel %vm1042, %v1035, %v1039
    %v1044 = vand.u32 2147483647, %v1034
    %vm1045 = vcmp.eq.f32.partialorder %v1044, 8.507059e+37
    %v1046 = vand.u32 %v1034, 2147483648
    %v1047 = vor.u32 1.1754944e-38, %v1046
    %v1048 = vsel %vm1045, %v1047, %v1043
    %v1049 = vmul.f32 1.0, %v1048
    %v1050 = vmul.f32 %v1029, %v900
    %v1051 = vmul.f32 %v1010, %v1030
    %v1052 = vadd.f32 %v1050, %v1051
    %v1053 = vtanh.pop %v1052
    %v1054 = vmul.f32 %v1049, %v1053
    %1055 = vst [vmem:[#allocation5 + $0x18] sm:$0xff] %v1054
    %v1056 = vld [vmem:[%s5 + $0x18] sm:$0xff]
    %v1057 = vmul.f32 %v600, %v1054
    %v1058 = vadd.f32 %v1056, %v1057
    %1059 = vst [vmem:[#allocation7 + $0x18] sm:$0xff] %v1058
    %1060 = vmatpush.msra.mxu0 %v445
    %1061 = vmatpush.msra.mxu0 %v441
    %1062 = vmatpush.msra.mxu0 %v437
    %1063 = vmatpush.msra.mxu0 %v433
    %1064 = vmatpush.msra.mxu0 %v429
    %1065 = vmatpush.msra.mxu0 %v425
    %1066 = vmatpush.msra.mxu0 %v421
    %1067 = vmatpush.msra.mxu0 %v417
    %1068 = vmatpush.msra.mxu0 %v413
    %1069 = vmatpush.msra.mxu0 %v409
    %1070 = vmatpush.msra.mxu0 %v405
    %1071 = vmatpush.msra.mxu0 %v401
    %1072 = vmatpush.msra.mxu0 %v397
    %1073 = vmatpush.msra.mxu0 %v393
    %1074 = vmatpush.msra.mxu0 %v389
    %1075 = vmatpush.msra.mxu0 %v385
    %1076 = vmatmul.f32.gmra.mxu0 %v1054
    %v1077 = vpop.f32.mrf.mxu0
    %v1078 = vadd.f32 0.0, %v1077
    %1079 = vdwg.mxu0
    %1080 = vmatpush.msra.mxu0 %v446
    %1081 = vmatpush.msra.mxu0 %v442
    %1082 = vmatpush.msra.mxu0 %v438
    %1083 = vmatpush.msra.mxu0 %v434
    %1084 = vmatpush.msra.mxu0 %v430
    %1085 = vmatpush.msra.mxu0 %v426
    %1086 = vmatpush.msra.mxu0 %v422
    %1087 = vmatpush.msra.mxu0 %v418
    %1088 = vmatpush.msra.mxu0 %v414
    %1089 = vmatpush.msra.mxu0 %v410
    %1090 = vmatpush.msra.mxu0 %v406
    %1091 = vmatpush.msra.mxu0 %v402
    %1092 = vmatpush.msra.mxu0 %v398
    %1093 = vmatpush.msra.mxu0 %v394
    %1094 = vmatpush.msra.mxu0 %v390
    %1095 = vmatpush.msra.mxu0 %v386
    %1096 = vmatmul.f32.gmra.mxu0 %v1054
    %v1097 = vpop.f32.mrf.mxu0
    %v1098 = vadd.f32 0.0, %v1097
    %1099 = vdwg.mxu0
    %1100 = vmatpush.msra.mxu0 %v447
    %1101 = vmatpush.msra.mxu0 %v443
    %1102 = vmatpush.msra.mxu0 %v439
    %1103 = vmatpush.msra.mxu0 %v435
    %1104 = vmatpush.msra.mxu0 %v431
    %1105 = vmatpush.msra.mxu0 %v427
    %1106 = vmatpush.msra.mxu0 %v423
    %1107 = vmatpush.msra.mxu0 %v419
    %1108 = vmatpush.msra.mxu0 %v415
    %1109 = vmatpush.msra.mxu0 %v411
    %1110 = vmatpush.msra.mxu0 %v407
    %1111 = vmatpush.msra.mxu0 %v403
    %1112 = vmatpush.msra.mxu0 %v399
    %1113 = vmatpush.msra.mxu0 %v395
    %1114 = vmatpush.msra.mxu0 %v391
    %1115 = vmatpush.msra.mxu0 %v387
    %1116 = vmatmul.f32.gmra.mxu0 %v1054
    %v1117 = vpop.f32.mrf.mxu0
    %v1118 = vadd.f32 0.0, %v1117
    %1119 = vdwg.mxu0
    %1120 = vmatpush.msra.mxu0 %v448
    %1121 = vmatpush.msra.mxu0 %v444
    %1122 = vmatpush.msra.mxu0 %v440
    %1123 = vmatpush.msra.mxu0 %v436
    %1124 = vmatpush.msra.mxu0 %v432
    %1125 = vmatpush.msra.mxu0 %v428
    %1126 = vmatpush.msra.mxu0 %v424
    %1127 = vmatpush.msra.mxu0 %v420
    %1128 = vmatpush.msra.mxu0 %v416
    %1129 = vmatpush.msra.mxu0 %v412
    %1130 = vmatpush.msra.mxu0 %v408
    %1131 = vmatpush.msra.mxu0 %v404
    %1132 = vmatpush.msra.mxu0 %v400
    %1133 = vmatpush.msra.mxu0 %v396
    %1134 = vmatpush.msra.mxu0 %v392
    %1135 = vmatpush.msra.mxu0 %v388
    %1136 = vmatmul.f32.gmra.mxu0 %v1054
    %v1137 = vpop.f32.mrf.mxu0
    %v1138 = vadd.f32 0.0, %v1137
    %1139 = vdwg.mxu0
    %v1140 = vadd.f32 %v155, %v1078
    %v1141 = vadd.f32 %v220, %v1098
    %v1142 = vadd.f32 %v285, %v1118
    %v1143 = vadd.f32 %v350, %v1138
    %v1144 = vxor.u32 %v1140, 2147483648
    %v1145 = vmul.f32 %v1144, 1.442695
    %v1146 = vpow.pop %v1145
    %v1147 = vadd.f32 %v1146, 1.0
    %v1148 = vrcp.pop %v1147
    %v1149 = vmul.f32 %v1147, %v1148
    %v1150 = vsub.f32 1.0, %v1149
    %v1151 = vmul.f32 %v1148, %v1150
    %v1152 = vadd.f32 %v1148, %v1151
    %vm1153 = vweird.f32 %v1147
    %vm1154 = vweird.f32 %v1148
    %vm1155 = vmor %vm1153, %vm1154
    %v1156 = vsel %vm1155, %v1148, %v1152
    %v1157 = vand.u32 2147483647, %v1147
    %vm1158 = vcmp.eq.f32.partialorder %v1157, 8.507059e+37
    %v1159 = vand.u32 %v1147, 2147483648
    %v1160 = vor.u32 1.1754944e-38, %v1159
    %v1161 = vsel %vm1158, %v1160, %v1156
    %v1162 = vmul.f32 1.0, %v1161
    %v1163 = vxor.u32 %v1141, 2147483648
    %v1164 = vmul.f32 %v1163, 1.442695
    %v1165 = vpow.pop %v1164
    %v1166 = vadd.f32 %v1165, 1.0
    %v1167 = vrcp.pop %v1166
    %v1168 = vmul.f32 %v1166, %v1167
    %v1169 = vsub.f32 1.0, %v1168
    %v1170 = vmul.f32 %v1167, %v1169
    %v1171 = vadd.f32 %v1167, %v1170
    %vm1172 = vweird.f32 %v1166
    %vm1173 = vweird.f32 %v1167
    %vm1174 = vmor %vm1172, %vm1173
    %v1175 = vsel %vm1174, %v1167, %v1171
    %v1176 = vand.u32 2147483647, %v1166
    %vm1177 = vcmp.eq.f32.partialorder %v1176, 8.507059e+37
    %v1178 = vand.u32 %v1166, 2147483648
    %v1179 = vor.u32 1.1754944e-38, %v1178
    %v1180 = vsel %vm1177, %v1179, %v1175
    %v1181 = vmul.f32 1.0, %v1180
    %v1182 = vtanh.pop %v1142
    %v1183 = vxor.u32 %v1143, 2147483648
    %v1184 = vmul.f32 %v1183, 1.442695
    %v1185 = vpow.pop %v1184
    %v1186 = vadd.f32 %v1185, 1.0
    %v1187 = vrcp.pop %v1186
    %v1188 = vmul.f32 %v1186, %v1187
    %v1189 = vsub.f32 1.0, %v1188
    %v1190 = vmul.f32 %v1187, %v1189
    %v1191 = vadd.f32 %v1187, %v1190
    %vm1192 = vweird.f32 %v1186
    %vm1193 = vweird.f32 %v1187
    %vm1194 = vmor %vm1192, %vm1193
    %v1195 = vsel %vm1194, %v1187, %v1191
    %v1196 = vand.u32 2147483647, %v1186
    %vm1197 = vcmp.eq.f32.partialorder %v1196, 8.507059e+37
    %v1198 = vand.u32 %v1186, 2147483648
    %v1199 = vor.u32 1.1754944e-38, %v1198
    %v1200 = vsel %vm1197, %v1199, %v1195
    %v1201 = vmul.f32 1.0, %v1200
    %v1202 = vmul.f32 %v1181, %v1052
    %v1203 = vmul.f32 %v1162, %v1182
    %v1204 = vadd.f32 %v1202, %v1203
    %v1205 = vtanh.pop %v1204
    %v1206 = vmul.f32 %v1201, %v1205
    %1207 = vst [vmem:[#allocation5 + $0x20] sm:$0xff] %v1206
    %v1208 = vld [vmem:[%s5 + $0x20] sm:$0xff]
    %v1209 = vmul.f32 %v600, %v1206
    %v1210 = vadd.f32 %v1208, %v1209
    %1211 = vst [vmem:[#allocation7 + $0x20] sm:$0xff] %v1210
    %1212 = vmatpush.msra.mxu0 %v445
    %1213 = vmatpush.msra.mxu0 %v441
    %1214 = vmatpush.msra.mxu0 %v437
    %1215 = vmatpush.msra.mxu0 %v433
    %1216 = vmatpush.msra.mxu0 %v429
    %1217 = vmatpush.msra.mxu0 %v425
    %1218 = vmatpush.msra.mxu0 %v421
    %1219 = vmatpush.msra.mxu0 %v417
    %1220 = vmatpush.msra.mxu0 %v413
    %1221 = vmatpush.msra.mxu0 %v409
    %1222 = vmatpush.msra.mxu0 %v405
    %1223 = vmatpush.msra.mxu0 %v401
    %1224 = vmatpush.msra.mxu0 %v397
    %1225 = vmatpush.msra.mxu0 %v393
    %1226 = vmatpush.msra.mxu0 %v389
    %1227 = vmatpush.msra.mxu0 %v385
    %1228 = vmatmul.f32.gmra.mxu0 %v1206
    %v1229 = vpop.f32.mrf.mxu0
    %v1230 = vadd.f32 0.0, %v1229
    %1231 = vdwg.mxu0
    %1232 = vmatpush.msra.mxu0 %v446
    %1233 = vmatpush.msra.mxu0 %v442
    %1234 = vmatpush.msra.mxu0 %v438
    %1235 = vmatpush.msra.mxu0 %v434
    %1236 = vmatpush.msra.mxu0 %v430
    %1237 = vmatpush.msra.mxu0 %v426
    %1238 = vmatpush.msra.mxu0 %v422
    %1239 = vmatpush.msra.mxu0 %v418
    %1240 = vmatpush.msra.mxu0 %v414
    %1241 = vmatpush.msra.mxu0 %v410
    %1242 = vmatpush.msra.mxu0 %v406
    %1243 = vmatpush.msra.mxu0 %v402
    %1244 = vmatpush.msra.mxu0 %v398
    %1245 = vmatpush.msra.mxu0 %v394
    %1246 = vmatpush.msra.mxu0 %v390
    %1247 = vmatpush.msra.mxu0 %v386
    %1248 = vmatmul.f32.gmra.mxu0 %v1206
    %v1249 = vpop.f32.mrf.mxu0
    %v1250 = vadd.f32 0.0, %v1249
    %1251 = vdwg.mxu0
    %1252 = vmatpush.msra.mxu0 %v447
    %1253 = vmatpush.msra.mxu0 %v443
    %1254 = vmatpush.msra.mxu0 %v439
    %1255 = vmatpush.msra.mxu0 %v435
    %1256 = vmatpush.msra.mxu0 %v431
    %1257 = vmatpush.msra.mxu0 %v427
    %1258 = vmatpush.msra.mxu0 %v423
    %1259 = vmatpush.msra.mxu0 %v419
    %1260 = vmatpush.msra.mxu0 %v415
    %1261 = vmatpush.msra.mxu0 %v411
    %1262 = vmatpush.msra.mxu0 %v407
    %1263 = vmatpush.msra.mxu0 %v403
    %1264 = vmatpush.msra.mxu0 %v399
    %1265 = vmatpush.msra.mxu0 %v395
    %1266 = vmatpush.msra.mxu0 %v391
    %1267 = vmatpush.msra.mxu0 %v387
    %1268 = vmatmul.f32.gmra.mxu0 %v1206
    %v1269 = vpop.f32.mrf.mxu0
    %v1270 = vadd.f32 0.0, %v1269
    %1271 = vdwg.mxu0
    %1272 = vmatpush.msra.mxu0 %v448
    %1273 = vmatpush.msra.mxu0 %v444
    %1274 = vmatpush.msra.mxu0 %v440
    %1275 = vmatpush.msra.mxu0 %v436
    %1276 = vmatpush.msra.mxu0 %v432
    %1277 = vmatpush.msra.mxu0 %v428
    %1278 = vmatpush.msra.mxu0 %v424
    %1279 = vmatpush.msra.mxu0 %v420
    %1280 = vmatpush.msra.mxu0 %v416
    %1281 = vmatpush.msra.mxu0 %v412
    %1282 = vmatpush.msra.mxu0 %v408
    %1283 = vmatpush.msra.mxu0 %v404
    %1284 = vmatpush.msra.mxu0 %v400
    %1285 = vmatpush.msra.mxu0 %v396
    %1286 = vmatpush.msra.mxu0 %v392
    %1287 = vmatpush.msra.mxu0 %v388
    %1288 = vmatmul.f32.gmra.mxu0 %v1206
    %v1289 = vpop.f32.mrf.mxu0
    %v1290 = vadd.f32 0.0, %v1289
    %1291 = vdwg.mxu0
    %v1292 = vadd.f32 %v158, %v1230
    %v1293 = vadd.f32 %v223, %v1250
    %v1294 = vadd.f32 %v288, %v1270
    %v1295 = vadd.f32 %v353, %v1290
    %v1296 = vxor.u32 %v1292, 2147483648
    %v1297 = vmul.f32 %v1296, 1.442695
    %v1298 = vpow.pop %v1297
    %v1299 = vadd.f32 %v1298, 1.0
    %v1300 = vrcp.pop %v1299
    %v1301 = vmul.f32 %v1299, %v1300
    %v1302 = vsub.f32 1.0, %v1301
    %v1303 = vmul.f32 %v1300, %v1302
    %v1304 = vadd.f32 %v1300, %v1303
    %vm1305 = vweird.f32 %v1299
    %vm1306 = vweird.f32 %v1300
    %vm1307 = vmor %vm1305, %vm1306
    %v1308 = vsel %vm1307, %v1300, %v1304
    %v1309 = vand.u32 2147483647, %v1299
    %vm1310 = vcmp.eq.f32.partialorder %v1309, 8.507059e+37
    %v1311 = vand.u32 %v1299, 2147483648
    %v1312 = vor.u32 1.1754944e-38, %v1311
    %v1313 = vsel %vm1310, %v1312, %v1308
    %v1314 = vmul.f32 1.0, %v1313
    %v1315 = vxor.u32 %v1293, 2147483648
    %v1316 = vmul.f32 %v1315, 1.442695
    %v1317 = vpow.pop %v1316
    %v1318 = vadd.f32 %v1317, 1.0
    %v1319 = vrcp.pop %v1318
    %v1320 = vmul.f32 %v1318, %v1319
    %v1321 = vsub.f32 1.0, %v1320
    %v1322 = vmul.f32 %v1319, %v1321
    %v1323 = vadd.f32 %v1319, %v1322
    %vm1324 = vweird.f32 %v1318
    %vm1325 = vweird.f32 %v1319
    %vm1326 = vmor %vm1324, %vm1325
    %v1327 = vsel %vm1326, %v1319, %v1323
    %v1328 = vand.u32 2147483647, %v1318
    %vm1329 = vcmp.eq.f32.partialorder %v1328, 8.507059e+37
    %v1330 = vand.u32 %v1318, 2147483648
    %v1331 = vor.u32 1.1754944e-38, %v1330
    %v1332 = vsel %vm1329, %v1331, %v1327
    %v1333 = vmul.f32 1.0, %v1332
    %v1334 = vtanh.pop %v1294
    %v1335 = vxor.u32 %v1295, 2147483648
    %v1336 = vmul.f32 %v1335, 1.442695
    %v1337 = vpow.pop %v1336
    %v1338 = vadd.f32 %v1337, 1.0
    %v1339 = vrcp.pop %v1338
    %v1340 = vmul.f32 %v1338, %v1339
    %v1341 = vsub.f32 1.0, %v1340
    %v1342 = vmul.f32 %v1339, %v1341
    %v1343 = vadd.f32 %v1339, %v1342
    %vm1344 = vweird.f32 %v1338
    %vm1345 = vweird.f32 %v1339
    %vm1346 = vmor %vm1344, %vm1345
    %v1347 = vsel %vm1346, %v1339, %v1343
    %v1348 = vand.u32 2147483647, %v1338
    %vm1349 = vcmp.eq.f32.partialorder %v1348, 8.507059e+37
    %v1350 = vand.u32 %v1338, 2147483648
    %v1351 = vor.u32 1.1754944e-38, %v1350
    %v1352 = vsel %vm1349, %v1351, %v1347
    %v1353 = vmul.f32 1.0, %v1352
    %v1354 = vmul.f32 %v1333, %v1204
    %v1355 = vmul.f32 %v1314, %v1334
    %v1356 = vadd.f32 %v1354, %v1355
    %v1357 = vtanh.pop %v1356
    %v1358 = vmul.f32 %v1353, %v1357
    %1359 = vst [vmem:[#allocation5 + $0x28] sm:$0xff] %v1358
    %v1360 = vld [vmem:[%s5 + $0x28] sm:$0xff]
    %v1361 = vmul.f32 %v600, %v1358
    %v1362 = vadd.f32 %v1360, %v1361
    %1363 = vst [vmem:[#allocation7 + $0x28] sm:$0xff] %v1362
    %1364 = vmatpush.msra.mxu0 %v445
    %1365 = vmatpush.msra.mxu0 %v441
    %1366 = vmatpush.msra.mxu0 %v437
    %1367 = vmatpush.msra.mxu0 %v433
    %1368 = vmatpush.msra.mxu0 %v429
    %1369 = vmatpush.msra.mxu0 %v425
    %1370 = vmatpush.msra.mxu0 %v421
    %1371 = vmatpush.msra.mxu0 %v417
    %1372 = vmatpush.msra.mxu0 %v413
    %1373 = vmatpush.msra.mxu0 %v409
    %1374 = vmatpush.msra.mxu0 %v405
    %1375 = vmatpush.msra.mxu0 %v401
    %1376 = vmatpush.msra.mxu0 %v397
    %1377 = vmatpush.msra.mxu0 %v393
    %1378 = vmatpush.msra.mxu0 %v389
    %1379 = vmatpush.msra.mxu0 %v385
    %1380 = vmatmul.f32.gmra.mxu0 %v1358
    %v1381 = vpop.f32.mrf.mxu0
    %v1382 = vadd.f32 0.0, %v1381
    %1383 = vdwg.mxu0
    %1384 = vmatpush.msra.mxu0 %v446
    %1385 = vmatpush.msra.mxu0 %v442
    %1386 = vmatpush.msra.mxu0 %v438
    %1387 = vmatpush.msra.mxu0 %v434
    %1388 = vmatpush.msra.mxu0 %v430
    %1389 = vmatpush.msra.mxu0 %v426
    %1390 = vmatpush.msra.mxu0 %v422
    %1391 = vmatpush.msra.mxu0 %v418
    %1392 = vmatpush.msra.mxu0 %v414
    %1393 = vmatpush.msra.mxu0 %v410
    %1394 = vmatpush.msra.mxu0 %v406
    %1395 = vmatpush.msra.mxu0 %v402
    %1396 = vmatpush.msra.mxu0 %v398
    %1397 = vmatpush.msra.mxu0 %v394
    %1398 = vmatpush.msra.mxu0 %v390
    %1399 = vmatpush.msra.mxu0 %v386
    %1400 = vmatmul.f32.gmra.mxu0 %v1358
    %v1401 = vpop.f32.mrf.mxu0
    %v1402 = vadd.f32 0.0, %v1401
    %1403 = vdwg.mxu0
    %1404 = vmatpush.msra.mxu0 %v447
    %1405 = vmatpush.msra.mxu0 %v443
    %1406 = vmatpush.msra.mxu0 %v439
    %1407 = vmatpush.msra.mxu0 %v435
    %1408 = vmatpush.msra.mxu0 %v431
    %1409 = vmatpush.msra.mxu0 %v427
    %1410 = vmatpush.msra.mxu0 %v423
    %1411 = vmatpush.msra.mxu0 %v419
    %1412 = vmatpush.msra.mxu0 %v415
    %1413 = vmatpush.msra.mxu0 %v411
    %1414 = vmatpush.msra.mxu0 %v407
    %1415 = vmatpush.msra.mxu0 %v403
    %1416 = vmatpush.msra.mxu0 %v399
    %1417 = vmatpush.msra.mxu0 %v395
    %1418 = vmatpush.msra.mxu0 %v391
    %1419 = vmatpush.msra.mxu0 %v387
    %1420 = vmatmul.f32.gmra.mxu0 %v1358
    %v1421 = vpop.f32.mrf.mxu0
    %v1422 = vadd.f32 0.0, %v1421
    %1423 = vdwg.mxu0
    %1424 = vmatpush.msra.mxu0 %v448
    %1425 = vmatpush.msra.mxu0 %v444
    %1426 = vmatpush.msra.mxu0 %v440
    %1427 = vmatpush.msra.mxu0 %v436
    %1428 = vmatpush.msra.mxu0 %v432
    %1429 = vmatpush.msra.mxu0 %v428
    %1430 = vmatpush.msra.mxu0 %v424
    %1431 = vmatpush.msra.mxu0 %v420
    %1432 = vmatpush.msra.mxu0 %v416
    %1433 = vmatpush.msra.mxu0 %v412
    %1434 = vmatpush.msra.mxu0 %v408
    %1435 = vmatpush.msra.mxu0 %v404
    %1436 = vmatpush.msra.mxu0 %v400
    %1437 = vmatpush.msra.mxu0 %v396
    %1438 = vmatpush.msra.mxu0 %v392
    %1439 = vmatpush.msra.mxu0 %v388
    %1440 = vmatmul.f32.gmra.mxu0 %v1358
    %v1441 = vpop.f32.mrf.mxu0
    %v1442 = vadd.f32 0.0, %v1441
    %1443 = vdwg.mxu0
    %v1444 = vadd.f32 %v161, %v1382
    %v1445 = vadd.f32 %v226, %v1402
    %v1446 = vadd.f32 %v291, %v1422
    %v1447 = vadd.f32 %v356, %v1442
    %v1448 = vxor.u32 %v1444, 2147483648
    %v1449 = vmul.f32 %v1448, 1.442695
    %v1450 = vpow.pop %v1449
    %v1451 = vadd.f32 %v1450, 1.0
    %v1452 = vrcp.pop %v1451
    %v1453 = vmul.f32 %v1451, %v1452
    %v1454 = vsub.f32 1.0, %v1453
    %v1455 = vmul.f32 %v1452, %v1454
    %v1456 = vadd.f32 %v1452, %v1455
    %vm1457 = vweird.f32 %v1451
    %vm1458 = vweird.f32 %v1452
    %vm1459 = vmor %vm1457, %vm1458
    %v1460 = vsel %vm1459, %v1452, %v1456
    %v1461 = vand.u32 2147483647, %v1451
    %vm1462 = vcmp.eq.f32.partialorder %v1461, 8.507059e+37
    %v1463 = vand.u32 %v1451, 2147483648
    %v1464 = vor.u32 1.1754944e-38, %v1463
    %v1465 = vsel %vm1462, %v1464, %v1460
    %v1466 = vmul.f32 1.0, %v1465
    %v1467 = vxor.u32 %v1445, 2147483648
    %v1468 = vmul.f32 %v1467, 1.442695
    %v1469 = vpow.pop %v1468
    %v1470 = vadd.f32 %v1469, 1.0
    %v1471 = vrcp.pop %v1470
    %v1472 = vmul.f32 %v1470, %v1471
    %v1473 = vsub.f32 1.0, %v1472
    %v1474 = vmul.f32 %v1471, %v1473
    %v1475 = vadd.f32 %v1471, %v1474
    %vm1476 = vweird.f32 %v1470
    %vm1477 = vweird.f32 %v1471
    %vm1478 = vmor %vm1476, %vm1477
    %v1479 = vsel %vm1478, %v1471, %v1475
    %v1480 = vand.u32 2147483647, %v1470
    %vm1481 = vcmp.eq.f32.partialorder %v1480, 8.507059e+37
    %v1482 = vand.u32 %v1470, 2147483648
    %v1483 = vor.u32 1.1754944e-38, %v1482
    %v1484 = vsel %vm1481, %v1483, %v1479
    %v1485 = vmul.f32 1.0, %v1484
    %v1486 = vtanh.pop %v1446
    %v1487 = vxor.u32 %v1447, 2147483648
    %v1488 = vmul.f32 %v1487, 1.442695
    %v1489 = vpow.pop %v1488
    %v1490 = vadd.f32 %v1489, 1.0
    %v1491 = vrcp.pop %v1490
    %v1492 = vmul.f32 %v1490, %v1491
    %v1493 = vsub.f32 1.0, %v1492
    %v1494 = vmul.f32 %v1491, %v1493
    %v1495 = vadd.f32 %v1491, %v1494
    %vm1496 = vweird.f32 %v1490
    %vm1497 = vweird.f32 %v1491
    %vm1498 = vmor %vm1496, %vm1497
    %v1499 = vsel %vm1498, %v1491, %v1495
    %v1500 = vand.u32 2147483647, %v1490
    %vm1501 = vcmp.eq.f32.partialorder %v1500, 8.507059e+37
    %v1502 = vand.u32 %v1490, 2147483648
    %v1503 = vor.u32 1.1754944e-38, %v1502
    %v1504 = vsel %vm1501, %v1503, %v1499
    %v1505 = vmul.f32 1.0, %v1504
    %v1506 = vmul.f32 %v1485, %v1356
    %v1507 = vmul.f32 %v1466, %v1486
    %v1508 = vadd.f32 %v1506, %v1507
    %v1509 = vtanh.pop %v1508
    %v1510 = vmul.f32 %v1505, %v1509
    %1511 = vst [vmem:[#allocation5 + $0x30] sm:$0xff] %v1510
    %v1512 = vld [vmem:[%s5 + $0x30] sm:$0xff]
    %v1513 = vmul.f32 %v600, %v1510
    %v1514 = vadd.f32 %v1512, %v1513
    %1515 = vst [vmem:[#allocation7 + $0x30] sm:$0xff] %v1514
    %1516 = vmatpush.msra.mxu0 %v445
    %1517 = vmatpush.msra.mxu0 %v441
    %1518 = vmatpush.msra.mxu0 %v437
    %1519 = vmatpush.msra.mxu0 %v433
    %1520 = vmatpush.msra.mxu0 %v429
    %1521 = vmatpush.msra.mxu0 %v425
    %1522 = vmatpush.msra.mxu0 %v421
    %1523 = vmatpush.msra.mxu0 %v417
    %1524 = vmatpush.msra.mxu0 %v413
    %1525 = vmatpush.msra.mxu0 %v409
    %1526 = vmatpush.msra.mxu0 %v405
    %1527 = vmatpush.msra.mxu0 %v401
    %1528 = vmatpush.msra.mxu0 %v397
    %1529 = vmatpush.msra.mxu0 %v393
    %1530 = vmatpush.msra.mxu0 %v389
    %1531 = vmatpush.msra.mxu0 %v385
    %1532 = vmatmul.f32.gmra.mxu0 %v1510
    %v1533 = vpop.f32.mrf.mxu0
    %v1534 = vadd.f32 0.0, %v1533
    %1535 = vdwg.mxu0
    %1536 = vmatpush.msra.mxu0 %v446
    %1537 = vmatpush.msra.mxu0 %v442
    %1538 = vmatpush.msra.mxu0 %v438
    %1539 = vmatpush.msra.mxu0 %v434
    %1540 = vmatpush.msra.mxu0 %v430
    %1541 = vmatpush.msra.mxu0 %v426
    %1542 = vmatpush.msra.mxu0 %v422
    %1543 = vmatpush.msra.mxu0 %v418
    %1544 = vmatpush.msra.mxu0 %v414
    %1545 = vmatpush.msra.mxu0 %v410
    %1546 = vmatpush.msra.mxu0 %v406
    %1547 = vmatpush.msra.mxu0 %v402
    %1548 = vmatpush.msra.mxu0 %v398
    %1549 = vmatpush.msra.mxu0 %v394
    %1550 = vmatpush.msra.mxu0 %v390
    %1551 = vmatpush.msra.mxu0 %v386
    %1552 = vmatmul.f32.gmra.mxu0 %v1510
    %v1553 = vpop.f32.mrf.mxu0
    %v1554 = vadd.f32 0.0, %v1553
    %1555 = vdwg.mxu0
    %1556 = vmatpush.msra.mxu0 %v447
    %1557 = vmatpush.msra.mxu0 %v443
    %1558 = vmatpush.msra.mxu0 %v439
    %1559 = vmatpush.msra.mxu0 %v435
    %1560 = vmatpush.msra.mxu0 %v431
    %1561 = vmatpush.msra.mxu0 %v427
    %1562 = vmatpush.msra.mxu0 %v423
    %1563 = vmatpush.msra.mxu0 %v419
    %1564 = vmatpush.msra.mxu0 %v415
    %1565 = vmatpush.msra.mxu0 %v411
    %1566 = vmatpush.msra.mxu0 %v407
    %1567 = vmatpush.msra.mxu0 %v403
    %1568 = vmatpush.msra.mxu0 %v399
    %1569 = vmatpush.msra.mxu0 %v395
    %1570 = vmatpush.msra.mxu0 %v391
    %1571 = vmatpush.msra.mxu0 %v387
    %1572 = vmatmul.f32.gmra.mxu0 %v1510
    %v1573 = vpop.f32.mrf.mxu0
    %v1574 = vadd.f32 0.0, %v1573
    %1575 = vdwg.mxu0
    %1576 = vmatpush.msra.mxu0 %v448
    %1577 = vmatpush.msra.mxu0 %v444
    %1578 = vmatpush.msra.mxu0 %v440
    %1579 = vmatpush.msra.mxu0 %v436
    %1580 = vmatpush.msra.mxu0 %v432
    %1581 = vmatpush.msra.mxu0 %v428
    %1582 = vmatpush.msra.mxu0 %v424
    %1583 = vmatpush.msra.mxu0 %v420
    %1584 = vmatpush.msra.mxu0 %v416
    %1585 = vmatpush.msra.mxu0 %v412
    %1586 = vmatpush.msra.mxu0 %v408
    %1587 = vmatpush.msra.mxu0 %v404
    %1588 = vmatpush.msra.mxu0 %v400
    %1589 = vmatpush.msra.mxu0 %v396
    %1590 = vmatpush.msra.mxu0 %v392
    %1591 = vmatpush.msra.mxu0 %v388
    %1592 = vmatmul.f32.gmra.mxu0 %v1510
    %v1593 = vpop.f32.mrf.mxu0
    %v1594 = vadd.f32 0.0, %v1593
    %1595 = vdwg.mxu0
    %v1596 = vadd.f32 %v164, %v1534
    %v1597 = vadd.f32 %v229, %v1554
    %v1598 = vadd.f32 %v294, %v1574
    %v1599 = vadd.f32 %v359, %v1594
    %v1600 = vxor.u32 %v1596, 2147483648
    %v1601 = vmul.f32 %v1600, 1.442695
    %v1602 = vpow.pop %v1601
    %v1603 = vadd.f32 %v1602, 1.0
    %v1604 = vrcp.pop %v1603
    %v1605 = vmul.f32 %v1603, %v1604
    %v1606 = vsub.f32 1.0, %v1605
    %v1607 = vmul.f32 %v1604, %v1606
    %v1608 = vadd.f32 %v1604, %v1607
    %vm1609 = vweird.f32 %v1603
    %vm1610 = vweird.f32 %v1604
    %vm1611 = vmor %vm1609, %vm1610
    %v1612 = vsel %vm1611, %v1604, %v1608
    %v1613 = vand.u32 2147483647, %v1603
    %vm1614 = vcmp.eq.f32.partialorder %v1613, 8.507059e+37
    %v1615 = vand.u32 %v1603, 2147483648
    %v1616 = vor.u32 1.1754944e-38, %v1615
    %v1617 = vsel %vm1614, %v1616, %v1612
    %v1618 = vmul.f32 1.0, %v1617
    %v1619 = vxor.u32 %v1597, 2147483648
    %v1620 = vmul.f32 %v1619, 1.442695
    %v1621 = vpow.pop %v1620
    %v1622 = vadd.f32 %v1621, 1.0
    %v1623 = vrcp.pop %v1622
    %v1624 = vmul.f32 %v1622, %v1623
    %v1625 = vsub.f32 1.0, %v1624
    %v1626 = vmul.f32 %v1623, %v1625
    %v1627 = vadd.f32 %v1623, %v1626
    %vm1628 = vweird.f32 %v1622
    %vm1629 = vweird.f32 %v1623
    %vm1630 = vmor %vm1628, %vm1629
    %v1631 = vsel %vm1630, %v1623, %v1627
    %v1632 = vand.u32 2147483647, %v1622
    %vm1633 = vcmp.eq.f32.partialorder %v1632, 8.507059e+37
    %v1634 = vand.u32 %v1622, 2147483648
    %v1635 = vor.u32 1.1754944e-38, %v1634
    %v1636 = vsel %vm1633, %v1635, %v1631
    %v1637 = vmul.f32 1.0, %v1636
    %v1638 = vtanh.pop %v1598
    %v1639 = vxor.u32 %v1599, 2147483648
    %v1640 = vmul.f32 %v1639, 1.442695
    %v1641 = vpow.pop %v1640
    %v1642 = vadd.f32 %v1641, 1.0
    %v1643 = vrcp.pop %v1642
    %v1644 = vmul.f32 %v1642, %v1643
    %v1645 = vsub.f32 1.0, %v1644
    %v1646 = vmul.f32 %v1643, %v1645
    %v1647 = vadd.f32 %v1643, %v1646
    %vm1648 = vweird.f32 %v1642
    %vm1649 = vweird.f32 %v1643
    %vm1650 = vmor %vm1648, %vm1649
    %v1651 = vsel %vm1650, %v1643, %v1647
    %v1652 = vand.u32 2147483647, %v1642
    %vm1653 = vcmp.eq.f32.partialorder %v1652, 8.507059e+37
    %v1654 = vand.u32 %v1642, 2147483648
    %v1655 = vor.u32 1.1754944e-38, %v1654
    %v1656 = vsel %vm1653, %v1655, %v1651
    %v1657 = vmul.f32 1.0, %v1656
    %v1658 = vmul.f32 %v1637, %v1508
    %v1659 = vmul.f32 %v1618, %v1638
    %v1660 = vadd.f32 %v1658, %v1659
    %v1661 = vtanh.pop %v1660
    %v1662 = vmul.f32 %v1657, %v1661
    %1663 = vst [vmem:[#allocation5 + $0x38] sm:$0xff] %v1662
    %v1664 = vld [vmem:[%s5 + $0x38] sm:$0xff]
    %v1665 = vmul.f32 %v600, %v1662
    %v1666 = vadd.f32 %v1664, %v1665
    %1667 = vst [vmem:[#allocation7 + $0x38] sm:$0xff] %v1666
    %1668 = vmatpush.msra.mxu0 %v445
    %1669 = vmatpush.msra.mxu0 %v441
    %1670 = vmatpush.msra.mxu0 %v437
    %1671 = vmatpush.msra.mxu0 %v433
    %1672 = vmatpush.msra.mxu0 %v429
    %1673 = vmatpush.msra.mxu0 %v425
    %1674 = vmatpush.msra.mxu0 %v421
    %1675 = vmatpush.msra.mxu0 %v417
    %1676 = vmatpush.msra.mxu0 %v413
    %1677 = vmatpush.msra.mxu0 %v409
    %1678 = vmatpush.msra.mxu0 %v405
    %1679 = vmatpush.msra.mxu0 %v401
    %1680 = vmatpush.msra.mxu0 %v397
    %1681 = vmatpush.msra.mxu0 %v393
    %1682 = vmatpush.msra.mxu0 %v389
    %1683 = vmatpush.msra.mxu0 %v385
    %1684 = vmatmul.f32.gmra.mxu0 %v1662
    %v1685 = vpop.f32.mrf.mxu0
    %v1686 = vadd.f32 0.0, %v1685
    %1687 = vdwg.mxu0
    %1688 = vmatpush.msra.mxu0 %v446
    %1689 = vmatpush.msra.mxu0 %v442
    %1690 = vmatpush.msra.mxu0 %v438
    %1691 = vmatpush.msra.mxu0 %v434
    %1692 = vmatpush.msra.mxu0 %v430
    %1693 = vmatpush.msra.mxu0 %v426
    %1694 = vmatpush.msra.mxu0 %v422
    %1695 = vmatpush.msra.mxu0 %v418
    %1696 = vmatpush.msra.mxu0 %v414
    %1697 = vmatpush.msra.mxu0 %v410
    %1698 = vmatpush.msra.mxu0 %v406
    %1699 = vmatpush.msra.mxu0 %v402
    %1700 = vmatpush.msra.mxu0 %v398
    %1701 = vmatpush.msra.mxu0 %v394
    %1702 = vmatpush.msra.mxu0 %v390
    %1703 = vmatpush.msra.mxu0 %v386
    %1704 = vmatmul.f32.gmra.mxu0 %v1662
    %v1705 = vpop.f32.mrf.mxu0
    %v1706 = vadd.f32 0.0, %v1705
    %1707 = vdwg.mxu0
    %1708 = vmatpush.msra.mxu0 %v447
    %1709 = vmatpush.msra.mxu0 %v443
    %1710 = vmatpush.msra.mxu0 %v439
    %1711 = vmatpush.msra.mxu0 %v435
    %1712 = vmatpush.msra.mxu0 %v431
    %1713 = vmatpush.msra.mxu0 %v427
    %1714 = vmatpush.msra.mxu0 %v423
    %1715 = vmatpush.msra.mxu0 %v419
    %1716 = vmatpush.msra.mxu0 %v415
    %1717 = vmatpush.msra.mxu0 %v411
    %1718 = vmatpush.msra.mxu0 %v407
    %1719 = vmatpush.msra.mxu0 %v403
    %1720 = vmatpush.msra.mxu0 %v399
    %1721 = vmatpush.msra.mxu0 %v395
    %1722 = vmatpush.msra.mxu0 %v391
    %1723 = vmatpush.msra.mxu0 %v387
    %1724 = vmatmul.f32.gmra.mxu0 %v1662
    %v1725 = vpop.f32.mrf.mxu0
    %v1726 = vadd.f32 0.0, %v1725
    %1727 = vdwg.mxu0
    %1728 = vmatpush.msra.mxu0 %v448
    %1729 = vmatpush.msra.mxu0 %v444
    %1730 = vmatpush.msra.mxu0 %v440
    %1731 = vmatpush.msra.mxu0 %v436
    %1732 = vmatpush.msra.mxu0 %v432
    %1733 = vmatpush.msra.mxu0 %v428
    %1734 = vmatpush.msra.mxu0 %v424
    %1735 = vmatpush.msra.mxu0 %v420
    %1736 = vmatpush.msra.mxu0 %v416
    %1737 = vmatpush.msra.mxu0 %v412
    %1738 = vmatpush.msra.mxu0 %v408
    %1739 = vmatpush.msra.mxu0 %v404
    %1740 = vmatpush.msra.mxu0 %v400
    %1741 = vmatpush.msra.mxu0 %v396
    %1742 = vmatpush.msra.mxu0 %v392
    %1743 = vmatpush.msra.mxu0 %v388
    %1744 = vmatmul.f32.gmra.mxu0 %v1662
    %v1745 = vpop.f32.mrf.mxu0
    %v1746 = vadd.f32 0.0, %v1745
    %1747 = vdwg.mxu0
    %v1748 = vadd.f32 %v167, %v1686
    %v1749 = vadd.f32 %v232, %v1706
    %v1750 = vadd.f32 %v297, %v1726
    %v1751 = vadd.f32 %v362, %v1746
    %v1752 = vxor.u32 %v1748, 2147483648
    %v1753 = vmul.f32 %v1752, 1.442695
    %v1754 = vpow.pop %v1753
    %v1755 = vadd.f32 %v1754, 1.0
    %v1756 = vrcp.pop %v1755
    %v1757 = vmul.f32 %v1755, %v1756
    %v1758 = vsub.f32 1.0, %v1757
    %v1759 = vmul.f32 %v1756, %v1758
    %v1760 = vadd.f32 %v1756, %v1759
    %vm1761 = vweird.f32 %v1755
    %vm1762 = vweird.f32 %v1756
    %vm1763 = vmor %vm1761, %vm1762
    %v1764 = vsel %vm1763, %v1756, %v1760
    %v1765 = vand.u32 2147483647, %v1755
    %vm1766 = vcmp.eq.f32.partialorder %v1765, 8.507059e+37
    %v1767 = vand.u32 %v1755, 2147483648
    %v1768 = vor.u32 1.1754944e-38, %v1767
    %v1769 = vsel %vm1766, %v1768, %v1764
    %v1770 = vmul.f32 1.0, %v1769
    %v1771 = vxor.u32 %v1749, 2147483648
    %v1772 = vmul.f32 %v1771, 1.442695
    %v1773 = vpow.pop %v1772
    %v1774 = vadd.f32 %v1773, 1.0
    %v1775 = vrcp.pop %v1774
    %v1776 = vmul.f32 %v1774, %v1775
    %v1777 = vsub.f32 1.0, %v1776
    %v1778 = vmul.f32 %v1775, %v1777
    %v1779 = vadd.f32 %v1775, %v1778
    %vm1780 = vweird.f32 %v1774
    %vm1781 = vweird.f32 %v1775
    %vm1782 = vmor %vm1780, %vm1781
    %v1783 = vsel %vm1782, %v1775, %v1779
    %v1784 = vand.u32 2147483647, %v1774
    %vm1785 = vcmp.eq.f32.partialorder %v1784, 8.507059e+37
    %v1786 = vand.u32 %v1774, 2147483648
    %v1787 = vor.u32 1.1754944e-38, %v1786
    %v1788 = vsel %vm1785, %v1787, %v1783
    %v1789 = vmul.f32 1.0, %v1788
    %v1790 = vtanh.pop %v1750
    %v1791 = vxor.u32 %v1751, 2147483648
    %v1792 = vmul.f32 %v1791, 1.442695
    %v1793 = vpow.pop %v1792
    %v1794 = vadd.f32 %v1793, 1.0
    %v1795 = vrcp.pop %v1794
    %v1796 = vmul.f32 %v1794, %v1795
    %v1797 = vsub.f32 1.0, %v1796
    %v1798 = vmul.f32 %v1795, %v1797
    %v1799 = vadd.f32 %v1795, %v1798
    %vm1800 = vweird.f32 %v1794
    %vm1801 = vweird.f32 %v1795
    %vm1802 = vmor %vm1800, %vm1801
    %v1803 = vsel %vm1802, %v1795, %v1799
    %v1804 = vand.u32 2147483647, %v1794
    %vm1805 = vcmp.eq.f32.partialorder %v1804, 8.507059e+37
    %v1806 = vand.u32 %v1794, 2147483648
    %v1807 = vor.u32 1.1754944e-38, %v1806
    %v1808 = vsel %vm1805, %v1807, %v1803
    %v1809 = vmul.f32 1.0, %v1808
    %v1810 = vmul.f32 %v1789, %v1660
    %v1811 = vmul.f32 %v1770, %v1790
    %v1812 = vadd.f32 %v1810, %v1811
    %v1813 = vtanh.pop %v1812
    %v1814 = vmul.f32 %v1809, %v1813
    %1815 = vst [vmem:[#allocation5 + $0x40] sm:$0xff] %v1814
    %v1816 = vld [vmem:[%s5 + $0x40] sm:$0xff]
    %v1817 = vmul.f32 %v600, %v1814
    %v1818 = vadd.f32 %v1816, %v1817
    %1819 = vst [vmem:[#allocation7 + $0x40] sm:$0xff] %v1818
    %1820 = vmatpush.msra.mxu0 %v445
    %1821 = vmatpush.msra.mxu0 %v441
    %1822 = vmatpush.msra.mxu0 %v437
    %1823 = vmatpush.msra.mxu0 %v433
    %1824 = vmatpush.msra.mxu0 %v429
    %1825 = vmatpush.msra.mxu0 %v425
    %1826 = vmatpush.msra.mxu0 %v421
    %1827 = vmatpush.msra.mxu0 %v417
    %1828 = vmatpush.msra.mxu0 %v413
    %1829 = vmatpush.msra.mxu0 %v409
    %1830 = vmatpush.msra.mxu0 %v405
    %1831 = vmatpush.msra.mxu0 %v401
    %1832 = vmatpush.msra.mxu0 %v397
    %1833 = vmatpush.msra.mxu0 %v393
    %1834 = vmatpush.msra.mxu0 %v389
    %1835 = vmatpush.msra.mxu0 %v385
    %1836 = vmatmul.f32.gmra.mxu0 %v1814
    %v1837 = vpop.f32.mrf.mxu0
    %v1838 = vadd.f32 0.0, %v1837
    %1839 = vdwg.mxu0
    %1840 = vmatpush.msra.mxu0 %v446
    %1841 = vmatpush.msra.mxu0 %v442
    %1842 = vmatpush.msra.mxu0 %v438
    %1843 = vmatpush.msra.mxu0 %v434
    %1844 = vmatpush.msra.mxu0 %v430
    %1845 = vmatpush.msra.mxu0 %v426
    %1846 = vmatpush.msra.mxu0 %v422
    %1847 = vmatpush.msra.mxu0 %v418
    %1848 = vmatpush.msra.mxu0 %v414
    %1849 = vmatpush.msra.mxu0 %v410
    %1850 = vmatpush.msra.mxu0 %v406
    %1851 = vmatpush.msra.mxu0 %v402
    %1852 = vmatpush.msra.mxu0 %v398
    %1853 = vmatpush.msra.mxu0 %v394
    %1854 = vmatpush.msra.mxu0 %v390
    %1855 = vmatpush.msra.mxu0 %v386
    %1856 = vmatmul.f32.gmra.mxu0 %v1814
    %v1857 = vpop.f32.mrf.mxu0
    %v1858 = vadd.f32 0.0, %v1857
    %1859 = vdwg.mxu0
    %1860 = vmatpush.msra.mxu0 %v447
    %1861 = vmatpush.msra.mxu0 %v443
    %1862 = vmatpush.msra.mxu0 %v439
    %1863 = vmatpush.msra.mxu0 %v435
    %1864 = vmatpush.msra.mxu0 %v431
    %1865 = vmatpush.msra.mxu0 %v427
    %1866 = vmatpush.msra.mxu0 %v423
    %1867 = vmatpush.msra.mxu0 %v419
    %1868 = vmatpush.msra.mxu0 %v415
    %1869 = vmatpush.msra.mxu0 %v411
    %1870 = vmatpush.msra.mxu0 %v407
    %1871 = vmatpush.msra.mxu0 %v403
    %1872 = vmatpush.msra.mxu0 %v399
    %1873 = vmatpush.msra.mxu0 %v395
    %1874 = vmatpush.msra.mxu0 %v391
    %1875 = vmatpush.msra.mxu0 %v387
    %1876 = vmatmul.f32.gmra.mxu0 %v1814
    %v1877 = vpop.f32.mrf.mxu0
    %v1878 = vadd.f32 0.0, %v1877
    %1879 = vdwg.mxu0
    %1880 = vmatpush.msra.mxu0 %v448
    %1881 = vmatpush.msra.mxu0 %v444
    %1882 = vmatpush.msra.mxu0 %v440
    %1883 = vmatpush.msra.mxu0 %v436
    %1884 = vmatpush.msra.mxu0 %v432
    %1885 = vmatpush.msra.mxu0 %v428
    %1886 = vmatpush.msra.mxu0 %v424
    %1887 = vmatpush.msra.mxu0 %v420
    %1888 = vmatpush.msra.mxu0 %v416
    %1889 = vmatpush.msra.mxu0 %v412
    %1890 = vmatpush.msra.mxu0 %v408
    %1891 = vmatpush.msra.mxu0 %v404
    %1892 = vmatpush.msra.mxu0 %v400
    %1893 = vmatpush.msra.mxu0 %v396
    %1894 = vmatpush.msra.mxu0 %v392
    %1895 = vmatpush.msra.mxu0 %v388
    %1896 = vmatmul.f32.gmra.mxu0 %v1814
    %v1897 = vpop.f32.mrf.mxu0
    %v1898 = vadd.f32 0.0, %v1897
    %1899 = vdwg.mxu0
    %v1900 = vadd.f32 %v170, %v1838
    %v1901 = vadd.f32 %v235, %v1858
    %v1902 = vadd.f32 %v300, %v1878
    %v1903 = vadd.f32 %v365, %v1898
    %v1904 = vxor.u32 %v1900, 2147483648
    %v1905 = vmul.f32 %v1904, 1.442695
    %v1906 = vpow.pop %v1905
    %v1907 = vadd.f32 %v1906, 1.0
    %v1908 = vrcp.pop %v1907
    %v1909 = vmul.f32 %v1907, %v1908
    %v1910 = vsub.f32 1.0, %v1909
    %v1911 = vmul.f32 %v1908, %v1910
    %v1912 = vadd.f32 %v1908, %v1911
    %vm1913 = vweird.f32 %v1907
    %vm1914 = vweird.f32 %v1908
    %vm1915 = vmor %vm1913, %vm1914
    %v1916 = vsel %vm1915, %v1908, %v1912
    %v1917 = vand.u32 2147483647, %v1907
    %vm1918 = vcmp.eq.f32.partialorder %v1917, 8.507059e+37
    %v1919 = vand.u32 %v1907, 2147483648
    %v1920 = vor.u32 1.1754944e-38, %v1919
    %v1921 = vsel %vm1918, %v1920, %v1916
    %v1922 = vmul.f32 1.0, %v1921
    %v1923 = vxor.u32 %v1901, 2147483648
    %v1924 = vmul.f32 %v1923, 1.442695
    %v1925 = vpow.pop %v1924
    %v1926 = vadd.f32 %v1925, 1.0
    %v1927 = vrcp.pop %v1926
    %v1928 = vmul.f32 %v1926, %v1927
    %v1929 = vsub.f32 1.0, %v1928
    %v1930 = vmul.f32 %v1927, %v1929
    %v1931 = vadd.f32 %v1927, %v1930
    %vm1932 = vweird.f32 %v1926
    %vm1933 = vweird.f32 %v1927
    %vm1934 = vmor %vm1932, %vm1933
    %v1935 = vsel %vm1934, %v1927, %v1931
    %v1936 = vand.u32 2147483647, %v1926
    %vm1937 = vcmp.eq.f32.partialorder %v1936, 8.507059e+37
    %v1938 = vand.u32 %v1926, 2147483648
    %v1939 = vor.u32 1.1754944e-38, %v1938
    %v1940 = vsel %vm1937, %v1939, %v1935
    %v1941 = vmul.f32 1.0, %v1940
    %v1942 = vtanh.pop %v1902
    %v1943 = vxor.u32 %v1903, 2147483648
    %v1944 = vmul.f32 %v1943, 1.442695
    %v1945 = vpow.pop %v1944
    %v1946 = vadd.f32 %v1945, 1.0
    %v1947 = vrcp.pop %v1946
    %v1948 = vmul.f32 %v1946, %v1947
    %v1949 = vsub.f32 1.0, %v1948
    %v1950 = vmul.f32 %v1947, %v1949
    %v1951 = vadd.f32 %v1947, %v1950
    %vm1952 = vweird.f32 %v1946
    %vm1953 = vweird.f32 %v1947
    %vm1954 = vmor %vm1952, %vm1953
    %v1955 = vsel %vm1954, %v1947, %v1951
    %v1956 = vand.u32 2147483647, %v1946
    %vm1957 = vcmp.eq.f32.partialorder %v1956, 8.507059e+37
    %v1958 = vand.u32 %v1946, 2147483648
    %v1959 = vor.u32 1.1754944e-38, %v1958
    %v1960 = vsel %vm1957, %v1959, %v1955
    %v1961 = vmul.f32 1.0, %v1960
    %v1962 = vmul.f32 %v1941, %v1812
    %v1963 = vmul.f32 %v1922, %v1942
    %v1964 = vadd.f32 %v1962, %v1963
    %v1965 = vtanh.pop %v1964
    %v1966 = vmul.f32 %v1961, %v1965
    %1967 = vst [vmem:[#allocation5 + $0x48] sm:$0xff] %v1966
    %v1968 = vld [vmem:[%s5 + $0x48] sm:$0xff]
    %v1969 = vmul.f32 %v600, %v1966
    %v1970 = vadd.f32 %v1968, %v1969
    %1971 = vst [vmem:[#allocation7 + $0x48] sm:$0xff] %v1970
    %1972 = vmatpush.msra.mxu0 %v445
    %1973 = vmatpush.msra.mxu0 %v441
    %1974 = vmatpush.msra.mxu0 %v437
    %1975 = vmatpush.msra.mxu0 %v433
    %1976 = vmatpush.msra.mxu0 %v429
    %1977 = vmatpush.msra.mxu0 %v425
    %1978 = vmatpush.msra.mxu0 %v421
    %1979 = vmatpush.msra.mxu0 %v417
    %1980 = vmatpush.msra.mxu0 %v413
    %1981 = vmatpush.msra.mxu0 %v409
    %1982 = vmatpush.msra.mxu0 %v405
    %1983 = vmatpush.msra.mxu0 %v401
    %1984 = vmatpush.msra.mxu0 %v397
    %1985 = vmatpush.msra.mxu0 %v393
    %1986 = vmatpush.msra.mxu0 %v389
    %1987 = vmatpush.msra.mxu0 %v385
    %1988 = vmatmul.f32.gmra.mxu0 %v1966
    %v1989 = vpop.f32.mrf.mxu0
    %v1990 = vadd.f32 0.0, %v1989
    %1991 = vdwg.mxu0
    %1992 = vmatpush.msra.mxu0 %v446
    %1993 = vmatpush.msra.mxu0 %v442
    %1994 = vmatpush.msra.mxu0 %v438
    %1995 = vmatpush.msra.mxu0 %v434
    %1996 = vmatpush.msra.mxu0 %v430
    %1997 = vmatpush.msra.mxu0 %v426
    %1998 = vmatpush.msra.mxu0 %v422
    %1999 = vmatpush.msra.mxu0 %v418
    %2000 = vmatpush.msra.mxu0 %v414
    %2001 = vmatpush.msra.mxu0 %v410
    %2002 = vmatpush.msra.mxu0 %v406
    %2003 = vmatpush.msra.mxu0 %v402
    %2004 = vmatpush.msra.mxu0 %v398
    %2005 = vmatpush.msra.mxu0 %v394
    %2006 = vmatpush.msra.mxu0 %v390
    %2007 = vmatpush.msra.mxu0 %v386
    %2008 = vmatmul.f32.gmra.mxu0 %v1966
    %v2009 = vpop.f32.mrf.mxu0
    %v2010 = vadd.f32 0.0, %v2009
    %2011 = vdwg.mxu0
    %2012 = vmatpush.msra.mxu0 %v447
    %2013 = vmatpush.msra.mxu0 %v443
    %2014 = vmatpush.msra.mxu0 %v439
    %2015 = vmatpush.msra.mxu0 %v435
    %2016 = vmatpush.msra.mxu0 %v431
    %2017 = vmatpush.msra.mxu0 %v427
    %2018 = vmatpush.msra.mxu0 %v423
    %2019 = vmatpush.msra.mxu0 %v419
    %2020 = vmatpush.msra.mxu0 %v415
    %2021 = vmatpush.msra.mxu0 %v411
    %2022 = vmatpush.msra.mxu0 %v407
    %2023 = vmatpush.msra.mxu0 %v403
    %2024 = vmatpush.msra.mxu0 %v399
    %2025 = vmatpush.msra.mxu0 %v395
    %2026 = vmatpush.msra.mxu0 %v391
    %2027 = vmatpush.msra.mxu0 %v387
    %2028 = vmatmul.f32.gmra.mxu0 %v1966
    %v2029 = vpop.f32.mrf.mxu0
    %v2030 = vadd.f32 0.0, %v2029
    %2031 = vdwg.mxu0
    %2032 = vmatpush.msra.mxu0 %v448
    %2033 = vmatpush.msra.mxu0 %v444
    %2034 = vmatpush.msra.mxu0 %v440
    %2035 = vmatpush.msra.mxu0 %v436
    %2036 = vmatpush.msra.mxu0 %v432
    %2037 = vmatpush.msra.mxu0 %v428
    %2038 = vmatpush.msra.mxu0 %v424
    %2039 = vmatpush.msra.mxu0 %v420
    %2040 = vmatpush.msra.mxu0 %v416
    %2041 = vmatpush.msra.mxu0 %v412
    %2042 = vmatpush.msra.mxu0 %v408
    %2043 = vmatpush.msra.mxu0 %v404
    %2044 = vmatpush.msra.mxu0 %v400
    %2045 = vmatpush.msra.mxu0 %v396
    %2046 = vmatpush.msra.mxu0 %v392
    %2047 = vmatpush.msra.mxu0 %v388
    %2048 = vmatmul.f32.gmra.mxu0 %v1966
    %v2049 = vpop.f32.mrf.mxu0
    %v2050 = vadd.f32 0.0, %v2049
    %2051 = vdwg.mxu0
    %v2052 = vadd.f32 %v173, %v1990
    %v2053 = vadd.f32 %v238, %v2010
    %v2054 = vadd.f32 %v303, %v2030
    %v2055 = vadd.f32 %v368, %v2050
    %v2056 = vxor.u32 %v2052, 2147483648
    %v2057 = vmul.f32 %v2056, 1.442695
    %v2058 = vpow.pop %v2057
    %v2059 = vadd.f32 %v2058, 1.0
    %v2060 = vrcp.pop %v2059
    %v2061 = vmul.f32 %v2059, %v2060
    %v2062 = vsub.f32 1.0, %v2061
    %v2063 = vmul.f32 %v2060, %v2062
    %v2064 = vadd.f32 %v2060, %v2063
    %vm2065 = vweird.f32 %v2059
    %vm2066 = vweird.f32 %v2060
    %vm2067 = vmor %vm2065, %vm2066
    %v2068 = vsel %vm2067, %v2060, %v2064
    %v2069 = vand.u32 2147483647, %v2059
    %vm2070 = vcmp.eq.f32.partialorder %v2069, 8.507059e+37
    %v2071 = vand.u32 %v2059, 2147483648
    %v2072 = vor.u32 1.1754944e-38, %v2071
    %v2073 = vsel %vm2070, %v2072, %v2068
    %v2074 = vmul.f32 1.0, %v2073
    %v2075 = vxor.u32 %v2053, 2147483648
    %v2076 = vmul.f32 %v2075, 1.442695
    %v2077 = vpow.pop %v2076
    %v2078 = vadd.f32 %v2077, 1.0
    %v2079 = vrcp.pop %v2078
    %v2080 = vmul.f32 %v2078, %v2079
    %v2081 = vsub.f32 1.0, %v2080
    %v2082 = vmul.f32 %v2079, %v2081
    %v2083 = vadd.f32 %v2079, %v2082
    %vm2084 = vweird.f32 %v2078
    %vm2085 = vweird.f32 %v2079
    %vm2086 = vmor %vm2084, %vm2085
    %v2087 = vsel %vm2086, %v2079, %v2083
    %v2088 = vand.u32 2147483647, %v2078
    %vm2089 = vcmp.eq.f32.partialorder %v2088, 8.507059e+37
    %v2090 = vand.u32 %v2078, 2147483648
    %v2091 = vor.u32 1.1754944e-38, %v2090
    %v2092 = vsel %vm2089, %v2091, %v2087
    %v2093 = vmul.f32 1.0, %v2092
    %v2094 = vtanh.pop %v2054
    %v2095 = vxor.u32 %v2055, 2147483648
    %v2096 = vmul.f32 %v2095, 1.442695
    %v2097 = vpow.pop %v2096
    %v2098 = vadd.f32 %v2097, 1.0
    %v2099 = vrcp.pop %v2098
    %v2100 = vmul.f32 %v2098, %v2099
    %v2101 = vsub.f32 1.0, %v2100
    %v2102 = vmul.f32 %v2099, %v2101
    %v2103 = vadd.f32 %v2099, %v2102
    %vm2104 = vweird.f32 %v2098
    %vm2105 = vweird.f32 %v2099
    %vm2106 = vmor %vm2104, %vm2105
    %v2107 = vsel %vm2106, %v2099, %v2103
    %v2108 = vand.u32 2147483647, %v2098
    %vm2109 = vcmp.eq.f32.partialorder %v2108, 8.507059e+37
    %v2110 = vand.u32 %v2098, 2147483648
    %v2111 = vor.u32 1.1754944e-38, %v2110
    %v2112 = vsel %vm2109, %v2111, %v2107
    %v2113 = vmul.f32 1.0, %v2112
    %v2114 = vmul.f32 %v2093, %v1964
    %v2115 = vmul.f32 %v2074, %v2094
    %v2116 = vadd.f32 %v2114, %v2115
    %v2117 = vtanh.pop %v2116
    %v2118 = vmul.f32 %v2113, %v2117
    %2119 = vst [vmem:[#allocation5 + $0x50] sm:$0xff] %v2118
    %v2120 = vld [vmem:[%s5 + $0x50] sm:$0xff]
    %v2121 = vmul.f32 %v600, %v2118
    %v2122 = vadd.f32 %v2120, %v2121
    %2123 = vst [vmem:[#allocation7 + $0x50] sm:$0xff] %v2122
    %2124 = vmatpush.msra.mxu0 %v445
    %2125 = vmatpush.msra.mxu0 %v441
    %2126 = vmatpush.msra.mxu0 %v437
    %2127 = vmatpush.msra.mxu0 %v433
    %2128 = vmatpush.msra.mxu0 %v429
    %2129 = vmatpush.msra.mxu0 %v425
    %2130 = vmatpush.msra.mxu0 %v421
    %2131 = vmatpush.msra.mxu0 %v417
    %2132 = vmatpush.msra.mxu0 %v413
    %2133 = vmatpush.msra.mxu0 %v409
    %2134 = vmatpush.msra.mxu0 %v405
    %2135 = vmatpush.msra.mxu0 %v401
    %2136 = vmatpush.msra.mxu0 %v397
    %2137 = vmatpush.msra.mxu0 %v393
    %2138 = vmatpush.msra.mxu0 %v389
    %2139 = vmatpush.msra.mxu0 %v385
    %2140 = vmatmul.f32.gmra.mxu0 %v2118
    %v2141 = vpop.f32.mrf.mxu0
    %v2142 = vadd.f32 0.0, %v2141
    %2143 = vdwg.mxu0
    %2144 = vmatpush.msra.mxu0 %v446
    %2145 = vmatpush.msra.mxu0 %v442
    %2146 = vmatpush.msra.mxu0 %v438
    %2147 = vmatpush.msra.mxu0 %v434
    %2148 = vmatpush.msra.mxu0 %v430
    %2149 = vmatpush.msra.mxu0 %v426
    %2150 = vmatpush.msra.mxu0 %v422
    %2151 = vmatpush.msra.mxu0 %v418
    %2152 = vmatpush.msra.mxu0 %v414
    %2153 = vmatpush.msra.mxu0 %v410
    %2154 = vmatpush.msra.mxu0 %v406
    %2155 = vmatpush.msra.mxu0 %v402
    %2156 = vmatpush.msra.mxu0 %v398
    %2157 = vmatpush.msra.mxu0 %v394
    %2158 = vmatpush.msra.mxu0 %v390
    %2159 = vmatpush.msra.mxu0 %v386
    %2160 = vmatmul.f32.gmra.mxu0 %v2118
    %v2161 = vpop.f32.mrf.mxu0
    %v2162 = vadd.f32 0.0, %v2161
    %2163 = vdwg.mxu0
    %2164 = vmatpush.msra.mxu0 %v447
    %2165 = vmatpush.msra.mxu0 %v443
    %2166 = vmatpush.msra.mxu0 %v439
    %2167 = vmatpush.msra.mxu0 %v435
    %2168 = vmatpush.msra.mxu0 %v431
    %2169 = vmatpush.msra.mxu0 %v427
    %2170 = vmatpush.msra.mxu0 %v423
    %2171 = vmatpush.msra.mxu0 %v419
    %2172 = vmatpush.msra.mxu0 %v415
    %2173 = vmatpush.msra.mxu0 %v411
    %2174 = vmatpush.msra.mxu0 %v407
    %2175 = vmatpush.msra.mxu0 %v403
    %2176 = vmatpush.msra.mxu0 %v399
    %2177 = vmatpush.msra.mxu0 %v395
    %2178 = vmatpush.msra.mxu0 %v391
    %2179 = vmatpush.msra.mxu0 %v387
    %2180 = vmatmul.f32.gmra.mxu0 %v2118
    %v2181 = vpop.f32.mrf.mxu0
    %v2182 = vadd.f32 0.0, %v2181
    %2183 = vdwg.mxu0
    %2184 = vmatpush.msra.mxu0 %v448
    %2185 = vmatpush.msra.mxu0 %v444
    %2186 = vmatpush.msra.mxu0 %v440
    %2187 = vmatpush.msra.mxu0 %v436
    %2188 = vmatpush.msra.mxu0 %v432
    %2189 = vmatpush.msra.mxu0 %v428
    %2190 = vmatpush.msra.mxu0 %v424
    %2191 = vmatpush.msra.mxu0 %v420
    %2192 = vmatpush.msra.mxu0 %v416
    %2193 = vmatpush.msra.mxu0 %v412
    %2194 = vmatpush.msra.mxu0 %v408
    %2195 = vmatpush.msra.mxu0 %v404
    %2196 = vmatpush.msra.mxu0 %v400
    %2197 = vmatpush.msra.mxu0 %v396
    %2198 = vmatpush.msra.mxu0 %v392
    %2199 = vmatpush.msra.mxu0 %v388
    %2200 = vmatmul.f32.gmra.mxu0 %v2118
    %v2201 = vpop.f32.mrf.mxu0
    %v2202 = vadd.f32 0.0, %v2201
    %2203 = vdwg.mxu0
    %v2204 = vadd.f32 %v176, %v2142
    %v2205 = vadd.f32 %v241, %v2162
    %v2206 = vadd.f32 %v306, %v2182
    %v2207 = vadd.f32 %v371, %v2202
    %v2208 = vxor.u32 %v2204, 2147483648
    %v2209 = vmul.f32 %v2208, 1.442695
    %v2210 = vpow.pop %v2209
    %v2211 = vadd.f32 %v2210, 1.0
    %v2212 = vrcp.pop %v2211
    %v2213 = vmul.f32 %v2211, %v2212
    %v2214 = vsub.f32 1.0, %v2213
    %v2215 = vmul.f32 %v2212, %v2214
    %v2216 = vadd.f32 %v2212, %v2215
    %vm2217 = vweird.f32 %v2211
    %vm2218 = vweird.f32 %v2212
    %vm2219 = vmor %vm2217, %vm2218
    %v2220 = vsel %vm2219, %v2212, %v2216
    %v2221 = vand.u32 2147483647, %v2211
    %vm2222 = vcmp.eq.f32.partialorder %v2221, 8.507059e+37
    %v2223 = vand.u32 %v2211, 2147483648
    %v2224 = vor.u32 1.1754944e-38, %v2223
    %v2225 = vsel %vm2222, %v2224, %v2220
    %v2226 = vmul.f32 1.0, %v2225
    %v2227 = vxor.u32 %v2205, 2147483648
    %v2228 = vmul.f32 %v2227, 1.442695
    %v2229 = vpow.pop %v2228
    %v2230 = vadd.f32 %v2229, 1.0
    %v2231 = vrcp.pop %v2230
    %v2232 = vmul.f32 %v2230, %v2231
    %v2233 = vsub.f32 1.0, %v2232
    %v2234 = vmul.f32 %v2231, %v2233
    %v2235 = vadd.f32 %v2231, %v2234
    %vm2236 = vweird.f32 %v2230
    %vm2237 = vweird.f32 %v2231
    %vm2238 = vmor %vm2236, %vm2237
    %v2239 = vsel %vm2238, %v2231, %v2235
    %v2240 = vand.u32 2147483647, %v2230
    %vm2241 = vcmp.eq.f32.partialorder %v2240, 8.507059e+37
    %v2242 = vand.u32 %v2230, 2147483648
    %v2243 = vor.u32 1.1754944e-38, %v2242
    %v2244 = vsel %vm2241, %v2243, %v2239
    %v2245 = vmul.f32 1.0, %v2244
    %v2246 = vtanh.pop %v2206
    %v2247 = vxor.u32 %v2207, 2147483648
    %v2248 = vmul.f32 %v2247, 1.442695
    %v2249 = vpow.pop %v2248
    %v2250 = vadd.f32 %v2249, 1.0
    %v2251 = vrcp.pop %v2250
    %v2252 = vmul.f32 %v2250, %v2251
    %v2253 = vsub.f32 1.0, %v2252
    %v2254 = vmul.f32 %v2251, %v2253
    %v2255 = vadd.f32 %v2251, %v2254
    %vm2256 = vweird.f32 %v2250
    %vm2257 = vweird.f32 %v2251
    %vm2258 = vmor %vm2256, %vm2257
    %v2259 = vsel %vm2258, %v2251, %v2255
    %v2260 = vand.u32 2147483647, %v2250
    %vm2261 = vcmp.eq.f32.partialorder %v2260, 8.507059e+37
    %v2262 = vand.u32 %v2250, 2147483648
    %v2263 = vor.u32 1.1754944e-38, %v2262
    %v2264 = vsel %vm2261, %v2263, %v2259
    %v2265 = vmul.f32 1.0, %v2264
    %v2266 = vmul.f32 %v2245, %v2116
    %v2267 = vmul.f32 %v2226, %v2246
    %v2268 = vadd.f32 %v2266, %v2267
    %v2269 = vtanh.pop %v2268
    %v2270 = vmul.f32 %v2265, %v2269
    %2271 = vst [vmem:[#allocation5 + $0x58] sm:$0xff] %v2270
    %v2272 = vld [vmem:[%s5 + $0x58] sm:$0xff]
    %v2273 = vmul.f32 %v600, %v2270
    %v2274 = vadd.f32 %v2272, %v2273
    %2275 = vst [vmem:[#allocation7 + $0x58] sm:$0xff] %v2274
    %2276 = vmatpush.msra.mxu0 %v445
    %2277 = vmatpush.msra.mxu0 %v441
    %2278 = vmatpush.msra.mxu0 %v437
    %2279 = vmatpush.msra.mxu0 %v433
    %2280 = vmatpush.msra.mxu0 %v429
    %2281 = vmatpush.msra.mxu0 %v425
    %2282 = vmatpush.msra.mxu0 %v421
    %2283 = vmatpush.msra.mxu0 %v417
    %2284 = vmatpush.msra.mxu0 %v413
    %2285 = vmatpush.msra.mxu0 %v409
    %2286 = vmatpush.msra.mxu0 %v405
    %2287 = vmatpush.msra.mxu0 %v401
    %2288 = vmatpush.msra.mxu0 %v397
    %2289 = vmatpush.msra.mxu0 %v393
    %2290 = vmatpush.msra.mxu0 %v389
    %2291 = vmatpush.msra.mxu0 %v385
    %2292 = vmatmul.f32.gmra.mxu0 %v2270
    %v2293 = vpop.f32.mrf.mxu0
    %v2294 = vadd.f32 0.0, %v2293
    %2295 = vdwg.mxu0
    %2296 = vmatpush.msra.mxu0 %v446
    %2297 = vmatpush.msra.mxu0 %v442
    %2298 = vmatpush.msra.mxu0 %v438
    %2299 = vmatpush.msra.mxu0 %v434
    %2300 = vmatpush.msra.mxu0 %v430
    %2301 = vmatpush.msra.mxu0 %v426
    %2302 = vmatpush.msra.mxu0 %v422
    %2303 = vmatpush.msra.mxu0 %v418
    %2304 = vmatpush.msra.mxu0 %v414
    %2305 = vmatpush.msra.mxu0 %v410
    %2306 = vmatpush.msra.mxu0 %v406
    %2307 = vmatpush.msra.mxu0 %v402
    %2308 = vmatpush.msra.mxu0 %v398
    %2309 = vmatpush.msra.mxu0 %v394
    %2310 = vmatpush.msra.mxu0 %v390
    %2311 = vmatpush.msra.mxu0 %v386
    %2312 = vmatmul.f32.gmra.mxu0 %v2270
    %v2313 = vpop.f32.mrf.mxu0
    %v2314 = vadd.f32 0.0, %v2313
    %2315 = vdwg.mxu0
    %2316 = vmatpush.msra.mxu0 %v447
    %2317 = vmatpush.msra.mxu0 %v443
    %2318 = vmatpush.msra.mxu0 %v439
    %2319 = vmatpush.msra.mxu0 %v435
    %2320 = vmatpush.msra.mxu0 %v431
    %2321 = vmatpush.msra.mxu0 %v427
    %2322 = vmatpush.msra.mxu0 %v423
    %2323 = vmatpush.msra.mxu0 %v419
    %2324 = vmatpush.msra.mxu0 %v415
    %2325 = vmatpush.msra.mxu0 %v411
    %2326 = vmatpush.msra.mxu0 %v407
    %2327 = vmatpush.msra.mxu0 %v403
    %2328 = vmatpush.msra.mxu0 %v399
    %2329 = vmatpush.msra.mxu0 %v395
    %2330 = vmatpush.msra.mxu0 %v391
    %2331 = vmatpush.msra.mxu0 %v387
    %2332 = vmatmul.f32.gmra.mxu0 %v2270
    %v2333 = vpop.f32.mrf.mxu0
    %v2334 = vadd.f32 0.0, %v2333
    %2335 = vdwg.mxu0
    %2336 = vmatpush.msra.mxu0 %v448
    %2337 = vmatpush.msra.mxu0 %v444
    %2338 = vmatpush.msra.mxu0 %v440
    %2339 = vmatpush.msra.mxu0 %v436
    %2340 = vmatpush.msra.mxu0 %v432
    %2341 = vmatpush.msra.mxu0 %v428
    %2342 = vmatpush.msra.mxu0 %v424
    %2343 = vmatpush.msra.mxu0 %v420
    %2344 = vmatpush.msra.mxu0 %v416
    %2345 = vmatpush.msra.mxu0 %v412
    %2346 = vmatpush.msra.mxu0 %v408
    %2347 = vmatpush.msra.mxu0 %v404
    %2348 = vmatpush.msra.mxu0 %v400
    %2349 = vmatpush.msra.mxu0 %v396
    %2350 = vmatpush.msra.mxu0 %v392
    %2351 = vmatpush.msra.mxu0 %v388
    %2352 = vmatmul.f32.gmra.mxu0 %v2270
    %v2353 = vpop.f32.mrf.mxu0
    %v2354 = vadd.f32 0.0, %v2353
    %2355 = vdwg.mxu0
    %v2356 = vadd.f32 %v179, %v2294
    %v2357 = vadd.f32 %v244, %v2314
    %v2358 = vadd.f32 %v309, %v2334
    %v2359 = vadd.f32 %v374, %v2354
    %v2360 = vxor.u32 %v2356, 2147483648
    %v2361 = vmul.f32 %v2360, 1.442695
    %v2362 = vpow.pop %v2361
    %v2363 = vadd.f32 %v2362, 1.0
    %v2364 = vrcp.pop %v2363
    %v2365 = vmul.f32 %v2363, %v2364
    %v2366 = vsub.f32 1.0, %v2365
    %v2367 = vmul.f32 %v2364, %v2366
    %v2368 = vadd.f32 %v2364, %v2367
    %vm2369 = vweird.f32 %v2363
    %vm2370 = vweird.f32 %v2364
    %vm2371 = vmor %vm2369, %vm2370
    %v2372 = vsel %vm2371, %v2364, %v2368
    %v2373 = vand.u32 2147483647, %v2363
    %vm2374 = vcmp.eq.f32.partialorder %v2373, 8.507059e+37
    %v2375 = vand.u32 %v2363, 2147483648
    %v2376 = vor.u32 1.1754944e-38, %v2375
    %v2377 = vsel %vm2374, %v2376, %v2372
    %v2378 = vmul.f32 1.0, %v2377
    %v2379 = vxor.u32 %v2357, 2147483648
    %v2380 = vmul.f32 %v2379, 1.442695
    %v2381 = vpow.pop %v2380
    %v2382 = vadd.f32 %v2381, 1.0
    %v2383 = vrcp.pop %v2382
    %v2384 = vmul.f32 %v2382, %v2383
    %v2385 = vsub.f32 1.0, %v2384
    %v2386 = vmul.f32 %v2383, %v2385
    %v2387 = vadd.f32 %v2383, %v2386
    %vm2388 = vweird.f32 %v2382
    %vm2389 = vweird.f32 %v2383
    %vm2390 = vmor %vm2388, %vm2389
    %v2391 = vsel %vm2390, %v2383, %v2387
    %v2392 = vand.u32 2147483647, %v2382
    %vm2393 = vcmp.eq.f32.partialorder %v2392, 8.507059e+37
    %v2394 = vand.u32 %v2382, 2147483648
    %v2395 = vor.u32 1.1754944e-38, %v2394
    %v2396 = vsel %vm2393, %v2395, %v2391
    %v2397 = vmul.f32 1.0, %v2396
    %v2398 = vtanh.pop %v2358
    %v2399 = vxor.u32 %v2359, 2147483648
    %v2400 = vmul.f32 %v2399, 1.442695
    %v2401 = vpow.pop %v2400
    %v2402 = vadd.f32 %v2401, 1.0
    %v2403 = vrcp.pop %v2402
    %v2404 = vmul.f32 %v2402, %v2403
    %v2405 = vsub.f32 1.0, %v2404
    %v2406 = vmul.f32 %v2403, %v2405
    %v2407 = vadd.f32 %v2403, %v2406
    %vm2408 = vweird.f32 %v2402
    %vm2409 = vweird.f32 %v2403
    %vm2410 = vmor %vm2408, %vm2409
    %v2411 = vsel %vm2410, %v2403, %v2407
    %v2412 = vand.u32 2147483647, %v2402
    %vm2413 = vcmp.eq.f32.partialorder %v2412, 8.507059e+37
    %v2414 = vand.u32 %v2402, 2147483648
    %v2415 = vor.u32 1.1754944e-38, %v2414
    %v2416 = vsel %vm2413, %v2415, %v2411
    %v2417 = vmul.f32 1.0, %v2416
    %v2418 = vmul.f32 %v2397, %v2268
    %v2419 = vmul.f32 %v2378, %v2398
    %v2420 = vadd.f32 %v2418, %v2419
    %v2421 = vtanh.pop %v2420
    %v2422 = vmul.f32 %v2417, %v2421
    %2423 = vst [vmem:[#allocation5 + $0x60] sm:$0xff] %v2422
    %v2424 = vld [vmem:[%s5 + $0x60] sm:$0xff]
    %v2425 = vmul.f32 %v600, %v2422
    %v2426 = vadd.f32 %v2424, %v2425
    %2427 = vst [vmem:[#allocation7 + $0x60] sm:$0xff] %v2426
    %2428 = vmatpush.msra.mxu0 %v445
    %2429 = vmatpush.msra.mxu0 %v441
    %2430 = vmatpush.msra.mxu0 %v437
    %2431 = vmatpush.msra.mxu0 %v433
    %2432 = vmatpush.msra.mxu0 %v429
    %2433 = vmatpush.msra.mxu0 %v425
    %2434 = vmatpush.msra.mxu0 %v421
    %2435 = vmatpush.msra.mxu0 %v417
    %2436 = vmatpush.msra.mxu0 %v413
    %2437 = vmatpush.msra.mxu0 %v409
    %2438 = vmatpush.msra.mxu0 %v405
    %2439 = vmatpush.msra.mxu0 %v401
    %2440 = vmatpush.msra.mxu0 %v397
    %2441 = vmatpush.msra.mxu0 %v393
    %2442 = vmatpush.msra.mxu0 %v389
    %2443 = vmatpush.msra.mxu0 %v385
    %2444 = vmatmul.f32.gmra.mxu0 %v2422
    %v2445 = vpop.f32.mrf.mxu0
    %v2446 = vadd.f32 0.0, %v2445
    %2447 = vdwg.mxu0
    %2448 = vmatpush.msra.mxu0 %v446
    %2449 = vmatpush.msra.mxu0 %v442
    %2450 = vmatpush.msra.mxu0 %v438
    %2451 = vmatpush.msra.mxu0 %v434
    %2452 = vmatpush.msra.mxu0 %v430
    %2453 = vmatpush.msra.mxu0 %v426
    %2454 = vmatpush.msra.mxu0 %v422
    %2455 = vmatpush.msra.mxu0 %v418
    %2456 = vmatpush.msra.mxu0 %v414
    %2457 = vmatpush.msra.mxu0 %v410
    %2458 = vmatpush.msra.mxu0 %v406
    %2459 = vmatpush.msra.mxu0 %v402
    %2460 = vmatpush.msra.mxu0 %v398
    %2461 = vmatpush.msra.mxu0 %v394
    %2462 = vmatpush.msra.mxu0 %v390
    %2463 = vmatpush.msra.mxu0 %v386
    %2464 = vmatmul.f32.gmra.mxu0 %v2422
    %v2465 = vpop.f32.mrf.mxu0
    %v2466 = vadd.f32 0.0, %v2465
    %2467 = vdwg.mxu0
    %2468 = vmatpush.msra.mxu0 %v447
    %2469 = vmatpush.msra.mxu0 %v443
    %2470 = vmatpush.msra.mxu0 %v439
    %2471 = vmatpush.msra.mxu0 %v435
    %2472 = vmatpush.msra.mxu0 %v431
    %2473 = vmatpush.msra.mxu0 %v427
    %2474 = vmatpush.msra.mxu0 %v423
    %2475 = vmatpush.msra.mxu0 %v419
    %2476 = vmatpush.msra.mxu0 %v415
    %2477 = vmatpush.msra.mxu0 %v411
    %2478 = vmatpush.msra.mxu0 %v407
    %2479 = vmatpush.msra.mxu0 %v403
    %2480 = vmatpush.msra.mxu0 %v399
    %2481 = vmatpush.msra.mxu0 %v395
    %2482 = vmatpush.msra.mxu0 %v391
    %2483 = vmatpush.msra.mxu0 %v387
    %2484 = vmatmul.f32.gmra.mxu0 %v2422
    %v2485 = vpop.f32.mrf.mxu0
    %v2486 = vadd.f32 0.0, %v2485
    %2487 = vdwg.mxu0
    %2488 = vmatpush.msra.mxu0 %v448
    %2489 = vmatpush.msra.mxu0 %v444
    %2490 = vmatpush.msra.mxu0 %v440
    %2491 = vmatpush.msra.mxu0 %v436
    %2492 = vmatpush.msra.mxu0 %v432
    %2493 = vmatpush.msra.mxu0 %v428
    %2494 = vmatpush.msra.mxu0 %v424
    %2495 = vmatpush.msra.mxu0 %v420
    %2496 = vmatpush.msra.mxu0 %v416
    %2497 = vmatpush.msra.mxu0 %v412
    %2498 = vmatpush.msra.mxu0 %v408
    %2499 = vmatpush.msra.mxu0 %v404
    %2500 = vmatpush.msra.mxu0 %v400
    %2501 = vmatpush.msra.mxu0 %v396
    %2502 = vmatpush.msra.mxu0 %v392
    %2503 = vmatpush.msra.mxu0 %v388
    %2504 = vmatmul.f32.gmra.mxu0 %v2422
    %v2505 = vpop.f32.mrf.mxu0
    %v2506 = vadd.f32 0.0, %v2505
    %2507 = vdwg.mxu0
    %v2508 = vadd.f32 %v182, %v2446
    %v2509 = vadd.f32 %v247, %v2466
    %v2510 = vadd.f32 %v312, %v2486
    %v2511 = vadd.f32 %v377, %v2506
    %v2512 = vxor.u32 %v2508, 2147483648
    %v2513 = vmul.f32 %v2512, 1.442695
    %v2514 = vpow.pop %v2513
    %v2515 = vadd.f32 %v2514, 1.0
    %v2516 = vrcp.pop %v2515
    %v2517 = vmul.f32 %v2515, %v2516
    %v2518 = vsub.f32 1.0, %v2517
    %v2519 = vmul.f32 %v2516, %v2518
    %v2520 = vadd.f32 %v2516, %v2519
    %vm2521 = vweird.f32 %v2515
    %vm2522 = vweird.f32 %v2516
    %vm2523 = vmor %vm2521, %vm2522
    %v2524 = vsel %vm2523, %v2516, %v2520
    %v2525 = vand.u32 2147483647, %v2515
    %vm2526 = vcmp.eq.f32.partialorder %v2525, 8.507059e+37
    %v2527 = vand.u32 %v2515, 2147483648
    %v2528 = vor.u32 1.1754944e-38, %v2527
    %v2529 = vsel %vm2526, %v2528, %v2524
    %v2530 = vmul.f32 1.0, %v2529
    %v2531 = vxor.u32 %v2509, 2147483648
    %v2532 = vmul.f32 %v2531, 1.442695
    %v2533 = vpow.pop %v2532
    %v2534 = vadd.f32 %v2533, 1.0
    %v2535 = vrcp.pop %v2534
    %v2536 = vmul.f32 %v2534, %v2535
    %v2537 = vsub.f32 1.0, %v2536
    %v2538 = vmul.f32 %v2535, %v2537
    %v2539 = vadd.f32 %v2535, %v2538
    %vm2540 = vweird.f32 %v2534
    %vm2541 = vweird.f32 %v2535
    %vm2542 = vmor %vm2540, %vm2541
    %v2543 = vsel %vm2542, %v2535, %v2539
    %v2544 = vand.u32 2147483647, %v2534
    %vm2545 = vcmp.eq.f32.partialorder %v2544, 8.507059e+37
    %v2546 = vand.u32 %v2534, 2147483648
    %v2547 = vor.u32 1.1754944e-38, %v2546
    %v2548 = vsel %vm2545, %v2547, %v2543
    %v2549 = vmul.f32 1.0, %v2548
    %v2550 = vtanh.pop %v2510
    %v2551 = vxor.u32 %v2511, 2147483648
    %v2552 = vmul.f32 %v2551, 1.442695
    %v2553 = vpow.pop %v2552
    %v2554 = vadd.f32 %v2553, 1.0
    %v2555 = vrcp.pop %v2554
    %v2556 = vmul.f32 %v2554, %v2555
    %v2557 = vsub.f32 1.0, %v2556
    %v2558 = vmul.f32 %v2555, %v2557
    %v2559 = vadd.f32 %v2555, %v2558
    %vm2560 = vweird.f32 %v2554
    %vm2561 = vweird.f32 %v2555
    %vm2562 = vmor %vm2560, %vm2561
    %v2563 = vsel %vm2562, %v2555, %v2559
    %v2564 = vand.u32 2147483647, %v2554
    %vm2565 = vcmp.eq.f32.partialorder %v2564, 8.507059e+37
    %v2566 = vand.u32 %v2554, 2147483648
    %v2567 = vor.u32 1.1754944e-38, %v2566
    %v2568 = vsel %vm2565, %v2567, %v2563
    %v2569 = vmul.f32 1.0, %v2568
    %v2570 = vmul.f32 %v2549, %v2420
    %v2571 = vmul.f32 %v2530, %v2550
    %v2572 = vadd.f32 %v2570, %v2571
    %v2573 = vtanh.pop %v2572
    %v2574 = vmul.f32 %v2569, %v2573
    %2575 = vst [vmem:[#allocation5 + $0x68] sm:$0xff] %v2574
    %v2576 = vld [vmem:[%s5 + $0x68] sm:$0xff]
    %v2577 = vmul.f32 %v600, %v2574
    %v2578 = vadd.f32 %v2576, %v2577
    %2579 = vst [vmem:[#allocation7 + $0x68] sm:$0xff] %v2578
    %2580 = vmatpush.msra.mxu0 %v445
    %2581 = vmatpush.msra.mxu0 %v441
    %2582 = vmatpush.msra.mxu0 %v437
    %2583 = vmatpush.msra.mxu0 %v433
    %2584 = vmatpush.msra.mxu0 %v429
    %2585 = vmatpush.msra.mxu0 %v425
    %2586 = vmatpush.msra.mxu0 %v421
    %2587 = vmatpush.msra.mxu0 %v417
    %2588 = vmatpush.msra.mxu0 %v413
    %2589 = vmatpush.msra.mxu0 %v409
    %2590 = vmatpush.msra.mxu0 %v405
    %2591 = vmatpush.msra.mxu0 %v401
    %2592 = vmatpush.msra.mxu0 %v397
    %2593 = vmatpush.msra.mxu0 %v393
    %2594 = vmatpush.msra.mxu0 %v389
    %2595 = vmatpush.msra.mxu0 %v385
    %2596 = vmatmul.f32.gmra.mxu0 %v2574
    %v2597 = vpop.f32.mrf.mxu0
    %v2598 = vadd.f32 0.0, %v2597
    %2599 = vdwg.mxu0
    %2600 = vmatpush.msra.mxu0 %v446
    %2601 = vmatpush.msra.mxu0 %v442
    %2602 = vmatpush.msra.mxu0 %v438
    %2603 = vmatpush.msra.mxu0 %v434
    %2604 = vmatpush.msra.mxu0 %v430
    %2605 = vmatpush.msra.mxu0 %v426
    %2606 = vmatpush.msra.mxu0 %v422
    %2607 = vmatpush.msra.mxu0 %v418
    %2608 = vmatpush.msra.mxu0 %v414
    %2609 = vmatpush.msra.mxu0 %v410
    %2610 = vmatpush.msra.mxu0 %v406
    %2611 = vmatpush.msra.mxu0 %v402
    %2612 = vmatpush.msra.mxu0 %v398
    %2613 = vmatpush.msra.mxu0 %v394
    %2614 = vmatpush.msra.mxu0 %v390
    %2615 = vmatpush.msra.mxu0 %v386
    %2616 = vmatmul.f32.gmra.mxu0 %v2574
    %v2617 = vpop.f32.mrf.mxu0
    %v2618 = vadd.f32 0.0, %v2617
    %2619 = vdwg.mxu0
    %2620 = vmatpush.msra.mxu0 %v447
    %2621 = vmatpush.msra.mxu0 %v443
    %2622 = vmatpush.msra.mxu0 %v439
    %2623 = vmatpush.msra.mxu0 %v435
    %2624 = vmatpush.msra.mxu0 %v431
    %2625 = vmatpush.msra.mxu0 %v427
    %2626 = vmatpush.msra.mxu0 %v423
    %2627 = vmatpush.msra.mxu0 %v419
    %2628 = vmatpush.msra.mxu0 %v415
    %2629 = vmatpush.msra.mxu0 %v411
    %2630 = vmatpush.msra.mxu0 %v407
    %2631 = vmatpush.msra.mxu0 %v403
    %2632 = vmatpush.msra.mxu0 %v399
    %2633 = vmatpush.msra.mxu0 %v395
    %2634 = vmatpush.msra.mxu0 %v391
    %2635 = vmatpush.msra.mxu0 %v387
    %2636 = vmatmul.f32.gmra.mxu0 %v2574
    %v2637 = vpop.f32.mrf.mxu0
    %v2638 = vadd.f32 0.0, %v2637
    %2639 = vdwg.mxu0
    %2640 = vmatpush.msra.mxu0 %v448
    %2641 = vmatpush.msra.mxu0 %v444
    %2642 = vmatpush.msra.mxu0 %v440
    %2643 = vmatpush.msra.mxu0 %v436
    %2644 = vmatpush.msra.mxu0 %v432
    %2645 = vmatpush.msra.mxu0 %v428
    %2646 = vmatpush.msra.mxu0 %v424
    %2647 = vmatpush.msra.mxu0 %v420
    %2648 = vmatpush.msra.mxu0 %v416
    %2649 = vmatpush.msra.mxu0 %v412
    %2650 = vmatpush.msra.mxu0 %v408
    %2651 = vmatpush.msra.mxu0 %v404
    %2652 = vmatpush.msra.mxu0 %v400
    %2653 = vmatpush.msra.mxu0 %v396
    %2654 = vmatpush.msra.mxu0 %v392
    %2655 = vmatpush.msra.mxu0 %v388
    %2656 = vmatmul.f32.gmra.mxu0 %v2574
    %v2657 = vpop.f32.mrf.mxu0
    %v2658 = vadd.f32 0.0, %v2657
    %2659 = vdwg.mxu0
    %v2660 = vadd.f32 %v185, %v2598
    %v2661 = vadd.f32 %v250, %v2618
    %v2662 = vadd.f32 %v315, %v2638
    %v2663 = vadd.f32 %v380, %v2658
    %v2664 = vxor.u32 %v2660, 2147483648
    %v2665 = vmul.f32 %v2664, 1.442695
    %v2666 = vpow.pop %v2665
    %v2667 = vadd.f32 %v2666, 1.0
    %v2668 = vrcp.pop %v2667
    %v2669 = vmul.f32 %v2667, %v2668
    %v2670 = vsub.f32 1.0, %v2669
    %v2671 = vmul.f32 %v2668, %v2670
    %v2672 = vadd.f32 %v2668, %v2671
    %vm2673 = vweird.f32 %v2667
    %vm2674 = vweird.f32 %v2668
    %vm2675 = vmor %vm2673, %vm2674
    %v2676 = vsel %vm2675, %v2668, %v2672
    %v2677 = vand.u32 2147483647, %v2667
    %vm2678 = vcmp.eq.f32.partialorder %v2677, 8.507059e+37
    %v2679 = vand.u32 %v2667, 2147483648
    %v2680 = vor.u32 1.1754944e-38, %v2679
    %v2681 = vsel %vm2678, %v2680, %v2676
    %v2682 = vmul.f32 1.0, %v2681
    %v2683 = vxor.u32 %v2661, 2147483648
    %v2684 = vmul.f32 %v2683, 1.442695
    %v2685 = vpow.pop %v2684
    %v2686 = vadd.f32 %v2685, 1.0
    %v2687 = vrcp.pop %v2686
    %v2688 = vmul.f32 %v2686, %v2687
    %v2689 = vsub.f32 1.0, %v2688
    %v2690 = vmul.f32 %v2687, %v2689
    %v2691 = vadd.f32 %v2687, %v2690
    %vm2692 = vweird.f32 %v2686
    %vm2693 = vweird.f32 %v2687
    %vm2694 = vmor %vm2692, %vm2693
    %v2695 = vsel %vm2694, %v2687, %v2691
    %v2696 = vand.u32 2147483647, %v2686
    %vm2697 = vcmp.eq.f32.partialorder %v2696, 8.507059e+37
    %v2698 = vand.u32 %v2686, 2147483648
    %v2699 = vor.u32 1.1754944e-38, %v2698
    %v2700 = vsel %vm2697, %v2699, %v2695
    %v2701 = vmul.f32 1.0, %v2700
    %v2702 = vtanh.pop %v2662
    %v2703 = vxor.u32 %v2663, 2147483648
    %v2704 = vmul.f32 %v2703, 1.442695
    %v2705 = vpow.pop %v2704
    %v2706 = vadd.f32 %v2705, 1.0
    %v2707 = vrcp.pop %v2706
    %v2708 = vmul.f32 %v2706, %v2707
    %v2709 = vsub.f32 1.0, %v2708
    %v2710 = vmul.f32 %v2707, %v2709
    %v2711 = vadd.f32 %v2707, %v2710
    %vm2712 = vweird.f32 %v2706
    %vm2713 = vweird.f32 %v2707
    %vm2714 = vmor %vm2712, %vm2713
    %v2715 = vsel %vm2714, %v2707, %v2711
    %v2716 = vand.u32 2147483647, %v2706
    %vm2717 = vcmp.eq.f32.partialorder %v2716, 8.507059e+37
    %v2718 = vand.u32 %v2706, 2147483648
    %v2719 = vor.u32 1.1754944e-38, %v2718
    %v2720 = vsel %vm2717, %v2719, %v2715
    %v2721 = vmul.f32 1.0, %v2720
    %v2722 = vmul.f32 %v2701, %v2572
    %v2723 = vmul.f32 %v2682, %v2702
    %v2724 = vadd.f32 %v2722, %v2723
    %v2725 = vtanh.pop %v2724
    %v2726 = vmul.f32 %v2721, %v2725
    %2727 = vst [vmem:[#allocation5 + $0x70] sm:$0xff] %v2726
    %v2728 = vld [vmem:[%s5 + $0x70] sm:$0xff]
    %v2729 = vmul.f32 %v600, %v2726
    %v2730 = vadd.f32 %v2728, %v2729
    %2731 = vst [vmem:[#allocation7 + $0x70] sm:$0xff] %v2730
    %2732 = vmatpush.msra.mxu0 %v445
    %2733 = vmatpush.msra.mxu0 %v441
    %2734 = vmatpush.msra.mxu0 %v437
    %2735 = vmatpush.msra.mxu0 %v433
    %2736 = vmatpush.msra.mxu0 %v429
    %2737 = vmatpush.msra.mxu0 %v425
    %2738 = vmatpush.msra.mxu0 %v421
    %2739 = vmatpush.msra.mxu0 %v417
    %2740 = vmatpush.msra.mxu0 %v413
    %2741 = vmatpush.msra.mxu0 %v409
    %2742 = vmatpush.msra.mxu0 %v405
    %2743 = vmatpush.msra.mxu0 %v401
    %2744 = vmatpush.msra.mxu0 %v397
    %2745 = vmatpush.msra.mxu0 %v393
    %2746 = vmatpush.msra.mxu0 %v389
    %2747 = vmatpush.msra.mxu0 %v385
    %2748 = vmatmul.f32.gmra.mxu0 %v2726
    %v2749 = vpop.f32.mrf.mxu0
    %v2750 = vadd.f32 0.0, %v2749
    %2751 = vdwg.mxu0
    %2752 = vmatpush.msra.mxu0 %v446
    %2753 = vmatpush.msra.mxu0 %v442
    %2754 = vmatpush.msra.mxu0 %v438
    %2755 = vmatpush.msra.mxu0 %v434
    %2756 = vmatpush.msra.mxu0 %v430
    %2757 = vmatpush.msra.mxu0 %v426
    %2758 = vmatpush.msra.mxu0 %v422
    %2759 = vmatpush.msra.mxu0 %v418
    %2760 = vmatpush.msra.mxu0 %v414
    %2761 = vmatpush.msra.mxu0 %v410
    %2762 = vmatpush.msra.mxu0 %v406
    %2763 = vmatpush.msra.mxu0 %v402
    %2764 = vmatpush.msra.mxu0 %v398
    %2765 = vmatpush.msra.mxu0 %v394
    %2766 = vmatpush.msra.mxu0 %v390
    %2767 = vmatpush.msra.mxu0 %v386
    %2768 = vmatmul.f32.gmra.mxu0 %v2726
    %v2769 = vpop.f32.mrf.mxu0
    %v2770 = vadd.f32 0.0, %v2769
    %2771 = vdwg.mxu0
    %2772 = vmatpush.msra.mxu0 %v447
    %2773 = vmatpush.msra.mxu0 %v443
    %2774 = vmatpush.msra.mxu0 %v439
    %2775 = vmatpush.msra.mxu0 %v435
    %2776 = vmatpush.msra.mxu0 %v431
    %2777 = vmatpush.msra.mxu0 %v427
    %2778 = vmatpush.msra.mxu0 %v423
    %2779 = vmatpush.msra.mxu0 %v419
    %2780 = vmatpush.msra.mxu0 %v415
    %2781 = vmatpush.msra.mxu0 %v411
    %2782 = vmatpush.msra.mxu0 %v407
    %2783 = vmatpush.msra.mxu0 %v403
    %2784 = vmatpush.msra.mxu0 %v399
    %2785 = vmatpush.msra.mxu0 %v395
    %2786 = vmatpush.msra.mxu0 %v391
    %2787 = vmatpush.msra.mxu0 %v387
    %2788 = vmatmul.f32.gmra.mxu0 %v2726
    %v2789 = vpop.f32.mrf.mxu0
    %v2790 = vadd.f32 0.0, %v2789
    %2791 = vdwg.mxu0
    %2792 = vmatpush.msra.mxu0 %v448
    %2793 = vmatpush.msra.mxu0 %v444
    %2794 = vmatpush.msra.mxu0 %v440
    %2795 = vmatpush.msra.mxu0 %v436
    %2796 = vmatpush.msra.mxu0 %v432
    %2797 = vmatpush.msra.mxu0 %v428
    %2798 = vmatpush.msra.mxu0 %v424
    %2799 = vmatpush.msra.mxu0 %v420
    %2800 = vmatpush.msra.mxu0 %v416
    %2801 = vmatpush.msra.mxu0 %v412
    %2802 = vmatpush.msra.mxu0 %v408
    %2803 = vmatpush.msra.mxu0 %v404
    %2804 = vmatpush.msra.mxu0 %v400
    %2805 = vmatpush.msra.mxu0 %v396
    %2806 = vmatpush.msra.mxu0 %v392
    %2807 = vmatpush.msra.mxu0 %v388
    %2808 = vmatmul.f32.gmra.mxu0 %v2726
    %v2809 = vpop.f32.mrf.mxu0
    %v2810 = vadd.f32 0.0, %v2809
    %2811 = vdwg.mxu0
    %v2812 = vadd.f32 %v188, %v2750
    %v2813 = vadd.f32 %v253, %v2770
    %v2814 = vadd.f32 %v318, %v2790
    %v2815 = vadd.f32 %v383, %v2810
    %v2816 = vxor.u32 %v2812, 2147483648
    %v2817 = vmul.f32 %v2816, 1.442695
    %v2818 = vpow.pop %v2817
    %v2819 = vadd.f32 %v2818, 1.0
    %v2820 = vrcp.pop %v2819
    %v2821 = vmul.f32 %v2819, %v2820
    %v2822 = vsub.f32 1.0, %v2821
    %v2823 = vmul.f32 %v2820, %v2822
    %v2824 = vadd.f32 %v2820, %v2823
    %vm2825 = vweird.f32 %v2819
    %vm2826 = vweird.f32 %v2820
    %vm2827 = vmor %vm2825, %vm2826
    %v2828 = vsel %vm2827, %v2820, %v2824
    %v2829 = vand.u32 2147483647, %v2819
    %vm2830 = vcmp.eq.f32.partialorder %v2829, 8.507059e+37
    %v2831 = vand.u32 %v2819, 2147483648
    %v2832 = vor.u32 1.1754944e-38, %v2831
    %v2833 = vsel %vm2830, %v2832, %v2828
    %v2834 = vmul.f32 1.0, %v2833
    %v2835 = vxor.u32 %v2813, 2147483648
    %v2836 = vmul.f32 %v2835, 1.442695
    %v2837 = vpow.pop %v2836
    %v2838 = vadd.f32 %v2837, 1.0
    %v2839 = vrcp.pop %v2838
    %v2840 = vmul.f32 %v2838, %v2839
    %v2841 = vsub.f32 1.0, %v2840
    %v2842 = vmul.f32 %v2839, %v2841
    %v2843 = vadd.f32 %v2839, %v2842
    %vm2844 = vweird.f32 %v2838
    %vm2845 = vweird.f32 %v2839
    %vm2846 = vmor %vm2844, %vm2845
    %v2847 = vsel %vm2846, %v2839, %v2843
    %v2848 = vand.u32 2147483647, %v2838
    %vm2849 = vcmp.eq.f32.partialorder %v2848, 8.507059e+37
    %v2850 = vand.u32 %v2838, 2147483648
    %v2851 = vor.u32 1.1754944e-38, %v2850
    %v2852 = vsel %vm2849, %v2851, %v2847
    %v2853 = vmul.f32 1.0, %v2852
    %v2854 = vtanh.pop %v2814
    %v2855 = vxor.u32 %v2815, 2147483648
    %v2856 = vmul.f32 %v2855, 1.442695
    %v2857 = vpow.pop %v2856
    %v2858 = vadd.f32 %v2857, 1.0
    %v2859 = vrcp.pop %v2858
    %v2860 = vmul.f32 %v2858, %v2859
    %v2861 = vsub.f32 1.0, %v2860
    %v2862 = vmul.f32 %v2859, %v2861
    %v2863 = vadd.f32 %v2859, %v2862
    %vm2864 = vweird.f32 %v2858
    %vm2865 = vweird.f32 %v2859
    %vm2866 = vmor %vm2864, %vm2865
    %v2867 = vsel %vm2866, %v2859, %v2863
    %v2868 = vand.u32 2147483647, %v2858
    %vm2869 = vcmp.eq.f32.partialorder %v2868, 8.507059e+37
    %v2870 = vand.u32 %v2858, 2147483648
    %v2871 = vor.u32 1.1754944e-38, %v2870
    %v2872 = vsel %vm2869, %v2871, %v2867
    %v2873 = vmul.f32 1.0, %v2872
    %v2874 = vmul.f32 %v2853, %v2724
    %v2875 = vmul.f32 %v2834, %v2854
    %v2876 = vadd.f32 %v2874, %v2875
    %v2877 = vtanh.pop %v2876
    %v2878 = vmul.f32 %v2873, %v2877
    %2879 = vst [vmem:[#allocation5 + $0x78] sm:$0xff] %v2878
    %v2880 = vld [vmem:[%s5 + $0x78] sm:$0xff]
    %v2881 = vmul.f32 %v600, %v2878
    %v2882 = vadd.f32 %v2880, %v2881
    %2883 = vst [vmem:[#allocation7 + $0x78] sm:$0xff] %v2882
    %2884 = vst [vmem:[#allocation2] sm:$0xff] %v2878
    %2885 = vst [vmem:[#allocation3] sm:$0xff] %v2876
    // Predicated region
    $region30: #{elmo_lm_forward.3} parent=1 // pred_check
      _
    $region31: #{elmo_lm_forward.3} parent=1 // pred_check_branch
      %2887 = sbr.rel (0) target = $region33
    $region32: #{elmo_lm_forward.3} parent=1 // pred_region
      %2889 = vsyncadd [#allocation6], 0
      %s2890 = sshll.u32 [#allocation5], 4
      %s2891 = int_to_ptr.vmem [resolvable:$true] %s2890
      %s2892 = sshll.u32 %s6, 4
      %s2893 = int_to_ptr.hbm [resolvable:$true] %s2892
      %2898 = dma.vmem_to_hbm [thread:$0]  %s2891, 2048, %s2893, [#allocation6], 128, 128, 8
    $region33: #{elmo_lm_forward.3} parent=1 // pred_fallthru
      _
    // Predicated region
    $region34: #{elmo_lm_forward.3} parent=1 // pred_check
      _
    $region35: #{elmo_lm_forward.3} parent=1 // pred_check_branch
      %2900 = sbr.rel (0) target = $region37
    $region36: #{elmo_lm_forward.3} parent=1 // pred_region
      %2902 = vsyncadd [#allocation8], 0
      %s2903 = sshll.u32 [#allocation7], 4
      %s2904 = int_to_ptr.vmem [resolvable:$true] %s2903
      %s2905 = sshll.u32 %s7, 4
      %s2906 = int_to_ptr.hbm [resolvable:$true] %s2905
      %2911 = dma.vmem_to_hbm [thread:$0]  %s2904, 2048, %s2906, [#allocation8], 128, 128, 8
    $region37: #{elmo_lm_forward.3} parent=1 // pred_fallthru
      _
    // Predicated region
    $region38: #{elmo_lm_forward.3} parent=1 // pred_check
      _
    $region39: #{elmo_lm_forward.3} parent=1 // pred_check_branch
      %2913 = sbr.rel (0) target = $region41
    $region40: #{elmo_lm_forward.3} parent=1 // pred_region
      %2915 = dma.done [#allocation6], 2048
    $region41: #{elmo_lm_forward.3} parent=1 // pred_fallthru
      _
    // Predicated region
    $region42: #{elmo_lm_forward.3} parent=1 // pred_check
      _
    $region43: #{elmo_lm_forward.3} parent=1 // pred_check_branch
      %2917 = sbr.rel (0) target = $region45
    $region44: #{elmo_lm_forward.3} parent=1 // pred_region
      %2919 = dma.done [#allocation8], 2048
    $region45: #{elmo_lm_forward.3} parent=1 // pred_fallthru
      _
    %2920 = vsyncpa [#allocation6], 1
    %2921 = vsyncpa [#allocation8], 1

// kernel: elmo_lm_forward.2
$region0: #{elmo_lm_forward.2}
  #allocation0 [shape = 'u32[]', space=smem, size = 0x4, offset = 0x4, fixed_abs, tag = 'smem constant byte address 0x4 - core index']
  #allocation1 [shape = 'u32[72,128]{1,0:T(1,128)}', space=vmem, size = 0x9000, scoped, tag = 'internal scratch']
  #allocation2 [shape = 'f32[8,128]{1,0:T(8,128)}', space=vmem, size = 0x1000, scoped, tag = 'scratch operand']
  #allocation3 [shape = 'f32[8,128]{1,0:T(8,128)}', space=vmem, size = 0x1000, scoped, tag = 'scratch operand']
  #allocation4 [shape = 'f32[1]{0:T(128)S(6)}', space=smem, size = 0x200, scoped, tag = 'scoped memory for elmo_lm_forward.2']
  %s0 = inlined_call_operand.<no memory space> [shape: f32[1], index: 0, kind: input, shape index: {}]
  %s1 = inlined_call_operand.vmem [shape: f32[128,64], index: 1, kind: input, shape index: {}]
  %s2 = inlined_call_operand.hbm [shape: f32[64,512], index: 2, kind: input, shape index: {}]
  %s3 = inlined_call_operand.vmem [shape: f32[128,512], index: 3, kind: input, shape index: {}]
  %s4 = inlined_call_operand.vmem [shape: f32[1,512], index: 4, kind: input, shape index: {}]
  %s5 = inlined_call_operand.vmem [shape: f32[128,128], index: 5, kind: input, shape index: {}]
  %s6 = inlined_call_operand.vmem [shape: f32[128,128], index: 6, kind: output, shape index: {0}]
  %s7 = inlined_call_operand.vmem [shape: f32[128,128], index: 7, kind: output, shape index: {1}]
  %8 = xla_tuple %s6, %s7
  %s9 = sld [smem:[#allocation0]]
  $region50: #{elmo_lm_forward.2} parent=0
    _
  %s11 = ssub.s32 1, %s9
  %s12 = scalar_select 0, %s11, %s9
  %13 = sst [smem:[#allocation4]] %s0
  $region1: #{elmo_lm_forward.2} parent=0
    #allocation5 [shape = 'u8[131072]{0}', space=vmem, size = 0x20000, scoped, tag = 'input window, operand 2, single buffered']
    #allocation6 [shape = 's32[1]{0}', space=sflag, size = 0x4, scoped, tag = 'scoped memory for elmo_lm_forward.2']
    %14 = vsyncpa [#allocation6], 0
    // Predicated region
    $region2: #{elmo_lm_forward.2} parent=1 // pred_check
      _
    $region3: #{elmo_lm_forward.2} parent=1 // pred_check_branch
      %16 = sbr.rel (0) target = $region5
    $region4: #{elmo_lm_forward.2} parent=1 // pred_region
      _
    $region5: #{elmo_lm_forward.2} parent=1 // pred_fallthru
      _
    // Predicated region
    $region6: #{elmo_lm_forward.2} parent=1 // pred_check
      _
    $region7: #{elmo_lm_forward.2} parent=1 // pred_check_branch
      %18 = sbr.rel (0) target = $region9
    $region8: #{elmo_lm_forward.2} parent=1 // pred_region
      _
    $region9: #{elmo_lm_forward.2} parent=1 // pred_fallthru
      _
    // Predicated region
    $region10: #{elmo_lm_forward.2} parent=1 // pred_check
      _
    $region11: #{elmo_lm_forward.2} parent=1 // pred_check_branch
      %20 = sbr.rel (0) target = $region13
    $region12: #{elmo_lm_forward.2} parent=1 // pred_region
      %22 = vsyncadd [#allocation6], 0
      %s23 = sshll.u32 %s2, 4
      %s24 = int_to_ptr.hbm [resolvable:$true] %s23
      %s25 = sshll.u32 [#allocation5], 4
      %s26 = int_to_ptr.vmem [resolvable:$true] %s25
      %31 = dma.hbm_to_vmem [thread:$0]  %s24, 4096, %s26, [#allocation6], 512, 512, 32
    $region13: #{elmo_lm_forward.2} parent=1 // pred_fallthru
      _
    // Predicated region
    $region14: #{elmo_lm_forward.2} parent=1 // pred_check
      _
    $region15: #{elmo_lm_forward.2} parent=1 // pred_check_branch
      %33 = sbr.rel (0) target = $region17
    $region16: #{elmo_lm_forward.2} parent=1 // pred_region
      _
    $region17: #{elmo_lm_forward.2} parent=1 // pred_fallthru
      _
    // Predicated region
    $region18: #{elmo_lm_forward.2} parent=1 // pred_check
      _
    $region19: #{elmo_lm_forward.2} parent=1 // pred_check_branch
      %35 = sbr.rel (0) target = $region21
    $region20: #{elmo_lm_forward.2} parent=1 // pred_region
      _
    $region21: #{elmo_lm_forward.2} parent=1 // pred_fallthru
      _
    // Predicated region
    $region22: #{elmo_lm_forward.2} parent=1 // pred_check
      _
    $region23: #{elmo_lm_forward.2} parent=1 // pred_check_branch
      %37 = sbr.rel (0) target = $region25
    $region24: #{elmo_lm_forward.2} parent=1 // pred_region
      _
    $region25: #{elmo_lm_forward.2} parent=1 // pred_fallthru
      _
    // Predicated region
    $region26: #{elmo_lm_forward.2} parent=1 // pred_check
      _
    $region27: #{elmo_lm_forward.2} parent=1 // pred_check_branch
      %39 = sbr.rel (0) target = $region29
    $region28: #{elmo_lm_forward.2} parent=1 // pred_region
      %41 = dma.done [#allocation6], 4096
    $region29: #{elmo_lm_forward.2} parent=1 // pred_fallthru
      _
    %p42 = scmp.eq.s32.totalorder 0, 0
    // Predicated region
    $region30: #{elmo_lm_forward.2} parent=1 // pred_check
      %p43 = pneg %p42
    $region31: #{elmo_lm_forward.2} parent=1 // pred_check_branch
      %45 = sbr.rel (%p43) target = $region33
    $region32: #{elmo_lm_forward.2} parent=1 // pred_region
      %46 = vst [vmem:[#allocation2] sm:$0xff] 0.0
      %47 = vst [vmem:[#allocation3] sm:$0xff] 0.0
    $region33: #{elmo_lm_forward.2} parent=1 // pred_fallthru
      _
    %s48 = sld [smem:[#allocation4]]
    %v49 = vld [vmem:[%s1] sm:$0xff]
    %v50 = vld [vmem:[%s1 + $0x8] sm:$0xff]
    %v51 = vld [vmem:[%s1 + $0x10] sm:$0xff]
    %v52 = vld [vmem:[%s1 + $0x18] sm:$0xff]
    %v53 = vld [vmem:[%s1 + $0x20] sm:$0xff]
    %v54 = vld [vmem:[%s1 + $0x28] sm:$0xff]
    %v55 = vld [vmem:[%s1 + $0x30] sm:$0xff]
    %v56 = vld [vmem:[%s1 + $0x38] sm:$0xff]
    %v57 = vld [vmem:[%s1 + $0x40] sm:$0xff]
    %v58 = vld [vmem:[%s1 + $0x48] sm:$0xff]
    %v59 = vld [vmem:[%s1 + $0x50] sm:$0xff]
    %v60 = vld [vmem:[%s1 + $0x58] sm:$0xff]
    %v61 = vld [vmem:[%s1 + $0x60] sm:$0xff]
    %v62 = vld [vmem:[%s1 + $0x68] sm:$0xff]
    %v63 = vld [vmem:[%s1 + $0x70] sm:$0xff]
    %v64 = vld [vmem:[%s1 + $0x78] sm:$0xff]
    %v65 = vld [vmem:[#allocation5] sm:$0xff]
    %v66 = vld [vmem:[#allocation5 + $0x8] sm:$0xff]
    %v67 = vld [vmem:[#allocation5 + $0x10] sm:$0xff]
    %v68 = vld [vmem:[#allocation5 + $0x18] sm:$0xff]
    %v69 = vld [vmem:[#allocation5 + $0x20] sm:$0xff]
    %v70 = vld [vmem:[#allocation5 + $0x28] sm:$0xff]
    %v71 = vld [vmem:[#allocation5 + $0x30] sm:$0xff]
    %v72 = vld [vmem:[#allocation5 + $0x38] sm:$0xff]
    %v73 = vld [vmem:[#allocation5 + $0x40] sm:$0xff]
    %v74 = vld [vmem:[#allocation5 + $0x48] sm:$0xff]
    %v75 = vld [vmem:[#allocation5 + $0x50] sm:$0xff]
    %v76 = vld [vmem:[#allocation5 + $0x58] sm:$0xff]
    %v77 = vld [vmem:[#allocation5 + $0x60] sm:$0xff]
    %v78 = vld [vmem:[#allocation5 + $0x68] sm:$0xff]
    %v79 = vld [vmem:[#allocation5 + $0x70] sm:$0xff]
    %v80 = vld [vmem:[#allocation5 + $0x78] sm:$0xff]
    %v81 = vld [vmem:[#allocation5 + $0x80] sm:$0xff]
    %v82 = vld [vmem:[#allocation5 + $0x88] sm:$0xff]
    %v83 = vld [vmem:[#allocation5 + $0x90] sm:$0xff]
    %v84 = vld [vmem:[#allocation5 + $0x98] sm:$0xff]
    %v85 = vld [vmem:[#allocation5 + $0xa0] sm:$0xff]
    %v86 = vld [vmem:[#allocation5 + $0xa8] sm:$0xff]
    %v87 = vld [vmem:[#allocation5 + $0xb0] sm:$0xff]
    %v88 = vld [vmem:[#allocation5 + $0xb8] sm:$0xff]
    %v89 = vld [vmem:[#allocation5 + $0xc0] sm:$0xff]
    %v90 = vld [vmem:[#allocation5 + $0xc8] sm:$0xff]
    %v91 = vld [vmem:[#allocation5 + $0xd0] sm:$0xff]
    %v92 = vld [vmem:[#allocation5 + $0xd8] sm:$0xff]
    %v93 = vld [vmem:[#allocation5 + $0xe0] sm:$0xff]
    %v94 = vld [vmem:[#allocation5 + $0xe8] sm:$0xff]
    %v95 = vld [vmem:[#allocation5 + $0xf0] sm:$0xff]
    %v96 = vld [vmem:[#allocation5 + $0xf8] sm:$0xff]
    %v97 = vld [vmem:[%s4] sm:$0xf]
    %v99 = vperm.slane %v97, 0
    %v100 = vperm.slane %v97, 1
    %v101 = vperm.slane %v97, 2
    %v102 = vperm.slane %v97, 3
    %vm107 = vcmask 523264
    %v109 = vsel %vm107, %v49, 0
    %v112 = vsel %vm107, %v50, 0
    %v115 = vsel %vm107, %v51, 0
    %v118 = vsel %vm107, %v52, 0
    %v121 = vsel %vm107, %v53, 0
    %v124 = vsel %vm107, %v54, 0
    %v127 = vsel %vm107, %v55, 0
    %v130 = vsel %vm107, %v56, 0
    %v133 = vsel %vm107, %v57, 0
    %v136 = vsel %vm107, %v58, 0
    %v139 = vsel %vm107, %v59, 0
    %v142 = vsel %vm107, %v60, 0
    %v145 = vsel %vm107, %v61, 0
    %v148 = vsel %vm107, %v62, 0
    %v151 = vsel %vm107, %v63, 0
    %v154 = vsel %vm107, %v64, 0
    %156 = vmatpush.msra.mxu0 0.0
    %157 = vmatpush.msra.mxu0 0.0
    %158 = vmatpush.msra.mxu0 0.0
    %159 = vmatpush.msra.mxu0 0.0
    %160 = vmatpush.msra.mxu0 0.0
    %161 = vmatpush.msra.mxu0 0.0
    %162 = vmatpush.msra.mxu0 0.0
    %163 = vmatpush.msra.mxu0 0.0
    %164 = vmatpush.msra.mxu0 %v93
    %165 = vmatpush.msra.mxu0 %v89
    %166 = vmatpush.msra.mxu0 %v85
    %167 = vmatpush.msra.mxu0 %v81
    %168 = vmatpush.msra.mxu0 %v77
    %169 = vmatpush.msra.mxu0 %v73
    %170 = vmatpush.msra.mxu0 %v69
    %171 = vmatpush.msra.mxu0 %v65
    %172 = vmatmul.f32.gmra.mxu0 %v109
    %v173 = vpop.f32.mrf.mxu0
    %v174 = vadd.f32 %v99, %v173
    %175 = vmatmul.f32.gmra.mxu0 %v112
    %v176 = vpop.f32.mrf.mxu0
    %v177 = vadd.f32 %v99, %v176
    %178 = vmatmul.f32.gmra.mxu0 %v115
    %v179 = vpop.f32.mrf.mxu0
    %v180 = vadd.f32 %v99, %v179
    %181 = vmatmul.f32.gmra.mxu0 %v118
    %v182 = vpop.f32.mrf.mxu0
    %v183 = vadd.f32 %v99, %v182
    %184 = vmatmul.f32.gmra.mxu0 %v121
    %v185 = vpop.f32.mrf.mxu0
    %v186 = vadd.f32 %v99, %v185
    %187 = vmatmul.f32.gmra.mxu0 %v124
    %v188 = vpop.f32.mrf.mxu0
    %v189 = vadd.f32 %v99, %v188
    %190 = vmatmul.f32.gmra.mxu0 %v127
    %v191 = vpop.f32.mrf.mxu0
    %v192 = vadd.f32 %v99, %v191
    %193 = vmatmul.f32.gmra.mxu0 %v130
    %v194 = vpop.f32.mrf.mxu0
    %v195 = vadd.f32 %v99, %v194
    %196 = vmatmul.f32.gmra.mxu0 %v133
    %v197 = vpop.f32.mrf.mxu0
    %v198 = vadd.f32 %v99, %v197
    %199 = vmatmul.f32.gmra.mxu0 %v136
    %v200 = vpop.f32.mrf.mxu0
    %v201 = vadd.f32 %v99, %v200
    %202 = vmatmul.f32.gmra.mxu0 %v139
    %v203 = vpop.f32.mrf.mxu0
    %v204 = vadd.f32 %v99, %v203
    %205 = vmatmul.f32.gmra.mxu0 %v142
    %v206 = vpop.f32.mrf.mxu0
    %v207 = vadd.f32 %v99, %v206
    %208 = vmatmul.f32.gmra.mxu0 %v145
    %v209 = vpop.f32.mrf.mxu0
    %v210 = vadd.f32 %v99, %v209
    %211 = vmatmul.f32.gmra.mxu0 %v148
    %v212 = vpop.f32.mrf.mxu0
    %v213 = vadd.f32 %v99, %v212
    %214 = vmatmul.f32.gmra.mxu0 %v151
    %v215 = vpop.f32.mrf.mxu0
    %v216 = vadd.f32 %v99, %v215
    %217 = vmatmul.f32.gmra.mxu0 %v154
    %v218 = vpop.f32.mrf.mxu0
    %v219 = vadd.f32 %v99, %v218
    %220 = vdwg.mxu0
    %221 = vmatpush.msra.mxu0 0.0
    %222 = vmatpush.msra.mxu0 0.0
    %223 = vmatpush.msra.mxu0 0.0
    %224 = vmatpush.msra.mxu0 0.0
    %225 = vmatpush.msra.mxu0 0.0
    %226 = vmatpush.msra.mxu0 0.0
    %227 = vmatpush.msra.mxu0 0.0
    %228 = vmatpush.msra.mxu0 0.0
    %229 = vmatpush.msra.mxu0 %v94
    %230 = vmatpush.msra.mxu0 %v90
    %231 = vmatpush.msra.mxu0 %v86
    %232 = vmatpush.msra.mxu0 %v82
    %233 = vmatpush.msra.mxu0 %v78
    %234 = vmatpush.msra.mxu0 %v74
    %235 = vmatpush.msra.mxu0 %v70
    %236 = vmatpush.msra.mxu0 %v66
    %237 = vmatmul.f32.gmra.mxu0 %v109
    %v238 = vpop.f32.mrf.mxu0
    %v239 = vadd.f32 %v100, %v238
    %240 = vmatmul.f32.gmra.mxu0 %v112
    %v241 = vpop.f32.mrf.mxu0
    %v242 = vadd.f32 %v100, %v241
    %243 = vmatmul.f32.gmra.mxu0 %v115
    %v244 = vpop.f32.mrf.mxu0
    %v245 = vadd.f32 %v100, %v244
    %246 = vmatmul.f32.gmra.mxu0 %v118
    %v247 = vpop.f32.mrf.mxu0
    %v248 = vadd.f32 %v100, %v247
    %249 = vmatmul.f32.gmra.mxu0 %v121
    %v250 = vpop.f32.mrf.mxu0
    %v251 = vadd.f32 %v100, %v250
    %252 = vmatmul.f32.gmra.mxu0 %v124
    %v253 = vpop.f32.mrf.mxu0
    %v254 = vadd.f32 %v100, %v253
    %255 = vmatmul.f32.gmra.mxu0 %v127
    %v256 = vpop.f32.mrf.mxu0
    %v257 = vadd.f32 %v100, %v256
    %258 = vmatmul.f32.gmra.mxu0 %v130
    %v259 = vpop.f32.mrf.mxu0
    %v260 = vadd.f32 %v100, %v259
    %261 = vmatmul.f32.gmra.mxu0 %v133
    %v262 = vpop.f32.mrf.mxu0
    %v263 = vadd.f32 %v100, %v262
    %264 = vmatmul.f32.gmra.mxu0 %v136
    %v265 = vpop.f32.mrf.mxu0
    %v266 = vadd.f32 %v100, %v265
    %267 = vmatmul.f32.gmra.mxu0 %v139
    %v268 = vpop.f32.mrf.mxu0
    %v269 = vadd.f32 %v100, %v268
    %270 = vmatmul.f32.gmra.mxu0 %v142
    %v271 = vpop.f32.mrf.mxu0
    %v272 = vadd.f32 %v100, %v271
    %273 = vmatmul.f32.gmra.mxu0 %v145
    %v274 = vpop.f32.mrf.mxu0
    %v275 = vadd.f32 %v100, %v274
    %276 = vmatmul.f32.gmra.mxu0 %v148
    %v277 = vpop.f32.mrf.mxu0
    %v278 = vadd.f32 %v100, %v277
    %279 = vmatmul.f32.gmra.mxu0 %v151
    %v280 = vpop.f32.mrf.mxu0
    %v281 = vadd.f32 %v100, %v280
    %282 = vmatmul.f32.gmra.mxu0 %v154
    %v283 = vpop.f32.mrf.mxu0
    %v284 = vadd.f32 %v100, %v283
    %285 = vdwg.mxu0
    %286 = vmatpush.msra.mxu0 0.0
    %287 = vmatpush.msra.mxu0 0.0
    %288 = vmatpush.msra.mxu0 0.0
    %289 = vmatpush.msra.mxu0 0.0
    %290 = vmatpush.msra.mxu0 0.0
    %291 = vmatpush.msra.mxu0 0.0
    %292 = vmatpush.msra.mxu0 0.0
    %293 = vmatpush.msra.mxu0 0.0
    %294 = vmatpush.msra.mxu0 %v95
    %295 = vmatpush.msra.mxu0 %v91
    %296 = vmatpush.msra.mxu0 %v87
    %297 = vmatpush.msra.mxu0 %v83
    %298 = vmatpush.msra.mxu0 %v79
    %299 = vmatpush.msra.mxu0 %v75
    %300 = vmatpush.msra.mxu0 %v71
    %301 = vmatpush.msra.mxu0 %v67
    %302 = vmatmul.f32.gmra.mxu0 %v109
    %v303 = vpop.f32.mrf.mxu0
    %v304 = vadd.f32 %v101, %v303
    %305 = vmatmul.f32.gmra.mxu0 %v112
    %v306 = vpop.f32.mrf.mxu0
    %v307 = vadd.f32 %v101, %v306
    %308 = vmatmul.f32.gmra.mxu0 %v115
    %v309 = vpop.f32.mrf.mxu0
    %v310 = vadd.f32 %v101, %v309
    %311 = vmatmul.f32.gmra.mxu0 %v118
    %v312 = vpop.f32.mrf.mxu0
    %v313 = vadd.f32 %v101, %v312
    %314 = vmatmul.f32.gmra.mxu0 %v121
    %v315 = vpop.f32.mrf.mxu0
    %v316 = vadd.f32 %v101, %v315
    %317 = vmatmul.f32.gmra.mxu0 %v124
    %v318 = vpop.f32.mrf.mxu0
    %v319 = vadd.f32 %v101, %v318
    %320 = vmatmul.f32.gmra.mxu0 %v127
    %v321 = vpop.f32.mrf.mxu0
    %v322 = vadd.f32 %v101, %v321
    %323 = vmatmul.f32.gmra.mxu0 %v130
    %v324 = vpop.f32.mrf.mxu0
    %v325 = vadd.f32 %v101, %v324
    %326 = vmatmul.f32.gmra.mxu0 %v133
    %v327 = vpop.f32.mrf.mxu0
    %v328 = vadd.f32 %v101, %v327
    %329 = vmatmul.f32.gmra.mxu0 %v136
    %v330 = vpop.f32.mrf.mxu0
    %v331 = vadd.f32 %v101, %v330
    %332 = vmatmul.f32.gmra.mxu0 %v139
    %v333 = vpop.f32.mrf.mxu0
    %v334 = vadd.f32 %v101, %v333
    %335 = vmatmul.f32.gmra.mxu0 %v142
    %v336 = vpop.f32.mrf.mxu0
    %v337 = vadd.f32 %v101, %v336
    %338 = vmatmul.f32.gmra.mxu0 %v145
    %v339 = vpop.f32.mrf.mxu0
    %v340 = vadd.f32 %v101, %v339
    %341 = vmatmul.f32.gmra.mxu0 %v148
    %v342 = vpop.f32.mrf.mxu0
    %v343 = vadd.f32 %v101, %v342
    %344 = vmatmul.f32.gmra.mxu0 %v151
    %v345 = vpop.f32.mrf.mxu0
    %v346 = vadd.f32 %v101, %v345
    %347 = vmatmul.f32.gmra.mxu0 %v154
    %v348 = vpop.f32.mrf.mxu0
    %v349 = vadd.f32 %v101, %v348
    %350 = vdwg.mxu0
    %351 = vmatpush.msra.mxu0 0.0
    %352 = vmatpush.msra.mxu0 0.0
    %353 = vmatpush.msra.mxu0 0.0
    %354 = vmatpush.msra.mxu0 0.0
    %355 = vmatpush.msra.mxu0 0.0
    %356 = vmatpush.msra.mxu0 0.0
    %357 = vmatpush.msra.mxu0 0.0
    %358 = vmatpush.msra.mxu0 0.0
    %359 = vmatpush.msra.mxu0 %v96
    %360 = vmatpush.msra.mxu0 %v92
    %361 = vmatpush.msra.mxu0 %v88
    %362 = vmatpush.msra.mxu0 %v84
    %363 = vmatpush.msra.mxu0 %v80
    %364 = vmatpush.msra.mxu0 %v76
    %365 = vmatpush.msra.mxu0 %v72
    %366 = vmatpush.msra.mxu0 %v68
    %367 = vmatmul.f32.gmra.mxu0 %v109
    %v368 = vpop.f32.mrf.mxu0
    %v369 = vadd.f32 %v102, %v368
    %370 = vmatmul.f32.gmra.mxu0 %v112
    %v371 = vpop.f32.mrf.mxu0
    %v372 = vadd.f32 %v102, %v371
    %373 = vmatmul.f32.gmra.mxu0 %v115
    %v374 = vpop.f32.mrf.mxu0
    %v375 = vadd.f32 %v102, %v374
    %376 = vmatmul.f32.gmra.mxu0 %v118
    %v377 = vpop.f32.mrf.mxu0
    %v378 = vadd.f32 %v102, %v377
    %379 = vmatmul.f32.gmra.mxu0 %v121
    %v380 = vpop.f32.mrf.mxu0
    %v381 = vadd.f32 %v102, %v380
    %382 = vmatmul.f32.gmra.mxu0 %v124
    %v383 = vpop.f32.mrf.mxu0
    %v384 = vadd.f32 %v102, %v383
    %385 = vmatmul.f32.gmra.mxu0 %v127
    %v386 = vpop.f32.mrf.mxu0
    %v387 = vadd.f32 %v102, %v386
    %388 = vmatmul.f32.gmra.mxu0 %v130
    %v389 = vpop.f32.mrf.mxu0
    %v390 = vadd.f32 %v102, %v389
    %391 = vmatmul.f32.gmra.mxu0 %v133
    %v392 = vpop.f32.mrf.mxu0
    %v393 = vadd.f32 %v102, %v392
    %394 = vmatmul.f32.gmra.mxu0 %v136
    %v395 = vpop.f32.mrf.mxu0
    %v396 = vadd.f32 %v102, %v395
    %397 = vmatmul.f32.gmra.mxu0 %v139
    %v398 = vpop.f32.mrf.mxu0
    %v399 = vadd.f32 %v102, %v398
    %400 = vmatmul.f32.gmra.mxu0 %v142
    %v401 = vpop.f32.mrf.mxu0
    %v402 = vadd.f32 %v102, %v401
    %403 = vmatmul.f32.gmra.mxu0 %v145
    %v404 = vpop.f32.mrf.mxu0
    %v405 = vadd.f32 %v102, %v404
    %406 = vmatmul.f32.gmra.mxu0 %v148
    %v407 = vpop.f32.mrf.mxu0
    %v408 = vadd.f32 %v102, %v407
    %409 = vmatmul.f32.gmra.mxu0 %v151
    %v410 = vpop.f32.mrf.mxu0
    %v411 = vadd.f32 %v102, %v410
    %412 = vmatmul.f32.gmra.mxu0 %v154
    %v413 = vpop.f32.mrf.mxu0
    %v414 = vadd.f32 %v102, %v413
    %415 = vdwg.mxu0
    %v416 = vld [vmem:[%s3] sm:$0xff]
    %v417 = vld [vmem:[%s3 + $0x8] sm:$0xff]
    %v418 = vld [vmem:[%s3 + $0x10] sm:$0xff]
    %v419 = vld [vmem:[%s3 + $0x18] sm:$0xff]
    %v420 = vld [vmem:[%s3 + $0x20] sm:$0xff]
    %v421 = vld [vmem:[%s3 + $0x28] sm:$0xff]
    %v422 = vld [vmem:[%s3 + $0x30] sm:$0xff]
    %v423 = vld [vmem:[%s3 + $0x38] sm:$0xff]
    %v424 = vld [vmem:[%s3 + $0x40] sm:$0xff]
    %v425 = vld [vmem:[%s3 + $0x48] sm:$0xff]
    %v426 = vld [vmem:[%s3 + $0x50] sm:$0xff]
    %v427 = vld [vmem:[%s3 + $0x58] sm:$0xff]
    %v428 = vld [vmem:[%s3 + $0x60] sm:$0xff]
    %v429 = vld [vmem:[%s3 + $0x68] sm:$0xff]
    %v430 = vld [vmem:[%s3 + $0x70] sm:$0xff]
    %v431 = vld [vmem:[%s3 + $0x78] sm:$0xff]
    %v432 = vld [vmem:[%s3 + $0x80] sm:$0xff]
    %v433 = vld [vmem:[%s3 + $0x88] sm:$0xff]
    %v434 = vld [vmem:[%s3 + $0x90] sm:$0xff]
    %v435 = vld [vmem:[%s3 + $0x98] sm:$0xff]
    %v436 = vld [vmem:[%s3 + $0xa0] sm:$0xff]
    %v437 = vld [vmem:[%s3 + $0xa8] sm:$0xff]
    %v438 = vld [vmem:[%s3 + $0xb0] sm:$0xff]
    %v439 = vld [vmem:[%s3 + $0xb8] sm:$0xff]
    %v440 = vld [vmem:[%s3 + $0xc0] sm:$0xff]
    %v441 = vld [vmem:[%s3 + $0xc8] sm:$0xff]
    %v442 = vld [vmem:[%s3 + $0xd0] sm:$0xff]
    %v443 = vld [vmem:[%s3 + $0xd8] sm:$0xff]
    %v444 = vld [vmem:[%s3 + $0xe0] sm:$0xff]
    %v445 = vld [vmem:[%s3 + $0xe8] sm:$0xff]
    %v446 = vld [vmem:[%s3 + $0xf0] sm:$0xff]
    %v447 = vld [vmem:[%s3 + $0xf8] sm:$0xff]
    %v448 = vld [vmem:[%s3 + $0x100] sm:$0xff]
    %v449 = vld [vmem:[%s3 + $0x108] sm:$0xff]
    %v450 = vld [vmem:[%s3 + $0x110] sm:$0xff]
    %v451 = vld [vmem:[%s3 + $0x118] sm:$0xff]
    %v452 = vld [vmem:[%s3 + $0x120] sm:$0xff]
    %v453 = vld [vmem:[%s3 + $0x128] sm:$0xff]
    %v454 = vld [vmem:[%s3 + $0x130] sm:$0xff]
    %v455 = vld [vmem:[%s3 + $0x138] sm:$0xff]
    %v456 = vld [vmem:[%s3 + $0x140] sm:$0xff]
    %v457 = vld [vmem:[%s3 + $0x148] sm:$0xff]
    %v458 = vld [vmem:[%s3 + $0x150] sm:$0xff]
    %v459 = vld [vmem:[%s3 + $0x158] sm:$0xff]
    %v460 = vld [vmem:[%s3 + $0x160] sm:$0xff]
    %v461 = vld [vmem:[%s3 + $0x168] sm:$0xff]
    %v462 = vld [vmem:[%s3 + $0x170] sm:$0xff]
    %v463 = vld [vmem:[%s3 + $0x178] sm:$0xff]
    %v464 = vld [vmem:[%s3 + $0x180] sm:$0xff]
    %v465 = vld [vmem:[%s3 + $0x188] sm:$0xff]
    %v466 = vld [vmem:[%s3 + $0x190] sm:$0xff]
    %v467 = vld [vmem:[%s3 + $0x198] sm:$0xff]
    %v468 = vld [vmem:[%s3 + $0x1a0] sm:$0xff]
    %v469 = vld [vmem:[%s3 + $0x1a8] sm:$0xff]
    %v470 = vld [vmem:[%s3 + $0x1b0] sm:$0xff]
    %v471 = vld [vmem:[%s3 + $0x1b8] sm:$0xff]
    %v472 = vld [vmem:[%s3 + $0x1c0] sm:$0xff]
    %v473 = vld [vmem:[%s3 + $0x1c8] sm:$0xff]
    %v474 = vld [vmem:[%s3 + $0x1d0] sm:$0xff]
    %v475 = vld [vmem:[%s3 + $0x1d8] sm:$0xff]
    %v476 = vld [vmem:[%s3 + $0x1e0] sm:$0xff]
    %v477 = vld [vmem:[%s3 + $0x1e8] sm:$0xff]
    %v478 = vld [vmem:[%s3 + $0x1f0] sm:$0xff]
    %v479 = vld [vmem:[%s3 + $0x1f8] sm:$0xff]
    %v480 = vld [vmem:[#allocation2] sm:$0xff]
    %v481 = vld [vmem:[#allocation3] sm:$0xff]
    %482 = vmatpush.msra.mxu0 %v476
    %483 = vmatpush.msra.mxu0 %v472
    %484 = vmatpush.msra.mxu0 %v468
    %485 = vmatpush.msra.mxu0 %v464
    %486 = vmatpush.msra.mxu0 %v460
    %487 = vmatpush.msra.mxu0 %v456
    %488 = vmatpush.msra.mxu0 %v452
    %489 = vmatpush.msra.mxu0 %v448
    %490 = vmatpush.msra.mxu0 %v444
    %491 = vmatpush.msra.mxu0 %v440
    %492 = vmatpush.msra.mxu0 %v436
    %493 = vmatpush.msra.mxu0 %v432
    %494 = vmatpush.msra.mxu0 %v428
    %495 = vmatpush.msra.mxu0 %v424
    %496 = vmatpush.msra.mxu0 %v420
    %497 = vmatpush.msra.mxu0 %v416
    %498 = vmatmul.f32.gmra.mxu0 %v480
    %v499 = vpop.f32.mrf.mxu0
    %v500 = vadd.f32 0.0, %v499
    %501 = vdwg.mxu0
    %502 = vmatpush.msra.mxu0 %v477
    %503 = vmatpush.msra.mxu0 %v473
    %504 = vmatpush.msra.mxu0 %v469
    %505 = vmatpush.msra.mxu0 %v465
    %506 = vmatpush.msra.mxu0 %v461
    %507 = vmatpush.msra.mxu0 %v457
    %508 = vmatpush.msra.mxu0 %v453
    %509 = vmatpush.msra.mxu0 %v449
    %510 = vmatpush.msra.mxu0 %v445
    %511 = vmatpush.msra.mxu0 %v441
    %512 = vmatpush.msra.mxu0 %v437
    %513 = vmatpush.msra.mxu0 %v433
    %514 = vmatpush.msra.mxu0 %v429
    %515 = vmatpush.msra.mxu0 %v425
    %516 = vmatpush.msra.mxu0 %v421
    %517 = vmatpush.msra.mxu0 %v417
    %518 = vmatmul.f32.gmra.mxu0 %v480
    %v519 = vpop.f32.mrf.mxu0
    %v520 = vadd.f32 0.0, %v519
    %521 = vdwg.mxu0
    %522 = vmatpush.msra.mxu0 %v478
    %523 = vmatpush.msra.mxu0 %v474
    %524 = vmatpush.msra.mxu0 %v470
    %525 = vmatpush.msra.mxu0 %v466
    %526 = vmatpush.msra.mxu0 %v462
    %527 = vmatpush.msra.mxu0 %v458
    %528 = vmatpush.msra.mxu0 %v454
    %529 = vmatpush.msra.mxu0 %v450
    %530 = vmatpush.msra.mxu0 %v446
    %531 = vmatpush.msra.mxu0 %v442
    %532 = vmatpush.msra.mxu0 %v438
    %533 = vmatpush.msra.mxu0 %v434
    %534 = vmatpush.msra.mxu0 %v430
    %535 = vmatpush.msra.mxu0 %v426
    %536 = vmatpush.msra.mxu0 %v422
    %537 = vmatpush.msra.mxu0 %v418
    %538 = vmatmul.f32.gmra.mxu0 %v480
    %v539 = vpop.f32.mrf.mxu0
    %v540 = vadd.f32 0.0, %v539
    %541 = vdwg.mxu0
    %542 = vmatpush.msra.mxu0 %v479
    %543 = vmatpush.msra.mxu0 %v475
    %544 = vmatpush.msra.mxu0 %v471
    %545 = vmatpush.msra.mxu0 %v467
    %546 = vmatpush.msra.mxu0 %v463
    %547 = vmatpush.msra.mxu0 %v459
    %548 = vmatpush.msra.mxu0 %v455
    %549 = vmatpush.msra.mxu0 %v451
    %550 = vmatpush.msra.mxu0 %v447
    %551 = vmatpush.msra.mxu0 %v443
    %552 = vmatpush.msra.mxu0 %v439
    %553 = vmatpush.msra.mxu0 %v435
    %554 = vmatpush.msra.mxu0 %v431
    %555 = vmatpush.msra.mxu0 %v427
    %556 = vmatpush.msra.mxu0 %v423
    %557 = vmatpush.msra.mxu0 %v419
    %558 = vmatmul.f32.gmra.mxu0 %v480
    %v559 = vpop.f32.mrf.mxu0
    %v560 = vadd.f32 0.0, %v559
    %561 = vdwg.mxu0
    %v562 = vadd.f32 %v174, %v500
    %v563 = vadd.f32 %v239, %v520
    %v564 = vadd.f32 %v304, %v540
    %v565 = vadd.f32 %v369, %v560
    %v566 = vxor.u32 %v562, 2147483648
    %v567 = vmul.f32 %v566, 1.442695
    %v568 = vpow.pop %v567
    %v569 = vadd.f32 %v568, 1.0
    %v570 = vrcp.pop %v569
    %v571 = vmul.f32 %v569, %v570
    %v572 = vsub.f32 1.0, %v571
    %v573 = vmul.f32 %v570, %v572
    %v574 = vadd.f32 %v570, %v573
    %vm575 = vweird.f32 %v569
    %vm576 = vweird.f32 %v570
    %vm577 = vmor %vm575, %vm576
    %v578 = vsel %vm577, %v570, %v574
    %v579 = vand.u32 2147483647, %v569
    %vm580 = vcmp.eq.f32.partialorder %v579, 8.507059e+37
    %v581 = vand.u32 %v569, 2147483648
    %v582 = vor.u32 1.1754944e-38, %v581
    %v583 = vsel %vm580, %v582, %v578
    %v584 = vmul.f32 1.0, %v583
    %v585 = vxor.u32 %v563, 2147483648
    %v586 = vmul.f32 %v585, 1.442695
    %v587 = vpow.pop %v586
    %v588 = vadd.f32 %v587, 1.0
    %v589 = vrcp.pop %v588
    %v590 = vmul.f32 %v588, %v589
    %v591 = vsub.f32 1.0, %v590
    %v592 = vmul.f32 %v589, %v591
    %v593 = vadd.f32 %v589, %v592
    %vm594 = vweird.f32 %v588
    %vm595 = vweird.f32 %v589
    %vm596 = vmor %vm594, %vm595
    %v597 = vsel %vm596, %v589, %v593
    %v598 = vand.u32 2147483647, %v588
    %vm599 = vcmp.eq.f32.partialorder %v598, 8.507059e+37
    %v600 = vand.u32 %v588, 2147483648
    %v601 = vor.u32 1.1754944e-38, %v600
    %v602 = vsel %vm599, %v601, %v597
    %v603 = vmul.f32 1.0, %v602
    %v604 = vtanh.pop %v564
    %v605 = vxor.u32 %v565, 2147483648
    %v606 = vmul.f32 %v605, 1.442695
    %v607 = vpow.pop %v606
    %v608 = vadd.f32 %v607, 1.0
    %v609 = vrcp.pop %v608
    %v610 = vmul.f32 %v608, %v609
    %v611 = vsub.f32 1.0, %v610
    %v612 = vmul.f32 %v609, %v611
    %v613 = vadd.f32 %v609, %v612
    %vm614 = vweird.f32 %v608
    %vm615 = vweird.f32 %v609
    %vm616 = vmor %vm614, %vm615
    %v617 = vsel %vm616, %v609, %v613
    %v618 = vand.u32 2147483647, %v608
    %vm619 = vcmp.eq.f32.partialorder %v618, 8.507059e+37
    %v620 = vand.u32 %v608, 2147483648
    %v621 = vor.u32 1.1754944e-38, %v620
    %v622 = vsel %vm619, %v621, %v617
    %v623 = vmul.f32 1.0, %v622
    %v624 = vmul.f32 %v603, %v481
    %v625 = vmul.f32 %v584, %v604
    %v626 = vadd.f32 %v624, %v625
    %v627 = vtanh.pop %v626
    %v628 = vmul.f32 %v623, %v627
    %629 = vst [vmem:[%s6] sm:$0xff] %v628
    %v630 = vld [vmem:[%s5] sm:$0xff]
    %v631 = vstv %s48
    %v632 = vmul.f32 %v631, %v628
    %v633 = vadd.f32 %v630, %v632
    %634 = vst [vmem:[%s7] sm:$0xff] %v633
    %635 = vmatpush.msra.mxu0 %v476
    %636 = vmatpush.msra.mxu0 %v472
    %637 = vmatpush.msra.mxu0 %v468
    %638 = vmatpush.msra.mxu0 %v464
    %639 = vmatpush.msra.mxu0 %v460
    %640 = vmatpush.msra.mxu0 %v456
    %641 = vmatpush.msra.mxu0 %v452
    %642 = vmatpush.msra.mxu0 %v448
    %643 = vmatpush.msra.mxu0 %v444
    %644 = vmatpush.msra.mxu0 %v440
    %645 = vmatpush.msra.mxu0 %v436
    %646 = vmatpush.msra.mxu0 %v432
    %647 = vmatpush.msra.mxu0 %v428
    %648 = vmatpush.msra.mxu0 %v424
    %649 = vmatpush.msra.mxu0 %v420
    %650 = vmatpush.msra.mxu0 %v416
    %651 = vmatmul.f32.gmra.mxu0 %v628
    %v652 = vpop.f32.mrf.mxu0
    %v653 = vadd.f32 0.0, %v652
    %654 = vdwg.mxu0
    %655 = vmatpush.msra.mxu0 %v477
    %656 = vmatpush.msra.mxu0 %v473
    %657 = vmatpush.msra.mxu0 %v469
    %658 = vmatpush.msra.mxu0 %v465
    %659 = vmatpush.msra.mxu0 %v461
    %660 = vmatpush.msra.mxu0 %v457
    %661 = vmatpush.msra.mxu0 %v453
    %662 = vmatpush.msra.mxu0 %v449
    %663 = vmatpush.msra.mxu0 %v445
    %664 = vmatpush.msra.mxu0 %v441
    %665 = vmatpush.msra.mxu0 %v437
    %666 = vmatpush.msra.mxu0 %v433
    %667 = vmatpush.msra.mxu0 %v429
    %668 = vmatpush.msra.mxu0 %v425
    %669 = vmatpush.msra.mxu0 %v421
    %670 = vmatpush.msra.mxu0 %v417
    %671 = vmatmul.f32.gmra.mxu0 %v628
    %v672 = vpop.f32.mrf.mxu0
    %v673 = vadd.f32 0.0, %v672
    %674 = vdwg.mxu0
    %675 = vmatpush.msra.mxu0 %v478
    %676 = vmatpush.msra.mxu0 %v474
    %677 = vmatpush.msra.mxu0 %v470
    %678 = vmatpush.msra.mxu0 %v466
    %679 = vmatpush.msra.mxu0 %v462
    %680 = vmatpush.msra.mxu0 %v458
    %681 = vmatpush.msra.mxu0 %v454
    %682 = vmatpush.msra.mxu0 %v450
    %683 = vmatpush.msra.mxu0 %v446
    %684 = vmatpush.msra.mxu0 %v442
    %685 = vmatpush.msra.mxu0 %v438
    %686 = vmatpush.msra.mxu0 %v434
    %687 = vmatpush.msra.mxu0 %v430
    %688 = vmatpush.msra.mxu0 %v426
    %689 = vmatpush.msra.mxu0 %v422
    %690 = vmatpush.msra.mxu0 %v418
    %691 = vmatmul.f32.gmra.mxu0 %v628
    %v692 = vpop.f32.mrf.mxu0
    %v693 = vadd.f32 0.0, %v692
    %694 = vdwg.mxu0
    %695 = vmatpush.msra.mxu0 %v479
    %696 = vmatpush.msra.mxu0 %v475
    %697 = vmatpush.msra.mxu0 %v471
    %698 = vmatpush.msra.mxu0 %v467
    %699 = vmatpush.msra.mxu0 %v463
    %700 = vmatpush.msra.mxu0 %v459
    %701 = vmatpush.msra.mxu0 %v455
    %702 = vmatpush.msra.mxu0 %v451
    %703 = vmatpush.msra.mxu0 %v447
    %704 = vmatpush.msra.mxu0 %v443
    %705 = vmatpush.msra.mxu0 %v439
    %706 = vmatpush.msra.mxu0 %v435
    %707 = vmatpush.msra.mxu0 %v431
    %708 = vmatpush.msra.mxu0 %v427
    %709 = vmatpush.msra.mxu0 %v423
    %710 = vmatpush.msra.mxu0 %v419
    %711 = vmatmul.f32.gmra.mxu0 %v628
    %v712 = vpop.f32.mrf.mxu0
    %v713 = vadd.f32 0.0, %v712
    %714 = vdwg.mxu0
    %v715 = vadd.f32 %v177, %v653
    %v716 = vadd.f32 %v242, %v673
    %v717 = vadd.f32 %v307, %v693
    %v718 = vadd.f32 %v372, %v713
    %v719 = vxor.u32 %v715, 2147483648
    %v720 = vmul.f32 %v719, 1.442695
    %v721 = vpow.pop %v720
    %v722 = vadd.f32 %v721, 1.0
    %v723 = vrcp.pop %v722
    %v724 = vmul.f32 %v722, %v723
    %v725 = vsub.f32 1.0, %v724
    %v726 = vmul.f32 %v723, %v725
    %v727 = vadd.f32 %v723, %v726
    %vm728 = vweird.f32 %v722
    %vm729 = vweird.f32 %v723
    %vm730 = vmor %vm728, %vm729
    %v731 = vsel %vm730, %v723, %v727
    %v732 = vand.u32 2147483647, %v722
    %vm733 = vcmp.eq.f32.partialorder %v732, 8.507059e+37
    %v734 = vand.u32 %v722, 2147483648
    %v735 = vor.u32 1.1754944e-38, %v734
    %v736 = vsel %vm733, %v735, %v731
    %v737 = vmul.f32 1.0, %v736
    %v738 = vxor.u32 %v716, 2147483648
    %v739 = vmul.f32 %v738, 1.442695
    %v740 = vpow.pop %v739
    %v741 = vadd.f32 %v740, 1.0
    %v742 = vrcp.pop %v741
    %v743 = vmul.f32 %v741, %v742
    %v744 = vsub.f32 1.0, %v743
    %v745 = vmul.f32 %v742, %v744
    %v746 = vadd.f32 %v742, %v745
    %vm747 = vweird.f32 %v741
    %vm748 = vweird.f32 %v742
    %vm749 = vmor %vm747, %vm748
    %v750 = vsel %vm749, %v742, %v746
    %v751 = vand.u32 2147483647, %v741
    %vm752 = vcmp.eq.f32.partialorder %v751, 8.507059e+37
    %v753 = vand.u32 %v741, 2147483648
    %v754 = vor.u32 1.1754944e-38, %v753
    %v755 = vsel %vm752, %v754, %v750
    %v756 = vmul.f32 1.0, %v755
    %v757 = vtanh.pop %v717
    %v758 = vxor.u32 %v718, 2147483648
    %v759 = vmul.f32 %v758, 1.442695
    %v760 = vpow.pop %v759
    %v761 = vadd.f32 %v760, 1.0
    %v762 = vrcp.pop %v761
    %v763 = vmul.f32 %v761, %v762
    %v764 = vsub.f32 1.0, %v763
    %v765 = vmul.f32 %v762, %v764
    %v766 = vadd.f32 %v762, %v765
    %vm767 = vweird.f32 %v761
    %vm768 = vweird.f32 %v762
    %vm769 = vmor %vm767, %vm768
    %v770 = vsel %vm769, %v762, %v766
    %v771 = vand.u32 2147483647, %v761
    %vm772 = vcmp.eq.f32.partialorder %v771, 8.507059e+37
    %v773 = vand.u32 %v761, 2147483648
    %v774 = vor.u32 1.1754944e-38, %v773
    %v775 = vsel %vm772, %v774, %v770
    %v776 = vmul.f32 1.0, %v775
    %v777 = vmul.f32 %v756, %v626
    %v778 = vmul.f32 %v737, %v757
    %v779 = vadd.f32 %v777, %v778
    %v780 = vtanh.pop %v779
    %v781 = vmul.f32 %v776, %v780
    %782 = vst [vmem:[%s6 + $0x8] sm:$0xff] %v781
    %v783 = vld [vmem:[%s5 + $0x8] sm:$0xff]
    %v784 = vmul.f32 %v631, %v781
    %v785 = vadd.f32 %v783, %v784
    %786 = vst [vmem:[%s7 + $0x8] sm:$0xff] %v785
    %787 = vmatpush.msra.mxu0 %v476
    %788 = vmatpush.msra.mxu0 %v472
    %789 = vmatpush.msra.mxu0 %v468
    %790 = vmatpush.msra.mxu0 %v464
    %791 = vmatpush.msra.mxu0 %v460
    %792 = vmatpush.msra.mxu0 %v456
    %793 = vmatpush.msra.mxu0 %v452
    %794 = vmatpush.msra.mxu0 %v448
    %795 = vmatpush.msra.mxu0 %v444
    %796 = vmatpush.msra.mxu0 %v440
    %797 = vmatpush.msra.mxu0 %v436
    %798 = vmatpush.msra.mxu0 %v432
    %799 = vmatpush.msra.mxu0 %v428
    %800 = vmatpush.msra.mxu0 %v424
    %801 = vmatpush.msra.mxu0 %v420
    %802 = vmatpush.msra.mxu0 %v416
    %803 = vmatmul.f32.gmra.mxu0 %v781
    %v804 = vpop.f32.mrf.mxu0
    %v805 = vadd.f32 0.0, %v804
    %806 = vdwg.mxu0
    %807 = vmatpush.msra.mxu0 %v477
    %808 = vmatpush.msra.mxu0 %v473
    %809 = vmatpush.msra.mxu0 %v469
    %810 = vmatpush.msra.mxu0 %v465
    %811 = vmatpush.msra.mxu0 %v461
    %812 = vmatpush.msra.mxu0 %v457
    %813 = vmatpush.msra.mxu0 %v453
    %814 = vmatpush.msra.mxu0 %v449
    %815 = vmatpush.msra.mxu0 %v445
    %816 = vmatpush.msra.mxu0 %v441
    %817 = vmatpush.msra.mxu0 %v437
    %818 = vmatpush.msra.mxu0 %v433
    %819 = vmatpush.msra.mxu0 %v429
    %820 = vmatpush.msra.mxu0 %v425
    %821 = vmatpush.msra.mxu0 %v421
    %822 = vmatpush.msra.mxu0 %v417
    %823 = vmatmul.f32.gmra.mxu0 %v781
    %v824 = vpop.f32.mrf.mxu0
    %v825 = vadd.f32 0.0, %v824
    %826 = vdwg.mxu0
    %827 = vmatpush.msra.mxu0 %v478
    %828 = vmatpush.msra.mxu0 %v474
    %829 = vmatpush.msra.mxu0 %v470
    %830 = vmatpush.msra.mxu0 %v466
    %831 = vmatpush.msra.mxu0 %v462
    %832 = vmatpush.msra.mxu0 %v458
    %833 = vmatpush.msra.mxu0 %v454
    %834 = vmatpush.msra.mxu0 %v450
    %835 = vmatpush.msra.mxu0 %v446
    %836 = vmatpush.msra.mxu0 %v442
    %837 = vmatpush.msra.mxu0 %v438
    %838 = vmatpush.msra.mxu0 %v434
    %839 = vmatpush.msra.mxu0 %v430
    %840 = vmatpush.msra.mxu0 %v426
    %841 = vmatpush.msra.mxu0 %v422
    %842 = vmatpush.msra.mxu0 %v418
    %843 = vmatmul.f32.gmra.mxu0 %v781
    %v844 = vpop.f32.mrf.mxu0
    %v845 = vadd.f32 0.0, %v844
    %846 = vdwg.mxu0
    %847 = vmatpush.msra.mxu0 %v479
    %848 = vmatpush.msra.mxu0 %v475
    %849 = vmatpush.msra.mxu0 %v471
    %850 = vmatpush.msra.mxu0 %v467
    %851 = vmatpush.msra.mxu0 %v463
    %852 = vmatpush.msra.mxu0 %v459
    %853 = vmatpush.msra.mxu0 %v455
    %854 = vmatpush.msra.mxu0 %v451
    %855 = vmatpush.msra.mxu0 %v447
    %856 = vmatpush.msra.mxu0 %v443
    %857 = vmatpush.msra.mxu0 %v439
    %858 = vmatpush.msra.mxu0 %v435
    %859 = vmatpush.msra.mxu0 %v431
    %860 = vmatpush.msra.mxu0 %v427
    %861 = vmatpush.msra.mxu0 %v423
    %862 = vmatpush.msra.mxu0 %v419
    %863 = vmatmul.f32.gmra.mxu0 %v781
    %v864 = vpop.f32.mrf.mxu0
    %v865 = vadd.f32 0.0, %v864
    %866 = vdwg.mxu0
    %v867 = vadd.f32 %v180, %v805
    %v868 = vadd.f32 %v245, %v825
    %v869 = vadd.f32 %v310, %v845
    %v870 = vadd.f32 %v375, %v865
    %v871 = vxor.u32 %v867, 2147483648
    %v872 = vmul.f32 %v871, 1.442695
    %v873 = vpow.pop %v872
    %v874 = vadd.f32 %v873, 1.0
    %v875 = vrcp.pop %v874
    %v876 = vmul.f32 %v874, %v875
    %v877 = vsub.f32 1.0, %v876
    %v878 = vmul.f32 %v875, %v877
    %v879 = vadd.f32 %v875, %v878
    %vm880 = vweird.f32 %v874
    %vm881 = vweird.f32 %v875
    %vm882 = vmor %vm880, %vm881
    %v883 = vsel %vm882, %v875, %v879
    %v884 = vand.u32 2147483647, %v874
    %vm885 = vcmp.eq.f32.partialorder %v884, 8.507059e+37
    %v886 = vand.u32 %v874, 2147483648
    %v887 = vor.u32 1.1754944e-38, %v886
    %v888 = vsel %vm885, %v887, %v883
    %v889 = vmul.f32 1.0, %v888
    %v890 = vxor.u32 %v868, 2147483648
    %v891 = vmul.f32 %v890, 1.442695
    %v892 = vpow.pop %v891
    %v893 = vadd.f32 %v892, 1.0
    %v894 = vrcp.pop %v893
    %v895 = vmul.f32 %v893, %v894
    %v896 = vsub.f32 1.0, %v895
    %v897 = vmul.f32 %v894, %v896
    %v898 = vadd.f32 %v894, %v897
    %vm899 = vweird.f32 %v893
    %vm900 = vweird.f32 %v894
    %vm901 = vmor %vm899, %vm900
    %v902 = vsel %vm901, %v894, %v898
    %v903 = vand.u32 2147483647, %v893
    %vm904 = vcmp.eq.f32.partialorder %v903, 8.507059e+37
    %v905 = vand.u32 %v893, 2147483648
    %v906 = vor.u32 1.1754944e-38, %v905
    %v907 = vsel %vm904, %v906, %v902
    %v908 = vmul.f32 1.0, %v907
    %v909 = vtanh.pop %v869
    %v910 = vxor.u32 %v870, 2147483648
    %v911 = vmul.f32 %v910, 1.442695
    %v912 = vpow.pop %v911
    %v913 = vadd.f32 %v912, 1.0
    %v914 = vrcp.pop %v913
    %v915 = vmul.f32 %v913, %v914
    %v916 = vsub.f32 1.0, %v915
    %v917 = vmul.f32 %v914, %v916
    %v918 = vadd.f32 %v914, %v917
    %vm919 = vweird.f32 %v913
    %vm920 = vweird.f32 %v914
    %vm921 = vmor %vm919, %vm920
    %v922 = vsel %vm921, %v914, %v918
    %v923 = vand.u32 2147483647, %v913
    %vm924 = vcmp.eq.f32.partialorder %v923, 8.507059e+37
    %v925 = vand.u32 %v913, 2147483648
    %v926 = vor.u32 1.1754944e-38, %v925
    %v927 = vsel %vm924, %v926, %v922
    %v928 = vmul.f32 1.0, %v927
    %v929 = vmul.f32 %v908, %v779
    %v930 = vmul.f32 %v889, %v909
    %v931 = vadd.f32 %v929, %v930
    %v932 = vtanh.pop %v931
    %v933 = vmul.f32 %v928, %v932
    %934 = vst [vmem:[%s6 + $0x10] sm:$0xff] %v933
    %v935 = vld [vmem:[%s5 + $0x10] sm:$0xff]
    %v936 = vmul.f32 %v631, %v933
    %v937 = vadd.f32 %v935, %v936
    %938 = vst [vmem:[%s7 + $0x10] sm:$0xff] %v937
    %939 = vmatpush.msra.mxu0 %v476
    %940 = vmatpush.msra.mxu0 %v472
    %941 = vmatpush.msra.mxu0 %v468
    %942 = vmatpush.msra.mxu0 %v464
    %943 = vmatpush.msra.mxu0 %v460
    %944 = vmatpush.msra.mxu0 %v456
    %945 = vmatpush.msra.mxu0 %v452
    %946 = vmatpush.msra.mxu0 %v448
    %947 = vmatpush.msra.mxu0 %v444
    %948 = vmatpush.msra.mxu0 %v440
    %949 = vmatpush.msra.mxu0 %v436
    %950 = vmatpush.msra.mxu0 %v432
    %951 = vmatpush.msra.mxu0 %v428
    %952 = vmatpush.msra.mxu0 %v424
    %953 = vmatpush.msra.mxu0 %v420
    %954 = vmatpush.msra.mxu0 %v416
    %955 = vmatmul.f32.gmra.mxu0 %v933
    %v956 = vpop.f32.mrf.mxu0
    %v957 = vadd.f32 0.0, %v956
    %958 = vdwg.mxu0
    %959 = vmatpush.msra.mxu0 %v477
    %960 = vmatpush.msra.mxu0 %v473
    %961 = vmatpush.msra.mxu0 %v469
    %962 = vmatpush.msra.mxu0 %v465
    %963 = vmatpush.msra.mxu0 %v461
    %964 = vmatpush.msra.mxu0 %v457
    %965 = vmatpush.msra.mxu0 %v453
    %966 = vmatpush.msra.mxu0 %v449
    %967 = vmatpush.msra.mxu0 %v445
    %968 = vmatpush.msra.mxu0 %v441
    %969 = vmatpush.msra.mxu0 %v437
    %970 = vmatpush.msra.mxu0 %v433
    %971 = vmatpush.msra.mxu0 %v429
    %972 = vmatpush.msra.mxu0 %v425
    %973 = vmatpush.msra.mxu0 %v421
    %974 = vmatpush.msra.mxu0 %v417
    %975 = vmatmul.f32.gmra.mxu0 %v933
    %v976 = vpop.f32.mrf.mxu0
    %v977 = vadd.f32 0.0, %v976
    %978 = vdwg.mxu0
    %979 = vmatpush.msra.mxu0 %v478
    %980 = vmatpush.msra.mxu0 %v474
    %981 = vmatpush.msra.mxu0 %v470
    %982 = vmatpush.msra.mxu0 %v466
    %983 = vmatpush.msra.mxu0 %v462
    %984 = vmatpush.msra.mxu0 %v458
    %985 = vmatpush.msra.mxu0 %v454
    %986 = vmatpush.msra.mxu0 %v450
    %987 = vmatpush.msra.mxu0 %v446
    %988 = vmatpush.msra.mxu0 %v442
    %989 = vmatpush.msra.mxu0 %v438
    %990 = vmatpush.msra.mxu0 %v434
    %991 = vmatpush.msra.mxu0 %v430
    %992 = vmatpush.msra.mxu0 %v426
    %993 = vmatpush.msra.mxu0 %v422
    %994 = vmatpush.msra.mxu0 %v418
    %995 = vmatmul.f32.gmra.mxu0 %v933
    %v996 = vpop.f32.mrf.mxu0
    %v997 = vadd.f32 0.0, %v996
    %998 = vdwg.mxu0
    %999 = vmatpush.msra.mxu0 %v479
    %1000 = vmatpush.msra.mxu0 %v475
    %1001 = vmatpush.msra.mxu0 %v471
    %1002 = vmatpush.msra.mxu0 %v467
    %1003 = vmatpush.msra.mxu0 %v463
    %1004 = vmatpush.msra.mxu0 %v459
    %1005 = vmatpush.msra.mxu0 %v455
    %1006 = vmatpush.msra.mxu0 %v451
    %1007 = vmatpush.msra.mxu0 %v447
    %1008 = vmatpush.msra.mxu0 %v443
    %1009 = vmatpush.msra.mxu0 %v439
    %1010 = vmatpush.msra.mxu0 %v435
    %1011 = vmatpush.msra.mxu0 %v431
    %1012 = vmatpush.msra.mxu0 %v427
    %1013 = vmatpush.msra.mxu0 %v423
    %1014 = vmatpush.msra.mxu0 %v419
    %1015 = vmatmul.f32.gmra.mxu0 %v933
    %v1016 = vpop.f32.mrf.mxu0
    %v1017 = vadd.f32 0.0, %v1016
    %1018 = vdwg.mxu0
    %v1019 = vadd.f32 %v183, %v957
    %v1020 = vadd.f32 %v248, %v977
    %v1021 = vadd.f32 %v313, %v997
    %v1022 = vadd.f32 %v378, %v1017
    %v1023 = vxor.u32 %v1019, 2147483648
    %v1024 = vmul.f32 %v1023, 1.442695
    %v1025 = vpow.pop %v1024
    %v1026 = vadd.f32 %v1025, 1.0
    %v1027 = vrcp.pop %v1026
    %v1028 = vmul.f32 %v1026, %v1027
    %v1029 = vsub.f32 1.0, %v1028
    %v1030 = vmul.f32 %v1027, %v1029
    %v1031 = vadd.f32 %v1027, %v1030
    %vm1032 = vweird.f32 %v1026
    %vm1033 = vweird.f32 %v1027
    %vm1034 = vmor %vm1032, %vm1033
    %v1035 = vsel %vm1034, %v1027, %v1031
    %v1036 = vand.u32 2147483647, %v1026
    %vm1037 = vcmp.eq.f32.partialorder %v1036, 8.507059e+37
    %v1038 = vand.u32 %v1026, 2147483648
    %v1039 = vor.u32 1.1754944e-38, %v1038
    %v1040 = vsel %vm1037, %v1039, %v1035
    %v1041 = vmul.f32 1.0, %v1040
    %v1042 = vxor.u32 %v1020, 2147483648
    %v1043 = vmul.f32 %v1042, 1.442695
    %v1044 = vpow.pop %v1043
    %v1045 = vadd.f32 %v1044, 1.0
    %v1046 = vrcp.pop %v1045
    %v1047 = vmul.f32 %v1045, %v1046
    %v1048 = vsub.f32 1.0, %v1047
    %v1049 = vmul.f32 %v1046, %v1048
    %v1050 = vadd.f32 %v1046, %v1049
    %vm1051 = vweird.f32 %v1045
    %vm1052 = vweird.f32 %v1046
    %vm1053 = vmor %vm1051, %vm1052
    %v1054 = vsel %vm1053, %v1046, %v1050
    %v1055 = vand.u32 2147483647, %v1045
    %vm1056 = vcmp.eq.f32.partialorder %v1055, 8.507059e+37
    %v1057 = vand.u32 %v1045, 2147483648
    %v1058 = vor.u32 1.1754944e-38, %v1057
    %v1059 = vsel %vm1056, %v1058, %v1054
    %v1060 = vmul.f32 1.0, %v1059
    %v1061 = vtanh.pop %v1021
    %v1062 = vxor.u32 %v1022, 2147483648
    %v1063 = vmul.f32 %v1062, 1.442695
    %v1064 = vpow.pop %v1063
    %v1065 = vadd.f32 %v1064, 1.0
    %v1066 = vrcp.pop %v1065
    %v1067 = vmul.f32 %v1065, %v1066
    %v1068 = vsub.f32 1.0, %v1067
    %v1069 = vmul.f32 %v1066, %v1068
    %v1070 = vadd.f32 %v1066, %v1069
    %vm1071 = vweird.f32 %v1065
    %vm1072 = vweird.f32 %v1066
    %vm1073 = vmor %vm1071, %vm1072
    %v1074 = vsel %vm1073, %v1066, %v1070
    %v1075 = vand.u32 2147483647, %v1065
    %vm1076 = vcmp.eq.f32.partialorder %v1075, 8.507059e+37
    %v1077 = vand.u32 %v1065, 2147483648
    %v1078 = vor.u32 1.1754944e-38, %v1077
    %v1079 = vsel %vm1076, %v1078, %v1074
    %v1080 = vmul.f32 1.0, %v1079
    %v1081 = vmul.f32 %v1060, %v931
    %v1082 = vmul.f32 %v1041, %v1061
    %v1083 = vadd.f32 %v1081, %v1082
    %v1084 = vtanh.pop %v1083
    %v1085 = vmul.f32 %v1080, %v1084
    %1086 = vst [vmem:[%s6 + $0x18] sm:$0xff] %v1085
    %v1087 = vld [vmem:[%s5 + $0x18] sm:$0xff]
    %v1088 = vmul.f32 %v631, %v1085
    %v1089 = vadd.f32 %v1087, %v1088
    %1090 = vst [vmem:[%s7 + $0x18] sm:$0xff] %v1089
    %1091 = vmatpush.msra.mxu0 %v476
    %1092 = vmatpush.msra.mxu0 %v472
    %1093 = vmatpush.msra.mxu0 %v468
    %1094 = vmatpush.msra.mxu0 %v464
    %1095 = vmatpush.msra.mxu0 %v460
    %1096 = vmatpush.msra.mxu0 %v456
    %1097 = vmatpush.msra.mxu0 %v452
    %1098 = vmatpush.msra.mxu0 %v448
    %1099 = vmatpush.msra.mxu0 %v444
    %1100 = vmatpush.msra.mxu0 %v440
    %1101 = vmatpush.msra.mxu0 %v436
    %1102 = vmatpush.msra.mxu0 %v432
    %1103 = vmatpush.msra.mxu0 %v428
    %1104 = vmatpush.msra.mxu0 %v424
    %1105 = vmatpush.msra.mxu0 %v420
    %1106 = vmatpush.msra.mxu0 %v416
    %1107 = vmatmul.f32.gmra.mxu0 %v1085
    %v1108 = vpop.f32.mrf.mxu0
    %v1109 = vadd.f32 0.0, %v1108
    %1110 = vdwg.mxu0
    %1111 = vmatpush.msra.mxu0 %v477
    %1112 = vmatpush.msra.mxu0 %v473
    %1113 = vmatpush.msra.mxu0 %v469
    %1114 = vmatpush.msra.mxu0 %v465
    %1115 = vmatpush.msra.mxu0 %v461
    %1116 = vmatpush.msra.mxu0 %v457
    %1117 = vmatpush.msra.mxu0 %v453
    %1118 = vmatpush.msra.mxu0 %v449
    %1119 = vmatpush.msra.mxu0 %v445
    %1120 = vmatpush.msra.mxu0 %v441
    %1121 = vmatpush.msra.mxu0 %v437
    %1122 = vmatpush.msra.mxu0 %v433
    %1123 = vmatpush.msra.mxu0 %v429
    %1124 = vmatpush.msra.mxu0 %v425
    %1125 = vmatpush.msra.mxu0 %v421
    %1126 = vmatpush.msra.mxu0 %v417
    %1127 = vmatmul.f32.gmra.mxu0 %v1085
    %v1128 = vpop.f32.mrf.mxu0
    %v1129 = vadd.f32 0.0, %v1128
    %1130 = vdwg.mxu0
    %1131 = vmatpush.msra.mxu0 %v478
    %1132 = vmatpush.msra.mxu0 %v474
    %1133 = vmatpush.msra.mxu0 %v470
    %1134 = vmatpush.msra.mxu0 %v466
    %1135 = vmatpush.msra.mxu0 %v462
    %1136 = vmatpush.msra.mxu0 %v458
    %1137 = vmatpush.msra.mxu0 %v454
    %1138 = vmatpush.msra.mxu0 %v450
    %1139 = vmatpush.msra.mxu0 %v446
    %1140 = vmatpush.msra.mxu0 %v442
    %1141 = vmatpush.msra.mxu0 %v438
    %1142 = vmatpush.msra.mxu0 %v434
    %1143 = vmatpush.msra.mxu0 %v430
    %1144 = vmatpush.msra.mxu0 %v426
    %1145 = vmatpush.msra.mxu0 %v422
    %1146 = vmatpush.msra.mxu0 %v418
    %1147 = vmatmul.f32.gmra.mxu0 %v1085
    %v1148 = vpop.f32.mrf.mxu0
    %v1149 = vadd.f32 0.0, %v1148
    %1150 = vdwg.mxu0
    %1151 = vmatpush.msra.mxu0 %v479
    %1152 = vmatpush.msra.mxu0 %v475
    %1153 = vmatpush.msra.mxu0 %v471
    %1154 = vmatpush.msra.mxu0 %v467
    %1155 = vmatpush.msra.mxu0 %v463
    %1156 = vmatpush.msra.mxu0 %v459
    %1157 = vmatpush.msra.mxu0 %v455
    %1158 = vmatpush.msra.mxu0 %v451
    %1159 = vmatpush.msra.mxu0 %v447
    %1160 = vmatpush.msra.mxu0 %v443
    %1161 = vmatpush.msra.mxu0 %v439
    %1162 = vmatpush.msra.mxu0 %v435
    %1163 = vmatpush.msra.mxu0 %v431
    %1164 = vmatpush.msra.mxu0 %v427
    %1165 = vmatpush.msra.mxu0 %v423
    %1166 = vmatpush.msra.mxu0 %v419
    %1167 = vmatmul.f32.gmra.mxu0 %v1085
    %v1168 = vpop.f32.mrf.mxu0
    %v1169 = vadd.f32 0.0, %v1168
    %1170 = vdwg.mxu0
    %v1171 = vadd.f32 %v186, %v1109
    %v1172 = vadd.f32 %v251, %v1129
    %v1173 = vadd.f32 %v316, %v1149
    %v1174 = vadd.f32 %v381, %v1169
    %v1175 = vxor.u32 %v1171, 2147483648
    %v1176 = vmul.f32 %v1175, 1.442695
    %v1177 = vpow.pop %v1176
    %v1178 = vadd.f32 %v1177, 1.0
    %v1179 = vrcp.pop %v1178
    %v1180 = vmul.f32 %v1178, %v1179
    %v1181 = vsub.f32 1.0, %v1180
    %v1182 = vmul.f32 %v1179, %v1181
    %v1183 = vadd.f32 %v1179, %v1182
    %vm1184 = vweird.f32 %v1178
    %vm1185 = vweird.f32 %v1179
    %vm1186 = vmor %vm1184, %vm1185
    %v1187 = vsel %vm1186, %v1179, %v1183
    %v1188 = vand.u32 2147483647, %v1178
    %vm1189 = vcmp.eq.f32.partialorder %v1188, 8.507059e+37
    %v1190 = vand.u32 %v1178, 2147483648
    %v1191 = vor.u32 1.1754944e-38, %v1190
    %v1192 = vsel %vm1189, %v1191, %v1187
    %v1193 = vmul.f32 1.0, %v1192
    %v1194 = vxor.u32 %v1172, 2147483648
    %v1195 = vmul.f32 %v1194, 1.442695
    %v1196 = vpow.pop %v1195
    %v1197 = vadd.f32 %v1196, 1.0
    %v1198 = vrcp.pop %v1197
    %v1199 = vmul.f32 %v1197, %v1198
    %v1200 = vsub.f32 1.0, %v1199
    %v1201 = vmul.f32 %v1198, %v1200
    %v1202 = vadd.f32 %v1198, %v1201
    %vm1203 = vweird.f32 %v1197
    %vm1204 = vweird.f32 %v1198
    %vm1205 = vmor %vm1203, %vm1204
    %v1206 = vsel %vm1205, %v1198, %v1202
    %v1207 = vand.u32 2147483647, %v1197
    %vm1208 = vcmp.eq.f32.partialorder %v1207, 8.507059e+37
    %v1209 = vand.u32 %v1197, 2147483648
    %v1210 = vor.u32 1.1754944e-38, %v1209
    %v1211 = vsel %vm1208, %v1210, %v1206
    %v1212 = vmul.f32 1.0, %v1211
    %v1213 = vtanh.pop %v1173
    %v1214 = vxor.u32 %v1174, 2147483648
    %v1215 = vmul.f32 %v1214, 1.442695
    %v1216 = vpow.pop %v1215
    %v1217 = vadd.f32 %v1216, 1.0
    %v1218 = vrcp.pop %v1217
    %v1219 = vmul.f32 %v1217, %v1218
    %v1220 = vsub.f32 1.0, %v1219
    %v1221 = vmul.f32 %v1218, %v1220
    %v1222 = vadd.f32 %v1218, %v1221
    %vm1223 = vweird.f32 %v1217
    %vm1224 = vweird.f32 %v1218
    %vm1225 = vmor %vm1223, %vm1224
    %v1226 = vsel %vm1225, %v1218, %v1222
    %v1227 = vand.u32 2147483647, %v1217
    %vm1228 = vcmp.eq.f32.partialorder %v1227, 8.507059e+37
    %v1229 = vand.u32 %v1217, 2147483648
    %v1230 = vor.u32 1.1754944e-38, %v1229
    %v1231 = vsel %vm1228, %v1230, %v1226
    %v1232 = vmul.f32 1.0, %v1231
    %v1233 = vmul.f32 %v1212, %v1083
    %v1234 = vmul.f32 %v1193, %v1213
    %v1235 = vadd.f32 %v1233, %v1234
    %v1236 = vtanh.pop %v1235
    %v1237 = vmul.f32 %v1232, %v1236
    %1238 = vst [vmem:[%s6 + $0x20] sm:$0xff] %v1237
    %v1239 = vld [vmem:[%s5 + $0x20] sm:$0xff]
    %v1240 = vmul.f32 %v631, %v1237
    %v1241 = vadd.f32 %v1239, %v1240
    %1242 = vst [vmem:[%s7 + $0x20] sm:$0xff] %v1241
    %1243 = vmatpush.msra.mxu0 %v476
    %1244 = vmatpush.msra.mxu0 %v472
    %1245 = vmatpush.msra.mxu0 %v468
    %1246 = vmatpush.msra.mxu0 %v464
    %1247 = vmatpush.msra.mxu0 %v460
    %1248 = vmatpush.msra.mxu0 %v456
    %1249 = vmatpush.msra.mxu0 %v452
    %1250 = vmatpush.msra.mxu0 %v448
    %1251 = vmatpush.msra.mxu0 %v444
    %1252 = vmatpush.msra.mxu0 %v440
    %1253 = vmatpush.msra.mxu0 %v436
    %1254 = vmatpush.msra.mxu0 %v432
    %1255 = vmatpush.msra.mxu0 %v428
    %1256 = vmatpush.msra.mxu0 %v424
    %1257 = vmatpush.msra.mxu0 %v420
    %1258 = vmatpush.msra.mxu0 %v416
    %1259 = vmatmul.f32.gmra.mxu0 %v1237
    %v1260 = vpop.f32.mrf.mxu0
    %v1261 = vadd.f32 0.0, %v1260
    %1262 = vdwg.mxu0
    %1263 = vmatpush.msra.mxu0 %v477
    %1264 = vmatpush.msra.mxu0 %v473
    %1265 = vmatpush.msra.mxu0 %v469
    %1266 = vmatpush.msra.mxu0 %v465
    %1267 = vmatpush.msra.mxu0 %v461
    %1268 = vmatpush.msra.mxu0 %v457
    %1269 = vmatpush.msra.mxu0 %v453
    %1270 = vmatpush.msra.mxu0 %v449
    %1271 = vmatpush.msra.mxu0 %v445
    %1272 = vmatpush.msra.mxu0 %v441
    %1273 = vmatpush.msra.mxu0 %v437
    %1274 = vmatpush.msra.mxu0 %v433
    %1275 = vmatpush.msra.mxu0 %v429
    %1276 = vmatpush.msra.mxu0 %v425
    %1277 = vmatpush.msra.mxu0 %v421
    %1278 = vmatpush.msra.mxu0 %v417
    %1279 = vmatmul.f32.gmra.mxu0 %v1237
    %v1280 = vpop.f32.mrf.mxu0
    %v1281 = vadd.f32 0.0, %v1280
    %1282 = vdwg.mxu0
    %1283 = vmatpush.msra.mxu0 %v478
    %1284 = vmatpush.msra.mxu0 %v474
    %1285 = vmatpush.msra.mxu0 %v470
    %1286 = vmatpush.msra.mxu0 %v466
    %1287 = vmatpush.msra.mxu0 %v462
    %1288 = vmatpush.msra.mxu0 %v458
    %1289 = vmatpush.msra.mxu0 %v454
    %1290 = vmatpush.msra.mxu0 %v450
    %1291 = vmatpush.msra.mxu0 %v446
    %1292 = vmatpush.msra.mxu0 %v442
    %1293 = vmatpush.msra.mxu0 %v438
    %1294 = vmatpush.msra.mxu0 %v434
    %1295 = vmatpush.msra.mxu0 %v430
    %1296 = vmatpush.msra.mxu0 %v426
    %1297 = vmatpush.msra.mxu0 %v422
    %1298 = vmatpush.msra.mxu0 %v418
    %1299 = vmatmul.f32.gmra.mxu0 %v1237
    %v1300 = vpop.f32.mrf.mxu0
    %v1301 = vadd.f32 0.0, %v1300
    %1302 = vdwg.mxu0
    %1303 = vmatpush.msra.mxu0 %v479
    %1304 = vmatpush.msra.mxu0 %v475
    %1305 = vmatpush.msra.mxu0 %v471
    %1306 = vmatpush.msra.mxu0 %v467
    %1307 = vmatpush.msra.mxu0 %v463
    %1308 = vmatpush.msra.mxu0 %v459
    %1309 = vmatpush.msra.mxu0 %v455
    %1310 = vmatpush.msra.mxu0 %v451
    %1311 = vmatpush.msra.mxu0 %v447
    %1312 = vmatpush.msra.mxu0 %v443
    %1313 = vmatpush.msra.mxu0 %v439
    %1314 = vmatpush.msra.mxu0 %v435
    %1315 = vmatpush.msra.mxu0 %v431
    %1316 = vmatpush.msra.mxu0 %v427
    %1317 = vmatpush.msra.mxu0 %v423
    %1318 = vmatpush.msra.mxu0 %v419
    %1319 = vmatmul.f32.gmra.mxu0 %v1237
    %v1320 = vpop.f32.mrf.mxu0
    %v1321 = vadd.f32 0.0, %v1320
    %1322 = vdwg.mxu0
    %v1323 = vadd.f32 %v189, %v1261
    %v1324 = vadd.f32 %v254, %v1281
    %v1325 = vadd.f32 %v319, %v1301
    %v1326 = vadd.f32 %v384, %v1321
    %v1327 = vxor.u32 %v1323, 2147483648
    %v1328 = vmul.f32 %v1327, 1.442695
    %v1329 = vpow.pop %v1328
    %v1330 = vadd.f32 %v1329, 1.0
    %v1331 = vrcp.pop %v1330
    %v1332 = vmul.f32 %v1330, %v1331
    %v1333 = vsub.f32 1.0, %v1332
    %v1334 = vmul.f32 %v1331, %v1333
    %v1335 = vadd.f32 %v1331, %v1334
    %vm1336 = vweird.f32 %v1330
    %vm1337 = vweird.f32 %v1331
    %vm1338 = vmor %vm1336, %vm1337
    %v1339 = vsel %vm1338, %v1331, %v1335
    %v1340 = vand.u32 2147483647, %v1330
    %vm1341 = vcmp.eq.f32.partialorder %v1340, 8.507059e+37
    %v1342 = vand.u32 %v1330, 2147483648
    %v1343 = vor.u32 1.1754944e-38, %v1342
    %v1344 = vsel %vm1341, %v1343, %v1339
    %v1345 = vmul.f32 1.0, %v1344
    %v1346 = vxor.u32 %v1324, 2147483648
    %v1347 = vmul.f32 %v1346, 1.442695
    %v1348 = vpow.pop %v1347
    %v1349 = vadd.f32 %v1348, 1.0
    %v1350 = vrcp.pop %v1349
    %v1351 = vmul.f32 %v1349, %v1350
    %v1352 = vsub.f32 1.0, %v1351
    %v1353 = vmul.f32 %v1350, %v1352
    %v1354 = vadd.f32 %v1350, %v1353
    %vm1355 = vweird.f32 %v1349
    %vm1356 = vweird.f32 %v1350
    %vm1357 = vmor %vm1355, %vm1356
    %v1358 = vsel %vm1357, %v1350, %v1354
    %v1359 = vand.u32 2147483647, %v1349
    %vm1360 = vcmp.eq.f32.partialorder %v1359, 8.507059e+37
    %v1361 = vand.u32 %v1349, 2147483648
    %v1362 = vor.u32 1.1754944e-38, %v1361
    %v1363 = vsel %vm1360, %v1362, %v1358
    %v1364 = vmul.f32 1.0, %v1363
    %v1365 = vtanh.pop %v1325
    %v1366 = vxor.u32 %v1326, 2147483648
    %v1367 = vmul.f32 %v1366, 1.442695
    %v1368 = vpow.pop %v1367
    %v1369 = vadd.f32 %v1368, 1.0
    %v1370 = vrcp.pop %v1369
    %v1371 = vmul.f32 %v1369, %v1370
    %v1372 = vsub.f32 1.0, %v1371
    %v1373 = vmul.f32 %v1370, %v1372
    %v1374 = vadd.f32 %v1370, %v1373
    %vm1375 = vweird.f32 %v1369
    %vm1376 = vweird.f32 %v1370
    %vm1377 = vmor %vm1375, %vm1376
    %v1378 = vsel %vm1377, %v1370, %v1374
    %v1379 = vand.u32 2147483647, %v1369
    %vm1380 = vcmp.eq.f32.partialorder %v1379, 8.507059e+37
    %v1381 = vand.u32 %v1369, 2147483648
    %v1382 = vor.u32 1.1754944e-38, %v1381
    %v1383 = vsel %vm1380, %v1382, %v1378
    %v1384 = vmul.f32 1.0, %v1383
    %v1385 = vmul.f32 %v1364, %v1235
    %v1386 = vmul.f32 %v1345, %v1365
    %v1387 = vadd.f32 %v1385, %v1386
    %v1388 = vtanh.pop %v1387
    %v1389 = vmul.f32 %v1384, %v1388
    %1390 = vst [vmem:[%s6 + $0x28] sm:$0xff] %v1389
    %v1391 = vld [vmem:[%s5 + $0x28] sm:$0xff]
    %v1392 = vmul.f32 %v631, %v1389
    %v1393 = vadd.f32 %v1391, %v1392
    %1394 = vst [vmem:[%s7 + $0x28] sm:$0xff] %v1393
    %1395 = vmatpush.msra.mxu0 %v476
    %1396 = vmatpush.msra.mxu0 %v472
    %1397 = vmatpush.msra.mxu0 %v468
    %1398 = vmatpush.msra.mxu0 %v464
    %1399 = vmatpush.msra.mxu0 %v460
    %1400 = vmatpush.msra.mxu0 %v456
    %1401 = vmatpush.msra.mxu0 %v452
    %1402 = vmatpush.msra.mxu0 %v448
    %1403 = vmatpush.msra.mxu0 %v444
    %1404 = vmatpush.msra.mxu0 %v440
    %1405 = vmatpush.msra.mxu0 %v436
    %1406 = vmatpush.msra.mxu0 %v432
    %1407 = vmatpush.msra.mxu0 %v428
    %1408 = vmatpush.msra.mxu0 %v424
    %1409 = vmatpush.msra.mxu0 %v420
    %1410 = vmatpush.msra.mxu0 %v416
    %1411 = vmatmul.f32.gmra.mxu0 %v1389
    %v1412 = vpop.f32.mrf.mxu0
    %v1413 = vadd.f32 0.0, %v1412
    %1414 = vdwg.mxu0
    %1415 = vmatpush.msra.mxu0 %v477
    %1416 = vmatpush.msra.mxu0 %v473
    %1417 = vmatpush.msra.mxu0 %v469
    %1418 = vmatpush.msra.mxu0 %v465
    %1419 = vmatpush.msra.mxu0 %v461
    %1420 = vmatpush.msra.mxu0 %v457
    %1421 = vmatpush.msra.mxu0 %v453
    %1422 = vmatpush.msra.mxu0 %v449
    %1423 = vmatpush.msra.mxu0 %v445
    %1424 = vmatpush.msra.mxu0 %v441
    %1425 = vmatpush.msra.mxu0 %v437
    %1426 = vmatpush.msra.mxu0 %v433
    %1427 = vmatpush.msra.mxu0 %v429
    %1428 = vmatpush.msra.mxu0 %v425
    %1429 = vmatpush.msra.mxu0 %v421
    %1430 = vmatpush.msra.mxu0 %v417
    %1431 = vmatmul.f32.gmra.mxu0 %v1389
    %v1432 = vpop.f32.mrf.mxu0
    %v1433 = vadd.f32 0.0, %v1432
    %1434 = vdwg.mxu0
    %1435 = vmatpush.msra.mxu0 %v478
    %1436 = vmatpush.msra.mxu0 %v474
    %1437 = vmatpush.msra.mxu0 %v470
    %1438 = vmatpush.msra.mxu0 %v466
    %1439 = vmatpush.msra.mxu0 %v462
    %1440 = vmatpush.msra.mxu0 %v458
    %1441 = vmatpush.msra.mxu0 %v454
    %1442 = vmatpush.msra.mxu0 %v450
    %1443 = vmatpush.msra.mxu0 %v446
    %1444 = vmatpush.msra.mxu0 %v442
    %1445 = vmatpush.msra.mxu0 %v438
    %1446 = vmatpush.msra.mxu0 %v434
    %1447 = vmatpush.msra.mxu0 %v430
    %1448 = vmatpush.msra.mxu0 %v426
    %1449 = vmatpush.msra.mxu0 %v422
    %1450 = vmatpush.msra.mxu0 %v418
    %1451 = vmatmul.f32.gmra.mxu0 %v1389
    %v1452 = vpop.f32.mrf.mxu0
    %v1453 = vadd.f32 0.0, %v1452
    %1454 = vdwg.mxu0
    %1455 = vmatpush.msra.mxu0 %v479
    %1456 = vmatpush.msra.mxu0 %v475
    %1457 = vmatpush.msra.mxu0 %v471
    %1458 = vmatpush.msra.mxu0 %v467
    %1459 = vmatpush.msra.mxu0 %v463
    %1460 = vmatpush.msra.mxu0 %v459
    %1461 = vmatpush.msra.mxu0 %v455
    %1462 = vmatpush.msra.mxu0 %v451
    %1463 = vmatpush.msra.mxu0 %v447
    %1464 = vmatpush.msra.mxu0 %v443
    %1465 = vmatpush.msra.mxu0 %v439
    %1466 = vmatpush.msra.mxu0 %v435
    %1467 = vmatpush.msra.mxu0 %v431
    %1468 = vmatpush.msra.mxu0 %v427
    %1469 = vmatpush.msra.mxu0 %v423
    %1470 = vmatpush.msra.mxu0 %v419
    %1471 = vmatmul.f32.gmra.mxu0 %v1389
    %v1472 = vpop.f32.mrf.mxu0
    %v1473 = vadd.f32 0.0, %v1472
    %1474 = vdwg.mxu0
    %v1475 = vadd.f32 %v192, %v1413
    %v1476 = vadd.f32 %v257, %v1433
    %v1477 = vadd.f32 %v322, %v1453
    %v1478 = vadd.f32 %v387, %v1473
    %v1479 = vxor.u32 %v1475, 2147483648
    %v1480 = vmul.f32 %v1479, 1.442695
    %v1481 = vpow.pop %v1480
    %v1482 = vadd.f32 %v1481, 1.0
    %v1483 = vrcp.pop %v1482
    %v1484 = vmul.f32 %v1482, %v1483
    %v1485 = vsub.f32 1.0, %v1484
    %v1486 = vmul.f32 %v1483, %v1485
    %v1487 = vadd.f32 %v1483, %v1486
    %vm1488 = vweird.f32 %v1482
    %vm1489 = vweird.f32 %v1483
    %vm1490 = vmor %vm1488, %vm1489
    %v1491 = vsel %vm1490, %v1483, %v1487
    %v1492 = vand.u32 2147483647, %v1482
    %vm1493 = vcmp.eq.f32.partialorder %v1492, 8.507059e+37
    %v1494 = vand.u32 %v1482, 2147483648
    %v1495 = vor.u32 1.1754944e-38, %v1494
    %v1496 = vsel %vm1493, %v1495, %v1491
    %v1497 = vmul.f32 1.0, %v1496
    %v1498 = vxor.u32 %v1476, 2147483648
    %v1499 = vmul.f32 %v1498, 1.442695
    %v1500 = vpow.pop %v1499
    %v1501 = vadd.f32 %v1500, 1.0
    %v1502 = vrcp.pop %v1501
    %v1503 = vmul.f32 %v1501, %v1502
    %v1504 = vsub.f32 1.0, %v1503
    %v1505 = vmul.f32 %v1502, %v1504
    %v1506 = vadd.f32 %v1502, %v1505
    %vm1507 = vweird.f32 %v1501
    %vm1508 = vweird.f32 %v1502
    %vm1509 = vmor %vm1507, %vm1508
    %v1510 = vsel %vm1509, %v1502, %v1506
    %v1511 = vand.u32 2147483647, %v1501
    %vm1512 = vcmp.eq.f32.partialorder %v1511, 8.507059e+37
    %v1513 = vand.u32 %v1501, 2147483648
    %v1514 = vor.u32 1.1754944e-38, %v1513
    %v1515 = vsel %vm1512, %v1514, %v1510
    %v1516 = vmul.f32 1.0, %v1515
    %v1517 = vtanh.pop %v1477
    %v1518 = vxor.u32 %v1478, 2147483648
    %v1519 = vmul.f32 %v1518, 1.442695
    %v1520 = vpow.pop %v1519
    %v1521 = vadd.f32 %v1520, 1.0
    %v1522 = vrcp.pop %v1521
    %v1523 = vmul.f32 %v1521, %v1522
    %v1524 = vsub.f32 1.0, %v1523
    %v1525 = vmul.f32 %v1522, %v1524
    %v1526 = vadd.f32 %v1522, %v1525
    %vm1527 = vweird.f32 %v1521
    %vm1528 = vweird.f32 %v1522
    %vm1529 = vmor %vm1527, %vm1528
    %v1530 = vsel %vm1529, %v1522, %v1526
    %v1531 = vand.u32 2147483647, %v1521
    %vm1532 = vcmp.eq.f32.partialorder %v1531, 8.507059e+37
    %v1533 = vand.u32 %v1521, 2147483648
    %v1534 = vor.u32 1.1754944e-38, %v1533
    %v1535 = vsel %vm1532, %v1534, %v1530
    %v1536 = vmul.f32 1.0, %v1535
    %v1537 = vmul.f32 %v1516, %v1387
    %v1538 = vmul.f32 %v1497, %v1517
    %v1539 = vadd.f32 %v1537, %v1538
    %v1540 = vtanh.pop %v1539
    %v1541 = vmul.f32 %v1536, %v1540
    %1542 = vst [vmem:[%s6 + $0x30] sm:$0xff] %v1541
    %v1543 = vld [vmem:[%s5 + $0x30] sm:$0xff]
    %v1544 = vmul.f32 %v631, %v1541
    %v1545 = vadd.f32 %v1543, %v1544
    %1546 = vst [vmem:[%s7 + $0x30] sm:$0xff] %v1545
    %1547 = vmatpush.msra.mxu0 %v476
    %1548 = vmatpush.msra.mxu0 %v472
    %1549 = vmatpush.msra.mxu0 %v468
    %1550 = vmatpush.msra.mxu0 %v464
    %1551 = vmatpush.msra.mxu0 %v460
    %1552 = vmatpush.msra.mxu0 %v456
    %1553 = vmatpush.msra.mxu0 %v452
    %1554 = vmatpush.msra.mxu0 %v448
    %1555 = vmatpush.msra.mxu0 %v444
    %1556 = vmatpush.msra.mxu0 %v440
    %1557 = vmatpush.msra.mxu0 %v436
    %1558 = vmatpush.msra.mxu0 %v432
    %1559 = vmatpush.msra.mxu0 %v428
    %1560 = vmatpush.msra.mxu0 %v424
    %1561 = vmatpush.msra.mxu0 %v420
    %1562 = vmatpush.msra.mxu0 %v416
    %1563 = vmatmul.f32.gmra.mxu0 %v1541
    %v1564 = vpop.f32.mrf.mxu0
    %v1565 = vadd.f32 0.0, %v1564
    %1566 = vdwg.mxu0
    %1567 = vmatpush.msra.mxu0 %v477
    %1568 = vmatpush.msra.mxu0 %v473
    %1569 = vmatpush.msra.mxu0 %v469
    %1570 = vmatpush.msra.mxu0 %v465
    %1571 = vmatpush.msra.mxu0 %v461
    %1572 = vmatpush.msra.mxu0 %v457
    %1573 = vmatpush.msra.mxu0 %v453
    %1574 = vmatpush.msra.mxu0 %v449
    %1575 = vmatpush.msra.mxu0 %v445
    %1576 = vmatpush.msra.mxu0 %v441
    %1577 = vmatpush.msra.mxu0 %v437
    %1578 = vmatpush.msra.mxu0 %v433
    %1579 = vmatpush.msra.mxu0 %v429
    %1580 = vmatpush.msra.mxu0 %v425
    %1581 = vmatpush.msra.mxu0 %v421
    %1582 = vmatpush.msra.mxu0 %v417
    %1583 = vmatmul.f32.gmra.mxu0 %v1541
    %v1584 = vpop.f32.mrf.mxu0
    %v1585 = vadd.f32 0.0, %v1584
    %1586 = vdwg.mxu0
    %1587 = vmatpush.msra.mxu0 %v478
    %1588 = vmatpush.msra.mxu0 %v474
    %1589 = vmatpush.msra.mxu0 %v470
    %1590 = vmatpush.msra.mxu0 %v466
    %1591 = vmatpush.msra.mxu0 %v462
    %1592 = vmatpush.msra.mxu0 %v458
    %1593 = vmatpush.msra.mxu0 %v454
    %1594 = vmatpush.msra.mxu0 %v450
    %1595 = vmatpush.msra.mxu0 %v446
    %1596 = vmatpush.msra.mxu0 %v442
    %1597 = vmatpush.msra.mxu0 %v438
    %1598 = vmatpush.msra.mxu0 %v434
    %1599 = vmatpush.msra.mxu0 %v430
    %1600 = vmatpush.msra.mxu0 %v426
    %1601 = vmatpush.msra.mxu0 %v422
    %1602 = vmatpush.msra.mxu0 %v418
    %1603 = vmatmul.f32.gmra.mxu0 %v1541
    %v1604 = vpop.f32.mrf.mxu0
    %v1605 = vadd.f32 0.0, %v1604
    %1606 = vdwg.mxu0
    %1607 = vmatpush.msra.mxu0 %v479
    %1608 = vmatpush.msra.mxu0 %v475
    %1609 = vmatpush.msra.mxu0 %v471
    %1610 = vmatpush.msra.mxu0 %v467
    %1611 = vmatpush.msra.mxu0 %v463
    %1612 = vmatpush.msra.mxu0 %v459
    %1613 = vmatpush.msra.mxu0 %v455
    %1614 = vmatpush.msra.mxu0 %v451
    %1615 = vmatpush.msra.mxu0 %v447
    %1616 = vmatpush.msra.mxu0 %v443
    %1617 = vmatpush.msra.mxu0 %v439
    %1618 = vmatpush.msra.mxu0 %v435
    %1619 = vmatpush.msra.mxu0 %v431
    %1620 = vmatpush.msra.mxu0 %v427
    %1621 = vmatpush.msra.mxu0 %v423
    %1622 = vmatpush.msra.mxu0 %v419
    %1623 = vmatmul.f32.gmra.mxu0 %v1541
    %v1624 = vpop.f32.mrf.mxu0
    %v1625 = vadd.f32 0.0, %v1624
    %1626 = vdwg.mxu0
    %v1627 = vadd.f32 %v195, %v1565
    %v1628 = vadd.f32 %v260, %v1585
    %v1629 = vadd.f32 %v325, %v1605
    %v1630 = vadd.f32 %v390, %v1625
    %v1631 = vxor.u32 %v1627, 2147483648
    %v1632 = vmul.f32 %v1631, 1.442695
    %v1633 = vpow.pop %v1632
    %v1634 = vadd.f32 %v1633, 1.0
    %v1635 = vrcp.pop %v1634
    %v1636 = vmul.f32 %v1634, %v1635
    %v1637 = vsub.f32 1.0, %v1636
    %v1638 = vmul.f32 %v1635, %v1637
    %v1639 = vadd.f32 %v1635, %v1638
    %vm1640 = vweird.f32 %v1634
    %vm1641 = vweird.f32 %v1635
    %vm1642 = vmor %vm1640, %vm1641
    %v1643 = vsel %vm1642, %v1635, %v1639
    %v1644 = vand.u32 2147483647, %v1634
    %vm1645 = vcmp.eq.f32.partialorder %v1644, 8.507059e+37
    %v1646 = vand.u32 %v1634, 2147483648
    %v1647 = vor.u32 1.1754944e-38, %v1646
    %v1648 = vsel %vm1645, %v1647, %v1643
    %v1649 = vmul.f32 1.0, %v1648
    %v1650 = vxor.u32 %v1628, 2147483648
    %v1651 = vmul.f32 %v1650, 1.442695
    %v1652 = vpow.pop %v1651
    %v1653 = vadd.f32 %v1652, 1.0
    %v1654 = vrcp.pop %v1653
    %v1655 = vmul.f32 %v1653, %v1654
    %v1656 = vsub.f32 1.0, %v1655
    %v1657 = vmul.f32 %v1654, %v1656
    %v1658 = vadd.f32 %v1654, %v1657
    %vm1659 = vweird.f32 %v1653
    %vm1660 = vweird.f32 %v1654
    %vm1661 = vmor %vm1659, %vm1660
    %v1662 = vsel %vm1661, %v1654, %v1658
    %v1663 = vand.u32 2147483647, %v1653
    %vm1664 = vcmp.eq.f32.partialorder %v1663, 8.507059e+37
    %v1665 = vand.u32 %v1653, 2147483648
    %v1666 = vor.u32 1.1754944e-38, %v1665
    %v1667 = vsel %vm1664, %v1666, %v1662
    %v1668 = vmul.f32 1.0, %v1667
    %v1669 = vtanh.pop %v1629
    %v1670 = vxor.u32 %v1630, 2147483648
    %v1671 = vmul.f32 %v1670, 1.442695
    %v1672 = vpow.pop %v1671
    %v1673 = vadd.f32 %v1672, 1.0
    %v1674 = vrcp.pop %v1673
    %v1675 = vmul.f32 %v1673, %v1674
    %v1676 = vsub.f32 1.0, %v1675
    %v1677 = vmul.f32 %v1674, %v1676
    %v1678 = vadd.f32 %v1674, %v1677
    %vm1679 = vweird.f32 %v1673
    %vm1680 = vweird.f32 %v1674
    %vm1681 = vmor %vm1679, %vm1680
    %v1682 = vsel %vm1681, %v1674, %v1678
    %v1683 = vand.u32 2147483647, %v1673
    %vm1684 = vcmp.eq.f32.partialorder %v1683, 8.507059e+37
    %v1685 = vand.u32 %v1673, 2147483648
    %v1686 = vor.u32 1.1754944e-38, %v1685
    %v1687 = vsel %vm1684, %v1686, %v1682
    %v1688 = vmul.f32 1.0, %v1687
    %v1689 = vmul.f32 %v1668, %v1539
    %v1690 = vmul.f32 %v1649, %v1669
    %v1691 = vadd.f32 %v1689, %v1690
    %v1692 = vtanh.pop %v1691
    %v1693 = vmul.f32 %v1688, %v1692
    %1694 = vst [vmem:[%s6 + $0x38] sm:$0xff] %v1693
    %v1695 = vld [vmem:[%s5 + $0x38] sm:$0xff]
    %v1696 = vmul.f32 %v631, %v1693
    %v1697 = vadd.f32 %v1695, %v1696
    %1698 = vst [vmem:[%s7 + $0x38] sm:$0xff] %v1697
    %1699 = vmatpush.msra.mxu0 %v476
    %1700 = vmatpush.msra.mxu0 %v472
    %1701 = vmatpush.msra.mxu0 %v468
    %1702 = vmatpush.msra.mxu0 %v464
    %1703 = vmatpush.msra.mxu0 %v460
    %1704 = vmatpush.msra.mxu0 %v456
    %1705 = vmatpush.msra.mxu0 %v452
    %1706 = vmatpush.msra.mxu0 %v448
    %1707 = vmatpush.msra.mxu0 %v444
    %1708 = vmatpush.msra.mxu0 %v440
    %1709 = vmatpush.msra.mxu0 %v436
    %1710 = vmatpush.msra.mxu0 %v432
    %1711 = vmatpush.msra.mxu0 %v428
    %1712 = vmatpush.msra.mxu0 %v424
    %1713 = vmatpush.msra.mxu0 %v420
    %1714 = vmatpush.msra.mxu0 %v416
    %1715 = vmatmul.f32.gmra.mxu0 %v1693
    %v1716 = vpop.f32.mrf.mxu0
    %v1717 = vadd.f32 0.0, %v1716
    %1718 = vdwg.mxu0
    %1719 = vmatpush.msra.mxu0 %v477
    %1720 = vmatpush.msra.mxu0 %v473
    %1721 = vmatpush.msra.mxu0 %v469
    %1722 = vmatpush.msra.mxu0 %v465
    %1723 = vmatpush.msra.mxu0 %v461
    %1724 = vmatpush.msra.mxu0 %v457
    %1725 = vmatpush.msra.mxu0 %v453
    %1726 = vmatpush.msra.mxu0 %v449
    %1727 = vmatpush.msra.mxu0 %v445
    %1728 = vmatpush.msra.mxu0 %v441
    %1729 = vmatpush.msra.mxu0 %v437
    %1730 = vmatpush.msra.mxu0 %v433
    %1731 = vmatpush.msra.mxu0 %v429
    %1732 = vmatpush.msra.mxu0 %v425
    %1733 = vmatpush.msra.mxu0 %v421
    %1734 = vmatpush.msra.mxu0 %v417
    %1735 = vmatmul.f32.gmra.mxu0 %v1693
    %v1736 = vpop.f32.mrf.mxu0
    %v1737 = vadd.f32 0.0, %v1736
    %1738 = vdwg.mxu0
    %1739 = vmatpush.msra.mxu0 %v478
    %1740 = vmatpush.msra.mxu0 %v474
    %1741 = vmatpush.msra.mxu0 %v470
    %1742 = vmatpush.msra.mxu0 %v466
    %1743 = vmatpush.msra.mxu0 %v462
    %1744 = vmatpush.msra.mxu0 %v458
    %1745 = vmatpush.msra.mxu0 %v454
    %1746 = vmatpush.msra.mxu0 %v450
    %1747 = vmatpush.msra.mxu0 %v446
    %1748 = vmatpush.msra.mxu0 %v442
    %1749 = vmatpush.msra.mxu0 %v438
    %1750 = vmatpush.msra.mxu0 %v434
    %1751 = vmatpush.msra.mxu0 %v430
    %1752 = vmatpush.msra.mxu0 %v426
    %1753 = vmatpush.msra.mxu0 %v422
    %1754 = vmatpush.msra.mxu0 %v418
    %1755 = vmatmul.f32.gmra.mxu0 %v1693
    %v1756 = vpop.f32.mrf.mxu0
    %v1757 = vadd.f32 0.0, %v1756
    %1758 = vdwg.mxu0
    %1759 = vmatpush.msra.mxu0 %v479
    %1760 = vmatpush.msra.mxu0 %v475
    %1761 = vmatpush.msra.mxu0 %v471
    %1762 = vmatpush.msra.mxu0 %v467
    %1763 = vmatpush.msra.mxu0 %v463
    %1764 = vmatpush.msra.mxu0 %v459
    %1765 = vmatpush.msra.mxu0 %v455
    %1766 = vmatpush.msra.mxu0 %v451
    %1767 = vmatpush.msra.mxu0 %v447
    %1768 = vmatpush.msra.mxu0 %v443
    %1769 = vmatpush.msra.mxu0 %v439
    %1770 = vmatpush.msra.mxu0 %v435
    %1771 = vmatpush.msra.mxu0 %v431
    %1772 = vmatpush.msra.mxu0 %v427
    %1773 = vmatpush.msra.mxu0 %v423
    %1774 = vmatpush.msra.mxu0 %v419
    %1775 = vmatmul.f32.gmra.mxu0 %v1693
    %v1776 = vpop.f32.mrf.mxu0
    %v1777 = vadd.f32 0.0, %v1776
    %1778 = vdwg.mxu0
    %v1779 = vadd.f32 %v198, %v1717
    %v1780 = vadd.f32 %v263, %v1737
    %v1781 = vadd.f32 %v328, %v1757
    %v1782 = vadd.f32 %v393, %v1777
    %v1783 = vxor.u32 %v1779, 2147483648
    %v1784 = vmul.f32 %v1783, 1.442695
    %v1785 = vpow.pop %v1784
    %v1786 = vadd.f32 %v1785, 1.0
    %v1787 = vrcp.pop %v1786
    %v1788 = vmul.f32 %v1786, %v1787
    %v1789 = vsub.f32 1.0, %v1788
    %v1790 = vmul.f32 %v1787, %v1789
    %v1791 = vadd.f32 %v1787, %v1790
    %vm1792 = vweird.f32 %v1786
    %vm1793 = vweird.f32 %v1787
    %vm1794 = vmor %vm1792, %vm1793
    %v1795 = vsel %vm1794, %v1787, %v1791
    %v1796 = vand.u32 2147483647, %v1786
    %vm1797 = vcmp.eq.f32.partialorder %v1796, 8.507059e+37
    %v1798 = vand.u32 %v1786, 2147483648
    %v1799 = vor.u32 1.1754944e-38, %v1798
    %v1800 = vsel %vm1797, %v1799, %v1795
    %v1801 = vmul.f32 1.0, %v1800
    %v1802 = vxor.u32 %v1780, 2147483648
    %v1803 = vmul.f32 %v1802, 1.442695
    %v1804 = vpow.pop %v1803
    %v1805 = vadd.f32 %v1804, 1.0
    %v1806 = vrcp.pop %v1805
    %v1807 = vmul.f32 %v1805, %v1806
    %v1808 = vsub.f32 1.0, %v1807
    %v1809 = vmul.f32 %v1806, %v1808
    %v1810 = vadd.f32 %v1806, %v1809
    %vm1811 = vweird.f32 %v1805
    %vm1812 = vweird.f32 %v1806
    %vm1813 = vmor %vm1811, %vm1812
    %v1814 = vsel %vm1813, %v1806, %v1810
    %v1815 = vand.u32 2147483647, %v1805
    %vm1816 = vcmp.eq.f32.partialorder %v1815, 8.507059e+37
    %v1817 = vand.u32 %v1805, 2147483648
    %v1818 = vor.u32 1.1754944e-38, %v1817
    %v1819 = vsel %vm1816, %v1818, %v1814
    %v1820 = vmul.f32 1.0, %v1819
    %v1821 = vtanh.pop %v1781
    %v1822 = vxor.u32 %v1782, 2147483648
    %v1823 = vmul.f32 %v1822, 1.442695
    %v1824 = vpow.pop %v1823
    %v1825 = vadd.f32 %v1824, 1.0
    %v1826 = vrcp.pop %v1825
    %v1827 = vmul.f32 %v1825, %v1826
    %v1828 = vsub.f32 1.0, %v1827
    %v1829 = vmul.f32 %v1826, %v1828
    %v1830 = vadd.f32 %v1826, %v1829
    %vm1831 = vweird.f32 %v1825
    %vm1832 = vweird.f32 %v1826
    %vm1833 = vmor %vm1831, %vm1832
    %v1834 = vsel %vm1833, %v1826, %v1830
    %v1835 = vand.u32 2147483647, %v1825
    %vm1836 = vcmp.eq.f32.partialorder %v1835, 8.507059e+37
    %v1837 = vand.u32 %v1825, 2147483648
    %v1838 = vor.u32 1.1754944e-38, %v1837
    %v1839 = vsel %vm1836, %v1838, %v1834
    %v1840 = vmul.f32 1.0, %v1839
    %v1841 = vmul.f32 %v1820, %v1691
    %v1842 = vmul.f32 %v1801, %v1821
    %v1843 = vadd.f32 %v1841, %v1842
    %v1844 = vtanh.pop %v1843
    %v1845 = vmul.f32 %v1840, %v1844
    %1846 = vst [vmem:[%s6 + $0x40] sm:$0xff] %v1845
    %v1847 = vld [vmem:[%s5 + $0x40] sm:$0xff]
    %v1848 = vmul.f32 %v631, %v1845
    %v1849 = vadd.f32 %v1847, %v1848
    %1850 = vst [vmem:[%s7 + $0x40] sm:$0xff] %v1849
    %1851 = vmatpush.msra.mxu0 %v476
    %1852 = vmatpush.msra.mxu0 %v472
    %1853 = vmatpush.msra.mxu0 %v468
    %1854 = vmatpush.msra.mxu0 %v464
    %1855 = vmatpush.msra.mxu0 %v460
    %1856 = vmatpush.msra.mxu0 %v456
    %1857 = vmatpush.msra.mxu0 %v452
    %1858 = vmatpush.msra.mxu0 %v448
    %1859 = vmatpush.msra.mxu0 %v444
    %1860 = vmatpush.msra.mxu0 %v440
    %1861 = vmatpush.msra.mxu0 %v436
    %1862 = vmatpush.msra.mxu0 %v432
    %1863 = vmatpush.msra.mxu0 %v428
    %1864 = vmatpush.msra.mxu0 %v424
    %1865 = vmatpush.msra.mxu0 %v420
    %1866 = vmatpush.msra.mxu0 %v416
    %1867 = vmatmul.f32.gmra.mxu0 %v1845
    %v1868 = vpop.f32.mrf.mxu0
    %v1869 = vadd.f32 0.0, %v1868
    %1870 = vdwg.mxu0
    %1871 = vmatpush.msra.mxu0 %v477
    %1872 = vmatpush.msra.mxu0 %v473
    %1873 = vmatpush.msra.mxu0 %v469
    %1874 = vmatpush.msra.mxu0 %v465
    %1875 = vmatpush.msra.mxu0 %v461
    %1876 = vmatpush.msra.mxu0 %v457
    %1877 = vmatpush.msra.mxu0 %v453
    %1878 = vmatpush.msra.mxu0 %v449
    %1879 = vmatpush.msra.mxu0 %v445
    %1880 = vmatpush.msra.mxu0 %v441
    %1881 = vmatpush.msra.mxu0 %v437
    %1882 = vmatpush.msra.mxu0 %v433
    %1883 = vmatpush.msra.mxu0 %v429
    %1884 = vmatpush.msra.mxu0 %v425
    %1885 = vmatpush.msra.mxu0 %v421
    %1886 = vmatpush.msra.mxu0 %v417
    %1887 = vmatmul.f32.gmra.mxu0 %v1845
    %v1888 = vpop.f32.mrf.mxu0
    %v1889 = vadd.f32 0.0, %v1888
    %1890 = vdwg.mxu0
    %1891 = vmatpush.msra.mxu0 %v478
    %1892 = vmatpush.msra.mxu0 %v474
    %1893 = vmatpush.msra.mxu0 %v470
    %1894 = vmatpush.msra.mxu0 %v466
    %1895 = vmatpush.msra.mxu0 %v462
    %1896 = vmatpush.msra.mxu0 %v458
    %1897 = vmatpush.msra.mxu0 %v454
    %1898 = vmatpush.msra.mxu0 %v450
    %1899 = vmatpush.msra.mxu0 %v446
    %1900 = vmatpush.msra.mxu0 %v442
    %1901 = vmatpush.msra.mxu0 %v438
    %1902 = vmatpush.msra.mxu0 %v434
    %1903 = vmatpush.msra.mxu0 %v430
    %1904 = vmatpush.msra.mxu0 %v426
    %1905 = vmatpush.msra.mxu0 %v422
    %1906 = vmatpush.msra.mxu0 %v418
    %1907 = vmatmul.f32.gmra.mxu0 %v1845
    %v1908 = vpop.f32.mrf.mxu0
    %v1909 = vadd.f32 0.0, %v1908
    %1910 = vdwg.mxu0
    %1911 = vmatpush.msra.mxu0 %v479
    %1912 = vmatpush.msra.mxu0 %v475
    %1913 = vmatpush.msra.mxu0 %v471
    %1914 = vmatpush.msra.mxu0 %v467
    %1915 = vmatpush.msra.mxu0 %v463
    %1916 = vmatpush.msra.mxu0 %v459
    %1917 = vmatpush.msra.mxu0 %v455
    %1918 = vmatpush.msra.mxu0 %v451
    %1919 = vmatpush.msra.mxu0 %v447
    %1920 = vmatpush.msra.mxu0 %v443
    %1921 = vmatpush.msra.mxu0 %v439
    %1922 = vmatpush.msra.mxu0 %v435
    %1923 = vmatpush.msra.mxu0 %v431
    %1924 = vmatpush.msra.mxu0 %v427
    %1925 = vmatpush.msra.mxu0 %v423
    %1926 = vmatpush.msra.mxu0 %v419
    %1927 = vmatmul.f32.gmra.mxu0 %v1845
    %v1928 = vpop.f32.mrf.mxu0
    %v1929 = vadd.f32 0.0, %v1928
    %1930 = vdwg.mxu0
    %v1931 = vadd.f32 %v201, %v1869
    %v1932 = vadd.f32 %v266, %v1889
    %v1933 = vadd.f32 %v331, %v1909
    %v1934 = vadd.f32 %v396, %v1929
    %v1935 = vxor.u32 %v1931, 2147483648
    %v1936 = vmul.f32 %v1935, 1.442695
    %v1937 = vpow.pop %v1936
    %v1938 = vadd.f32 %v1937, 1.0
    %v1939 = vrcp.pop %v1938
    %v1940 = vmul.f32 %v1938, %v1939
    %v1941 = vsub.f32 1.0, %v1940
    %v1942 = vmul.f32 %v1939, %v1941
    %v1943 = vadd.f32 %v1939, %v1942
    %vm1944 = vweird.f32 %v1938
    %vm1945 = vweird.f32 %v1939
    %vm1946 = vmor %vm1944, %vm1945
    %v1947 = vsel %vm1946, %v1939, %v1943
    %v1948 = vand.u32 2147483647, %v1938
    %vm1949 = vcmp.eq.f32.partialorder %v1948, 8.507059e+37
    %v1950 = vand.u32 %v1938, 2147483648
    %v1951 = vor.u32 1.1754944e-38, %v1950
    %v1952 = vsel %vm1949, %v1951, %v1947
    %v1953 = vmul.f32 1.0, %v1952
    %v1954 = vxor.u32 %v1932, 2147483648
    %v1955 = vmul.f32 %v1954, 1.442695
    %v1956 = vpow.pop %v1955
    %v1957 = vadd.f32 %v1956, 1.0
    %v1958 = vrcp.pop %v1957
    %v1959 = vmul.f32 %v1957, %v1958
    %v1960 = vsub.f32 1.0, %v1959
    %v1961 = vmul.f32 %v1958, %v1960
    %v1962 = vadd.f32 %v1958, %v1961
    %vm1963 = vweird.f32 %v1957
    %vm1964 = vweird.f32 %v1958
    %vm1965 = vmor %vm1963, %vm1964
    %v1966 = vsel %vm1965, %v1958, %v1962
    %v1967 = vand.u32 2147483647, %v1957
    %vm1968 = vcmp.eq.f32.partialorder %v1967, 8.507059e+37
    %v1969 = vand.u32 %v1957, 2147483648
    %v1970 = vor.u32 1.1754944e-38, %v1969
    %v1971 = vsel %vm1968, %v1970, %v1966
    %v1972 = vmul.f32 1.0, %v1971
    %v1973 = vtanh.pop %v1933
    %v1974 = vxor.u32 %v1934, 2147483648
    %v1975 = vmul.f32 %v1974, 1.442695
    %v1976 = vpow.pop %v1975
    %v1977 = vadd.f32 %v1976, 1.0
    %v1978 = vrcp.pop %v1977
    %v1979 = vmul.f32 %v1977, %v1978
    %v1980 = vsub.f32 1.0, %v1979
    %v1981 = vmul.f32 %v1978, %v1980
    %v1982 = vadd.f32 %v1978, %v1981
    %vm1983 = vweird.f32 %v1977
    %vm1984 = vweird.f32 %v1978
    %vm1985 = vmor %vm1983, %vm1984
    %v1986 = vsel %vm1985, %v1978, %v1982
    %v1987 = vand.u32 2147483647, %v1977
    %vm1988 = vcmp.eq.f32.partialorder %v1987, 8.507059e+37
    %v1989 = vand.u32 %v1977, 2147483648
    %v1990 = vor.u32 1.1754944e-38, %v1989
    %v1991 = vsel %vm1988, %v1990, %v1986
    %v1992 = vmul.f32 1.0, %v1991
    %v1993 = vmul.f32 %v1972, %v1843
    %v1994 = vmul.f32 %v1953, %v1973
    %v1995 = vadd.f32 %v1993, %v1994
    %v1996 = vtanh.pop %v1995
    %v1997 = vmul.f32 %v1992, %v1996
    %1998 = vst [vmem:[%s6 + $0x48] sm:$0xff] %v1997
    %v1999 = vld [vmem:[%s5 + $0x48] sm:$0xff]
    %v2000 = vmul.f32 %v631, %v1997
    %v2001 = vadd.f32 %v1999, %v2000
    %2002 = vst [vmem:[%s7 + $0x48] sm:$0xff] %v2001
    %2003 = vmatpush.msra.mxu0 %v476
    %2004 = vmatpush.msra.mxu0 %v472
    %2005 = vmatpush.msra.mxu0 %v468
    %2006 = vmatpush.msra.mxu0 %v464
    %2007 = vmatpush.msra.mxu0 %v460
    %2008 = vmatpush.msra.mxu0 %v456
    %2009 = vmatpush.msra.mxu0 %v452
    %2010 = vmatpush.msra.mxu0 %v448
    %2011 = vmatpush.msra.mxu0 %v444
    %2012 = vmatpush.msra.mxu0 %v440
    %2013 = vmatpush.msra.mxu0 %v436
    %2014 = vmatpush.msra.mxu0 %v432
    %2015 = vmatpush.msra.mxu0 %v428
    %2016 = vmatpush.msra.mxu0 %v424
    %2017 = vmatpush.msra.mxu0 %v420
    %2018 = vmatpush.msra.mxu0 %v416
    %2019 = vmatmul.f32.gmra.mxu0 %v1997
    %v2020 = vpop.f32.mrf.mxu0
    %v2021 = vadd.f32 0.0, %v2020
    %2022 = vdwg.mxu0
    %2023 = vmatpush.msra.mxu0 %v477
    %2024 = vmatpush.msra.mxu0 %v473
    %2025 = vmatpush.msra.mxu0 %v469
    %2026 = vmatpush.msra.mxu0 %v465
    %2027 = vmatpush.msra.mxu0 %v461
    %2028 = vmatpush.msra.mxu0 %v457
    %2029 = vmatpush.msra.mxu0 %v453
    %2030 = vmatpush.msra.mxu0 %v449
    %2031 = vmatpush.msra.mxu0 %v445
    %2032 = vmatpush.msra.mxu0 %v441
    %2033 = vmatpush.msra.mxu0 %v437
    %2034 = vmatpush.msra.mxu0 %v433
    %2035 = vmatpush.msra.mxu0 %v429
    %2036 = vmatpush.msra.mxu0 %v425
    %2037 = vmatpush.msra.mxu0 %v421
    %2038 = vmatpush.msra.mxu0 %v417
    %2039 = vmatmul.f32.gmra.mxu0 %v1997
    %v2040 = vpop.f32.mrf.mxu0
    %v2041 = vadd.f32 0.0, %v2040
    %2042 = vdwg.mxu0
    %2043 = vmatpush.msra.mxu0 %v478
    %2044 = vmatpush.msra.mxu0 %v474
    %2045 = vmatpush.msra.mxu0 %v470
    %2046 = vmatpush.msra.mxu0 %v466
    %2047 = vmatpush.msra.mxu0 %v462
    %2048 = vmatpush.msra.mxu0 %v458
    %2049 = vmatpush.msra.mxu0 %v454
    %2050 = vmatpush.msra.mxu0 %v450
    %2051 = vmatpush.msra.mxu0 %v446
    %2052 = vmatpush.msra.mxu0 %v442
    %2053 = vmatpush.msra.mxu0 %v438
    %2054 = vmatpush.msra.mxu0 %v434
    %2055 = vmatpush.msra.mxu0 %v430
    %2056 = vmatpush.msra.mxu0 %v426
    %2057 = vmatpush.msra.mxu0 %v422
    %2058 = vmatpush.msra.mxu0 %v418
    %2059 = vmatmul.f32.gmra.mxu0 %v1997
    %v2060 = vpop.f32.mrf.mxu0
    %v2061 = vadd.f32 0.0, %v2060
    %2062 = vdwg.mxu0
    %2063 = vmatpush.msra.mxu0 %v479
    %2064 = vmatpush.msra.mxu0 %v475
    %2065 = vmatpush.msra.mxu0 %v471
    %2066 = vmatpush.msra.mxu0 %v467
    %2067 = vmatpush.msra.mxu0 %v463
    %2068 = vmatpush.msra.mxu0 %v459
    %2069 = vmatpush.msra.mxu0 %v455
    %2070 = vmatpush.msra.mxu0 %v451
    %2071 = vmatpush.msra.mxu0 %v447
    %2072 = vmatpush.msra.mxu0 %v443
    %2073 = vmatpush.msra.mxu0 %v439
    %2074 = vmatpush.msra.mxu0 %v435
    %2075 = vmatpush.msra.mxu0 %v431
    %2076 = vmatpush.msra.mxu0 %v427
    %2077 = vmatpush.msra.mxu0 %v423
    %2078 = vmatpush.msra.mxu0 %v419
    %2079 = vmatmul.f32.gmra.mxu0 %v1997
    %v2080 = vpop.f32.mrf.mxu0
    %v2081 = vadd.f32 0.0, %v2080
    %2082 = vdwg.mxu0
    %v2083 = vadd.f32 %v204, %v2021
    %v2084 = vadd.f32 %v269, %v2041
    %v2085 = vadd.f32 %v334, %v2061
    %v2086 = vadd.f32 %v399, %v2081
    %v2087 = vxor.u32 %v2083, 2147483648
    %v2088 = vmul.f32 %v2087, 1.442695
    %v2089 = vpow.pop %v2088
    %v2090 = vadd.f32 %v2089, 1.0
    %v2091 = vrcp.pop %v2090
    %v2092 = vmul.f32 %v2090, %v2091
    %v2093 = vsub.f32 1.0, %v2092
    %v2094 = vmul.f32 %v2091, %v2093
    %v2095 = vadd.f32 %v2091, %v2094
    %vm2096 = vweird.f32 %v2090
    %vm2097 = vweird.f32 %v2091
    %vm2098 = vmor %vm2096, %vm2097
    %v2099 = vsel %vm2098, %v2091, %v2095
    %v2100 = vand.u32 2147483647, %v2090
    %vm2101 = vcmp.eq.f32.partialorder %v2100, 8.507059e+37
    %v2102 = vand.u32 %v2090, 2147483648
    %v2103 = vor.u32 1.1754944e-38, %v2102
    %v2104 = vsel %vm2101, %v2103, %v2099
    %v2105 = vmul.f32 1.0, %v2104
    %v2106 = vxor.u32 %v2084, 2147483648
    %v2107 = vmul.f32 %v2106, 1.442695
    %v2108 = vpow.pop %v2107
    %v2109 = vadd.f32 %v2108, 1.0
    %v2110 = vrcp.pop %v2109
    %v2111 = vmul.f32 %v2109, %v2110
    %v2112 = vsub.f32 1.0, %v2111
    %v2113 = vmul.f32 %v2110, %v2112
    %v2114 = vadd.f32 %v2110, %v2113
    %vm2115 = vweird.f32 %v2109
    %vm2116 = vweird.f32 %v2110
    %vm2117 = vmor %vm2115, %vm2116
    %v2118 = vsel %vm2117, %v2110, %v2114
    %v2119 = vand.u32 2147483647, %v2109
    %vm2120 = vcmp.eq.f32.partialorder %v2119, 8.507059e+37
    %v2121 = vand.u32 %v2109, 2147483648
    %v2122 = vor.u32 1.1754944e-38, %v2121
    %v2123 = vsel %vm2120, %v2122, %v2118
    %v2124 = vmul.f32 1.0, %v2123
    %v2125 = vtanh.pop %v2085
    %v2126 = vxor.u32 %v2086, 2147483648
    %v2127 = vmul.f32 %v2126, 1.442695
    %v2128 = vpow.pop %v2127
    %v2129 = vadd.f32 %v2128, 1.0
    %v2130 = vrcp.pop %v2129
    %v2131 = vmul.f32 %v2129, %v2130
    %v2132 = vsub.f32 1.0, %v2131
    %v2133 = vmul.f32 %v2130, %v2132
    %v2134 = vadd.f32 %v2130, %v2133
    %vm2135 = vweird.f32 %v2129
    %vm2136 = vweird.f32 %v2130
    %vm2137 = vmor %vm2135, %vm2136
    %v2138 = vsel %vm2137, %v2130, %v2134
    %v2139 = vand.u32 2147483647, %v2129
    %vm2140 = vcmp.eq.f32.partialorder %v2139, 8.507059e+37
    %v2141 = vand.u32 %v2129, 2147483648
    %v2142 = vor.u32 1.1754944e-38, %v2141
    %v2143 = vsel %vm2140, %v2142, %v2138
    %v2144 = vmul.f32 1.0, %v2143
    %v2145 = vmul.f32 %v2124, %v1995
    %v2146 = vmul.f32 %v2105, %v2125
    %v2147 = vadd.f32 %v2145, %v2146
    %v2148 = vtanh.pop %v2147
    %v2149 = vmul.f32 %v2144, %v2148
    %2150 = vst [vmem:[%s6 + $0x50] sm:$0xff] %v2149
    %v2151 = vld [vmem:[%s5 + $0x50] sm:$0xff]
    %v2152 = vmul.f32 %v631, %v2149
    %v2153 = vadd.f32 %v2151, %v2152
    %2154 = vst [vmem:[%s7 + $0x50] sm:$0xff] %v2153
    %2155 = vmatpush.msra.mxu0 %v476
    %2156 = vmatpush.msra.mxu0 %v472
    %2157 = vmatpush.msra.mxu0 %v468
    %2158 = vmatpush.msra.mxu0 %v464
    %2159 = vmatpush.msra.mxu0 %v460
    %2160 = vmatpush.msra.mxu0 %v456
    %2161 = vmatpush.msra.mxu0 %v452
    %2162 = vmatpush.msra.mxu0 %v448
    %2163 = vmatpush.msra.mxu0 %v444
    %2164 = vmatpush.msra.mxu0 %v440
    %2165 = vmatpush.msra.mxu0 %v436
    %2166 = vmatpush.msra.mxu0 %v432
    %2167 = vmatpush.msra.mxu0 %v428
    %2168 = vmatpush.msra.mxu0 %v424
    %2169 = vmatpush.msra.mxu0 %v420
    %2170 = vmatpush.msra.mxu0 %v416
    %2171 = vmatmul.f32.gmra.mxu0 %v2149
    %v2172 = vpop.f32.mrf.mxu0
    %v2173 = vadd.f32 0.0, %v2172
    %2174 = vdwg.mxu0
    %2175 = vmatpush.msra.mxu0 %v477
    %2176 = vmatpush.msra.mxu0 %v473
    %2177 = vmatpush.msra.mxu0 %v469
    %2178 = vmatpush.msra.mxu0 %v465
    %2179 = vmatpush.msra.mxu0 %v461
    %2180 = vmatpush.msra.mxu0 %v457
    %2181 = vmatpush.msra.mxu0 %v453
    %2182 = vmatpush.msra.mxu0 %v449
    %2183 = vmatpush.msra.mxu0 %v445
    %2184 = vmatpush.msra.mxu0 %v441
    %2185 = vmatpush.msra.mxu0 %v437
    %2186 = vmatpush.msra.mxu0 %v433
    %2187 = vmatpush.msra.mxu0 %v429
    %2188 = vmatpush.msra.mxu0 %v425
    %2189 = vmatpush.msra.mxu0 %v421
    %2190 = vmatpush.msra.mxu0 %v417
    %2191 = vmatmul.f32.gmra.mxu0 %v2149
    %v2192 = vpop.f32.mrf.mxu0
    %v2193 = vadd.f32 0.0, %v2192
    %2194 = vdwg.mxu0
    %2195 = vmatpush.msra.mxu0 %v478
    %2196 = vmatpush.msra.mxu0 %v474
    %2197 = vmatpush.msra.mxu0 %v470
    %2198 = vmatpush.msra.mxu0 %v466
    %2199 = vmatpush.msra.mxu0 %v462
    %2200 = vmatpush.msra.mxu0 %v458
    %2201 = vmatpush.msra.mxu0 %v454
    %2202 = vmatpush.msra.mxu0 %v450
    %2203 = vmatpush.msra.mxu0 %v446
    %2204 = vmatpush.msra.mxu0 %v442
    %2205 = vmatpush.msra.mxu0 %v438
    %2206 = vmatpush.msra.mxu0 %v434
    %2207 = vmatpush.msra.mxu0 %v430
    %2208 = vmatpush.msra.mxu0 %v426
    %2209 = vmatpush.msra.mxu0 %v422
    %2210 = vmatpush.msra.mxu0 %v418
    %2211 = vmatmul.f32.gmra.mxu0 %v2149
    %v2212 = vpop.f32.mrf.mxu0
    %v2213 = vadd.f32 0.0, %v2212
    %2214 = vdwg.mxu0
    %2215 = vmatpush.msra.mxu0 %v479
    %2216 = vmatpush.msra.mxu0 %v475
    %2217 = vmatpush.msra.mxu0 %v471
    %2218 = vmatpush.msra.mxu0 %v467
    %2219 = vmatpush.msra.mxu0 %v463
    %2220 = vmatpush.msra.mxu0 %v459
    %2221 = vmatpush.msra.mxu0 %v455
    %2222 = vmatpush.msra.mxu0 %v451
    %2223 = vmatpush.msra.mxu0 %v447
    %2224 = vmatpush.msra.mxu0 %v443
    %2225 = vmatpush.msra.mxu0 %v439
    %2226 = vmatpush.msra.mxu0 %v435
    %2227 = vmatpush.msra.mxu0 %v431
    %2228 = vmatpush.msra.mxu0 %v427
    %2229 = vmatpush.msra.mxu0 %v423
    %2230 = vmatpush.msra.mxu0 %v419
    %2231 = vmatmul.f32.gmra.mxu0 %v2149
    %v2232 = vpop.f32.mrf.mxu0
    %v2233 = vadd.f32 0.0, %v2232
    %2234 = vdwg.mxu0
    %v2235 = vadd.f32 %v207, %v2173
    %v2236 = vadd.f32 %v272, %v2193
    %v2237 = vadd.f32 %v337, %v2213
    %v2238 = vadd.f32 %v402, %v2233
    %v2239 = vxor.u32 %v2235, 2147483648
    %v2240 = vmul.f32 %v2239, 1.442695
    %v2241 = vpow.pop %v2240
    %v2242 = vadd.f32 %v2241, 1.0
    %v2243 = vrcp.pop %v2242
    %v2244 = vmul.f32 %v2242, %v2243
    %v2245 = vsub.f32 1.0, %v2244
    %v2246 = vmul.f32 %v2243, %v2245
    %v2247 = vadd.f32 %v2243, %v2246
    %vm2248 = vweird.f32 %v2242
    %vm2249 = vweird.f32 %v2243
    %vm2250 = vmor %vm2248, %vm2249
    %v2251 = vsel %vm2250, %v2243, %v2247
    %v2252 = vand.u32 2147483647, %v2242
    %vm2253 = vcmp.eq.f32.partialorder %v2252, 8.507059e+37
    %v2254 = vand.u32 %v2242, 2147483648
    %v2255 = vor.u32 1.1754944e-38, %v2254
    %v2256 = vsel %vm2253, %v2255, %v2251
    %v2257 = vmul.f32 1.0, %v2256
    %v2258 = vxor.u32 %v2236, 2147483648
    %v2259 = vmul.f32 %v2258, 1.442695
    %v2260 = vpow.pop %v2259
    %v2261 = vadd.f32 %v2260, 1.0
    %v2262 = vrcp.pop %v2261
    %v2263 = vmul.f32 %v2261, %v2262
    %v2264 = vsub.f32 1.0, %v2263
    %v2265 = vmul.f32 %v2262, %v2264
    %v2266 = vadd.f32 %v2262, %v2265
    %vm2267 = vweird.f32 %v2261
    %vm2268 = vweird.f32 %v2262
    %vm2269 = vmor %vm2267, %vm2268
    %v2270 = vsel %vm2269, %v2262, %v2266
    %v2271 = vand.u32 2147483647, %v2261
    %vm2272 = vcmp.eq.f32.partialorder %v2271, 8.507059e+37
    %v2273 = vand.u32 %v2261, 2147483648
    %v2274 = vor.u32 1.1754944e-38, %v2273
    %v2275 = vsel %vm2272, %v2274, %v2270
    %v2276 = vmul.f32 1.0, %v2275
    %v2277 = vtanh.pop %v2237
    %v2278 = vxor.u32 %v2238, 2147483648
    %v2279 = vmul.f32 %v2278, 1.442695
    %v2280 = vpow.pop %v2279
    %v2281 = vadd.f32 %v2280, 1.0
    %v2282 = vrcp.pop %v2281
    %v2283 = vmul.f32 %v2281, %v2282
    %v2284 = vsub.f32 1.0, %v2283
    %v2285 = vmul.f32 %v2282, %v2284
    %v2286 = vadd.f32 %v2282, %v2285
    %vm2287 = vweird.f32 %v2281
    %vm2288 = vweird.f32 %v2282
    %vm2289 = vmor %vm2287, %vm2288
    %v2290 = vsel %vm2289, %v2282, %v2286
    %v2291 = vand.u32 2147483647, %v2281
    %vm2292 = vcmp.eq.f32.partialorder %v2291, 8.507059e+37
    %v2293 = vand.u32 %v2281, 2147483648
    %v2294 = vor.u32 1.1754944e-38, %v2293
    %v2295 = vsel %vm2292, %v2294, %v2290
    %v2296 = vmul.f32 1.0, %v2295
    %v2297 = vmul.f32 %v2276, %v2147
    %v2298 = vmul.f32 %v2257, %v2277
    %v2299 = vadd.f32 %v2297, %v2298
    %v2300 = vtanh.pop %v2299
    %v2301 = vmul.f32 %v2296, %v2300
    %2302 = vst [vmem:[%s6 + $0x58] sm:$0xff] %v2301
    %v2303 = vld [vmem:[%s5 + $0x58] sm:$0xff]
    %v2304 = vmul.f32 %v631, %v2301
    %v2305 = vadd.f32 %v2303, %v2304
    %2306 = vst [vmem:[%s7 + $0x58] sm:$0xff] %v2305
    %2307 = vmatpush.msra.mxu0 %v476
    %2308 = vmatpush.msra.mxu0 %v472
    %2309 = vmatpush.msra.mxu0 %v468
    %2310 = vmatpush.msra.mxu0 %v464
    %2311 = vmatpush.msra.mxu0 %v460
    %2312 = vmatpush.msra.mxu0 %v456
    %2313 = vmatpush.msra.mxu0 %v452
    %2314 = vmatpush.msra.mxu0 %v448
    %2315 = vmatpush.msra.mxu0 %v444
    %2316 = vmatpush.msra.mxu0 %v440
    %2317 = vmatpush.msra.mxu0 %v436
    %2318 = vmatpush.msra.mxu0 %v432
    %2319 = vmatpush.msra.mxu0 %v428
    %2320 = vmatpush.msra.mxu0 %v424
    %2321 = vmatpush.msra.mxu0 %v420
    %2322 = vmatpush.msra.mxu0 %v416
    %2323 = vmatmul.f32.gmra.mxu0 %v2301
    %v2324 = vpop.f32.mrf.mxu0
    %v2325 = vadd.f32 0.0, %v2324
    %2326 = vdwg.mxu0
    %2327 = vmatpush.msra.mxu0 %v477
    %2328 = vmatpush.msra.mxu0 %v473
    %2329 = vmatpush.msra.mxu0 %v469
    %2330 = vmatpush.msra.mxu0 %v465
    %2331 = vmatpush.msra.mxu0 %v461
    %2332 = vmatpush.msra.mxu0 %v457
    %2333 = vmatpush.msra.mxu0 %v453
    %2334 = vmatpush.msra.mxu0 %v449
    %2335 = vmatpush.msra.mxu0 %v445
    %2336 = vmatpush.msra.mxu0 %v441
    %2337 = vmatpush.msra.mxu0 %v437
    %2338 = vmatpush.msra.mxu0 %v433
    %2339 = vmatpush.msra.mxu0 %v429
    %2340 = vmatpush.msra.mxu0 %v425
    %2341 = vmatpush.msra.mxu0 %v421
    %2342 = vmatpush.msra.mxu0 %v417
    %2343 = vmatmul.f32.gmra.mxu0 %v2301
    %v2344 = vpop.f32.mrf.mxu0
    %v2345 = vadd.f32 0.0, %v2344
    %2346 = vdwg.mxu0
    %2347 = vmatpush.msra.mxu0 %v478
    %2348 = vmatpush.msra.mxu0 %v474
    %2349 = vmatpush.msra.mxu0 %v470
    %2350 = vmatpush.msra.mxu0 %v466
    %2351 = vmatpush.msra.mxu0 %v462
    %2352 = vmatpush.msra.mxu0 %v458
    %2353 = vmatpush.msra.mxu0 %v454
    %2354 = vmatpush.msra.mxu0 %v450
    %2355 = vmatpush.msra.mxu0 %v446
    %2356 = vmatpush.msra.mxu0 %v442
    %2357 = vmatpush.msra.mxu0 %v438
    %2358 = vmatpush.msra.mxu0 %v434
    %2359 = vmatpush.msra.mxu0 %v430
    %2360 = vmatpush.msra.mxu0 %v426
    %2361 = vmatpush.msra.mxu0 %v422
    %2362 = vmatpush.msra.mxu0 %v418
    %2363 = vmatmul.f32.gmra.mxu0 %v2301
    %v2364 = vpop.f32.mrf.mxu0
    %v2365 = vadd.f32 0.0, %v2364
    %2366 = vdwg.mxu0
    %2367 = vmatpush.msra.mxu0 %v479
    %2368 = vmatpush.msra.mxu0 %v475
    %2369 = vmatpush.msra.mxu0 %v471
    %2370 = vmatpush.msra.mxu0 %v467
    %2371 = vmatpush.msra.mxu0 %v463
    %2372 = vmatpush.msra.mxu0 %v459
    %2373 = vmatpush.msra.mxu0 %v455
    %2374 = vmatpush.msra.mxu0 %v451
    %2375 = vmatpush.msra.mxu0 %v447
    %2376 = vmatpush.msra.mxu0 %v443
    %2377 = vmatpush.msra.mxu0 %v439
    %2378 = vmatpush.msra.mxu0 %v435
    %2379 = vmatpush.msra.mxu0 %v431
    %2380 = vmatpush.msra.mxu0 %v427
    %2381 = vmatpush.msra.mxu0 %v423
    %2382 = vmatpush.msra.mxu0 %v419
    %2383 = vmatmul.f32.gmra.mxu0 %v2301
    %v2384 = vpop.f32.mrf.mxu0
    %v2385 = vadd.f32 0.0, %v2384
    %2386 = vdwg.mxu0
    %v2387 = vadd.f32 %v210, %v2325
    %v2388 = vadd.f32 %v275, %v2345
    %v2389 = vadd.f32 %v340, %v2365
    %v2390 = vadd.f32 %v405, %v2385
    %v2391 = vxor.u32 %v2387, 2147483648
    %v2392 = vmul.f32 %v2391, 1.442695
    %v2393 = vpow.pop %v2392
    %v2394 = vadd.f32 %v2393, 1.0
    %v2395 = vrcp.pop %v2394
    %v2396 = vmul.f32 %v2394, %v2395
    %v2397 = vsub.f32 1.0, %v2396
    %v2398 = vmul.f32 %v2395, %v2397
    %v2399 = vadd.f32 %v2395, %v2398
    %vm2400 = vweird.f32 %v2394
    %vm2401 = vweird.f32 %v2395
    %vm2402 = vmor %vm2400, %vm2401
    %v2403 = vsel %vm2402, %v2395, %v2399
    %v2404 = vand.u32 2147483647, %v2394
    %vm2405 = vcmp.eq.f32.partialorder %v2404, 8.507059e+37
    %v2406 = vand.u32 %v2394, 2147483648
    %v2407 = vor.u32 1.1754944e-38, %v2406
    %v2408 = vsel %vm2405, %v2407, %v2403
    %v2409 = vmul.f32 1.0, %v2408
    %v2410 = vxor.u32 %v2388, 2147483648
    %v2411 = vmul.f32 %v2410, 1.442695
    %v2412 = vpow.pop %v2411
    %v2413 = vadd.f32 %v2412, 1.0
    %v2414 = vrcp.pop %v2413
    %v2415 = vmul.f32 %v2413, %v2414
    %v2416 = vsub.f32 1.0, %v2415
    %v2417 = vmul.f32 %v2414, %v2416
    %v2418 = vadd.f32 %v2414, %v2417
    %vm2419 = vweird.f32 %v2413
    %vm2420 = vweird.f32 %v2414
    %vm2421 = vmor %vm2419, %vm2420
    %v2422 = vsel %vm2421, %v2414, %v2418
    %v2423 = vand.u32 2147483647, %v2413
    %vm2424 = vcmp.eq.f32.partialorder %v2423, 8.507059e+37
    %v2425 = vand.u32 %v2413, 2147483648
    %v2426 = vor.u32 1.1754944e-38, %v2425
    %v2427 = vsel %vm2424, %v2426, %v2422
    %v2428 = vmul.f32 1.0, %v2427
    %v2429 = vtanh.pop %v2389
    %v2430 = vxor.u32 %v2390, 2147483648
    %v2431 = vmul.f32 %v2430, 1.442695
    %v2432 = vpow.pop %v2431
    %v2433 = vadd.f32 %v2432, 1.0
    %v2434 = vrcp.pop %v2433
    %v2435 = vmul.f32 %v2433, %v2434
    %v2436 = vsub.f32 1.0, %v2435
    %v2437 = vmul.f32 %v2434, %v2436
    %v2438 = vadd.f32 %v2434, %v2437
    %vm2439 = vweird.f32 %v2433
    %vm2440 = vweird.f32 %v2434
    %vm2441 = vmor %vm2439, %vm2440
    %v2442 = vsel %vm2441, %v2434, %v2438
    %v2443 = vand.u32 2147483647, %v2433
    %vm2444 = vcmp.eq.f32.partialorder %v2443, 8.507059e+37
    %v2445 = vand.u32 %v2433, 2147483648
    %v2446 = vor.u32 1.1754944e-38, %v2445
    %v2447 = vsel %vm2444, %v2446, %v2442
    %v2448 = vmul.f32 1.0, %v2447
    %v2449 = vmul.f32 %v2428, %v2299
    %v2450 = vmul.f32 %v2409, %v2429
    %v2451 = vadd.f32 %v2449, %v2450
    %v2452 = vtanh.pop %v2451
    %v2453 = vmul.f32 %v2448, %v2452
    %2454 = vst [vmem:[%s6 + $0x60] sm:$0xff] %v2453
    %v2455 = vld [vmem:[%s5 + $0x60] sm:$0xff]
    %v2456 = vmul.f32 %v631, %v2453
    %v2457 = vadd.f32 %v2455, %v2456
    %2458 = vst [vmem:[%s7 + $0x60] sm:$0xff] %v2457
    %2459 = vmatpush.msra.mxu0 %v476
    %2460 = vmatpush.msra.mxu0 %v472
    %2461 = vmatpush.msra.mxu0 %v468
    %2462 = vmatpush.msra.mxu0 %v464
    %2463 = vmatpush.msra.mxu0 %v460
    %2464 = vmatpush.msra.mxu0 %v456
    %2465 = vmatpush.msra.mxu0 %v452
    %2466 = vmatpush.msra.mxu0 %v448
    %2467 = vmatpush.msra.mxu0 %v444
    %2468 = vmatpush.msra.mxu0 %v440
    %2469 = vmatpush.msra.mxu0 %v436
    %2470 = vmatpush.msra.mxu0 %v432
    %2471 = vmatpush.msra.mxu0 %v428
    %2472 = vmatpush.msra.mxu0 %v424
    %2473 = vmatpush.msra.mxu0 %v420
    %2474 = vmatpush.msra.mxu0 %v416
    %2475 = vmatmul.f32.gmra.mxu0 %v2453
    %v2476 = vpop.f32.mrf.mxu0
    %v2477 = vadd.f32 0.0, %v2476
    %2478 = vdwg.mxu0
    %2479 = vmatpush.msra.mxu0 %v477
    %2480 = vmatpush.msra.mxu0 %v473
    %2481 = vmatpush.msra.mxu0 %v469
    %2482 = vmatpush.msra.mxu0 %v465
    %2483 = vmatpush.msra.mxu0 %v461
    %2484 = vmatpush.msra.mxu0 %v457
    %2485 = vmatpush.msra.mxu0 %v453
    %2486 = vmatpush.msra.mxu0 %v449
    %2487 = vmatpush.msra.mxu0 %v445
    %2488 = vmatpush.msra.mxu0 %v441
    %2489 = vmatpush.msra.mxu0 %v437
    %2490 = vmatpush.msra.mxu0 %v433
    %2491 = vmatpush.msra.mxu0 %v429
    %2492 = vmatpush.msra.mxu0 %v425
    %2493 = vmatpush.msra.mxu0 %v421
    %2494 = vmatpush.msra.mxu0 %v417
    %2495 = vmatmul.f32.gmra.mxu0 %v2453
    %v2496 = vpop.f32.mrf.mxu0
    %v2497 = vadd.f32 0.0, %v2496
    %2498 = vdwg.mxu0
    %2499 = vmatpush.msra.mxu0 %v478
    %2500 = vmatpush.msra.mxu0 %v474
    %2501 = vmatpush.msra.mxu0 %v470
    %2502 = vmatpush.msra.mxu0 %v466
    %2503 = vmatpush.msra.mxu0 %v462
    %2504 = vmatpush.msra.mxu0 %v458
    %2505 = vmatpush.msra.mxu0 %v454
    %2506 = vmatpush.msra.mxu0 %v450
    %2507 = vmatpush.msra.mxu0 %v446
    %2508 = vmatpush.msra.mxu0 %v442
    %2509 = vmatpush.msra.mxu0 %v438
    %2510 = vmatpush.msra.mxu0 %v434
    %2511 = vmatpush.msra.mxu0 %v430
    %2512 = vmatpush.msra.mxu0 %v426
    %2513 = vmatpush.msra.mxu0 %v422
    %2514 = vmatpush.msra.mxu0 %v418
    %2515 = vmatmul.f32.gmra.mxu0 %v2453
    %v2516 = vpop.f32.mrf.mxu0
    %v2517 = vadd.f32 0.0, %v2516
    %2518 = vdwg.mxu0
    %2519 = vmatpush.msra.mxu0 %v479
    %2520 = vmatpush.msra.mxu0 %v475
    %2521 = vmatpush.msra.mxu0 %v471
    %2522 = vmatpush.msra.mxu0 %v467
    %2523 = vmatpush.msra.mxu0 %v463
    %2524 = vmatpush.msra.mxu0 %v459
    %2525 = vmatpush.msra.mxu0 %v455
    %2526 = vmatpush.msra.mxu0 %v451
    %2527 = vmatpush.msra.mxu0 %v447
    %2528 = vmatpush.msra.mxu0 %v443
    %2529 = vmatpush.msra.mxu0 %v439
    %2530 = vmatpush.msra.mxu0 %v435
    %2531 = vmatpush.msra.mxu0 %v431
    %2532 = vmatpush.msra.mxu0 %v427
    %2533 = vmatpush.msra.mxu0 %v423
    %2534 = vmatpush.msra.mxu0 %v419
    %2535 = vmatmul.f32.gmra.mxu0 %v2453
    %v2536 = vpop.f32.mrf.mxu0
    %v2537 = vadd.f32 0.0, %v2536
    %2538 = vdwg.mxu0
    %v2539 = vadd.f32 %v213, %v2477
    %v2540 = vadd.f32 %v278, %v2497
    %v2541 = vadd.f32 %v343, %v2517
    %v2542 = vadd.f32 %v408, %v2537
    %v2543 = vxor.u32 %v2539, 2147483648
    %v2544 = vmul.f32 %v2543, 1.442695
    %v2545 = vpow.pop %v2544
    %v2546 = vadd.f32 %v2545, 1.0
    %v2547 = vrcp.pop %v2546
    %v2548 = vmul.f32 %v2546, %v2547
    %v2549 = vsub.f32 1.0, %v2548
    %v2550 = vmul.f32 %v2547, %v2549
    %v2551 = vadd.f32 %v2547, %v2550
    %vm2552 = vweird.f32 %v2546
    %vm2553 = vweird.f32 %v2547
    %vm2554 = vmor %vm2552, %vm2553
    %v2555 = vsel %vm2554, %v2547, %v2551
    %v2556 = vand.u32 2147483647, %v2546
    %vm2557 = vcmp.eq.f32.partialorder %v2556, 8.507059e+37
    %v2558 = vand.u32 %v2546, 2147483648
    %v2559 = vor.u32 1.1754944e-38, %v2558
    %v2560 = vsel %vm2557, %v2559, %v2555
    %v2561 = vmul.f32 1.0, %v2560
    %v2562 = vxor.u32 %v2540, 2147483648
    %v2563 = vmul.f32 %v2562, 1.442695
    %v2564 = vpow.pop %v2563
    %v2565 = vadd.f32 %v2564, 1.0
    %v2566 = vrcp.pop %v2565
    %v2567 = vmul.f32 %v2565, %v2566
    %v2568 = vsub.f32 1.0, %v2567
    %v2569 = vmul.f32 %v2566, %v2568
    %v2570 = vadd.f32 %v2566, %v2569
    %vm2571 = vweird.f32 %v2565
    %vm2572 = vweird.f32 %v2566
    %vm2573 = vmor %vm2571, %vm2572
    %v2574 = vsel %vm2573, %v2566, %v2570
    %v2575 = vand.u32 2147483647, %v2565
    %vm2576 = vcmp.eq.f32.partialorder %v2575, 8.507059e+37
    %v2577 = vand.u32 %v2565, 2147483648
    %v2578 = vor.u32 1.1754944e-38, %v2577
    %v2579 = vsel %vm2576, %v2578, %v2574
    %v2580 = vmul.f32 1.0, %v2579
    %v2581 = vtanh.pop %v2541
    %v2582 = vxor.u32 %v2542, 2147483648
    %v2583 = vmul.f32 %v2582, 1.442695
    %v2584 = vpow.pop %v2583
    %v2585 = vadd.f32 %v2584, 1.0
    %v2586 = vrcp.pop %v2585
    %v2587 = vmul.f32 %v2585, %v2586
    %v2588 = vsub.f32 1.0, %v2587
    %v2589 = vmul.f32 %v2586, %v2588
    %v2590 = vadd.f32 %v2586, %v2589
    %vm2591 = vweird.f32 %v2585
    %vm2592 = vweird.f32 %v2586
    %vm2593 = vmor %vm2591, %vm2592
    %v2594 = vsel %vm2593, %v2586, %v2590
    %v2595 = vand.u32 2147483647, %v2585
    %vm2596 = vcmp.eq.f32.partialorder %v2595, 8.507059e+37
    %v2597 = vand.u32 %v2585, 2147483648
    %v2598 = vor.u32 1.1754944e-38, %v2597
    %v2599 = vsel %vm2596, %v2598, %v2594
    %v2600 = vmul.f32 1.0, %v2599
    %v2601 = vmul.f32 %v2580, %v2451
    %v2602 = vmul.f32 %v2561, %v2581
    %v2603 = vadd.f32 %v2601, %v2602
    %v2604 = vtanh.pop %v2603
    %v2605 = vmul.f32 %v2600, %v2604
    %2606 = vst [vmem:[%s6 + $0x68] sm:$0xff] %v2605
    %v2607 = vld [vmem:[%s5 + $0x68] sm:$0xff]
    %v2608 = vmul.f32 %v631, %v2605
    %v2609 = vadd.f32 %v2607, %v2608
    %2610 = vst [vmem:[%s7 + $0x68] sm:$0xff] %v2609
    %2611 = vmatpush.msra.mxu0 %v476
    %2612 = vmatpush.msra.mxu0 %v472
    %2613 = vmatpush.msra.mxu0 %v468
    %2614 = vmatpush.msra.mxu0 %v464
    %2615 = vmatpush.msra.mxu0 %v460
    %2616 = vmatpush.msra.mxu0 %v456
    %2617 = vmatpush.msra.mxu0 %v452
    %2618 = vmatpush.msra.mxu0 %v448
    %2619 = vmatpush.msra.mxu0 %v444
    %2620 = vmatpush.msra.mxu0 %v440
    %2621 = vmatpush.msra.mxu0 %v436
    %2622 = vmatpush.msra.mxu0 %v432
    %2623 = vmatpush.msra.mxu0 %v428
    %2624 = vmatpush.msra.mxu0 %v424
    %2625 = vmatpush.msra.mxu0 %v420
    %2626 = vmatpush.msra.mxu0 %v416
    %2627 = vmatmul.f32.gmra.mxu0 %v2605
    %v2628 = vpop.f32.mrf.mxu0
    %v2629 = vadd.f32 0.0, %v2628
    %2630 = vdwg.mxu0
    %2631 = vmatpush.msra.mxu0 %v477
    %2632 = vmatpush.msra.mxu0 %v473
    %2633 = vmatpush.msra.mxu0 %v469
    %2634 = vmatpush.msra.mxu0 %v465
    %2635 = vmatpush.msra.mxu0 %v461
    %2636 = vmatpush.msra.mxu0 %v457
    %2637 = vmatpush.msra.mxu0 %v453
    %2638 = vmatpush.msra.mxu0 %v449
    %2639 = vmatpush.msra.mxu0 %v445
    %2640 = vmatpush.msra.mxu0 %v441
    %2641 = vmatpush.msra.mxu0 %v437
    %2642 = vmatpush.msra.mxu0 %v433
    %2643 = vmatpush.msra.mxu0 %v429
    %2644 = vmatpush.msra.mxu0 %v425
    %2645 = vmatpush.msra.mxu0 %v421
    %2646 = vmatpush.msra.mxu0 %v417
    %2647 = vmatmul.f32.gmra.mxu0 %v2605
    %v2648 = vpop.f32.mrf.mxu0
    %v2649 = vadd.f32 0.0, %v2648
    %2650 = vdwg.mxu0
    %2651 = vmatpush.msra.mxu0 %v478
    %2652 = vmatpush.msra.mxu0 %v474
    %2653 = vmatpush.msra.mxu0 %v470
    %2654 = vmatpush.msra.mxu0 %v466
    %2655 = vmatpush.msra.mxu0 %v462
    %2656 = vmatpush.msra.mxu0 %v458
    %2657 = vmatpush.msra.mxu0 %v454
    %2658 = vmatpush.msra.mxu0 %v450
    %2659 = vmatpush.msra.mxu0 %v446
    %2660 = vmatpush.msra.mxu0 %v442
    %2661 = vmatpush.msra.mxu0 %v438
    %2662 = vmatpush.msra.mxu0 %v434
    %2663 = vmatpush.msra.mxu0 %v430
    %2664 = vmatpush.msra.mxu0 %v426
    %2665 = vmatpush.msra.mxu0 %v422
    %2666 = vmatpush.msra.mxu0 %v418
    %2667 = vmatmul.f32.gmra.mxu0 %v2605
    %v2668 = vpop.f32.mrf.mxu0
    %v2669 = vadd.f32 0.0, %v2668
    %2670 = vdwg.mxu0
    %2671 = vmatpush.msra.mxu0 %v479
    %2672 = vmatpush.msra.mxu0 %v475
    %2673 = vmatpush.msra.mxu0 %v471
    %2674 = vmatpush.msra.mxu0 %v467
    %2675 = vmatpush.msra.mxu0 %v463
    %2676 = vmatpush.msra.mxu0 %v459
    %2677 = vmatpush.msra.mxu0 %v455
    %2678 = vmatpush.msra.mxu0 %v451
    %2679 = vmatpush.msra.mxu0 %v447
    %2680 = vmatpush.msra.mxu0 %v443
    %2681 = vmatpush.msra.mxu0 %v439
    %2682 = vmatpush.msra.mxu0 %v435
    %2683 = vmatpush.msra.mxu0 %v431
    %2684 = vmatpush.msra.mxu0 %v427
    %2685 = vmatpush.msra.mxu0 %v423
    %2686 = vmatpush.msra.mxu0 %v419
    %2687 = vmatmul.f32.gmra.mxu0 %v2605
    %v2688 = vpop.f32.mrf.mxu0
    %v2689 = vadd.f32 0.0, %v2688
    %2690 = vdwg.mxu0
    %v2691 = vadd.f32 %v216, %v2629
    %v2692 = vadd.f32 %v281, %v2649
    %v2693 = vadd.f32 %v346, %v2669
    %v2694 = vadd.f32 %v411, %v2689
    %v2695 = vxor.u32 %v2691, 2147483648
    %v2696 = vmul.f32 %v2695, 1.442695
    %v2697 = vpow.pop %v2696
    %v2698 = vadd.f32 %v2697, 1.0
    %v2699 = vrcp.pop %v2698
    %v2700 = vmul.f32 %v2698, %v2699
    %v2701 = vsub.f32 1.0, %v2700
    %v2702 = vmul.f32 %v2699, %v2701
    %v2703 = vadd.f32 %v2699, %v2702
    %vm2704 = vweird.f32 %v2698
    %vm2705 = vweird.f32 %v2699
    %vm2706 = vmor %vm2704, %vm2705
    %v2707 = vsel %vm2706, %v2699, %v2703
    %v2708 = vand.u32 2147483647, %v2698
    %vm2709 = vcmp.eq.f32.partialorder %v2708, 8.507059e+37
    %v2710 = vand.u32 %v2698, 2147483648
    %v2711 = vor.u32 1.1754944e-38, %v2710
    %v2712 = vsel %vm2709, %v2711, %v2707
    %v2713 = vmul.f32 1.0, %v2712
    %v2714 = vxor.u32 %v2692, 2147483648
    %v2715 = vmul.f32 %v2714, 1.442695
    %v2716 = vpow.pop %v2715
    %v2717 = vadd.f32 %v2716, 1.0
    %v2718 = vrcp.pop %v2717
    %v2719 = vmul.f32 %v2717, %v2718
    %v2720 = vsub.f32 1.0, %v2719
    %v2721 = vmul.f32 %v2718, %v2720
    %v2722 = vadd.f32 %v2718, %v2721
    %vm2723 = vweird.f32 %v2717
    %vm2724 = vweird.f32 %v2718
    %vm2725 = vmor %vm2723, %vm2724
    %v2726 = vsel %vm2725, %v2718, %v2722
    %v2727 = vand.u32 2147483647, %v2717
    %vm2728 = vcmp.eq.f32.partialorder %v2727, 8.507059e+37
    %v2729 = vand.u32 %v2717, 2147483648
    %v2730 = vor.u32 1.1754944e-38, %v2729
    %v2731 = vsel %vm2728, %v2730, %v2726
    %v2732 = vmul.f32 1.0, %v2731
    %v2733 = vtanh.pop %v2693
    %v2734 = vxor.u32 %v2694, 2147483648
    %v2735 = vmul.f32 %v2734, 1.442695
    %v2736 = vpow.pop %v2735
    %v2737 = vadd.f32 %v2736, 1.0
    %v2738 = vrcp.pop %v2737
    %v2739 = vmul.f32 %v2737, %v2738
    %v2740 = vsub.f32 1.0, %v2739
    %v2741 = vmul.f32 %v2738, %v2740
    %v2742 = vadd.f32 %v2738, %v2741
    %vm2743 = vweird.f32 %v2737
    %vm2744 = vweird.f32 %v2738
    %vm2745 = vmor %vm2743, %vm2744
    %v2746 = vsel %vm2745, %v2738, %v2742
    %v2747 = vand.u32 2147483647, %v2737
    %vm2748 = vcmp.eq.f32.partialorder %v2747, 8.507059e+37
    %v2749 = vand.u32 %v2737, 2147483648
    %v2750 = vor.u32 1.1754944e-38, %v2749
    %v2751 = vsel %vm2748, %v2750, %v2746
    %v2752 = vmul.f32 1.0, %v2751
    %v2753 = vmul.f32 %v2732, %v2603
    %v2754 = vmul.f32 %v2713, %v2733
    %v2755 = vadd.f32 %v2753, %v2754
    %v2756 = vtanh.pop %v2755
    %v2757 = vmul.f32 %v2752, %v2756
    %2758 = vst [vmem:[%s6 + $0x70] sm:$0xff] %v2757
    %v2759 = vld [vmem:[%s5 + $0x70] sm:$0xff]
    %v2760 = vmul.f32 %v631, %v2757
    %v2761 = vadd.f32 %v2759, %v2760
    %2762 = vst [vmem:[%s7 + $0x70] sm:$0xff] %v2761
    %2763 = vmatpush.msra.mxu0 %v476
    %2764 = vmatpush.msra.mxu0 %v472
    %2765 = vmatpush.msra.mxu0 %v468
    %2766 = vmatpush.msra.mxu0 %v464
    %2767 = vmatpush.msra.mxu0 %v460
    %2768 = vmatpush.msra.mxu0 %v456
    %2769 = vmatpush.msra.mxu0 %v452
    %2770 = vmatpush.msra.mxu0 %v448
    %2771 = vmatpush.msra.mxu0 %v444
    %2772 = vmatpush.msra.mxu0 %v440
    %2773 = vmatpush.msra.mxu0 %v436
    %2774 = vmatpush.msra.mxu0 %v432
    %2775 = vmatpush.msra.mxu0 %v428
    %2776 = vmatpush.msra.mxu0 %v424
    %2777 = vmatpush.msra.mxu0 %v420
    %2778 = vmatpush.msra.mxu0 %v416
    %2779 = vmatmul.f32.gmra.mxu0 %v2757
    %v2780 = vpop.f32.mrf.mxu0
    %v2781 = vadd.f32 0.0, %v2780
    %2782 = vdwg.mxu0
    %2783 = vmatpush.msra.mxu0 %v477
    %2784 = vmatpush.msra.mxu0 %v473
    %2785 = vmatpush.msra.mxu0 %v469
    %2786 = vmatpush.msra.mxu0 %v465
    %2787 = vmatpush.msra.mxu0 %v461
    %2788 = vmatpush.msra.mxu0 %v457
    %2789 = vmatpush.msra.mxu0 %v453
    %2790 = vmatpush.msra.mxu0 %v449
    %2791 = vmatpush.msra.mxu0 %v445
    %2792 = vmatpush.msra.mxu0 %v441
    %2793 = vmatpush.msra.mxu0 %v437
    %2794 = vmatpush.msra.mxu0 %v433
    %2795 = vmatpush.msra.mxu0 %v429
    %2796 = vmatpush.msra.mxu0 %v425
    %2797 = vmatpush.msra.mxu0 %v421
    %2798 = vmatpush.msra.mxu0 %v417
    %2799 = vmatmul.f32.gmra.mxu0 %v2757
    %v2800 = vpop.f32.mrf.mxu0
    %v2801 = vadd.f32 0.0, %v2800
    %2802 = vdwg.mxu0
    %2803 = vmatpush.msra.mxu0 %v478
    %2804 = vmatpush.msra.mxu0 %v474
    %2805 = vmatpush.msra.mxu0 %v470
    %2806 = vmatpush.msra.mxu0 %v466
    %2807 = vmatpush.msra.mxu0 %v462
    %2808 = vmatpush.msra.mxu0 %v458
    %2809 = vmatpush.msra.mxu0 %v454
    %2810 = vmatpush.msra.mxu0 %v450
    %2811 = vmatpush.msra.mxu0 %v446
    %2812 = vmatpush.msra.mxu0 %v442
    %2813 = vmatpush.msra.mxu0 %v438
    %2814 = vmatpush.msra.mxu0 %v434
    %2815 = vmatpush.msra.mxu0 %v430
    %2816 = vmatpush.msra.mxu0 %v426
    %2817 = vmatpush.msra.mxu0 %v422
    %2818 = vmatpush.msra.mxu0 %v418
    %2819 = vmatmul.f32.gmra.mxu0 %v2757
    %v2820 = vpop.f32.mrf.mxu0
    %v2821 = vadd.f32 0.0, %v2820
    %2822 = vdwg.mxu0
    %2823 = vmatpush.msra.mxu0 %v479
    %2824 = vmatpush.msra.mxu0 %v475
    %2825 = vmatpush.msra.mxu0 %v471
    %2826 = vmatpush.msra.mxu0 %v467
    %2827 = vmatpush.msra.mxu0 %v463
    %2828 = vmatpush.msra.mxu0 %v459
    %2829 = vmatpush.msra.mxu0 %v455
    %2830 = vmatpush.msra.mxu0 %v451
    %2831 = vmatpush.msra.mxu0 %v447
    %2832 = vmatpush.msra.mxu0 %v443
    %2833 = vmatpush.msra.mxu0 %v439
    %2834 = vmatpush.msra.mxu0 %v435
    %2835 = vmatpush.msra.mxu0 %v431
    %2836 = vmatpush.msra.mxu0 %v427
    %2837 = vmatpush.msra.mxu0 %v423
    %2838 = vmatpush.msra.mxu0 %v419
    %2839 = vmatmul.f32.gmra.mxu0 %v2757
    %v2840 = vpop.f32.mrf.mxu0
    %v2841 = vadd.f32 0.0, %v2840
    %2842 = vdwg.mxu0
    %v2843 = vadd.f32 %v219, %v2781
    %v2844 = vadd.f32 %v284, %v2801
    %v2845 = vadd.f32 %v349, %v2821
    %v2846 = vadd.f32 %v414, %v2841
    %v2847 = vxor.u32 %v2843, 2147483648
    %v2848 = vmul.f32 %v2847, 1.442695
    %v2849 = vpow.pop %v2848
    %v2850 = vadd.f32 %v2849, 1.0
    %v2851 = vrcp.pop %v2850
    %v2852 = vmul.f32 %v2850, %v2851
    %v2853 = vsub.f32 1.0, %v2852
    %v2854 = vmul.f32 %v2851, %v2853
    %v2855 = vadd.f32 %v2851, %v2854
    %vm2856 = vweird.f32 %v2850
    %vm2857 = vweird.f32 %v2851
    %vm2858 = vmor %vm2856, %vm2857
    %v2859 = vsel %vm2858, %v2851, %v2855
    %v2860 = vand.u32 2147483647, %v2850
    %vm2861 = vcmp.eq.f32.partialorder %v2860, 8.507059e+37
    %v2862 = vand.u32 %v2850, 2147483648
    %v2863 = vor.u32 1.1754944e-38, %v2862
    %v2864 = vsel %vm2861, %v2863, %v2859
    %v2865 = vmul.f32 1.0, %v2864
    %v2866 = vxor.u32 %v2844, 2147483648
    %v2867 = vmul.f32 %v2866, 1.442695
    %v2868 = vpow.pop %v2867
    %v2869 = vadd.f32 %v2868, 1.0
    %v2870 = vrcp.pop %v2869
    %v2871 = vmul.f32 %v2869, %v2870
    %v2872 = vsub.f32 1.0, %v2871
    %v2873 = vmul.f32 %v2870, %v2872
    %v2874 = vadd.f32 %v2870, %v2873
    %vm2875 = vweird.f32 %v2869
    %vm2876 = vweird.f32 %v2870
    %vm2877 = vmor %vm2875, %vm2876
    %v2878 = vsel %vm2877, %v2870, %v2874
    %v2879 = vand.u32 2147483647, %v2869
    %vm2880 = vcmp.eq.f32.partialorder %v2879, 8.507059e+37
    %v2881 = vand.u32 %v2869, 2147483648
    %v2882 = vor.u32 1.1754944e-38, %v2881
    %v2883 = vsel %vm2880, %v2882, %v2878
    %v2884 = vmul.f32 1.0, %v2883
    %v2885 = vtanh.pop %v2845
    %v2886 = vxor.u32 %v2846, 2147483648
    %v2887 = vmul.f32 %v2886, 1.442695
    %v2888 = vpow.pop %v2887
    %v2889 = vadd.f32 %v2888, 1.0
    %v2890 = vrcp.pop %v2889
    %v2891 = vmul.f32 %v2889, %v2890
    %v2892 = vsub.f32 1.0, %v2891
    %v2893 = vmul.f32 %v2890, %v2892
    %v2894 = vadd.f32 %v2890, %v2893
    %vm2895 = vweird.f32 %v2889
    %vm2896 = vweird.f32 %v2890
    %vm2897 = vmor %vm2895, %vm2896
    %v2898 = vsel %vm2897, %v2890, %v2894
    %v2899 = vand.u32 2147483647, %v2889
    %vm2900 = vcmp.eq.f32.partialorder %v2899, 8.507059e+37
    %v2901 = vand.u32 %v2889, 2147483648
    %v2902 = vor.u32 1.1754944e-38, %v2901
    %v2903 = vsel %vm2900, %v2902, %v2898
    %v2904 = vmul.f32 1.0, %v2903
    %v2905 = vmul.f32 %v2884, %v2755
    %v2906 = vmul.f32 %v2865, %v2885
    %v2907 = vadd.f32 %v2905, %v2906
    %v2908 = vtanh.pop %v2907
    %v2909 = vmul.f32 %v2904, %v2908
    %2910 = vst [vmem:[%s6 + $0x78] sm:$0xff] %v2909
    %v2911 = vld [vmem:[%s5 + $0x78] sm:$0xff]
    %v2912 = vmul.f32 %v631, %v2909
    %v2913 = vadd.f32 %v2911, %v2912
    %2914 = vst [vmem:[%s7 + $0x78] sm:$0xff] %v2913
    %2915 = vst [vmem:[#allocation2] sm:$0xff] %v2909
    %2916 = vst [vmem:[#allocation3] sm:$0xff] %v2907
    // Predicated region
    $region34: #{elmo_lm_forward.2} parent=1 // pred_check
      _
    $region35: #{elmo_lm_forward.2} parent=1 // pred_check_branch
      %2918 = sbr.rel (0) target = $region37
    $region36: #{elmo_lm_forward.2} parent=1 // pred_region
      _
    $region37: #{elmo_lm_forward.2} parent=1 // pred_fallthru
      _
    // Predicated region
    $region38: #{elmo_lm_forward.2} parent=1 // pred_check
      _
    $region39: #{elmo_lm_forward.2} parent=1 // pred_check_branch
      %2920 = sbr.rel (0) target = $region41
    $region40: #{elmo_lm_forward.2} parent=1 // pred_region
      _
    $region41: #{elmo_lm_forward.2} parent=1 // pred_fallthru
      _
    // Predicated region
    $region42: #{elmo_lm_forward.2} parent=1 // pred_check
      _
    $region43: #{elmo_lm_forward.2} parent=1 // pred_check_branch
      %2922 = sbr.rel (0) target = $region45
    $region44: #{elmo_lm_forward.2} parent=1 // pred_region
      _
    $region45: #{elmo_lm_forward.2} parent=1 // pred_fallthru
      _
    // Predicated region
    $region46: #{elmo_lm_forward.2} parent=1 // pred_check
      _
    $region47: #{elmo_lm_forward.2} parent=1 // pred_check_branch
      %2924 = sbr.rel (0) target = $region49
    $region48: #{elmo_lm_forward.2} parent=1 // pred_region
      _
    $region49: #{elmo_lm_forward.2} parent=1 // pred_fallthru
      _
    %2925 = vsyncpa [#allocation6], 1

</llo_original>
